<compile_context>
chip_gen: v5e
topology: v5e:2x2
jax: 0.10.0
libtpu: 0.0.40
codegen_flags: <defaults>
</compile_context>

<pallas_src>
import functools

import jax
import jax.numpy as jnp
from jax.experimental import pallas as pl
from jax.experimental.pallas import tpu as pltpu

_VMEM_LIMIT_BYTES = 32 * 1024 * 1024  # > v5e's 16 MiB scoped default, < v7x physical


# -----------------------------------------------------------------------------
# Pallas kernels
# -----------------------------------------------------------------------------
def _conv_accum(y_ref, w_ref, ho, wo):
    """4x4 / stride-2 conv of one padded image in space-to-depth form.

    y_ref: (rows_in, 4*Cin) bf16  -- flattened s2d rows (+ a little zero pad).
    w_ref: (4, 4*Cin, Cout) bf16  -- weight regrouped per 2x2 offset a*2+b.
    Returns f32 (ho*(wo+1), Cout); every (wo+1)-th row is junk (dropped later).
    The im2col "patches" are realised purely in VMEM by shifting the f32
    matmul result windows -- nothing extra ever touches HBM.
    """
    wp1 = wo + 1
    rows_out = ho * wp1
    yv = y_ref[...]                                   # single aligned bf16 load
    acc = None
    for a in (0, 1):
        for b in (0, 1):
            off = a * wp1 + b
            part = jnp.dot(yv, w_ref[2 * a + b],
                           preferred_element_type=jnp.float32)
            part = part[off:off + rows_out, :]        # shifted f32 window
            acc = part if acc is None else acc + part
    return acc


def _conv_leaky_kernel(y_ref, w_ref, o_ref, *, ho, wo):
    """Conv + fused LeakyReLU(0.2) (layer 1, no BatchNorm)."""
    acc = _conv_accum(y_ref, w_ref, ho, wo)
    o_ref[...] = jnp.where(acc >= 0, acc, 0.2 * acc).astype(o_ref.dtype)


def _conv_stats_kernel(y_ref, w_ref, mask_ref, o_ref, sum_ref, sq_ref, *, ho, wo):
    """Conv + fused per-image BatchNorm partial sums (valid rows only)."""
    acc = _conv_accum(y_ref, w_ref, ho, wo)
    vacc = acc * mask_ref[...]                        # zero the junk rows (mask is 0/1)
    sum_ref[...] = jnp.sum(vacc, axis=0, keepdims=True)
    sq_ref[...] = jnp.sum(vacc * vacc, axis=0, keepdims=True)
    o_ref[...] = acc.astype(o_ref.dtype)


def _bn_leaky_kernel(x_ref, scale_ref, shift_ref, o_ref):
    """BatchNorm folded to scale/shift + LeakyReLU(0.2), streaming elementwise."""
    y = x_ref[...] * scale_ref[...] + shift_ref[...]
    o_ref[...] = jnp.where(y >= 0, y, 0.2 * y).astype(o_ref.dtype)


def _head_kernel(x_ref, w_ref, o_ref):
    """Final 4x4/valid conv (Cout=1) as one lane-batched matvec + sigmoid."""
    y = jnp.dot(x_ref[...], w_ref[...], preferred_element_type=jnp.float32)
    o_ref[...] = 0.5 * (jnp.tanh(0.5 * y) + 1.0)      # numerically-stable sigmoid


# -----------------------------------------------------------------------------
# Pallas wrappers
# -----------------------------------------------------------------------------
def conv_s2d(y, w, ho, wo, *, mask=None, out_dtype=jnp.float32):
    """Per-image conv.  mask != None additionally emits BN partial statistics."""
    n, rows_in, cin4 = y.shape
    cout = w.shape[-1]
    rows_out = ho * (wo + 1)
    assert rows_in >= rows_out + wo + 2  # room for the shifted windows

    conv_shape = jax.ShapeDtypeStruct((n, rows_out, cout), out_dtype)
    conv_spec = pl.BlockSpec((None, rows_out, cout), lambda i: (i, 0, 0))
    in_specs = [
        pl.BlockSpec((None, rows_in, cin4), lambda i: (i, 0, 0)),
        pl.BlockSpec((4, cin4, cout), lambda i: (0, 0, 0)),   # weight stays VMEM-resident
    ]
    if mask is None:
        kernel = functools.partial(_conv_leaky_kernel, ho=ho, wo=wo)
        out_shape, out_specs = conv_shape, conv_spec
        args = (y, w)
    else:
        kernel = functools.partial(_conv_stats_kernel, ho=ho, wo=wo)
        in_specs.append(pl.BlockSpec((rows_out, 1), lambda i: (0, 0)))
        stat_shape = jax.ShapeDtypeStruct((n, 1, cout), jnp.float32)
        stat_spec = pl.BlockSpec((None, 1, cout), lambda i: (i, 0, 0))
        out_shape = (conv_shape, stat_shape, stat_shape)
        out_specs = (conv_spec, stat_spec, stat_spec)
        args = (y, w, mask)

    return pl.pallas_call(
        kernel,
        out_shape=out_shape,
        grid=(n,),
        in_specs=in_specs,
        out_specs=out_specs,
        compiler_params=pltpu.CompilerParams(
            dimension_semantics=("parallel",),
            vmem_limit_bytes=_VMEM_LIMIT_BYTES),
    )(*args)


def bn_leaky(x, scale, shift):
    """Apply folded BatchNorm scale/shift + LeakyReLU; bf16 output for the next conv."""
    n, r, c = x.shape
    return pl.pallas_call(
        _bn_leaky_kernel,
        out_shape=jax.ShapeDtypeStruct((n, r, c), jnp.bfloat16),
        grid=(n,),
        in_specs=[
            pl.BlockSpec((None, r, c), lambda i: (i, 0, 0)),
            pl.BlockSpec((1, c), lambda i: (0, 0)),
            pl.BlockSpec((1, c), lambda i: (0, 0)),
        ],
        out_specs=pl.BlockSpec((None, r, c), lambda i: (i, 0, 0)),
        compiler_params=pltpu.CompilerParams(
            dimension_semantics=("parallel",),
            vmem_limit_bytes=_VMEM_LIMIT_BYTES),
    )(x, scale, shift)


def head_sigmoid(x, w):
    n = x.shape[0]
    return pl.pallas_call(
        _head_kernel,
        out_shape=jax.ShapeDtypeStruct((n, 1), jnp.float32),
    )(x, w)


# -----------------------------------------------------------------------------
# Glue: space-to-depth layout + parameter setup
# -----------------------------------------------------------------------------
def _prep_input(x_nhwc):
    """Zero-pad by 1, space-to-depth by 2, flatten spatial -> bf16 s2d rows.

    (N, H, W, C) -> (N, rows, 4C) with channel packing (di*2+dj)*C + c and a
    few zero rows appended so every shifted window stays in bounds.
    """
    x = jnp.pad(x_nhwc, ((0, 0), (1, 1), (1, 1), (0, 0)))
    n, hp, wp, c = x.shape
    y = x.reshape(n, hp // 2, 2, wp // 2, 2, c).transpose(0, 1, 3, 2, 4, 5)
    rows = (hp // 2) * (wp // 2)
    y = y.reshape(n, rows, 4 * c)
    rows_padded = -(-(rows + 1) // 8) * 8
    y = jnp.pad(y, ((0, 0), (0, rows_padded - rows), (0, 0)))
    return y.astype(jnp.bfloat16)


def _rows_to_nhwc(rows, n, ho, wo, c):
    """Drop the per-row junk column of a conv-kernel output -> (N, ho, wo, c)."""
    return rows.reshape(n, ho, wo + 1, c)[:, :, :wo, :]


def _valid_row_mask(ho, wo):
    rows_out = ho * (wo + 1)
    m = (jnp.arange(rows_out) % (wo + 1) < wo).astype(jnp.float32)
    return m.reshape(rows_out, 1)


def _conv_weight(key, cout, cin):
    """DCGAN-style N(0, 0.02) 4x4 weight, regrouped for the s2d kernel.

    Returns (4, 4*cin, cout) bf16: leading index = 2x2 block offset a*2+b,
    middle index matches the s2d channel packing (di*2+dj)*cin + c.
    """
    w = 0.02 * jax.random.normal(key, (cout, cin, 4, 4), dtype=jnp.float32)
    wt = jnp.transpose(w, (2, 3, 1, 0))            # (kh, kw, cin, cout)
    wr = wt.reshape(2, 2, 2, 2, cin, cout)         # (a, di, b, dj, cin, cout)
    wg = jnp.transpose(wr, (0, 2, 1, 3, 4, 5))     # (a, b, di, dj, cin, cout)
    return wg.reshape(4, 4 * cin, cout).astype(jnp.bfloat16)


def _head_weight(key, cin):
    w = 0.02 * jax.random.normal(key, (1, cin, 4, 4), dtype=jnp.float32)
    return jnp.transpose(w, (2, 3, 1, 0)).reshape(16 * cin, 1).astype(jnp.bfloat16)


# -----------------------------------------------------------------------------
# Model: mirrors Discriminator(ngpu, nc, ndf).forward(x), x of shape (N, nc, 64, 64)
# -----------------------------------------------------------------------------
class PallasDiscriminator:
    BN_EPS = 1e-5

    def __init__(self, key, nc=3, ndf=64):
        self.nc, self.ndf = nc, ndf
        keys = jax.random.split(key, 5)
        chans = [nc, ndf, ndf * 2, ndf * 4, ndf * 8]
        self.conv_w = [_conv_weight(keys[i], chans[i + 1], chans[i]) for i in range(4)]
        self.head_w = _head_weight(keys[4], chans[4])
        # BatchNorm affine params (PyTorch init: gamma=1, beta=0) for layers 2..4
        self.gammas = [jnp.ones((1, chans[i + 1]), jnp.float32) for i in range(1, 4)]
        self.betas = [jnp.zeros((1, chans[i + 1]), jnp.float32) for i in range(1, 4)]
        self._forward = jax.jit(self._forward_impl)

    # TODO(synk): BatchNorm2d running-stat updates (training side effect) are not
    # modeled; forward output uses batch statistics exactly like train() mode.
    def _forward_impl(self, x_nchw):
        x = jnp.transpose(x_nchw.astype(jnp.float32), (0, 2, 3, 1))   # NHWC
        n, h, w, _ = x.shape

        # Layer 1: Conv(nc -> ndf, 4, 2, 1) + LeakyReLU(0.2), fully fused.
        ho = wo = h // 2
        cout = self.conv_w[0].shape[-1]
        act = conv_s2d(_prep_input(x), self.conv_w[0], ho, wo,
                       out_dtype=jnp.bfloat16)

        # Layers 2..4: Conv + BatchNorm2d (training-mode batch stats) + LeakyReLU.
        for li in range(1, 4):
            x_nhwc = _rows_to_nhwc(act, n, ho, wo, cout)
            y = _prep_input(x_nhwc)
            ho, wo = ho // 2, wo // 2
            cout = self.conv_w[li].shape[-1]
            mask = _valid_row_mask(ho, wo)
            conv, psum, psq = conv_s2d(y, self.conv_w[li], ho, wo, mask=mask)
            count = float(n * ho * wo)
            mean = jnp.sum(psum, axis=0) / count                       # (1, cout)
            var = jnp.maximum(jnp.sum(psq, axis=0) / count - mean * mean, 0.0)
            invstd = jax.lax.rsqrt(var + self.BN_EPS)                  # biased var
            scale = self.gammas[li - 1] * invstd
            shift = self.betas[li - 1] - mean * scale
            act = bn_leaky(conv, scale, shift)

        # Layer 5: Conv(8*ndf -> 1, 4, 1, 0) + Sigmoid on the 4x4 feature map.
        x_nhwc = _rows_to_nhwc(act, n, ho, wo, cout)                   # (n, 4, 4, 8*ndf)
        flat = x_nhwc.reshape(n, ho * wo * cout)
        out = head_sigmoid(flat, self.head_w)                          # (n, 1) f32
        return out.reshape(n, 1, 1, 1)                                 # NCHW (N,1,1,1)

    def __call__(self, x_nchw):
        return self._forward(x_nchw)


# -----------------------------------------------------------------------------
# Demo
# -----------------------------------------------------------------------------
if __name__ == "__main__":
    key = jax.random.PRNGKey(0)
    k_params, k_x = jax.random.split(key)

    # 64x64 spatial is required by the conv stack (the final 4x4/valid conv
    # needs a 4x4 feature map); keep batch and channel width small.
    N, NC, NDF, HW = 2, 3, 16, 64
    x = jax.random.normal(k_x, (N, NC, HW, HW), dtype=jnp.float32)

    disc = PallasDiscriminator(k_params, nc=NC, ndf=NDF)
    out = jax.block_until_ready(disc(x))

    assert out.shape == (N, 1, 1, 1), out.shape
    assert bool(jnp.all(jnp.isfinite(out)))
    assert bool(jnp.all((out >= 0.0) & (out <= 1.0)))   # sigmoid range
    print("KERNEL_OK")
</pallas_src>

<mosaic_0001>
module attributes {stable_mosaic.version = 11 : i64} {
  func.func @_conv_leaky_kernel(%arg0: i32, %arg1: memref<1x1096x12xbf16, #tpu.memory_space<vmem>>, %arg2: memref<4x12x16xbf16, #tpu.memory_space<vmem>>, %arg3: memref<1x1056x16xbf16, #tpu.memory_space<vmem>>) attributes {dimension_semantics = [#tpu.dimension_semantics<parallel>], iteration_bounds = array<i64: 2>, scalar_prefetch = 0 : i64, scratch_operands = 0 : i64, tpu.core_type = #tpu.core_type<tc>, window_params = [{transform_indices = @transform_0, window_bounds = array<i64: 1, 1096, 12>}, {pipeline_mode = #tpu.pipeline_mode<synchronous>, transform_indices = @transform_1, window_bounds = array<i64: 4, 12, 16>}, {transform_indices = @transform_2, window_bounds = array<i64: 1, 1056, 16>}]} {
    %c0 = arith.constant 0 : index
    %c0_0 = arith.constant 0 : index
    %c0_1 = arith.constant 0 : index
    %0 = vector.load %arg1[%c0, %c0_0, %c0_1] : memref<1x1096x12xbf16, #tpu.memory_space<vmem>>, vector<1x1096x12xbf16>
    %1 = vector.shape_cast %0 : vector<1x1096x12xbf16> to vector<1096x12xbf16>
    %c0_2 = arith.constant 0 : index
    %c0_3 = arith.constant 0 : index
    %c0_4 = arith.constant 0 : index
    %2 = vector.load %arg2[%c0_2, %c0_3, %c0_4] : memref<4x12x16xbf16, #tpu.memory_space<vmem>>, vector<1x12x16xbf16>
    %3 = vector.shape_cast %2 : vector<1x12x16xbf16> to vector<12x16xbf16>
    %cst = arith.constant dense<0.000000e+00> : vector<1096x16xf32>
    %4 = tpu.matmul %1, %3, %cst {dimension_numbers = #tpu.dot_dimension_numbers<[1], [0], [0], [1], [0, 0, 1, 1], [], []>} : vector<1096x12xbf16>, vector<12x16xbf16>, vector<1096x16xf32> -> vector<1096x16xf32>
    %5 = vector.extract_strided_slice %4 {offsets = [0, 0], sizes = [1056, 16], strides = [1, 1]} : vector<1096x16xf32> to vector<1056x16xf32>
    %c1 = arith.constant 1 : index
    %c0_5 = arith.constant 0 : index
    %c0_6 = arith.constant 0 : index
    %6 = vector.load %arg2[%c1, %c0_5, %c0_6] : memref<4x12x16xbf16, #tpu.memory_space<vmem>>, vector<1x12x16xbf16>
    %7 = vector.shape_cast %6 : vector<1x12x16xbf16> to vector<12x16xbf16>
    %cst_7 = arith.constant dense<0.000000e+00> : vector<1096x16xf32>
    %8 = tpu.matmul %1, %7, %cst_7 {dimension_numbers = #tpu.dot_dimension_numbers<[1], [0], [0], [1], [0, 0, 1, 1], [], []>} : vector<1096x12xbf16>, vector<12x16xbf16>, vector<1096x16xf32> -> vector<1096x16xf32>
    %9 = vector.extract_strided_slice %8 {offsets = [1, 0], sizes = [1056, 16], strides = [1, 1]} : vector<1096x16xf32> to vector<1056x16xf32>
    %10 = arith.addf %5, %9 : vector<1056x16xf32>
    %c2 = arith.constant 2 : index
    %c0_8 = arith.constant 0 : index
    %c0_9 = arith.constant 0 : index
    %11 = vector.load %arg2[%c2, %c0_8, %c0_9] : memref<4x12x16xbf16, #tpu.memory_space<vmem>>, vector<1x12x16xbf16>
    %12 = vector.shape_cast %11 : vector<1x12x16xbf16> to vector<12x16xbf16>
    %cst_10 = arith.constant dense<0.000000e+00> : vector<1096x16xf32>
    %13 = tpu.matmul %1, %12, %cst_10 {dimension_numbers = #tpu.dot_dimension_numbers<[1], [0], [0], [1], [0, 0, 1, 1], [], []>} : vector<1096x12xbf16>, vector<12x16xbf16>, vector<1096x16xf32> -> vector<1096x16xf32>
    %14 = vector.extract_strided_slice %13 {offsets = [33, 0], sizes = [1056, 16], strides = [1, 1]} : vector<1096x16xf32> to vector<1056x16xf32>
    %15 = arith.addf %10, %14 : vector<1056x16xf32>
    %c3 = arith.constant 3 : index
    %c0_11 = arith.constant 0 : index
    %c0_12 = arith.constant 0 : index
    %16 = vector.load %arg2[%c3, %c0_11, %c0_12] : memref<4x12x16xbf16, #tpu.memory_space<vmem>>, vector<1x12x16xbf16>
    %17 = vector.shape_cast %16 : vector<1x12x16xbf16> to vector<12x16xbf16>
    %cst_13 = arith.constant dense<0.000000e+00> : vector<1096x16xf32>
    %18 = tpu.matmul %1, %17, %cst_13 {dimension_numbers = #tpu.dot_dimension_numbers<[1], [0], [0], [1], [0, 0, 1, 1], [], []>} : vector<1096x12xbf16>, vector<12x16xbf16>, vector<1096x16xf32> -> vector<1096x16xf32>
    %19 = vector.extract_strided_slice %18 {offsets = [34, 0], sizes = [1056, 16], strides = [1, 1]} : vector<1096x16xf32> to vector<1056x16xf32>
    %20 = arith.addf %15, %19 : vector<1056x16xf32>
    %cst_14 = arith.constant 0.000000e+00 : f32
    %21 = vector.broadcast %cst_14 : f32 to vector<1056x16xf32>
    %22 = arith.cmpf oge, %20, %21 : vector<1056x16xf32>
    %cst_15 = arith.constant 2.000000e-01 : f32
    %23 = vector.broadcast %cst_15 : f32 to vector<1056x16xf32>
    %24 = arith.mulf %23, %20 : vector<1056x16xf32>
    %25 = arith.select %22, %20, %24 : vector<1056x16xi1>, vector<1056x16xf32>
    %26 = arith.truncf %25 : vector<1056x16xf32> to vector<1056x16xbf16>
    %c0_16 = arith.constant 0 : index
    %c0_17 = arith.constant 0 : index
    %c0_18 = arith.constant 0 : index
    %27 = vector.load %arg3[%c0_16, %c0_17, %c0_18] : memref<1x1056x16xbf16, #tpu.memory_space<vmem>>, vector<1x1056x16xbf16>
    %28 = vector.shape_cast %27 : vector<1x1056x16xbf16> to vector<1056x16xbf16>
    %29 = vector.shape_cast %26 : vector<1056x16xbf16> to vector<1x1056x16xbf16>
    tpu.vector_store %arg3[%c0_16, %c0_17, %c0_18], %29 {strides = array<i32>} : memref<1x1056x16xbf16, #tpu.memory_space<vmem>>, vector<1x1056x16xbf16>,
    return
  }
  func.func @transform_0(%arg0: i32) -> (i32, i32, i32) {
    %c0_i32 = arith.constant 0 : i32
    %c0_i32_0 = arith.constant 0 : i32
    %c0_i32_1 = arith.constant 0 : i32
    return %arg0, %c0_i32, %c0_i32_0 : i32, i32, i32
  }
  func.func @transform_1(%arg0: i32) -> (i32, i32, i32) {
    %c0_i32 = arith.constant 0 : i32
    %c0_i32_0 = arith.constant 0 : i32
    %c0_i32_1 = arith.constant 0 : i32
    %c0_i32_2 = arith.constant 0 : i32
    return %c0_i32, %c0_i32_0, %c0_i32_1 : i32, i32, i32
  }
  func.func @transform_2(%arg0: i32) -> (i32, i32, i32) {
    %c0_i32 = arith.constant 0 : i32
    %c0_i32_0 = arith.constant 0 : i32
    %c0_i32_1 = arith.constant 0 : i32
    return %arg0, %c0_i32, %c0_i32_0 : i32, i32, i32
  }
}

module attributes {stable_mosaic.version = 11 : i64} {
  func.func @_conv_stats_kernel(%arg0: i32, %arg1: memref<1x296x64xbf16, #tpu.memory_space<vmem>>, %arg2: memref<4x64x32xbf16, #tpu.memory_space<vmem>>, %arg3: memref<272x1xf32, #tpu.memory_space<vmem>>, %arg4: memref<1x272x32xf32, #tpu.memory_space<vmem>>, %arg5: memref<1x1x32xf32, #tpu.memory_space<vmem>>, %arg6: memref<1x1x32xf32, #tpu.memory_space<vmem>>) attributes {dimension_semantics = [#tpu.dimension_semantics<parallel>], iteration_bounds = array<i64: 2>, scalar_prefetch = 0 : i64, scratch_operands = 0 : i64, tpu.core_type = #tpu.core_type<tc>, window_params = [{transform_indices = @transform_0, window_bounds = array<i64: 1, 296, 64>}, {pipeline_mode = #tpu.pipeline_mode<synchronous>, transform_indices = @transform_1, window_bounds = array<i64: 4, 64, 32>}, {pipeline_mode = #tpu.pipeline_mode<synchronous>, transform_indices = @transform_2, window_bounds = array<i64: 272, 1>}, {transform_indices = @transform_3, window_bounds = array<i64: 1, 272, 32>}, {transform_indices = @transform_4, window_bounds = array<i64: 1, 1, 32>}, {transform_indices = @transform_5, window_bounds = array<i64: 1, 1, 32>}]} {
    %c0 = arith.constant 0 : index
    %c0_0 = arith.constant 0 : index
    %c0_1 = arith.constant 0 : index
    %0 = vector.load %arg1[%c0, %c0_0, %c0_1] : memref<1x296x64xbf16, #tpu.memory_space<vmem>>, vector<1x296x64xbf16>
    %1 = vector.shape_cast %0 : vector<1x296x64xbf16> to vector<296x64xbf16>
    %c0_2 = arith.constant 0 : index
    %c0_3 = arith.constant 0 : index
    %c0_4 = arith.constant 0 : index
    %2 = vector.load %arg2[%c0_2, %c0_3, %c0_4] : memref<4x64x32xbf16, #tpu.memory_space<vmem>>, vector<1x64x32xbf16>
    %3 = vector.shape_cast %2 : vector<1x64x32xbf16> to vector<64x32xbf16>
    %cst = arith.constant dense<0.000000e+00> : vector<296x32xf32>
    %4 = tpu.matmul %1, %3, %cst {dimension_numbers = #tpu.dot_dimension_numbers<[1], [0], [0], [1], [0, 0, 1, 1], [], []>} : vector<296x64xbf16>, vector<64x32xbf16>, vector<296x32xf32> -> vector<296x32xf32>
    %5 = vector.extract_strided_slice %4 {offsets = [0, 0], sizes = [272, 32], strides = [1, 1]} : vector<296x32xf32> to vector<272x32xf32>
    %c1 = arith.constant 1 : index
    %c0_5 = arith.constant 0 : index
    %c0_6 = arith.constant 0 : index
    %6 = vector.load %arg2[%c1, %c0_5, %c0_6] : memref<4x64x32xbf16, #tpu.memory_space<vmem>>, vector<1x64x32xbf16>
    %7 = vector.shape_cast %6 : vector<1x64x32xbf16> to vector<64x32xbf16>
    %cst_7 = arith.constant dense<0.000000e+00> : vector<296x32xf32>
    %8 = tpu.matmul %1, %7, %cst_7 {dimension_numbers = #tpu.dot_dimension_numbers<[1], [0], [0], [1], [0, 0, 1, 1], [], []>} : vector<296x64xbf16>, vector<64x32xbf16>, vector<296x32xf32> -> vector<296x32xf32>
    %9 = vector.extract_strided_slice %8 {offsets = [1, 0], sizes = [272, 32], strides = [1, 1]} : vector<296x32xf32> to vector<272x32xf32>
    %10 = arith.addf %5, %9 : vector<272x32xf32>
    %c2 = arith.constant 2 : index
    %c0_8 = arith.constant 0 : index
    %c0_9 = arith.constant 0 : index
    %11 = vector.load %arg2[%c2, %c0_8, %c0_9] : memref<4x64x32xbf16, #tpu.memory_space<vmem>>, vector<1x64x32xbf16>
    %12 = vector.shape_cast %11 : vector<1x64x32xbf16> to vector<64x32xbf16>
    %cst_10 = arith.constant dense<0.000000e+00> : vector<296x32xf32>
    %13 = tpu.matmul %1, %12, %cst_10 {dimension_numbers = #tpu.dot_dimension_numbers<[1], [0], [0], [1], [0, 0, 1, 1], [], []>} : vector<296x64xbf16>, vector<64x32xbf16>, vector<296x32xf32> -> vector<296x32xf32>
    %14 = vector.extract_strided_slice %13 {offsets = [17, 0], sizes = [272, 32], strides = [1, 1]} : vector<296x32xf32> to vector<272x32xf32>
    %15 = arith.addf %10, %14 : vector<272x32xf32>
    %c3 = arith.constant 3 : index
    %c0_11 = arith.constant 0 : index
    %c0_12 = arith.constant 0 : index
    %16 = vector.load %arg2[%c3, %c0_11, %c0_12] : memref<4x64x32xbf16, #tpu.memory_space<vmem>>, vector<1x64x32xbf16>
    %17 = vector.shape_cast %16 : vector<1x64x32xbf16> to vector<64x32xbf16>
    %cst_13 = arith.constant dense<0.000000e+00> : vector<296x32xf32>
    %18 = tpu.matmul %1, %17, %cst_13 {dimension_numbers = #tpu.dot_dimension_numbers<[1], [0], [0], [1], [0, 0, 1, 1], [], []>} : vector<296x64xbf16>, vector<64x32xbf16>, vector<296x32xf32> -> vector<296x32xf32>
    %19 = vector.extract_strided_slice %18 {offsets = [18, 0], sizes = [272, 32], strides = [1, 1]} : vector<296x32xf32> to vector<272x32xf32>
    %20 = arith.addf %15, %19 : vector<272x32xf32>
    %c0_14 = arith.constant 0 : index
    %c0_15 = arith.constant 0 : index
    %21 = vector.load %arg3[%c0_14, %c0_15] : memref<272x1xf32, #tpu.memory_space<vmem>>, vector<272x1xf32>
    %22 = vector.broadcast %21 : vector<272x1xf32> to vector<272x32xf32>
    %23 = arith.mulf %20, %22 : vector<272x32xf32>
    %cst_16 = arith.constant dense<0.000000e+00> : vector<32xf32>
    %24 = vector.multi_reduction <add>, %23, %cst_16 [0] : vector<272x32xf32> to vector<32xf32>
    %25 = vector.shape_cast %24 : vector<32xf32> to vector<1x32xf32>
    %c0_17 = arith.constant 0 : index
    %c0_18 = arith.constant 0 : index
    %c0_19 = arith.constant 0 : index
    %26 = vector.load %arg5[%c0_17, %c0_18, %c0_19] : memref<1x1x32xf32, #tpu.memory_space<vmem>>, vector<1x1x32xf32>
    %27 = vector.shape_cast %26 : vector<1x1x32xf32> to vector<1x32xf32>
    %28 = vector.shape_cast %25 : vector<1x32xf32> to vector<1x1x32xf32>
    tpu.vector_store %arg5[%c0_17, %c0_18, %c0_19], %28 {strides = array<i32>} : memref<1x1x32xf32, #tpu.memory_space<vmem>>, vector<1x1x32xf32>,
    %29 = arith.mulf %23, %23 : vector<272x32xf32>
    %cst_20 = arith.constant dense<0.000000e+00> : vector<32xf32>
    %30 = vector.multi_reduction <add>, %29, %cst_20 [0] : vector<272x32xf32> to vector<32xf32>
    %31 = vector.shape_cast %30 : vector<32xf32> to vector<1x32xf32>
    %c0_21 = arith.constant 0 : index
    %c0_22 = arith.constant 0 : index
    %c0_23 = arith.constant 0 : index
    %32 = vector.load %arg6[%c0_21, %c0_22, %c0_23] : memref<1x1x32xf32, #tpu.memory_space<vmem>>, vector<1x1x32xf32>
    %33 = vector.shape_cast %32 : vector<1x1x32xf32> to vector<1x32xf32>
    %34 = vector.shape_cast %31 : vector<1x32xf32> to vector<1x1x32xf32>
    tpu.vector_store %arg6[%c0_21, %c0_22, %c0_23], %34 {strides = array<i32>} : memref<1x1x32xf32, #tpu.memory_space<vmem>>, vector<1x1x32xf32>,
    %c0_24 = arith.constant 0 : index
    %c0_25 = arith.constant 0 : index
    %c0_26 = arith.constant 0 : index
    %35 = vector.load %arg4[%c0_24, %c0_25, %c0_26] : memref<1x272x32xf32, #tpu.memory_space<vmem>>, vector<1x272x32xf32>
    %36 = vector.shape_cast %35 : vector<1x272x32xf32> to vector<272x32xf32>
    %37 = vector.shape_cast %20 : vector<272x32xf32> to vector<1x272x32xf32>
    tpu.vector_store %arg4[%c0_24, %c0_25, %c0_26], %37 {strides = array<i32>} : memref<1x272x32xf32, #tpu.memory_space<vmem>>, vector<1x272x32xf32>,
    return
  }
  func.func @transform_0(%arg0: i32) -> (i32, i32, i32) {
    %c0_i32 = arith.constant 0 : i32
    %c0_i32_0 = arith.constant 0 : i32
    %c0_i32_1 = arith.constant 0 : i32
    return %arg0, %c0_i32, %c0_i32_0 : i32, i32, i32
  }
  func.func @transform_1(%arg0: i32) -> (i32, i32, i32) {
    %c0_i32 = arith.constant 0 : i32
    %c0_i32_0 = arith.constant 0 : i32
    %c0_i32_1 = arith.constant 0 : i32
    %c0_i32_2 = arith.constant 0 : i32
    return %c0_i32, %c0_i32_0, %c0_i32_1 : i32, i32, i32
  }
  func.func @transform_2(%arg0: i32) -> (i32, i32) {
    %c0_i32 = arith.constant 0 : i32
    %c0_i32_0 = arith.constant 0 : i32
    %c0_i32_1 = arith.constant 0 : i32
    return %c0_i32, %c0_i32_0 : i32, i32
  }
  func.func @transform_3(%arg0: i32) -> (i32, i32, i32) {
    %c0_i32 = arith.constant 0 : i32
    %c0_i32_0 = arith.constant 0 : i32
    %c0_i32_1 = arith.constant 0 : i32
    return %arg0, %c0_i32, %c0_i32_0 : i32, i32, i32
  }
  func.func @transform_4(%arg0: i32) -> (i32, i32, i32) {
    %c0_i32 = arith.constant 0 : i32
    %c0_i32_0 = arith.constant 0 : i32
    %c0_i32_1 = arith.constant 0 : i32
    return %arg0, %c0_i32, %c0_i32_0 : i32, i32, i32
  }
  func.func @transform_5(%arg0: i32) -> (i32, i32, i32) {
    %c0_i32 = arith.constant 0 : i32
    %c0_i32_0 = arith.constant 0 : i32
    %c0_i32_1 = arith.constant 0 : i32
    return %arg0, %c0_i32, %c0_i32_0 : i32, i32, i32
  }
}

module attributes {stable_mosaic.version = 11 : i64} {
  func.func @_bn_leaky_kernel(%arg0: i32, %arg1: memref<1x272x32xf32, #tpu.memory_space<vmem>>, %arg2: memref<1x32xf32, #tpu.memory_space<vmem>>, %arg3: memref<1x32xf32, #tpu.memory_space<vmem>>, %arg4: memref<1x272x32xbf16, #tpu.memory_space<vmem>>) attributes {dimension_semantics = [#tpu.dimension_semantics<parallel>], iteration_bounds = array<i64: 2>, scalar_prefetch = 0 : i64, scratch_operands = 0 : i64, tpu.core_type = #tpu.core_type<tc>, window_params = [{transform_indices = @transform_0, window_bounds = array<i64: 1, 272, 32>}, {pipeline_mode = #tpu.pipeline_mode<synchronous>, transform_indices = @transform_1, window_bounds = array<i64: 1, 32>}, {pipeline_mode = #tpu.pipeline_mode<synchronous>, transform_indices = @transform_2, window_bounds = array<i64: 1, 32>}, {transform_indices = @transform_3, window_bounds = array<i64: 1, 272, 32>}]} {
    %c0 = arith.constant 0 : index
    %c0_0 = arith.constant 0 : index
    %c0_1 = arith.constant 0 : index
    %0 = vector.load %arg1[%c0, %c0_0, %c0_1] : memref<1x272x32xf32, #tpu.memory_space<vmem>>, vector<1x272x32xf32>
    %1 = vector.shape_cast %0 : vector<1x272x32xf32> to vector<272x32xf32>
    %c0_2 = arith.constant 0 : index
    %c0_3 = arith.constant 0 : index
    %2 = vector.load %arg2[%c0_2, %c0_3] : memref<1x32xf32, #tpu.memory_space<vmem>>, vector<1x32xf32>
    %3 = vector.broadcast %2 : vector<1x32xf32> to vector<272x32xf32>
    %4 = arith.mulf %1, %3 : vector<272x32xf32>
    %c0_4 = arith.constant 0 : index
    %c0_5 = arith.constant 0 : index
    %5 = vector.load %arg3[%c0_4, %c0_5] : memref<1x32xf32, #tpu.memory_space<vmem>>, vector<1x32xf32>
    %6 = vector.broadcast %5 : vector<1x32xf32> to vector<272x32xf32>
    %7 = arith.addf %4, %6 : vector<272x32xf32>
    %cst = arith.constant 0.000000e+00 : f32
    %8 = vector.broadcast %cst : f32 to vector<272x32xf32>
    %9 = arith.cmpf oge, %7, %8 : vector<272x32xf32>
    %cst_6 = arith.constant 2.000000e-01 : f32
    %10 = vector.broadcast %cst_6 : f32 to vector<272x32xf32>
    %11 = arith.mulf %10, %7 : vector<272x32xf32>
    %12 = arith.select %9, %7, %11 : vector<272x32xi1>, vector<272x32xf32>
    %13 = arith.truncf %12 : vector<272x32xf32> to vector<272x32xbf16>
    %c0_7 = arith.constant 0 : index
    %c0_8 = arith.constant 0 : index
    %c0_9 = arith.constant 0 : index
    %14 = vector.load %arg4[%c0_7, %c0_8, %c0_9] : memref<1x272x32xbf16, #tpu.memory_space<vmem>>, vector<1x272x32xbf16>
    %15 = vector.shape_cast %14 : vector<1x272x32xbf16> to vector<272x32xbf16>
    %16 = vector.shape_cast %13 : vector<272x32xbf16> to vector<1x272x32xbf16>
    tpu.vector_store %arg4[%c0_7, %c0_8, %c0_9], %16 {strides = array<i32>} : memref<1x272x32xbf16, #tpu.memory_space<vmem>>, vector<1x272x32xbf16>,
    return
  }
  func.func @transform_0(%arg0: i32) -> (i32, i32, i32) {
    %c0_i32 = arith.constant 0 : i32
    %c0_i32_0 = arith.constant 0 : i32
    %c0_i32_1 = arith.constant 0 : i32
    return %arg0, %c0_i32, %c0_i32_0 : i32, i32, i32
  }
  func.func @transform_1(%arg0: i32) -> (i32, i32) {
    %c0_i32 = arith.constant 0 : i32
    %c0_i32_0 = arith.constant 0 : i32
    %c0_i32_1 = arith.constant 0 : i32
    return %c0_i32, %c0_i32_0 : i32, i32
  }
  func.func @transform_2(%arg0: i32) -> (i32, i32) {
    %c0_i32 = arith.constant 0 : i32
    %c0_i32_0 = arith.constant 0 : i32
    %c0_i32_1 = arith.constant 0 : i32
    return %c0_i32, %c0_i32_0 : i32, i32
  }
  func.func @transform_3(%arg0: i32) -> (i32, i32, i32) {
    %c0_i32 = arith.constant 0 : i32
    %c0_i32_0 = arith.constant 0 : i32
    %c0_i32_1 = arith.constant 0 : i32
    return %arg0, %c0_i32, %c0_i32_0 : i32, i32, i32
  }
}

module attributes {stable_mosaic.version = 11 : i64} {
  func.func @_conv_stats_kernel(%arg0: i32, %arg1: memref<1x88x128xbf16, #tpu.memory_space<vmem>>, %arg2: memref<4x128x64xbf16, #tpu.memory_space<vmem>>, %arg3: memref<72x1xf32, #tpu.memory_space<vmem>>, %arg4: memref<1x72x64xf32, #tpu.memory_space<vmem>>, %arg5: memref<1x1x64xf32, #tpu.memory_space<vmem>>, %arg6: memref<1x1x64xf32, #tpu.memory_space<vmem>>) attributes {dimension_semantics = [#tpu.dimension_semantics<parallel>], iteration_bounds = array<i64: 2>, scalar_prefetch = 0 : i64, scratch_operands = 0 : i64, tpu.core_type = #tpu.core_type<tc>, window_params = [{transform_indices = @transform_0, window_bounds = array<i64: 1, 88, 128>}, {pipeline_mode = #tpu.pipeline_mode<synchronous>, transform_indices = @transform_1, window_bounds = array<i64: 4, 128, 64>}, {pipeline_mode = #tpu.pipeline_mode<synchronous>, transform_indices = @transform_2, window_bounds = array<i64: 72, 1>}, {transform_indices = @transform_3, window_bounds = array<i64: 1, 72, 64>}, {transform_indices = @transform_4, window_bounds = array<i64: 1, 1, 64>}, {transform_indices = @transform_5, window_bounds = array<i64: 1, 1, 64>}]} {
    %c0 = arith.constant 0 : index
    %c0_0 = arith.constant 0 : index
    %c0_1 = arith.constant 0 : index
    %0 = vector.load %arg1[%c0, %c0_0, %c0_1] : memref<1x88x128xbf16, #tpu.memory_space<vmem>>, vector<1x88x128xbf16>
    %1 = vector.shape_cast %0 : vector<1x88x128xbf16> to vector<88x128xbf16>
    %c0_2 = arith.constant 0 : index
    %c0_3 = arith.constant 0 : index
    %c0_4 = arith.constant 0 : index
    %2 = vector.load %arg2[%c0_2, %c0_3, %c0_4] : memref<4x128x64xbf16, #tpu.memory_space<vmem>>, vector<1x128x64xbf16>
    %3 = vector.shape_cast %2 : vector<1x128x64xbf16> to vector<128x64xbf16>
    %cst = arith.constant dense<0.000000e+00> : vector<88x64xf32>
    %4 = tpu.matmul %1, %3, %cst {dimension_numbers = #tpu.dot_dimension_numbers<[1], [0], [0], [1], [0, 0, 1, 1], [], []>} : vector<88x128xbf16>, vector<128x64xbf16>, vector<88x64xf32> -> vector<88x64xf32>
    %5 = vector.extract_strided_slice %4 {offsets = [0, 0], sizes = [72, 64], strides = [1, 1]} : vector<88x64xf32> to vector<72x64xf32>
    %c1 = arith.constant 1 : index
    %c0_5 = arith.constant 0 : index
    %c0_6 = arith.constant 0 : index
    %6 = vector.load %arg2[%c1, %c0_5, %c0_6] : memref<4x128x64xbf16, #tpu.memory_space<vmem>>, vector<1x128x64xbf16>
    %7 = vector.shape_cast %6 : vector<1x128x64xbf16> to vector<128x64xbf16>
    %cst_7 = arith.constant dense<0.000000e+00> : vector<88x64xf32>
    %8 = tpu.matmul %1, %7, %cst_7 {dimension_numbers = #tpu.dot_dimension_numbers<[1], [0], [0], [1], [0, 0, 1, 1], [], []>} : vector<88x128xbf16>, vector<128x64xbf16>, vector<88x64xf32> -> vector<88x64xf32>
    %9 = vector.extract_strided_slice %8 {offsets = [1, 0], sizes = [72, 64], strides = [1, 1]} : vector<88x64xf32> to vector<72x64xf32>
    %10 = arith.addf %5, %9 : vector<72x64xf32>
    %c2 = arith.constant 2 : index
    %c0_8 = arith.constant 0 : index
    %c0_9 = arith.constant 0 : index
    %11 = vector.load %arg2[%c2, %c0_8, %c0_9] : memref<4x128x64xbf16, #tpu.memory_space<vmem>>, vector<1x128x64xbf16>
    %12 = vector.shape_cast %11 : vector<1x128x64xbf16> to vector<128x64xbf16>
    %cst_10 = arith.constant dense<0.000000e+00> : vector<88x64xf32>
    %13 = tpu.matmul %1, %12, %cst_10 {dimension_numbers = #tpu.dot_dimension_numbers<[1], [0], [0], [1], [0, 0, 1, 1], [], []>} : vector<88x128xbf16>, vector<128x64xbf16>, vector<88x64xf32> -> vector<88x64xf32>
    %14 = vector.extract_strided_slice %13 {offsets = [9, 0], sizes = [72, 64], strides = [1, 1]} : vector<88x64xf32> to vector<72x64xf32>
    %15 = arith.addf %10, %14 : vector<72x64xf32>
    %c3 = arith.constant 3 : index
    %c0_11 = arith.constant 0 : index
    %c0_12 = arith.constant 0 : index
    %16 = vector.load %arg2[%c3, %c0_11, %c0_12] : memref<4x128x64xbf16, #tpu.memory_space<vmem>>, vector<1x128x64xbf16>
    %17 = vector.shape_cast %16 : vector<1x128x64xbf16> to vector<128x64xbf16>
    %cst_13 = arith.constant dense<0.000000e+00> : vector<88x64xf32>
    %18 = tpu.matmul %1, %17, %cst_13 {dimension_numbers = #tpu.dot_dimension_numbers<[1], [0], [0], [1], [0, 0, 1, 1], [], []>} : vector<88x128xbf16>, vector<128x64xbf16>, vector<88x64xf32> -> vector<88x64xf32>
    %19 = vector.extract_strided_slice %18 {offsets = [10, 0], sizes = [72, 64], strides = [1, 1]} : vector<88x64xf32> to vector<72x64xf32>
    %20 = arith.addf %15, %19 : vector<72x64xf32>
    %c0_14 = arith.constant 0 : index
    %c0_15 = arith.constant 0 : index
    %21 = vector.load %arg3[%c0_14, %c0_15] : memref<72x1xf32, #tpu.memory_space<vmem>>, vector<72x1xf32>
    %22 = vector.broadcast %21 : vector<72x1xf32> to vector<72x64xf32>
    %23 = arith.mulf %20, %22 : vector<72x64xf32>
    %cst_16 = arith.constant dense<0.000000e+00> : vector<64xf32>
    %24 = vector.multi_reduction <add>, %23, %cst_16 [0] : vector<72x64xf32> to vector<64xf32>
    %25 = vector.shape_cast %24 : vector<64xf32> to vector<1x64xf32>
    %c0_17 = arith.constant 0 : index
    %c0_18 = arith.constant 0 : index
    %c0_19 = arith.constant 0 : index
    %26 = vector.load %arg5[%c0_17, %c0_18, %c0_19] : memref<1x1x64xf32, #tpu.memory_space<vmem>>, vector<1x1x64xf32>
    %27 = vector.shape_cast %26 : vector<1x1x64xf32> to vector<1x64xf32>
    %28 = vector.shape_cast %25 : vector<1x64xf32> to vector<1x1x64xf32>
    tpu.vector_store %arg5[%c0_17, %c0_18, %c0_19], %28 {strides = array<i32>} : memref<1x1x64xf32, #tpu.memory_space<vmem>>, vector<1x1x64xf32>,
    %29 = arith.mulf %23, %23 : vector<72x64xf32>
    %cst_20 = arith.constant dense<0.000000e+00> : vector<64xf32>
    %30 = vector.multi_reduction <add>, %29, %cst_20 [0] : vector<72x64xf32> to vector<64xf32>
    %31 = vector.shape_cast %30 : vector<64xf32> to vector<1x64xf32>
    %c0_21 = arith.constant 0 : index
    %c0_22 = arith.constant 0 : index
    %c0_23 = arith.constant 0 : index
    %32 = vector.load %arg6[%c0_21, %c0_22, %c0_23] : memref<1x1x64xf32, #tpu.memory_space<vmem>>, vector<1x1x64xf32>
    %33 = vector.shape_cast %32 : vector<1x1x64xf32> to vector<1x64xf32>
    %34 = vector.shape_cast %31 : vector<1x64xf32> to vector<1x1x64xf32>
    tpu.vector_store %arg6[%c0_21, %c0_22, %c0_23], %34 {strides = array<i32>} : memref<1x1x64xf32, #tpu.memory_space<vmem>>, vector<1x1x64xf32>,
    %c0_24 = arith.constant 0 : index
    %c0_25 = arith.constant 0 : index
    %c0_26 = arith.constant 0 : index
    %35 = vector.load %arg4[%c0_24, %c0_25, %c0_26] : memref<1x72x64xf32, #tpu.memory_space<vmem>>, vector<1x72x64xf32>
    %36 = vector.shape_cast %35 : vector<1x72x64xf32> to vector<72x64xf32>
    %37 = vector.shape_cast %20 : vector<72x64xf32> to vector<1x72x64xf32>
    tpu.vector_store %arg4[%c0_24, %c0_25, %c0_26], %37 {strides = array<i32>} : memref<1x72x64xf32, #tpu.memory_space<vmem>>, vector<1x72x64xf32>,
    return
  }
  func.func @transform_0(%arg0: i32) -> (i32, i32, i32) {
    %c0_i32 = arith.constant 0 : i32
    %c0_i32_0 = arith.constant 0 : i32
    %c0_i32_1 = arith.constant 0 : i32
    return %arg0, %c0_i32, %c0_i32_0 : i32, i32, i32
  }
  func.func @transform_1(%arg0: i32) -> (i32, i32, i32) {
    %c0_i32 = arith.constant 0 : i32
    %c0_i32_0 = arith.constant 0 : i32
    %c0_i32_1 = arith.constant 0 : i32
    %c0_i32_2 = arith.constant 0 : i32
    return %c0_i32, %c0_i32_0, %c0_i32_1 : i32, i32, i32
  }
  func.func @transform_2(%arg0: i32) -> (i32, i32) {
    %c0_i32 = arith.constant 0 : i32
    %c0_i32_0 = arith.constant 0 : i32
    %c0_i32_1 = arith.constant 0 : i32
    return %c0_i32, %c0_i32_0 : i32, i32
  }
  func.func @transform_3(%arg0: i32) -> (i32, i32, i32) {
    %c0_i32 = arith.constant 0 : i32
    %c0_i32_0 = arith.constant 0 : i32
    %c0_i32_1 = arith.constant 0 : i32
    return %arg0, %c0_i32, %c0_i32_0 : i32, i32, i32
  }
  func.func @transform_4(%arg0: i32) -> (i32, i32, i32) {
    %c0_i32 = arith.constant 0 : i32
    %c0_i32_0 = arith.constant 0 : i32
    %c0_i32_1 = arith.constant 0 : i32
    return %arg0, %c0_i32, %c0_i32_0 : i32, i32, i32
  }
  func.func @transform_5(%arg0: i32) -> (i32, i32, i32) {
    %c0_i32 = arith.constant 0 : i32
    %c0_i32_0 = arith.constant 0 : i32
    %c0_i32_1 = arith.constant 0 : i32
    return %arg0, %c0_i32, %c0_i32_0 : i32, i32, i32
  }
}

module attributes {stable_mosaic.version = 11 : i64} {
  func.func @_bn_leaky_kernel(%arg0: i32, %arg1: memref<1x72x64xf32, #tpu.memory_space<vmem>>, %arg2: memref<1x64xf32, #tpu.memory_space<vmem>>, %arg3: memref<1x64xf32, #tpu.memory_space<vmem>>, %arg4: memref<1x72x64xbf16, #tpu.memory_space<vmem>>) attributes {dimension_semantics = [#tpu.dimension_semantics<parallel>], iteration_bounds = array<i64: 2>, scalar_prefetch = 0 : i64, scratch_operands = 0 : i64, tpu.core_type = #tpu.core_type<tc>, window_params = [{transform_indices = @transform_0, window_bounds = array<i64: 1, 72, 64>}, {pipeline_mode = #tpu.pipeline_mode<synchronous>, transform_indices = @transform_1, window_bounds = array<i64: 1, 64>}, {pipeline_mode = #tpu.pipeline_mode<synchronous>, transform_indices = @transform_2, window_bounds = array<i64: 1, 64>}, {transform_indices = @transform_3, window_bounds = array<i64: 1, 72, 64>}]} {
    %c0 = arith.constant 0 : index
    %c0_0 = arith.constant 0 : index
    %c0_1 = arith.constant 0 : index
    %0 = vector.load %arg1[%c0, %c0_0, %c0_1] : memref<1x72x64xf32, #tpu.memory_space<vmem>>, vector<1x72x64xf32>
    %1 = vector.shape_cast %0 : vector<1x72x64xf32> to vector<72x64xf32>
    %c0_2 = arith.constant 0 : index
    %c0_3 = arith.constant 0 : index
    %2 = vector.load %arg2[%c0_2, %c0_3] : memref<1x64xf32, #tpu.memory_space<vmem>>, vector<1x64xf32>
    %3 = vector.broadcast %2 : vector<1x64xf32> to vector<72x64xf32>
    %4 = arith.mulf %1, %3 : vector<72x64xf32>
    %c0_4 = arith.constant 0 : index
    %c0_5 = arith.constant 0 : index
    %5 = vector.load %arg3[%c0_4, %c0_5] : memref<1x64xf32, #tpu.memory_space<vmem>>, vector<1x64xf32>
    %6 = vector.broadcast %5 : vector<1x64xf32> to vector<72x64xf32>
    %7 = arith.addf %4, %6 : vector<72x64xf32>
    %cst = arith.constant 0.000000e+00 : f32
    %8 = vector.broadcast %cst : f32 to vector<72x64xf32>
    %9 = arith.cmpf oge, %7, %8 : vector<72x64xf32>
    %cst_6 = arith.constant 2.000000e-01 : f32
    %10 = vector.broadcast %cst_6 : f32 to vector<72x64xf32>
    %11 = arith.mulf %10, %7 : vector<72x64xf32>
    %12 = arith.select %9, %7, %11 : vector<72x64xi1>, vector<72x64xf32>
    %13 = arith.truncf %12 : vector<72x64xf32> to vector<72x64xbf16>
    %c0_7 = arith.constant 0 : index
    %c0_8 = arith.constant 0 : index
    %c0_9 = arith.constant 0 : index
    %14 = vector.load %arg4[%c0_7, %c0_8, %c0_9] : memref<1x72x64xbf16, #tpu.memory_space<vmem>>, vector<1x72x64xbf16>
    %15 = vector.shape_cast %14 : vector<1x72x64xbf16> to vector<72x64xbf16>
    %16 = vector.shape_cast %13 : vector<72x64xbf16> to vector<1x72x64xbf16>
    tpu.vector_store %arg4[%c0_7, %c0_8, %c0_9], %16 {strides = array<i32>} : memref<1x72x64xbf16, #tpu.memory_space<vmem>>, vector<1x72x64xbf16>,
    return
  }
  func.func @transform_0(%arg0: i32) -> (i32, i32, i32) {
    %c0_i32 = arith.constant 0 : i32
    %c0_i32_0 = arith.constant 0 : i32
    %c0_i32_1 = arith.constant 0 : i32
    return %arg0, %c0_i32, %c0_i32_0 : i32, i32, i32
  }
  func.func @transform_1(%arg0: i32) -> (i32, i32) {
    %c0_i32 = arith.constant 0 : i32
    %c0_i32_0 = arith.constant 0 : i32
    %c0_i32_1 = arith.constant 0 : i32
    return %c0_i32, %c0_i32_0 : i32, i32
  }
  func.func @transform_2(%arg0: i32) -> (i32, i32) {
    %c0_i32 = arith.constant 0 : i32
    %c0_i32_0 = arith.constant 0 : i32
    %c0_i32_1 = arith.constant 0 : i32
    return %c0_i32, %c0_i32_0 : i32, i32
  }
  func.func @transform_3(%arg0: i32) -> (i32, i32, i32) {
    %c0_i32 = arith.constant 0 : i32
    %c0_i32_0 = arith.constant 0 : i32
    %c0_i32_1 = arith.constant 0 : i32
    return %arg0, %c0_i32, %c0_i32_0 : i32, i32, i32
  }
}

module attributes {stable_mosaic.version = 11 : i64} {
  func.func @_bn_leaky_kernel(%arg0: i32, %arg1: memref<1x20x128xf32, #tpu.memory_space<vmem>>, %arg2: memref<1x128xf32, #tpu.memory_space<vmem>>, %arg3: memref<1x128xf32, #tpu.memory_space<vmem>>, %arg4: memref<1x20x128xbf16, #tpu.memory_space<vmem>>) attributes {dimension_semantics = [#tpu.dimension_semantics<parallel>], iteration_bounds = array<i64: 2>, scalar_prefetch = 0 : i64, scratch_operands = 0 : i64, tpu.core_type = #tpu.core_type<tc>, window_params = [{transform_indices = @transform_0, window_bounds = array<i64: 1, 20, 128>}, {pipeline_mode = #tpu.pipeline_mode<synchronous>, transform_indices = @transform_1, window_bounds = array<i64: 1, 128>}, {pipeline_mode = #tpu.pipeline_mode<synchronous>, transform_indices = @transform_2, window_bounds = array<i64: 1, 128>}, {transform_indices = @transform_3, window_bounds = array<i64: 1, 20, 128>}]} {
    %c0 = arith.constant 0 : index
    %c0_0 = arith.constant 0 : index
    %c0_1 = arith.constant 0 : index
    %0 = vector.load %arg1[%c0, %c0_0, %c0_1] : memref<1x20x128xf32, #tpu.memory_space<vmem>>, vector<1x20x128xf32>
    %1 = vector.shape_cast %0 : vector<1x20x128xf32> to vector<20x128xf32>
    %c0_2 = arith.constant 0 : index
    %c0_3 = arith.constant 0 : index
    %2 = vector.load %arg2[%c0_2, %c0_3] : memref<1x128xf32, #tpu.memory_space<vmem>>, vector<1x128xf32>
    %3 = vector.broadcast %2 : vector<1x128xf32> to vector<20x128xf32>
    %4 = arith.mulf %1, %3 : vector<20x128xf32>
    %c0_4 = arith.constant 0 : index
    %c0_5 = arith.constant 0 : index
    %5 = vector.load %arg3[%c0_4, %c0_5] : memref<1x128xf32, #tpu.memory_space<vmem>>, vector<1x128xf32>
    %6 = vector.broadcast %5 : vector<1x128xf32> to vector<20x128xf32>
    %7 = arith.addf %4, %6 : vector<20x128xf32>
    %cst = arith.constant 0.000000e+00 : f32
    %8 = vector.broadcast %cst : f32 to vector<20x128xf32>
    %9 = arith.cmpf oge, %7, %8 : vector<20x128xf32>
    %cst_6 = arith.constant 2.000000e-01 : f32
    %10 = vector.broadcast %cst_6 : f32 to vector<20x128xf32>
    %11 = arith.mulf %10, %7 : vector<20x128xf32>
    %12 = arith.select %9, %7, %11 : vector<20x128xi1>, vector<20x128xf32>
    %13 = arith.truncf %12 : vector<20x128xf32> to vector<20x128xbf16>
    %c0_7 = arith.constant 0 : index
    %c0_8 = arith.constant 0 : index
    %c0_9 = arith.constant 0 : index
    %14 = vector.load %arg4[%c0_7, %c0_8, %c0_9] : memref<1x20x128xbf16, #tpu.memory_space<vmem>>, vector<1x20x128xbf16>
    %15 = vector.shape_cast %14 : vector<1x20x128xbf16> to vector<20x128xbf16>
    %16 = vector.shape_cast %13 : vector<20x128xbf16> to vector<1x20x128xbf16>
    tpu.vector_store %arg4[%c0_7, %c0_8, %c0_9], %16 {strides = array<i32>} : memref<1x20x128xbf16, #tpu.memory_space<vmem>>, vector<1x20x128xbf16>,
    return
  }
  func.func @transform_0(%arg0: i32) -> (i32, i32, i32) {
    %c0_i32 = arith.constant 0 : i32
    %c0_i32_0 = arith.constant 0 : i32
    %c0_i32_1 = arith.constant 0 : i32
    return %arg0, %c0_i32, %c0_i32_0 : i32, i32, i32
  }
  func.func @transform_1(%arg0: i32) -> (i32, i32) {
    %c0_i32 = arith.constant 0 : i32
    %c0_i32_0 = arith.constant 0 : i32
    %c0_i32_1 = arith.constant 0 : i32
    return %c0_i32, %c0_i32_0 : i32, i32
  }
  func.func @transform_2(%arg0: i32) -> (i32, i32) {
    %c0_i32 = arith.constant 0 : i32
    %c0_i32_0 = arith.constant 0 : i32
    %c0_i32_1 = arith.constant 0 : i32
    return %c0_i32, %c0_i32_0 : i32, i32
  }
  func.func @transform_3(%arg0: i32) -> (i32, i32, i32) {
    %c0_i32 = arith.constant 0 : i32
    %c0_i32_0 = arith.constant 0 : i32
    %c0_i32_1 = arith.constant 0 : i32
    return %arg0, %c0_i32, %c0_i32_0 : i32, i32, i32
  }
}

module attributes {stable_mosaic.version = 11 : i64} {
  func.func @_conv_stats_kernel(%arg0: i32, %arg1: memref<1x32x256xbf16, #tpu.memory_space<vmem>>, %arg2: memref<4x256x128xbf16, #tpu.memory_space<vmem>>, %arg3: memref<20x1xf32, #tpu.memory_space<vmem>>, %arg4: memref<1x20x128xf32, #tpu.memory_space<vmem>>, %arg5: memref<1x1x128xf32, #tpu.memory_space<vmem>>, %arg6: memref<1x1x128xf32, #tpu.memory_space<vmem>>) attributes {dimension_semantics = [#tpu.dimension_semantics<parallel>], iteration_bounds = array<i64: 2>, scalar_prefetch = 0 : i64, scratch_operands = 0 : i64, tpu.core_type = #tpu.core_type<tc>, window_params = [{transform_indices = @transform_0, window_bounds = array<i64: 1, 32, 256>}, {pipeline_mode = #tpu.pipeline_mode<synchronous>, transform_indices = @transform_1, window_bounds = array<i64: 4, 256, 128>}, {pipeline_mode = #tpu.pipeline_mode<synchronous>, transform_indices = @transform_2, window_bounds = array<i64: 20, 1>}, {transform_indices = @transform_3, window_bounds = array<i64: 1, 20, 128>}, {transform_indices = @transform_4, window_bounds = array<i64: 1, 1, 128>}, {transform_indices = @transform_5, window_bounds = array<i64: 1, 1, 128>}]} {
    %c0 = arith.constant 0 : index
    %c0_0 = arith.constant 0 : index
    %c0_1 = arith.constant 0 : index
    %0 = vector.load %arg1[%c0, %c0_0, %c0_1] : memref<1x32x256xbf16, #tpu.memory_space<vmem>>, vector<1x32x256xbf16>
    %1 = vector.shape_cast %0 : vector<1x32x256xbf16> to vector<32x256xbf16>
    %c0_2 = arith.constant 0 : index
    %c0_3 = arith.constant 0 : index
    %c0_4 = arith.constant 0 : index
    %2 = vector.load %arg2[%c0_2, %c0_3, %c0_4] : memref<4x256x128xbf16, #tpu.memory_space<vmem>>, vector<1x256x128xbf16>
    %3 = vector.shape_cast %2 : vector<1x256x128xbf16> to vector<256x128xbf16>
    %cst = arith.constant dense<0.000000e+00> : vector<32x128xf32>
    %4 = tpu.matmul %1, %3, %cst {dimension_numbers = #tpu.dot_dimension_numbers<[1], [0], [0], [1], [0, 0, 1, 1], [], []>} : vector<32x256xbf16>, vector<256x128xbf16>, vector<32x128xf32> -> vector<32x128xf32>
    %5 = vector.extract_strided_slice %4 {offsets = [0, 0], sizes = [20, 128], strides = [1, 1]} : vector<32x128xf32> to vector<20x128xf32>
    %c1 = arith.constant 1 : index
    %c0_5 = arith.constant 0 : index
    %c0_6 = arith.constant 0 : index
    %6 = vector.load %arg2[%c1, %c0_5, %c0_6] : memref<4x256x128xbf16, #tpu.memory_space<vmem>>, vector<1x256x128xbf16>
    %7 = vector.shape_cast %6 : vector<1x256x128xbf16> to vector<256x128xbf16>
    %cst_7 = arith.constant dense<0.000000e+00> : vector<32x128xf32>
    %8 = tpu.matmul %1, %7, %cst_7 {dimension_numbers = #tpu.dot_dimension_numbers<[1], [0], [0], [1], [0, 0, 1, 1], [], []>} : vector<32x256xbf16>, vector<256x128xbf16>, vector<32x128xf32> -> vector<32x128xf32>
    %9 = vector.extract_strided_slice %8 {offsets = [1, 0], sizes = [20, 128], strides = [1, 1]} : vector<32x128xf32> to vector<20x128xf32>
    %10 = arith.addf %5, %9 : vector<20x128xf32>
    %c2 = arith.constant 2 : index
    %c0_8 = arith.constant 0 : index
    %c0_9 = arith.constant 0 : index
    %11 = vector.load %arg2[%c2, %c0_8, %c0_9] : memref<4x256x128xbf16, #tpu.memory_space<vmem>>, vector<1x256x128xbf16>
    %12 = vector.shape_cast %11 : vector<1x256x128xbf16> to vector<256x128xbf16>
    %cst_10 = arith.constant dense<0.000000e+00> : vector<32x128xf32>
    %13 = tpu.matmul %1, %12, %cst_10 {dimension_numbers = #tpu.dot_dimension_numbers<[1], [0], [0], [1], [0, 0, 1, 1], [], []>} : vector<32x256xbf16>, vector<256x128xbf16>, vector<32x128xf32> -> vector<32x128xf32>
    %14 = vector.extract_strided_slice %13 {offsets = [5, 0], sizes = [20, 128], strides = [1, 1]} : vector<32x128xf32> to vector<20x128xf32>
    %15 = arith.addf %10, %14 : vector<20x128xf32>
    %c3 = arith.constant 3 : index
    %c0_11 = arith.constant 0 : index
    %c0_12 = arith.constant 0 : index
    %16 = vector.load %arg2[%c3, %c0_11, %c0_12] : memref<4x256x128xbf16, #tpu.memory_space<vmem>>, vector<1x256x128xbf16>
    %17 = vector.shape_cast %16 : vector<1x256x128xbf16> to vector<256x128xbf16>
    %cst_13 = arith.constant dense<0.000000e+00> : vector<32x128xf32>
    %18 = tpu.matmul %1, %17, %cst_13 {dimension_numbers = #tpu.dot_dimension_numbers<[1], [0], [0], [1], [0, 0, 1, 1], [], []>} : vector<32x256xbf16>, vector<256x128xbf16>, vector<32x128xf32> -> vector<32x128xf32>
    %19 = vector.extract_strided_slice %18 {offsets = [6, 0], sizes = [20, 128], strides = [1, 1]} : vector<32x128xf32> to vector<20x128xf32>
    %20 = arith.addf %15, %19 : vector<20x128xf32>
    %c0_14 = arith.constant 0 : index
    %c0_15 = arith.constant 0 : index
    %21 = vector.load %arg3[%c0_14, %c0_15] : memref<20x1xf32, #tpu.memory_space<vmem>>, vector<20x1xf32>
    %22 = vector.broadcast %21 : vector<20x1xf32> to vector<20x128xf32>
    %23 = arith.mulf %20, %22 : vector<20x128xf32>
    %cst_16 = arith.constant dense<0.000000e+00> : vector<128xf32>
    %24 = vector.multi_reduction <add>, %23, %cst_16 [0] : vector<20x128xf32> to vector<128xf32>
    %25 = vector.shape_cast %24 : vector<128xf32> to vector<1x128xf32>
    %c0_17 = arith.constant 0 : index
    %c0_18 = arith.constant 0 : index
    %c0_19 = arith.constant 0 : index
    %26 = vector.load %arg5[%c0_17, %c0_18, %c0_19] : memref<1x1x128xf32, #tpu.memory_space<vmem>>, vector<1x1x128xf32>
    %27 = vector.shape_cast %26 : vector<1x1x128xf32> to vector<1x128xf32>
    %28 = vector.shape_cast %25 : vector<1x128xf32> to vector<1x1x128xf32>
    tpu.vector_store %arg5[%c0_17, %c0_18, %c0_19], %28 {strides = array<i32>} : memref<1x1x128xf32, #tpu.memory_space<vmem>>, vector<1x1x128xf32>,
    %29 = arith.mulf %23, %23 : vector<20x128xf32>
    %cst_20 = arith.constant dense<0.000000e+00> : vector<128xf32>
    %30 = vector.multi_reduction <add>, %29, %cst_20 [0] : vector<20x128xf32> to vector<128xf32>
    %31 = vector.shape_cast %30 : vector<128xf32> to vector<1x128xf32>
    %c0_21 = arith.constant 0 : index
    %c0_22 = arith.constant 0 : index
    %c0_23 = arith.constant 0 : index
    %32 = vector.load %arg6[%c0_21, %c0_22, %c0_23] : memref<1x1x128xf32, #tpu.memory_space<vmem>>, vector<1x1x128xf32>
    %33 = vector.shape_cast %32 : vector<1x1x128xf32> to vector<1x128xf32>
    %34 = vector.shape_cast %31 : vector<1x128xf32> to vector<1x1x128xf32>
    tpu.vector_store %arg6[%c0_21, %c0_22, %c0_23], %34 {strides = array<i32>} : memref<1x1x128xf32, #tpu.memory_space<vmem>>, vector<1x1x128xf32>,
    %c0_24 = arith.constant 0 : index
    %c0_25 = arith.constant 0 : index
    %c0_26 = arith.constant 0 : index
    %35 = vector.load %arg4[%c0_24, %c0_25, %c0_26] : memref<1x20x128xf32, #tpu.memory_space<vmem>>, vector<1x20x128xf32>
    %36 = vector.shape_cast %35 : vector<1x20x128xf32> to vector<20x128xf32>
    %37 = vector.shape_cast %20 : vector<20x128xf32> to vector<1x20x128xf32>
    tpu.vector_store %arg4[%c0_24, %c0_25, %c0_26], %37 {strides = array<i32>} : memref<1x20x128xf32, #tpu.memory_space<vmem>>, vector<1x20x128xf32>,
    return
  }
  func.func @transform_0(%arg0: i32) -> (i32, i32, i32) {
    %c0_i32 = arith.constant 0 : i32
    %c0_i32_0 = arith.constant 0 : i32
    %c0_i32_1 = arith.constant 0 : i32
    return %arg0, %c0_i32, %c0_i32_0 : i32, i32, i32
  }
  func.func @transform_1(%arg0: i32) -> (i32, i32, i32) {
    %c0_i32 = arith.constant 0 : i32
    %c0_i32_0 = arith.constant 0 : i32
    %c0_i32_1 = arith.constant 0 : i32
    %c0_i32_2 = arith.constant 0 : i32
    return %c0_i32, %c0_i32_0, %c0_i32_1 : i32, i32, i32
  }
  func.func @transform_2(%arg0: i32) -> (i32, i32) {
    %c0_i32 = arith.constant 0 : i32
    %c0_i32_0 = arith.constant 0 : i32
    %c0_i32_1 = arith.constant 0 : i32
    return %c0_i32, %c0_i32_0 : i32, i32
  }
  func.func @transform_3(%arg0: i32) -> (i32, i32, i32) {
    %c0_i32 = arith.constant 0 : i32
    %c0_i32_0 = arith.constant 0 : i32
    %c0_i32_1 = arith.constant 0 : i32
    return %arg0, %c0_i32, %c0_i32_0 : i32, i32, i32
  }
  func.func @transform_4(%arg0: i32) -> (i32, i32, i32) {
    %c0_i32 = arith.constant 0 : i32
    %c0_i32_0 = arith.constant 0 : i32
    %c0_i32_1 = arith.constant 0 : i32
    return %arg0, %c0_i32, %c0_i32_0 : i32, i32, i32
  }
  func.func @transform_5(%arg0: i32) -> (i32, i32, i32) {
    %c0_i32 = arith.constant 0 : i32
    %c0_i32_0 = arith.constant 0 : i32
    %c0_i32_1 = arith.constant 0 : i32
    return %arg0, %c0_i32, %c0_i32_0 : i32, i32, i32
  }
}

module attributes {stable_mosaic.version = 11 : i64} {
  func.func @_head_kernel(%arg0: memref<2x2048xbf16, #tpu.memory_space<vmem>>, %arg1: memref<2048x1xbf16, #tpu.memory_space<vmem>>, %arg2: memref<2x1xf32, #tpu.memory_space<vmem>>) attributes {dimension_semantics = [], scalar_prefetch = 0 : i64, scratch_operands = 0 : i64, tpu.core_type = #tpu.core_type<tc>} {
    %c0 = arith.constant 0 : index
    %c0_0 = arith.constant 0 : index
    %0 = vector.load %arg0[%c0, %c0_0] : memref<2x2048xbf16, #tpu.memory_space<vmem>>, vector<2x2048xbf16>
    %c0_1 = arith.constant 0 : index
    %c0_2 = arith.constant 0 : index
    %1 = vector.load %arg1[%c0_1, %c0_2] : memref<2048x1xbf16, #tpu.memory_space<vmem>>, vector<2048x1xbf16>
    %cst = arith.constant dense<0.000000e+00> : vector<2x1xf32>
    %2 = tpu.matmul %0, %1, %cst {dimension_numbers = #tpu.dot_dimension_numbers<[1], [0], [0], [1], [0, 0, 1, 1], [], []>} : vector<2x2048xbf16>, vector<2048x1xbf16>, vector<2x1xf32> -> vector<2x1xf32>
    %cst_3 = arith.constant 5.000000e-01 : f32
    %3 = vector.broadcast %cst_3 : f32 to vector<2x1xf32>
    %4 = arith.mulf %3, %2 : vector<2x1xf32>
    %5 = math.tanh %4 : vector<2x1xf32>
    %cst_4 = arith.constant 1.000000e+00 : f32
    %6 = vector.broadcast %cst_4 : f32 to vector<2x1xf32>
    %7 = arith.addf %5, %6 : vector<2x1xf32>
    %cst_5 = arith.constant 5.000000e-01 : f32
    %8 = vector.broadcast %cst_5 : f32 to vector<2x1xf32>
    %9 = arith.mulf %8, %7 : vector<2x1xf32>
    %c0_6 = arith.constant 0 : index
    %c0_7 = arith.constant 0 : index
    %10 = vector.load %arg2[%c0_6, %c0_7] : memref<2x1xf32, #tpu.memory_space<vmem>>, vector<2x1xf32>
    tpu.vector_store %arg2[%c0_6, %c0_7], %9 {strides = array<i32>} : memref<2x1xf32, #tpu.memory_space<vmem>>, vector<2x1xf32>,
    return
  }
}

</mosaic_0001>

<llo_original>
// kernel: _forward_impl.8
$region0: #{_forward_impl.8}
  #allocation0 [shape = 'u32[]', space=smem, size = 0x4, offset = 0x4, fixed_abs, tag = 'smem constant byte address 0x4 - core index']
  #allocation1 [shape = 'u32[72,128]{1,0:T(1,128)}', space=vmem, size = 0x9000, scoped, tag = 'internal scratch']
  %s0 = inlined_call_operand.vmem [shape: bf16[2,1096,12], index: 0, kind: input, shape index: {}]
  %s1 = inlined_call_operand.vmem [shape: bf16[4,12,16], index: 1, kind: input, shape index: {}]
  %s2 = inlined_call_operand.vmem [shape: bf16[2,1056,16], index: 2, kind: output, shape index: {}]
  %s3 = sld [smem:[#allocation0]]
  $region41: #{_forward_impl.8} parent=0
    _
  %s5 = ssub.s32 1, %s3
  %s6 = scalar_select 0, %s5, %s3
  loop: start=0, step=1, limit=4
  $region2: #{_forward_impl.8} parent=0 // loop_pre_header
    _
  $region3: #{_forward_impl.8} parent=0 // loop_header
    %s8 = sphi 0, %s12
    %p9 = scmp.ge.s32.totalorder %s8, 4
    %s18 = sphi 0, %s20
    %s21 = sphi 0, %s18
    %s22 = sphi 0, %s21
    %s38 = sphi 0, %s22
    %s42 = sphi 0, %s42
    %s44 = sphi 0, %s42
    %s45 = sphi 0, %s44
    %s59 = sphi 0, %s45
    %s65 = sphi 0, %s67
    %s68 = sphi 0, %s65
    %s69 = sphi 0, %s68
    %s85 = sphi 0, %s69
  $region4: #{_forward_impl.8} parent=0 // loop_header_branch
    %11 = sbr.rel (%p9) target = $region8
  $region5: #{_forward_impl.8} parent=0 // loop_body
    %s13 = ssub.s32 %s8, 1
    %s14 = ssub.s32 %s8, 2
    %s15 = sadd.s32 %s8, 1
    %s16 = ssub.s32 %s8, %s15
    %p17 = scmp.eq.s32.totalorder %s16, 0
    %s19 = sadd.s32 %s18, 1
    %s20 = scalar_select %p17, %s18, %s19
    %p23 = pneg %p17
    %p24 = scmp.eq.s32.totalorder %s8, 1
    %p25 = por %p23, %p24
    %p26 = scmp.ne.s32.totalorder %s18, %s21
    %p27 = scmp.eq.s32.totalorder %s8, 0
    %p28 = por %p26, %p27
    %p29 = scmp.ne.s32.totalorder %s18, %s21
    %p30 = scmp.eq.s32.totalorder %s13, 1
    %p31 = por %p29, %p30
    %p32 = scmp.ne.s32.totalorder %s21, %s22
    %p33 = scmp.eq.s32.totalorder %s13, 0
    %p34 = por %p32, %p33
    %p35 = scmp.ne.s32.totalorder %s21, %s22
    %p36 = scmp.eq.s32.totalorder %s14, 1
    %p37 = por %p35, %p36
    %p39 = scmp.ne.s32.totalorder %s22, %s38
    %p40 = scmp.eq.s32.totalorder %s14, 0
    %p41 = por %p39, %p40
    %s43 = sadd.s32 %s42, 1
    %p46 = scmp.eq.s32.totalorder %s8, 1
    %p47 = scmp.ne.s32.totalorder %s42, %s44
    %p48 = scmp.eq.s32.totalorder %s8, 0
    %p49 = por %p47, %p48
    %p50 = scmp.ne.s32.totalorder %s42, %s44
    %p51 = scmp.eq.s32.totalorder %s13, 1
    %p52 = por %p50, %p51
    %p53 = scmp.ne.s32.totalorder %s44, %s45
    %p54 = scmp.eq.s32.totalorder %s13, 0
    %p55 = por %p53, %p54
    %p56 = scmp.ne.s32.totalorder %s44, %s45
    %p57 = scmp.eq.s32.totalorder %s14, 1
    %p58 = por %p56, %p57
    %p60 = scmp.ne.s32.totalorder %s45, %s59
    %p61 = scmp.eq.s32.totalorder %s14, 0
    %p62 = por %p60, %p61
    %s63 = ssub.s32 %s8, %s15
    %p64 = scmp.eq.s32.totalorder %s63, 0
    %s66 = sadd.s32 %s65, 1
    %s67 = scalar_select %p64, %s65, %s66
    %p70 = pneg %p64
    %p71 = scmp.eq.s32.totalorder %s8, 1
    %p72 = por %p70, %p71
    %p73 = scmp.ne.s32.totalorder %s65, %s68
    %p74 = scmp.eq.s32.totalorder %s8, 0
    %p75 = por %p73, %p74
    %p76 = scmp.ne.s32.totalorder %s65, %s68
    %p77 = scmp.eq.s32.totalorder %s13, 1
    %p78 = por %p76, %p77
    %p79 = scmp.ne.s32.totalorder %s68, %s69
    %p80 = scmp.eq.s32.totalorder %s13, 0
    %p81 = por %p79, %p80
    %p82 = scmp.ne.s32.totalorder %s68, %s69
    %p83 = scmp.eq.s32.totalorder %s14, 1
    %p84 = por %p82, %p83
    %p86 = scmp.ne.s32.totalorder %s69, %s85
    %p87 = scmp.eq.s32.totalorder %s14, 0
    %p88 = por %p86, %p87
    %p89 = scmp.le.s32.totalorder 1, %s8
    %p90 = scmp.lt.s32.totalorder %s8, 3
    %p91 = pnand %p89, %p90
    %p92 = pneg %p91
    // Predicated region
    $region9: #{_forward_impl.8} parent=5 // pred_check
      _
    $region10: #{_forward_impl.8} parent=5 // pred_check_branch
      %94 = sbr.rel (%p91) target = $region12
    $region11: #{_forward_impl.8} parent=5 // pred_region
      %s95 = ssub.s32 %s8, 1
      // Predicated region
      $region13: #{_forward_impl.8} parent=11 // pred_check
        %p96 = pneg %p55
      $region14: #{_forward_impl.8} parent=11 // pred_check_branch
        %98 = sbr.rel (%p96) target = $region16
      $region15: #{_forward_impl.8} parent=11 // pred_region
        _
      $region16: #{_forward_impl.8} parent=11 // pred_fallthru
        _
    $region12: #{_forward_impl.8} parent=5 // pred_fallthru
      _
    %p99 = scmp.lt.s32.totalorder %s8, 2
    // Predicated region
    $region17: #{_forward_impl.8} parent=5 // pred_check
      %p100 = pneg %p99
    $region18: #{_forward_impl.8} parent=5 // pred_check_branch
      %102 = sbr.rel (%p100) target = $region20
    $region19: #{_forward_impl.8} parent=5 // pred_region
      // Predicated region
      $region21: #{_forward_impl.8} parent=19 // pred_check
        %p103 = pneg %p28
      $region22: #{_forward_impl.8} parent=19 // pred_check_branch
        %105 = sbr.rel (%p103) target = $region24
      $region23: #{_forward_impl.8} parent=19 // pred_region
        %p106 = scmp.lt.s32.totalorder %s8, 1
        %s107 = scalar_select %p106, %s8, 1
        %s108 = smul.addr %s107, 137
        %s109 = smul.addr %s108, 4
        %s110 = scalar_lea.vmem %s0, %s109
      $region24: #{_forward_impl.8} parent=19 // pred_fallthru
        _
    $region20: #{_forward_impl.8} parent=5 // pred_fallthru
      _
    %p111 = scmp.le.s32.totalorder 1, %s8
    %p112 = scmp.lt.s32.totalorder %s8, 3
    %p113 = pnand %p111, %p112
    %p114 = pneg %p113
    // Predicated region
    $region25: #{_forward_impl.8} parent=5 // pred_check
      _
    $region26: #{_forward_impl.8} parent=5 // pred_check_branch
      %116 = sbr.rel (%p113) target = $region28
    $region27: #{_forward_impl.8} parent=5 // pred_region
      %s117 = ssub.s32 %s8, 1
      %p118 = scmp.lt.s32.totalorder %s13, 1
      %s119 = scalar_select %p118, %s13, 1
      %s120 = smul.addr %s119, 137
      %s121 = smul.addr %s120, 4
      %s122 = scalar_lea.vmem %s0, %s121
      %p123 = pneg %p34
      %p124 = pneg %p31
      %p125 = pneg %p55
      %p126 = pneg %p52
      %p127 = pneg %p81
      %p128 = pneg %p78
      %p129 = scmp.lt.s32.totalorder %s13, 1
      %s130 = scalar_select %p129, %s13, 1
      %s131 = smul.addr %s130, 132
      %s132 = smul.addr %s131, 4
      %s133 = scalar_lea.vmem %s2, %s132
      %p134 = scmp.lt.s32.totalorder %s13, 1
      %s135 = scalar_select %p134, %s13, 1
      %s136 = smul.addr %s135, 137
      %s137 = smul.addr %s136, 4
      %s138 = scalar_lea.vmem %s0, %s137
      %p139 = scmp.lt.s32.totalorder %s13, 1
      %s140 = scalar_select %p139, %s13, 1
      %s141 = smul.addr %s140, 132
      %s142 = smul.addr %s141, 4
      %s143 = scalar_lea.vmem %s2, %s142
      %v145 = vld [vmem:[%s138] sm:$0xf]
      %v146 = vld [vmem:[%s138 + $0x4] sm:$0xf]
      %v147 = vld [vmem:[%s138 + $0x8] sm:$0xf]
      %v148 = vld [vmem:[%s138 + $0xc] sm:$0xf]
      %v149 = vld [vmem:[%s138 + $0x10] sm:$0xf]
      %v150 = vld [vmem:[%s138 + $0x14] sm:$0xf]
      %v151 = vld [vmem:[%s138 + $0x18] sm:$0xf]
      %v152 = vld [vmem:[%s138 + $0x1c] sm:$0xf]
      %v153 = vld [vmem:[%s138 + $0x20] sm:$0xf]
      %v154 = vld [vmem:[%s138 + $0x24] sm:$0xf]
      %v155 = vld [vmem:[%s138 + $0x28] sm:$0xf]
      %v156 = vld [vmem:[%s138 + $0x2c] sm:$0xf]
      %v157 = vld [vmem:[%s138 + $0x30] sm:$0xf]
      %v158 = vld [vmem:[%s138 + $0x34] sm:$0xf]
      %v159 = vld [vmem:[%s138 + $0x38] sm:$0xf]
      %v160 = vld [vmem:[%s138 + $0x3c] sm:$0xf]
      %v161 = vld [vmem:[%s138 + $0x40] sm:$0xf]
      %v162 = vld [vmem:[%s138 + $0x44] sm:$0xf]
      %v163 = vld [vmem:[%s138 + $0x48] sm:$0xf]
      %v164 = vld [vmem:[%s138 + $0x4c] sm:$0xf]
      %v165 = vld [vmem:[%s138 + $0x50] sm:$0xf]
      %v166 = vld [vmem:[%s138 + $0x54] sm:$0xf]
      %v167 = vld [vmem:[%s138 + $0x58] sm:$0xf]
      %v168 = vld [vmem:[%s138 + $0x5c] sm:$0xf]
      %v169 = vld [vmem:[%s138 + $0x60] sm:$0xf]
      %v170 = vld [vmem:[%s138 + $0x64] sm:$0xf]
      %v171 = vld [vmem:[%s138 + $0x68] sm:$0xf]
      %v172 = vld [vmem:[%s138 + $0x6c] sm:$0xf]
      %v173 = vld [vmem:[%s138 + $0x70] sm:$0xf]
      %v174 = vld [vmem:[%s138 + $0x74] sm:$0xf]
      %v175 = vld [vmem:[%s138 + $0x78] sm:$0xf]
      %v176 = vld [vmem:[%s138 + $0x7c] sm:$0xf]
      %v177 = vld [vmem:[%s138 + $0x80] sm:$0xf]
      %v178 = vld [vmem:[%s138 + $0x84] sm:$0xf]
      %v179 = vld [vmem:[%s138 + $0x88] sm:$0xf]
      %v180 = vld [vmem:[%s138 + $0x8c] sm:$0xf]
      %v181 = vld [vmem:[%s138 + $0x90] sm:$0xf]
      %v182 = vld [vmem:[%s138 + $0x94] sm:$0xf]
      %v183 = vld [vmem:[%s138 + $0x98] sm:$0xf]
      %v184 = vld [vmem:[%s138 + $0x9c] sm:$0xf]
      %v185 = vld [vmem:[%s138 + $0xa0] sm:$0xf]
      %v186 = vld [vmem:[%s138 + $0xa4] sm:$0xf]
      %v187 = vld [vmem:[%s138 + $0xa8] sm:$0xf]
      %v188 = vld [vmem:[%s138 + $0xac] sm:$0xf]
      %v189 = vld [vmem:[%s138 + $0xb0] sm:$0xf]
      %v190 = vld [vmem:[%s138 + $0xb4] sm:$0xf]
      %v191 = vld [vmem:[%s138 + $0xb8] sm:$0xf]
      %v192 = vld [vmem:[%s138 + $0xbc] sm:$0xf]
      %v193 = vld [vmem:[%s138 + $0xc0] sm:$0xf]
      %v194 = vld [vmem:[%s138 + $0xc4] sm:$0xf]
      %v195 = vld [vmem:[%s138 + $0xc8] sm:$0xf]
      %v196 = vld [vmem:[%s138 + $0xcc] sm:$0xf]
      %v197 = vld [vmem:[%s138 + $0xd0] sm:$0xf]
      %v198 = vld [vmem:[%s138 + $0xd4] sm:$0xf]
      %v199 = vld [vmem:[%s138 + $0xd8] sm:$0xf]
      %v200 = vld [vmem:[%s138 + $0xdc] sm:$0xf]
      %v201 = vld [vmem:[%s138 + $0xe0] sm:$0xf]
      %v202 = vld [vmem:[%s138 + $0xe4] sm:$0xf]
      %v203 = vld [vmem:[%s138 + $0xe8] sm:$0xf]
      %v204 = vld [vmem:[%s138 + $0xec] sm:$0xf]
      %v205 = vld [vmem:[%s138 + $0xf0] sm:$0xf]
      %v206 = vld [vmem:[%s138 + $0xf4] sm:$0xf]
      %v207 = vld [vmem:[%s138 + $0xf8] sm:$0xf]
      %v208 = vld [vmem:[%s138 + $0xfc] sm:$0xf]
      %v209 = vld [vmem:[%s138 + $0x100] sm:$0xf]
      %v210 = vld [vmem:[%s138 + $0x104] sm:$0xf]
      %v211 = vld [vmem:[%s138 + $0x108] sm:$0xf]
      %v212 = vld [vmem:[%s138 + $0x10c] sm:$0xf]
      %v213 = vld [vmem:[%s138 + $0x110] sm:$0xf]
      %v214 = vld [vmem:[%s138 + $0x114] sm:$0xf]
      %v215 = vld [vmem:[%s138 + $0x118] sm:$0xf]
      %v216 = vld [vmem:[%s138 + $0x11c] sm:$0xf]
      %v217 = vld [vmem:[%s138 + $0x120] sm:$0xf]
      %v218 = vld [vmem:[%s138 + $0x124] sm:$0xf]
      %v219 = vld [vmem:[%s138 + $0x128] sm:$0xf]
      %v220 = vld [vmem:[%s138 + $0x12c] sm:$0xf]
      %v221 = vld [vmem:[%s138 + $0x130] sm:$0xf]
      %v222 = vld [vmem:[%s138 + $0x134] sm:$0xf]
      %v223 = vld [vmem:[%s138 + $0x138] sm:$0xf]
      %v224 = vld [vmem:[%s138 + $0x13c] sm:$0xf]
      %v225 = vld [vmem:[%s138 + $0x140] sm:$0xf]
      %v226 = vld [vmem:[%s138 + $0x144] sm:$0xf]
      %v227 = vld [vmem:[%s138 + $0x148] sm:$0xf]
      %v228 = vld [vmem:[%s138 + $0x14c] sm:$0xf]
      %v229 = vld [vmem:[%s138 + $0x150] sm:$0xf]
      %v230 = vld [vmem:[%s138 + $0x154] sm:$0xf]
      %v231 = vld [vmem:[%s138 + $0x158] sm:$0xf]
      %v232 = vld [vmem:[%s138 + $0x15c] sm:$0xf]
      %v233 = vld [vmem:[%s138 + $0x160] sm:$0xf]
      %v234 = vld [vmem:[%s138 + $0x164] sm:$0xf]
      %v235 = vld [vmem:[%s138 + $0x168] sm:$0xf]
      %v236 = vld [vmem:[%s138 + $0x16c] sm:$0xf]
      %v237 = vld [vmem:[%s138 + $0x170] sm:$0xf]
      %v238 = vld [vmem:[%s138 + $0x174] sm:$0xf]
      %v239 = vld [vmem:[%s138 + $0x178] sm:$0xf]
      %v240 = vld [vmem:[%s138 + $0x17c] sm:$0xf]
      %v241 = vld [vmem:[%s138 + $0x180] sm:$0xf]
      %v242 = vld [vmem:[%s138 + $0x184] sm:$0xf]
      %v243 = vld [vmem:[%s138 + $0x188] sm:$0xf]
      %v244 = vld [vmem:[%s138 + $0x18c] sm:$0xf]
      %v245 = vld [vmem:[%s138 + $0x190] sm:$0xf]
      %v246 = vld [vmem:[%s138 + $0x194] sm:$0xf]
      %v247 = vld [vmem:[%s138 + $0x198] sm:$0xf]
      %v248 = vld [vmem:[%s138 + $0x19c] sm:$0xf]
      %v249 = vld [vmem:[%s138 + $0x1a0] sm:$0xf]
      %v250 = vld [vmem:[%s138 + $0x1a4] sm:$0xf]
      %v251 = vld [vmem:[%s138 + $0x1a8] sm:$0xf]
      %v252 = vld [vmem:[%s138 + $0x1ac] sm:$0xf]
      %v253 = vld [vmem:[%s138 + $0x1b0] sm:$0xf]
      %v254 = vld [vmem:[%s138 + $0x1b4] sm:$0xf]
      %v255 = vld [vmem:[%s138 + $0x1b8] sm:$0xf]
      %v256 = vld [vmem:[%s138 + $0x1bc] sm:$0xf]
      %v257 = vld [vmem:[%s138 + $0x1c0] sm:$0xf]
      %v258 = vld [vmem:[%s138 + $0x1c4] sm:$0xf]
      %v259 = vld [vmem:[%s138 + $0x1c8] sm:$0xf]
      %v260 = vld [vmem:[%s138 + $0x1cc] sm:$0xf]
      %v261 = vld [vmem:[%s138 + $0x1d0] sm:$0xf]
      %v262 = vld [vmem:[%s138 + $0x1d4] sm:$0xf]
      %v263 = vld [vmem:[%s138 + $0x1d8] sm:$0xf]
      %v264 = vld [vmem:[%s138 + $0x1dc] sm:$0xf]
      %v265 = vld [vmem:[%s138 + $0x1e0] sm:$0xf]
      %v266 = vld [vmem:[%s138 + $0x1e4] sm:$0xf]
      %v267 = vld [vmem:[%s138 + $0x1e8] sm:$0xf]
      %v268 = vld [vmem:[%s138 + $0x1ec] sm:$0xf]
      %v269 = vld [vmem:[%s138 + $0x1f0] sm:$0xf]
      %v270 = vld [vmem:[%s138 + $0x1f4] sm:$0xf]
      %v271 = vld [vmem:[%s138 + $0x1f8] sm:$0xf]
      %v272 = vld [vmem:[%s138 + $0x1fc] sm:$0xf]
      %v273 = vld [vmem:[%s138 + $0x200] sm:$0xf]
      %v274 = vld [vmem:[%s138 + $0x204] sm:$0xf]
      %v275 = vld [vmem:[%s138 + $0x208] sm:$0xf]
      %v276 = vld [vmem:[%s138 + $0x20c] sm:$0xf]
      %v277 = vld [vmem:[%s138 + $0x210] sm:$0xf]
      %v278 = vld [vmem:[%s138 + $0x214] sm:$0xf]
      %v279 = vld [vmem:[%s138 + $0x218] sm:$0xf]
      %v280 = vld [vmem:[%s138 + $0x21c] sm:$0xf]
      %v281 = vld [vmem:[%s138 + $0x220] sm:$0xf]
      %v282 = vld [vmem:[%s1] sm:$0xf]
      %v283 = vld [vmem:[%s1 + $0x4] sm:$0x3]
      %v421 = vunpack.c.l.b16 %v145
      %v422 = vunpack.c.l.b16 %v146
      %v423 = vunpack.c.l.b16 %v147
      %v424 = vunpack.c.l.b16 %v148
      %v425 = vunpack.c.l.b16 %v149
      %v426 = vunpack.c.l.b16 %v150
      %v427 = vunpack.c.l.b16 %v151
      %v428 = vunpack.c.l.b16 %v152
      %v429 = vunpack.c.l.b16 %v153
      %v430 = vunpack.c.l.b16 %v154
      %v431 = vunpack.c.l.b16 %v155
      %v432 = vunpack.c.l.b16 %v156
      %v433 = vunpack.c.l.b16 %v157
      %v434 = vunpack.c.l.b16 %v158
      %v435 = vunpack.c.l.b16 %v159
      %v436 = vunpack.c.l.b16 %v160
      %v437 = vunpack.c.l.b16 %v161
      %v438 = vunpack.c.l.b16 %v162
      %v439 = vunpack.c.l.b16 %v163
      %v440 = vunpack.c.l.b16 %v164
      %v441 = vunpack.c.l.b16 %v165
      %v442 = vunpack.c.l.b16 %v166
      %v443 = vunpack.c.l.b16 %v167
      %v444 = vunpack.c.l.b16 %v168
      %v445 = vunpack.c.l.b16 %v169
      %v446 = vunpack.c.l.b16 %v170
      %v447 = vunpack.c.l.b16 %v171
      %v448 = vunpack.c.l.b16 %v172
      %v449 = vunpack.c.l.b16 %v173
      %v450 = vunpack.c.l.b16 %v174
      %v451 = vunpack.c.l.b16 %v175
      %v452 = vunpack.c.l.b16 %v176
      %v453 = vunpack.c.l.b16 %v177
      %v454 = vunpack.c.l.b16 %v178
      %v455 = vunpack.c.l.b16 %v179
      %v456 = vunpack.c.l.b16 %v180
      %v457 = vunpack.c.l.b16 %v181
      %v458 = vunpack.c.l.b16 %v182
      %v459 = vunpack.c.l.b16 %v183
      %v460 = vunpack.c.l.b16 %v184
      %v461 = vunpack.c.l.b16 %v185
      %v462 = vunpack.c.l.b16 %v186
      %v463 = vunpack.c.l.b16 %v187
      %v464 = vunpack.c.l.b16 %v188
      %v465 = vunpack.c.l.b16 %v189
      %v466 = vunpack.c.l.b16 %v190
      %v467 = vunpack.c.l.b16 %v191
      %v468 = vunpack.c.l.b16 %v192
      %v469 = vunpack.c.l.b16 %v193
      %v470 = vunpack.c.l.b16 %v194
      %v471 = vunpack.c.l.b16 %v195
      %v472 = vunpack.c.l.b16 %v196
      %v473 = vunpack.c.l.b16 %v197
      %v474 = vunpack.c.l.b16 %v198
      %v475 = vunpack.c.l.b16 %v199
      %v476 = vunpack.c.l.b16 %v200
      %v477 = vunpack.c.l.b16 %v201
      %v478 = vunpack.c.l.b16 %v202
      %v479 = vunpack.c.l.b16 %v203
      %v480 = vunpack.c.l.b16 %v204
      %v481 = vunpack.c.l.b16 %v205
      %v482 = vunpack.c.l.b16 %v206
      %v483 = vunpack.c.l.b16 %v207
      %v484 = vunpack.c.l.b16 %v208
      %v485 = vunpack.c.l.b16 %v209
      %v486 = vunpack.c.l.b16 %v210
      %v487 = vunpack.c.l.b16 %v211
      %v488 = vunpack.c.l.b16 %v212
      %v489 = vunpack.c.l.b16 %v213
      %v490 = vunpack.c.l.b16 %v214
      %v491 = vunpack.c.l.b16 %v215
      %v492 = vunpack.c.l.b16 %v216
      %v493 = vunpack.c.l.b16 %v217
      %v494 = vunpack.c.l.b16 %v218
      %v495 = vunpack.c.l.b16 %v219
      %v496 = vunpack.c.l.b16 %v220
      %v497 = vunpack.c.l.b16 %v221
      %v498 = vunpack.c.l.b16 %v222
      %v499 = vunpack.c.l.b16 %v223
      %v500 = vunpack.c.l.b16 %v224
      %v501 = vunpack.c.l.b16 %v225
      %v502 = vunpack.c.l.b16 %v226
      %v503 = vunpack.c.l.b16 %v227
      %v504 = vunpack.c.l.b16 %v228
      %v505 = vunpack.c.l.b16 %v229
      %v506 = vunpack.c.l.b16 %v230
      %v507 = vunpack.c.l.b16 %v231
      %v508 = vunpack.c.l.b16 %v232
      %v509 = vunpack.c.l.b16 %v233
      %v510 = vunpack.c.l.b16 %v234
      %v511 = vunpack.c.l.b16 %v235
      %v512 = vunpack.c.l.b16 %v236
      %v513 = vunpack.c.l.b16 %v237
      %v514 = vunpack.c.l.b16 %v238
      %v515 = vunpack.c.l.b16 %v239
      %v516 = vunpack.c.l.b16 %v240
      %v517 = vunpack.c.l.b16 %v241
      %v518 = vunpack.c.l.b16 %v242
      %v519 = vunpack.c.l.b16 %v243
      %v520 = vunpack.c.l.b16 %v244
      %v521 = vunpack.c.l.b16 %v245
      %v522 = vunpack.c.l.b16 %v246
      %v523 = vunpack.c.l.b16 %v247
      %v524 = vunpack.c.l.b16 %v248
      %v525 = vunpack.c.l.b16 %v249
      %v526 = vunpack.c.l.b16 %v250
      %v527 = vunpack.c.l.b16 %v251
      %v528 = vunpack.c.l.b16 %v252
      %v529 = vunpack.c.l.b16 %v253
      %v530 = vunpack.c.l.b16 %v254
      %v531 = vunpack.c.l.b16 %v255
      %v532 = vunpack.c.l.b16 %v256
      %v533 = vunpack.c.l.b16 %v257
      %v534 = vunpack.c.l.b16 %v258
      %v535 = vunpack.c.l.b16 %v259
      %v536 = vunpack.c.l.b16 %v260
      %v537 = vunpack.c.l.b16 %v261
      %v538 = vunpack.c.l.b16 %v262
      %v539 = vunpack.c.l.b16 %v263
      %v540 = vunpack.c.l.b16 %v264
      %v541 = vunpack.c.l.b16 %v265
      %v542 = vunpack.c.l.b16 %v266
      %v543 = vunpack.c.l.b16 %v267
      %v544 = vunpack.c.l.b16 %v268
      %v545 = vunpack.c.l.b16 %v269
      %v546 = vunpack.c.l.b16 %v270
      %v547 = vunpack.c.l.b16 %v271
      %v548 = vunpack.c.l.b16 %v272
      %v549 = vunpack.c.l.b16 %v273
      %v550 = vunpack.c.l.b16 %v274
      %v551 = vunpack.c.l.b16 %v275
      %v552 = vunpack.c.l.b16 %v276
      %v553 = vunpack.c.l.b16 %v277
      %v554 = vunpack.c.l.b16 %v278
      %v555 = vunpack.c.l.b16 %v279
      %v556 = vunpack.c.l.b16 %v280
      %v557 = vunpack.c.l.b16 %v281
      %v558 = vpack.c.b16 %v422, %v421
      %v559 = vpack.c.b16 %v424, %v423
      %v560 = vpack.c.b16 %v426, %v425
      %v561 = vpack.c.b16 %v428, %v427
      %v562 = vpack.c.b16 %v430, %v429
      %v563 = vpack.c.b16 %v432, %v431
      %v564 = vpack.c.b16 %v434, %v433
      %v565 = vpack.c.b16 %v436, %v435
      %v566 = vpack.c.b16 %v438, %v437
      %v567 = vpack.c.b16 %v440, %v439
      %v568 = vpack.c.b16 %v442, %v441
      %v569 = vpack.c.b16 %v444, %v443
      %v570 = vpack.c.b16 %v446, %v445
      %v571 = vpack.c.b16 %v448, %v447
      %v572 = vpack.c.b16 %v450, %v449
      %v573 = vpack.c.b16 %v452, %v451
      %v574 = vpack.c.b16 %v454, %v453
      %v575 = vpack.c.b16 %v456, %v455
      %v576 = vpack.c.b16 %v458, %v457
      %v577 = vpack.c.b16 %v460, %v459
      %v578 = vpack.c.b16 %v462, %v461
      %v579 = vpack.c.b16 %v464, %v463
      %v580 = vpack.c.b16 %v466, %v465
      %v581 = vpack.c.b16 %v468, %v467
      %v582 = vpack.c.b16 %v470, %v469
      %v583 = vpack.c.b16 %v472, %v471
      %v584 = vpack.c.b16 %v474, %v473
      %v585 = vpack.c.b16 %v476, %v475
      %v586 = vpack.c.b16 %v478, %v477
      %v587 = vpack.c.b16 %v480, %v479
      %v588 = vpack.c.b16 %v482, %v481
      %v589 = vpack.c.b16 %v484, %v483
      %v590 = vpack.c.b16 %v486, %v485
      %v591 = vpack.c.b16 %v488, %v487
      %v592 = vpack.c.b16 %v490, %v489
      %v593 = vpack.c.b16 %v492, %v491
      %v594 = vpack.c.b16 %v494, %v493
      %v595 = vpack.c.b16 %v496, %v495
      %v596 = vpack.c.b16 %v498, %v497
      %v597 = vpack.c.b16 %v500, %v499
      %v598 = vpack.c.b16 %v502, %v501
      %v599 = vpack.c.b16 %v504, %v503
      %v600 = vpack.c.b16 %v506, %v505
      %v601 = vpack.c.b16 %v508, %v507
      %v602 = vpack.c.b16 %v510, %v509
      %v603 = vpack.c.b16 %v512, %v511
      %v604 = vpack.c.b16 %v514, %v513
      %v605 = vpack.c.b16 %v516, %v515
      %v606 = vpack.c.b16 %v518, %v517
      %v607 = vpack.c.b16 %v520, %v519
      %v608 = vpack.c.b16 %v522, %v521
      %v609 = vpack.c.b16 %v524, %v523
      %v610 = vpack.c.b16 %v526, %v525
      %v611 = vpack.c.b16 %v528, %v527
      %v612 = vpack.c.b16 %v530, %v529
      %v613 = vpack.c.b16 %v532, %v531
      %v614 = vpack.c.b16 %v534, %v533
      %v615 = vpack.c.b16 %v536, %v535
      %v616 = vpack.c.b16 %v538, %v537
      %v617 = vpack.c.b16 %v540, %v539
      %v618 = vpack.c.b16 %v542, %v541
      %v619 = vpack.c.b16 %v544, %v543
      %v620 = vpack.c.b16 %v546, %v545
      %v621 = vpack.c.b16 %v548, %v547
      %v622 = vpack.c.b16 %v550, %v549
      %v623 = vpack.c.b16 %v552, %v551
      %v624 = vpack.c.b16 %v554, %v553
      %v625 = vpack.c.b16 %v556, %v555
      %v626 = vpack.c.b16 %v557, %v557
      %v629 = vunpack.c.l.b16 %v282
      %v630 = vunpack.c.l.b16 %v283
      %v631 = vpack.c.b16 %v630, %v629
      %vm632 = vcmask 97280
      %v634 = vsel %vm632, %v558, 0
      %v637 = vsel %vm632, %v559, 0
      %v640 = vsel %vm632, %v560, 0
      %v643 = vsel %vm632, %v561, 0
      %v646 = vsel %vm632, %v562, 0
      %v649 = vsel %vm632, %v563, 0
      %v652 = vsel %vm632, %v564, 0
      %v655 = vsel %vm632, %v565, 0
      %v658 = vsel %vm632, %v566, 0
      %v661 = vsel %vm632, %v567, 0
      %v664 = vsel %vm632, %v568, 0
      %v667 = vsel %vm632, %v569, 0
      %v670 = vsel %vm632, %v570, 0
      %v673 = vsel %vm632, %v571, 0
      %v676 = vsel %vm632, %v572, 0
      %v679 = vsel %vm632, %v573, 0
      %v682 = vsel %vm632, %v574, 0
      %v685 = vsel %vm632, %v575, 0
      %v688 = vsel %vm632, %v576, 0
      %v691 = vsel %vm632, %v577, 0
      %v694 = vsel %vm632, %v578, 0
      %v697 = vsel %vm632, %v579, 0
      %v700 = vsel %vm632, %v580, 0
      %v703 = vsel %vm632, %v581, 0
      %v706 = vsel %vm632, %v582, 0
      %v709 = vsel %vm632, %v583, 0
      %v712 = vsel %vm632, %v584, 0
      %v715 = vsel %vm632, %v585, 0
      %v718 = vsel %vm632, %v586, 0
      %v721 = vsel %vm632, %v587, 0
      %v724 = vsel %vm632, %v588, 0
      %v727 = vsel %vm632, %v589, 0
      %v730 = vsel %vm632, %v590, 0
      %v733 = vsel %vm632, %v591, 0
      %v736 = vsel %vm632, %v592, 0
      %v739 = vsel %vm632, %v593, 0
      %v742 = vsel %vm632, %v594, 0
      %v745 = vsel %vm632, %v595, 0
      %v748 = vsel %vm632, %v596, 0
      %v751 = vsel %vm632, %v597, 0
      %v754 = vsel %vm632, %v598, 0
      %v757 = vsel %vm632, %v599, 0
      %v760 = vsel %vm632, %v600, 0
      %v763 = vsel %vm632, %v601, 0
      %v766 = vsel %vm632, %v602, 0
      %v769 = vsel %vm632, %v603, 0
      %v772 = vsel %vm632, %v604, 0
      %v775 = vsel %vm632, %v605, 0
      %v778 = vsel %vm632, %v606, 0
      %v781 = vsel %vm632, %v607, 0
      %v784 = vsel %vm632, %v608, 0
      %v787 = vsel %vm632, %v609, 0
      %v790 = vsel %vm632, %v610, 0
      %v793 = vsel %vm632, %v611, 0
      %v796 = vsel %vm632, %v612, 0
      %v799 = vsel %vm632, %v613, 0
      %v802 = vsel %vm632, %v614, 0
      %v805 = vsel %vm632, %v615, 0
      %v808 = vsel %vm632, %v616, 0
      %v811 = vsel %vm632, %v617, 0
      %v814 = vsel %vm632, %v618, 0
      %v817 = vsel %vm632, %v619, 0
      %v820 = vsel %vm632, %v620, 0
      %v823 = vsel %vm632, %v621, 0
      %v826 = vsel %vm632, %v622, 0
      %v829 = vsel %vm632, %v623, 0
      %v832 = vsel %vm632, %v624, 0
      %v835 = vsel %vm632, %v625, 0
      %v838 = vsel %vm632, %v626, 0
      %vm840 = vcmask 1045504
      %v842 = vsel %vm840, %v631, 0
      %844 = vmatpush.bf16.msra.mxu0 0
      %845 = vmatpush.bf16.msra.mxu0 0
      %846 = vmatpush.bf16.msra.mxu0 0
      %847 = vmatpush.bf16.msra.mxu0 0
      %848 = vmatpush.bf16.msra.mxu0 0
      %849 = vmatpush.bf16.msra.mxu0 0
      %850 = vmatpush.bf16.msra.mxu0 0
      %851 = vmatpush.bf16.msra.mxu0 %v842
      %852 = vmatmul.bf16.gmra.mxu0 %v634
      %v853 = vpop.f32.mrf.mxu0
      %v854 = vadd.f32 0.0, %v853
      %v855 = vpop.f32.mrf.mxu0
      %v856 = vadd.f32 0.0, %v855
      %857 = vmatmul.bf16.gmra.mxu0 %v637
      %v858 = vpop.f32.mrf.mxu0
      %v859 = vadd.f32 0.0, %v858
      %v860 = vpop.f32.mrf.mxu0
      %v861 = vadd.f32 0.0, %v860
      %862 = vmatmul.bf16.gmra.mxu0 %v640
      %v863 = vpop.f32.mrf.mxu0
      %v864 = vadd.f32 0.0, %v863
      %v865 = vpop.f32.mrf.mxu0
      %v866 = vadd.f32 0.0, %v865
      %867 = vmatmul.bf16.gmra.mxu0 %v643
      %v868 = vpop.f32.mrf.mxu0
      %v869 = vadd.f32 0.0, %v868
      %v870 = vpop.f32.mrf.mxu0
      %v871 = vadd.f32 0.0, %v870
      %872 = vmatmul.bf16.gmra.mxu0 %v646
      %v873 = vpop.f32.mrf.mxu0
      %v874 = vadd.f32 0.0, %v873
      %v875 = vpop.f32.mrf.mxu0
      %v876 = vadd.f32 0.0, %v875
      %877 = vmatmul.bf16.gmra.mxu0 %v649
      %v878 = vpop.f32.mrf.mxu0
      %v879 = vadd.f32 0.0, %v878
      %v880 = vpop.f32.mrf.mxu0
      %v881 = vadd.f32 0.0, %v880
      %882 = vmatmul.bf16.gmra.mxu0 %v652
      %v883 = vpop.f32.mrf.mxu0
      %v884 = vadd.f32 0.0, %v883
      %v885 = vpop.f32.mrf.mxu0
      %v886 = vadd.f32 0.0, %v885
      %887 = vmatmul.bf16.gmra.mxu0 %v655
      %v888 = vpop.f32.mrf.mxu0
      %v889 = vadd.f32 0.0, %v888
      %v890 = vpop.f32.mrf.mxu0
      %v891 = vadd.f32 0.0, %v890
      %892 = vmatmul.bf16.gmra.mxu0 %v658
      %v893 = vpop.f32.mrf.mxu0
      %v894 = vadd.f32 0.0, %v893
      %v895 = vpop.f32.mrf.mxu0
      %v896 = vadd.f32 0.0, %v895
      %897 = vmatmul.bf16.gmra.mxu0 %v661
      %v898 = vpop.f32.mrf.mxu0
      %v899 = vadd.f32 0.0, %v898
      %v900 = vpop.f32.mrf.mxu0
      %v901 = vadd.f32 0.0, %v900
      %902 = vmatmul.bf16.gmra.mxu0 %v664
      %v903 = vpop.f32.mrf.mxu0
      %v904 = vadd.f32 0.0, %v903
      %v905 = vpop.f32.mrf.mxu0
      %v906 = vadd.f32 0.0, %v905
      %907 = vmatmul.bf16.gmra.mxu0 %v667
      %v908 = vpop.f32.mrf.mxu0
      %v909 = vadd.f32 0.0, %v908
      %v910 = vpop.f32.mrf.mxu0
      %v911 = vadd.f32 0.0, %v910
      %912 = vmatmul.bf16.gmra.mxu0 %v670
      %v913 = vpop.f32.mrf.mxu0
      %v914 = vadd.f32 0.0, %v913
      %v915 = vpop.f32.mrf.mxu0
      %v916 = vadd.f32 0.0, %v915
      %917 = vmatmul.bf16.gmra.mxu0 %v673
      %v918 = vpop.f32.mrf.mxu0
      %v919 = vadd.f32 0.0, %v918
      %v920 = vpop.f32.mrf.mxu0
      %v921 = vadd.f32 0.0, %v920
      %922 = vmatmul.bf16.gmra.mxu0 %v676
      %v923 = vpop.f32.mrf.mxu0
      %v924 = vadd.f32 0.0, %v923
      %v925 = vpop.f32.mrf.mxu0
      %v926 = vadd.f32 0.0, %v925
      %927 = vmatmul.bf16.gmra.mxu0 %v679
      %v928 = vpop.f32.mrf.mxu0
      %v929 = vadd.f32 0.0, %v928
      %v930 = vpop.f32.mrf.mxu0
      %v931 = vadd.f32 0.0, %v930
      %932 = vmatmul.bf16.gmra.mxu0 %v682
      %v933 = vpop.f32.mrf.mxu0
      %v934 = vadd.f32 0.0, %v933
      %v935 = vpop.f32.mrf.mxu0
      %v936 = vadd.f32 0.0, %v935
      %937 = vmatmul.bf16.gmra.mxu0 %v685
      %v938 = vpop.f32.mrf.mxu0
      %v939 = vadd.f32 0.0, %v938
      %v940 = vpop.f32.mrf.mxu0
      %v941 = vadd.f32 0.0, %v940
      %942 = vmatmul.bf16.gmra.mxu0 %v688
      %v943 = vpop.f32.mrf.mxu0
      %v944 = vadd.f32 0.0, %v943
      %v945 = vpop.f32.mrf.mxu0
      %v946 = vadd.f32 0.0, %v945
      %947 = vmatmul.bf16.gmra.mxu0 %v691
      %v948 = vpop.f32.mrf.mxu0
      %v949 = vadd.f32 0.0, %v948
      %v950 = vpop.f32.mrf.mxu0
      %v951 = vadd.f32 0.0, %v950
      %952 = vmatmul.bf16.gmra.mxu0 %v694
      %v953 = vpop.f32.mrf.mxu0
      %v954 = vadd.f32 0.0, %v953
      %v955 = vpop.f32.mrf.mxu0
      %v956 = vadd.f32 0.0, %v955
      %957 = vmatmul.bf16.gmra.mxu0 %v697
      %v958 = vpop.f32.mrf.mxu0
      %v959 = vadd.f32 0.0, %v958
      %v960 = vpop.f32.mrf.mxu0
      %v961 = vadd.f32 0.0, %v960
      %962 = vmatmul.bf16.gmra.mxu0 %v700
      %v963 = vpop.f32.mrf.mxu0
      %v964 = vadd.f32 0.0, %v963
      %v965 = vpop.f32.mrf.mxu0
      %v966 = vadd.f32 0.0, %v965
      %967 = vmatmul.bf16.gmra.mxu0 %v703
      %v968 = vpop.f32.mrf.mxu0
      %v969 = vadd.f32 0.0, %v968
      %v970 = vpop.f32.mrf.mxu0
      %v971 = vadd.f32 0.0, %v970
      %972 = vmatmul.bf16.gmra.mxu0 %v706
      %v973 = vpop.f32.mrf.mxu0
      %v974 = vadd.f32 0.0, %v973
      %v975 = vpop.f32.mrf.mxu0
      %v976 = vadd.f32 0.0, %v975
      %977 = vmatmul.bf16.gmra.mxu0 %v709
      %v978 = vpop.f32.mrf.mxu0
      %v979 = vadd.f32 0.0, %v978
      %v980 = vpop.f32.mrf.mxu0
      %v981 = vadd.f32 0.0, %v980
      %982 = vmatmul.bf16.gmra.mxu0 %v712
      %v983 = vpop.f32.mrf.mxu0
      %v984 = vadd.f32 0.0, %v983
      %v985 = vpop.f32.mrf.mxu0
      %v986 = vadd.f32 0.0, %v985
      %987 = vmatmul.bf16.gmra.mxu0 %v715
      %v988 = vpop.f32.mrf.mxu0
      %v989 = vadd.f32 0.0, %v988
      %v990 = vpop.f32.mrf.mxu0
      %v991 = vadd.f32 0.0, %v990
      %992 = vmatmul.bf16.gmra.mxu0 %v718
      %v993 = vpop.f32.mrf.mxu0
      %v994 = vadd.f32 0.0, %v993
      %v995 = vpop.f32.mrf.mxu0
      %v996 = vadd.f32 0.0, %v995
      %997 = vmatmul.bf16.gmra.mxu0 %v721
      %v998 = vpop.f32.mrf.mxu0
      %v999 = vadd.f32 0.0, %v998
      %v1000 = vpop.f32.mrf.mxu0
      %v1001 = vadd.f32 0.0, %v1000
      %1002 = vmatmul.bf16.gmra.mxu0 %v724
      %v1003 = vpop.f32.mrf.mxu0
      %v1004 = vadd.f32 0.0, %v1003
      %v1005 = vpop.f32.mrf.mxu0
      %v1006 = vadd.f32 0.0, %v1005
      %1007 = vmatmul.bf16.gmra.mxu0 %v727
      %v1008 = vpop.f32.mrf.mxu0
      %v1009 = vadd.f32 0.0, %v1008
      %v1010 = vpop.f32.mrf.mxu0
      %v1011 = vadd.f32 0.0, %v1010
      %1012 = vmatmul.bf16.gmra.mxu0 %v730
      %v1013 = vpop.f32.mrf.mxu0
      %v1014 = vadd.f32 0.0, %v1013
      %v1015 = vpop.f32.mrf.mxu0
      %v1016 = vadd.f32 0.0, %v1015
      %1017 = vmatmul.bf16.gmra.mxu0 %v733
      %v1018 = vpop.f32.mrf.mxu0
      %v1019 = vadd.f32 0.0, %v1018
      %v1020 = vpop.f32.mrf.mxu0
      %v1021 = vadd.f32 0.0, %v1020
      %1022 = vmatmul.bf16.gmra.mxu0 %v736
      %v1023 = vpop.f32.mrf.mxu0
      %v1024 = vadd.f32 0.0, %v1023
      %v1025 = vpop.f32.mrf.mxu0
      %v1026 = vadd.f32 0.0, %v1025
      %1027 = vmatmul.bf16.gmra.mxu0 %v739
      %v1028 = vpop.f32.mrf.mxu0
      %v1029 = vadd.f32 0.0, %v1028
      %v1030 = vpop.f32.mrf.mxu0
      %v1031 = vadd.f32 0.0, %v1030
      %1032 = vmatmul.bf16.gmra.mxu0 %v742
      %v1033 = vpop.f32.mrf.mxu0
      %v1034 = vadd.f32 0.0, %v1033
      %v1035 = vpop.f32.mrf.mxu0
      %v1036 = vadd.f32 0.0, %v1035
      %1037 = vmatmul.bf16.gmra.mxu0 %v745
      %v1038 = vpop.f32.mrf.mxu0
      %v1039 = vadd.f32 0.0, %v1038
      %v1040 = vpop.f32.mrf.mxu0
      %v1041 = vadd.f32 0.0, %v1040
      %1042 = vmatmul.bf16.gmra.mxu0 %v748
      %v1043 = vpop.f32.mrf.mxu0
      %v1044 = vadd.f32 0.0, %v1043
      %v1045 = vpop.f32.mrf.mxu0
      %v1046 = vadd.f32 0.0, %v1045
      %1047 = vmatmul.bf16.gmra.mxu0 %v751
      %v1048 = vpop.f32.mrf.mxu0
      %v1049 = vadd.f32 0.0, %v1048
      %v1050 = vpop.f32.mrf.mxu0
      %v1051 = vadd.f32 0.0, %v1050
      %1052 = vmatmul.bf16.gmra.mxu0 %v754
      %v1053 = vpop.f32.mrf.mxu0
      %v1054 = vadd.f32 0.0, %v1053
      %v1055 = vpop.f32.mrf.mxu0
      %v1056 = vadd.f32 0.0, %v1055
      %1057 = vmatmul.bf16.gmra.mxu0 %v757
      %v1058 = vpop.f32.mrf.mxu0
      %v1059 = vadd.f32 0.0, %v1058
      %v1060 = vpop.f32.mrf.mxu0
      %v1061 = vadd.f32 0.0, %v1060
      %1062 = vmatmul.bf16.gmra.mxu0 %v760
      %v1063 = vpop.f32.mrf.mxu0
      %v1064 = vadd.f32 0.0, %v1063
      %v1065 = vpop.f32.mrf.mxu0
      %v1066 = vadd.f32 0.0, %v1065
      %1067 = vmatmul.bf16.gmra.mxu0 %v763
      %v1068 = vpop.f32.mrf.mxu0
      %v1069 = vadd.f32 0.0, %v1068
      %v1070 = vpop.f32.mrf.mxu0
      %v1071 = vadd.f32 0.0, %v1070
      %1072 = vmatmul.bf16.gmra.mxu0 %v766
      %v1073 = vpop.f32.mrf.mxu0
      %v1074 = vadd.f32 0.0, %v1073
      %v1075 = vpop.f32.mrf.mxu0
      %v1076 = vadd.f32 0.0, %v1075
      %1077 = vmatmul.bf16.gmra.mxu0 %v769
      %v1078 = vpop.f32.mrf.mxu0
      %v1079 = vadd.f32 0.0, %v1078
      %v1080 = vpop.f32.mrf.mxu0
      %v1081 = vadd.f32 0.0, %v1080
      %1082 = vmatmul.bf16.gmra.mxu0 %v772
      %v1083 = vpop.f32.mrf.mxu0
      %v1084 = vadd.f32 0.0, %v1083
      %v1085 = vpop.f32.mrf.mxu0
      %v1086 = vadd.f32 0.0, %v1085
      %1087 = vmatmul.bf16.gmra.mxu0 %v775
      %v1088 = vpop.f32.mrf.mxu0
      %v1089 = vadd.f32 0.0, %v1088
      %v1090 = vpop.f32.mrf.mxu0
      %v1091 = vadd.f32 0.0, %v1090
      %1092 = vmatmul.bf16.gmra.mxu0 %v778
      %v1093 = vpop.f32.mrf.mxu0
      %v1094 = vadd.f32 0.0, %v1093
      %v1095 = vpop.f32.mrf.mxu0
      %v1096 = vadd.f32 0.0, %v1095
      %1097 = vmatmul.bf16.gmra.mxu0 %v781
      %v1098 = vpop.f32.mrf.mxu0
      %v1099 = vadd.f32 0.0, %v1098
      %v1100 = vpop.f32.mrf.mxu0
      %v1101 = vadd.f32 0.0, %v1100
      %1102 = vmatmul.bf16.gmra.mxu0 %v784
      %v1103 = vpop.f32.mrf.mxu0
      %v1104 = vadd.f32 0.0, %v1103
      %v1105 = vpop.f32.mrf.mxu0
      %v1106 = vadd.f32 0.0, %v1105
      %1107 = vmatmul.bf16.gmra.mxu0 %v787
      %v1108 = vpop.f32.mrf.mxu0
      %v1109 = vadd.f32 0.0, %v1108
      %v1110 = vpop.f32.mrf.mxu0
      %v1111 = vadd.f32 0.0, %v1110
      %1112 = vmatmul.bf16.gmra.mxu0 %v790
      %v1113 = vpop.f32.mrf.mxu0
      %v1114 = vadd.f32 0.0, %v1113
      %v1115 = vpop.f32.mrf.mxu0
      %v1116 = vadd.f32 0.0, %v1115
      %1117 = vmatmul.bf16.gmra.mxu0 %v793
      %v1118 = vpop.f32.mrf.mxu0
      %v1119 = vadd.f32 0.0, %v1118
      %v1120 = vpop.f32.mrf.mxu0
      %v1121 = vadd.f32 0.0, %v1120
      %1122 = vmatmul.bf16.gmra.mxu0 %v796
      %v1123 = vpop.f32.mrf.mxu0
      %v1124 = vadd.f32 0.0, %v1123
      %v1125 = vpop.f32.mrf.mxu0
      %v1126 = vadd.f32 0.0, %v1125
      %1127 = vmatmul.bf16.gmra.mxu0 %v799
      %v1128 = vpop.f32.mrf.mxu0
      %v1129 = vadd.f32 0.0, %v1128
      %v1130 = vpop.f32.mrf.mxu0
      %v1131 = vadd.f32 0.0, %v1130
      %1132 = vmatmul.bf16.gmra.mxu0 %v802
      %v1133 = vpop.f32.mrf.mxu0
      %v1134 = vadd.f32 0.0, %v1133
      %v1135 = vpop.f32.mrf.mxu0
      %v1136 = vadd.f32 0.0, %v1135
      %1137 = vmatmul.bf16.gmra.mxu0 %v805
      %v1138 = vpop.f32.mrf.mxu0
      %v1139 = vadd.f32 0.0, %v1138
      %v1140 = vpop.f32.mrf.mxu0
      %v1141 = vadd.f32 0.0, %v1140
      %1142 = vmatmul.bf16.gmra.mxu0 %v808
      %v1143 = vpop.f32.mrf.mxu0
      %v1144 = vadd.f32 0.0, %v1143
      %v1145 = vpop.f32.mrf.mxu0
      %v1146 = vadd.f32 0.0, %v1145
      %1147 = vmatmul.bf16.gmra.mxu0 %v811
      %v1148 = vpop.f32.mrf.mxu0
      %v1149 = vadd.f32 0.0, %v1148
      %v1150 = vpop.f32.mrf.mxu0
      %v1151 = vadd.f32 0.0, %v1150
      %1152 = vmatmul.bf16.gmra.mxu0 %v814
      %v1153 = vpop.f32.mrf.mxu0
      %v1154 = vadd.f32 0.0, %v1153
      %v1155 = vpop.f32.mrf.mxu0
      %v1156 = vadd.f32 0.0, %v1155
      %1157 = vmatmul.bf16.gmra.mxu0 %v817
      %v1158 = vpop.f32.mrf.mxu0
      %v1159 = vadd.f32 0.0, %v1158
      %v1160 = vpop.f32.mrf.mxu0
      %v1161 = vadd.f32 0.0, %v1160
      %1162 = vmatmul.bf16.gmra.mxu0 %v820
      %v1163 = vpop.f32.mrf.mxu0
      %v1164 = vadd.f32 0.0, %v1163
      %v1165 = vpop.f32.mrf.mxu0
      %v1166 = vadd.f32 0.0, %v1165
      %1167 = vmatmul.bf16.gmra.mxu0 %v823
      %v1168 = vpop.f32.mrf.mxu0
      %v1169 = vadd.f32 0.0, %v1168
      %v1170 = vpop.f32.mrf.mxu0
      %v1171 = vadd.f32 0.0, %v1170
      %1172 = vmatmul.bf16.gmra.mxu0 %v826
      %v1173 = vpop.f32.mrf.mxu0
      %v1174 = vadd.f32 0.0, %v1173
      %v1175 = vpop.f32.mrf.mxu0
      %v1176 = vadd.f32 0.0, %v1175
      %1177 = vmatmul.bf16.gmra.mxu0 %v829
      %v1178 = vpop.f32.mrf.mxu0
      %v1179 = vadd.f32 0.0, %v1178
      %v1180 = vpop.f32.mrf.mxu0
      %v1181 = vadd.f32 0.0, %v1180
      %1182 = vmatmul.bf16.gmra.mxu0 %v832
      %v1183 = vpop.f32.mrf.mxu0
      %v1184 = vpop.f32.mrf.mxu0
      %1185 = vmatmul.bf16.gmra.mxu0 %v835
      %v1186 = vpop.f32.mrf.mxu0
      %v1187 = vpop.f32.mrf.mxu0
      %1188 = vmatmul.bf16.gmra.mxu0 %v838
      %v1189 = vpop.f32.mrf.mxu0
      %v1190 = vpop.f32.mrf.mxu0
      %1191 = vdwg.mxu0
      %s1192 = scalar_lea.vmem %s1, 8
      %v1193 = vld [vmem:[%s1192] sm:$0xf]
      %v1194 = vld [vmem:[%s1192 + $0x4] sm:$0x3]
      %v1197 = vunpack.c.l.b16 %v1193
      %v1198 = vunpack.c.l.b16 %v1194
      %v1199 = vpack.c.b16 %v1198, %v1197
      %v1201 = vsel %vm840, %v1199, 0
      %1203 = vmatpush.bf16.msra.mxu0 0
      %1204 = vmatpush.bf16.msra.mxu0 0
      %1205 = vmatpush.bf16.msra.mxu0 0
      %1206 = vmatpush.bf16.msra.mxu0 0
      %1207 = vmatpush.bf16.msra.mxu0 0
      %1208 = vmatpush.bf16.msra.mxu0 0
      %1209 = vmatpush.bf16.msra.mxu0 0
      %1210 = vmatpush.bf16.msra.mxu0 %v1201
      %1211 = vmatmul.bf16.gmra.mxu0 %v634
      %v1212 = vpop.f32.mrf.mxu0
      %v1213 = vadd.f32 0.0, %v1212
      %v1214 = vpop.f32.mrf.mxu0
      %v1215 = vadd.f32 0.0, %v1214
      %1216 = vmatmul.bf16.gmra.mxu0 %v637
      %v1217 = vpop.f32.mrf.mxu0
      %v1218 = vadd.f32 0.0, %v1217
      %v1219 = vpop.f32.mrf.mxu0
      %v1220 = vadd.f32 0.0, %v1219
      %1221 = vmatmul.bf16.gmra.mxu0 %v640
      %v1222 = vpop.f32.mrf.mxu0
      %v1223 = vadd.f32 0.0, %v1222
      %v1224 = vpop.f32.mrf.mxu0
      %v1225 = vadd.f32 0.0, %v1224
      %1226 = vmatmul.bf16.gmra.mxu0 %v643
      %v1227 = vpop.f32.mrf.mxu0
      %v1228 = vadd.f32 0.0, %v1227
      %v1229 = vpop.f32.mrf.mxu0
      %v1230 = vadd.f32 0.0, %v1229
      %1231 = vmatmul.bf16.gmra.mxu0 %v646
      %v1232 = vpop.f32.mrf.mxu0
      %v1233 = vadd.f32 0.0, %v1232
      %v1234 = vpop.f32.mrf.mxu0
      %v1235 = vadd.f32 0.0, %v1234
      %1236 = vmatmul.bf16.gmra.mxu0 %v649
      %v1237 = vpop.f32.mrf.mxu0
      %v1238 = vadd.f32 0.0, %v1237
      %v1239 = vpop.f32.mrf.mxu0
      %v1240 = vadd.f32 0.0, %v1239
      %1241 = vmatmul.bf16.gmra.mxu0 %v652
      %v1242 = vpop.f32.mrf.mxu0
      %v1243 = vadd.f32 0.0, %v1242
      %v1244 = vpop.f32.mrf.mxu0
      %v1245 = vadd.f32 0.0, %v1244
      %1246 = vmatmul.bf16.gmra.mxu0 %v655
      %v1247 = vpop.f32.mrf.mxu0
      %v1248 = vadd.f32 0.0, %v1247
      %v1249 = vpop.f32.mrf.mxu0
      %v1250 = vadd.f32 0.0, %v1249
      %1251 = vmatmul.bf16.gmra.mxu0 %v658
      %v1252 = vpop.f32.mrf.mxu0
      %v1253 = vadd.f32 0.0, %v1252
      %v1254 = vpop.f32.mrf.mxu0
      %v1255 = vadd.f32 0.0, %v1254
      %1256 = vmatmul.bf16.gmra.mxu0 %v661
      %v1257 = vpop.f32.mrf.mxu0
      %v1258 = vadd.f32 0.0, %v1257
      %v1259 = vpop.f32.mrf.mxu0
      %v1260 = vadd.f32 0.0, %v1259
      %1261 = vmatmul.bf16.gmra.mxu0 %v664
      %v1262 = vpop.f32.mrf.mxu0
      %v1263 = vadd.f32 0.0, %v1262
      %v1264 = vpop.f32.mrf.mxu0
      %v1265 = vadd.f32 0.0, %v1264
      %1266 = vmatmul.bf16.gmra.mxu0 %v667
      %v1267 = vpop.f32.mrf.mxu0
      %v1268 = vadd.f32 0.0, %v1267
      %v1269 = vpop.f32.mrf.mxu0
      %v1270 = vadd.f32 0.0, %v1269
      %1271 = vmatmul.bf16.gmra.mxu0 %v670
      %v1272 = vpop.f32.mrf.mxu0
      %v1273 = vadd.f32 0.0, %v1272
      %v1274 = vpop.f32.mrf.mxu0
      %v1275 = vadd.f32 0.0, %v1274
      %1276 = vmatmul.bf16.gmra.mxu0 %v673
      %v1277 = vpop.f32.mrf.mxu0
      %v1278 = vadd.f32 0.0, %v1277
      %v1279 = vpop.f32.mrf.mxu0
      %v1280 = vadd.f32 0.0, %v1279
      %1281 = vmatmul.bf16.gmra.mxu0 %v676
      %v1282 = vpop.f32.mrf.mxu0
      %v1283 = vadd.f32 0.0, %v1282
      %v1284 = vpop.f32.mrf.mxu0
      %v1285 = vadd.f32 0.0, %v1284
      %1286 = vmatmul.bf16.gmra.mxu0 %v679
      %v1287 = vpop.f32.mrf.mxu0
      %v1288 = vadd.f32 0.0, %v1287
      %v1289 = vpop.f32.mrf.mxu0
      %v1290 = vadd.f32 0.0, %v1289
      %1291 = vmatmul.bf16.gmra.mxu0 %v682
      %v1292 = vpop.f32.mrf.mxu0
      %v1293 = vadd.f32 0.0, %v1292
      %v1294 = vpop.f32.mrf.mxu0
      %v1295 = vadd.f32 0.0, %v1294
      %1296 = vmatmul.bf16.gmra.mxu0 %v685
      %v1297 = vpop.f32.mrf.mxu0
      %v1298 = vadd.f32 0.0, %v1297
      %v1299 = vpop.f32.mrf.mxu0
      %v1300 = vadd.f32 0.0, %v1299
      %1301 = vmatmul.bf16.gmra.mxu0 %v688
      %v1302 = vpop.f32.mrf.mxu0
      %v1303 = vadd.f32 0.0, %v1302
      %v1304 = vpop.f32.mrf.mxu0
      %v1305 = vadd.f32 0.0, %v1304
      %1306 = vmatmul.bf16.gmra.mxu0 %v691
      %v1307 = vpop.f32.mrf.mxu0
      %v1308 = vadd.f32 0.0, %v1307
      %v1309 = vpop.f32.mrf.mxu0
      %v1310 = vadd.f32 0.0, %v1309
      %1311 = vmatmul.bf16.gmra.mxu0 %v694
      %v1312 = vpop.f32.mrf.mxu0
      %v1313 = vadd.f32 0.0, %v1312
      %v1314 = vpop.f32.mrf.mxu0
      %v1315 = vadd.f32 0.0, %v1314
      %1316 = vmatmul.bf16.gmra.mxu0 %v697
      %v1317 = vpop.f32.mrf.mxu0
      %v1318 = vadd.f32 0.0, %v1317
      %v1319 = vpop.f32.mrf.mxu0
      %v1320 = vadd.f32 0.0, %v1319
      %1321 = vmatmul.bf16.gmra.mxu0 %v700
      %v1322 = vpop.f32.mrf.mxu0
      %v1323 = vadd.f32 0.0, %v1322
      %v1324 = vpop.f32.mrf.mxu0
      %v1325 = vadd.f32 0.0, %v1324
      %1326 = vmatmul.bf16.gmra.mxu0 %v703
      %v1327 = vpop.f32.mrf.mxu0
      %v1328 = vadd.f32 0.0, %v1327
      %v1329 = vpop.f32.mrf.mxu0
      %v1330 = vadd.f32 0.0, %v1329
      %1331 = vmatmul.bf16.gmra.mxu0 %v706
      %v1332 = vpop.f32.mrf.mxu0
      %v1333 = vadd.f32 0.0, %v1332
      %v1334 = vpop.f32.mrf.mxu0
      %v1335 = vadd.f32 0.0, %v1334
      %1336 = vmatmul.bf16.gmra.mxu0 %v709
      %v1337 = vpop.f32.mrf.mxu0
      %v1338 = vadd.f32 0.0, %v1337
      %v1339 = vpop.f32.mrf.mxu0
      %v1340 = vadd.f32 0.0, %v1339
      %1341 = vmatmul.bf16.gmra.mxu0 %v712
      %v1342 = vpop.f32.mrf.mxu0
      %v1343 = vadd.f32 0.0, %v1342
      %v1344 = vpop.f32.mrf.mxu0
      %v1345 = vadd.f32 0.0, %v1344
      %1346 = vmatmul.bf16.gmra.mxu0 %v715
      %v1347 = vpop.f32.mrf.mxu0
      %v1348 = vadd.f32 0.0, %v1347
      %v1349 = vpop.f32.mrf.mxu0
      %v1350 = vadd.f32 0.0, %v1349
      %1351 = vmatmul.bf16.gmra.mxu0 %v718
      %v1352 = vpop.f32.mrf.mxu0
      %v1353 = vadd.f32 0.0, %v1352
      %v1354 = vpop.f32.mrf.mxu0
      %v1355 = vadd.f32 0.0, %v1354
      %1356 = vmatmul.bf16.gmra.mxu0 %v721
      %v1357 = vpop.f32.mrf.mxu0
      %v1358 = vadd.f32 0.0, %v1357
      %v1359 = vpop.f32.mrf.mxu0
      %v1360 = vadd.f32 0.0, %v1359
      %1361 = vmatmul.bf16.gmra.mxu0 %v724
      %v1362 = vpop.f32.mrf.mxu0
      %v1363 = vadd.f32 0.0, %v1362
      %v1364 = vpop.f32.mrf.mxu0
      %v1365 = vadd.f32 0.0, %v1364
      %1366 = vmatmul.bf16.gmra.mxu0 %v727
      %v1367 = vpop.f32.mrf.mxu0
      %v1368 = vadd.f32 0.0, %v1367
      %v1369 = vpop.f32.mrf.mxu0
      %v1370 = vadd.f32 0.0, %v1369
      %1371 = vmatmul.bf16.gmra.mxu0 %v730
      %v1372 = vpop.f32.mrf.mxu0
      %v1373 = vadd.f32 0.0, %v1372
      %v1374 = vpop.f32.mrf.mxu0
      %v1375 = vadd.f32 0.0, %v1374
      %1376 = vmatmul.bf16.gmra.mxu0 %v733
      %v1377 = vpop.f32.mrf.mxu0
      %v1378 = vadd.f32 0.0, %v1377
      %v1379 = vpop.f32.mrf.mxu0
      %v1380 = vadd.f32 0.0, %v1379
      %1381 = vmatmul.bf16.gmra.mxu0 %v736
      %v1382 = vpop.f32.mrf.mxu0
      %v1383 = vadd.f32 0.0, %v1382
      %v1384 = vpop.f32.mrf.mxu0
      %v1385 = vadd.f32 0.0, %v1384
      %1386 = vmatmul.bf16.gmra.mxu0 %v739
      %v1387 = vpop.f32.mrf.mxu0
      %v1388 = vadd.f32 0.0, %v1387
      %v1389 = vpop.f32.mrf.mxu0
      %v1390 = vadd.f32 0.0, %v1389
      %1391 = vmatmul.bf16.gmra.mxu0 %v742
      %v1392 = vpop.f32.mrf.mxu0
      %v1393 = vadd.f32 0.0, %v1392
      %v1394 = vpop.f32.mrf.mxu0
      %v1395 = vadd.f32 0.0, %v1394
      %1396 = vmatmul.bf16.gmra.mxu0 %v745
      %v1397 = vpop.f32.mrf.mxu0
      %v1398 = vadd.f32 0.0, %v1397
      %v1399 = vpop.f32.mrf.mxu0
      %v1400 = vadd.f32 0.0, %v1399
      %1401 = vmatmul.bf16.gmra.mxu0 %v748
      %v1402 = vpop.f32.mrf.mxu0
      %v1403 = vadd.f32 0.0, %v1402
      %v1404 = vpop.f32.mrf.mxu0
      %v1405 = vadd.f32 0.0, %v1404
      %1406 = vmatmul.bf16.gmra.mxu0 %v751
      %v1407 = vpop.f32.mrf.mxu0
      %v1408 = vadd.f32 0.0, %v1407
      %v1409 = vpop.f32.mrf.mxu0
      %v1410 = vadd.f32 0.0, %v1409
      %1411 = vmatmul.bf16.gmra.mxu0 %v754
      %v1412 = vpop.f32.mrf.mxu0
      %v1413 = vadd.f32 0.0, %v1412
      %v1414 = vpop.f32.mrf.mxu0
      %v1415 = vadd.f32 0.0, %v1414
      %1416 = vmatmul.bf16.gmra.mxu0 %v757
      %v1417 = vpop.f32.mrf.mxu0
      %v1418 = vadd.f32 0.0, %v1417
      %v1419 = vpop.f32.mrf.mxu0
      %v1420 = vadd.f32 0.0, %v1419
      %1421 = vmatmul.bf16.gmra.mxu0 %v760
      %v1422 = vpop.f32.mrf.mxu0
      %v1423 = vadd.f32 0.0, %v1422
      %v1424 = vpop.f32.mrf.mxu0
      %v1425 = vadd.f32 0.0, %v1424
      %1426 = vmatmul.bf16.gmra.mxu0 %v763
      %v1427 = vpop.f32.mrf.mxu0
      %v1428 = vadd.f32 0.0, %v1427
      %v1429 = vpop.f32.mrf.mxu0
      %v1430 = vadd.f32 0.0, %v1429
      %1431 = vmatmul.bf16.gmra.mxu0 %v766
      %v1432 = vpop.f32.mrf.mxu0
      %v1433 = vadd.f32 0.0, %v1432
      %v1434 = vpop.f32.mrf.mxu0
      %v1435 = vadd.f32 0.0, %v1434
      %1436 = vmatmul.bf16.gmra.mxu0 %v769
      %v1437 = vpop.f32.mrf.mxu0
      %v1438 = vadd.f32 0.0, %v1437
      %v1439 = vpop.f32.mrf.mxu0
      %v1440 = vadd.f32 0.0, %v1439
      %1441 = vmatmul.bf16.gmra.mxu0 %v772
      %v1442 = vpop.f32.mrf.mxu0
      %v1443 = vadd.f32 0.0, %v1442
      %v1444 = vpop.f32.mrf.mxu0
      %v1445 = vadd.f32 0.0, %v1444
      %1446 = vmatmul.bf16.gmra.mxu0 %v775
      %v1447 = vpop.f32.mrf.mxu0
      %v1448 = vadd.f32 0.0, %v1447
      %v1449 = vpop.f32.mrf.mxu0
      %v1450 = vadd.f32 0.0, %v1449
      %1451 = vmatmul.bf16.gmra.mxu0 %v778
      %v1452 = vpop.f32.mrf.mxu0
      %v1453 = vadd.f32 0.0, %v1452
      %v1454 = vpop.f32.mrf.mxu0
      %v1455 = vadd.f32 0.0, %v1454
      %1456 = vmatmul.bf16.gmra.mxu0 %v781
      %v1457 = vpop.f32.mrf.mxu0
      %v1458 = vadd.f32 0.0, %v1457
      %v1459 = vpop.f32.mrf.mxu0
      %v1460 = vadd.f32 0.0, %v1459
      %1461 = vmatmul.bf16.gmra.mxu0 %v784
      %v1462 = vpop.f32.mrf.mxu0
      %v1463 = vadd.f32 0.0, %v1462
      %v1464 = vpop.f32.mrf.mxu0
      %v1465 = vadd.f32 0.0, %v1464
      %1466 = vmatmul.bf16.gmra.mxu0 %v787
      %v1467 = vpop.f32.mrf.mxu0
      %v1468 = vadd.f32 0.0, %v1467
      %v1469 = vpop.f32.mrf.mxu0
      %v1470 = vadd.f32 0.0, %v1469
      %1471 = vmatmul.bf16.gmra.mxu0 %v790
      %v1472 = vpop.f32.mrf.mxu0
      %v1473 = vadd.f32 0.0, %v1472
      %v1474 = vpop.f32.mrf.mxu0
      %v1475 = vadd.f32 0.0, %v1474
      %1476 = vmatmul.bf16.gmra.mxu0 %v793
      %v1477 = vpop.f32.mrf.mxu0
      %v1478 = vadd.f32 0.0, %v1477
      %v1479 = vpop.f32.mrf.mxu0
      %v1480 = vadd.f32 0.0, %v1479
      %1481 = vmatmul.bf16.gmra.mxu0 %v796
      %v1482 = vpop.f32.mrf.mxu0
      %v1483 = vadd.f32 0.0, %v1482
      %v1484 = vpop.f32.mrf.mxu0
      %v1485 = vadd.f32 0.0, %v1484
      %1486 = vmatmul.bf16.gmra.mxu0 %v799
      %v1487 = vpop.f32.mrf.mxu0
      %v1488 = vadd.f32 0.0, %v1487
      %v1489 = vpop.f32.mrf.mxu0
      %v1490 = vadd.f32 0.0, %v1489
      %1491 = vmatmul.bf16.gmra.mxu0 %v802
      %v1492 = vpop.f32.mrf.mxu0
      %v1493 = vadd.f32 0.0, %v1492
      %v1494 = vpop.f32.mrf.mxu0
      %v1495 = vadd.f32 0.0, %v1494
      %1496 = vmatmul.bf16.gmra.mxu0 %v805
      %v1497 = vpop.f32.mrf.mxu0
      %v1498 = vadd.f32 0.0, %v1497
      %v1499 = vpop.f32.mrf.mxu0
      %v1500 = vadd.f32 0.0, %v1499
      %1501 = vmatmul.bf16.gmra.mxu0 %v808
      %v1502 = vpop.f32.mrf.mxu0
      %v1503 = vadd.f32 0.0, %v1502
      %v1504 = vpop.f32.mrf.mxu0
      %v1505 = vadd.f32 0.0, %v1504
      %1506 = vmatmul.bf16.gmra.mxu0 %v811
      %v1507 = vpop.f32.mrf.mxu0
      %v1508 = vadd.f32 0.0, %v1507
      %v1509 = vpop.f32.mrf.mxu0
      %v1510 = vadd.f32 0.0, %v1509
      %1511 = vmatmul.bf16.gmra.mxu0 %v814
      %v1512 = vpop.f32.mrf.mxu0
      %v1513 = vadd.f32 0.0, %v1512
      %v1514 = vpop.f32.mrf.mxu0
      %v1515 = vadd.f32 0.0, %v1514
      %1516 = vmatmul.bf16.gmra.mxu0 %v817
      %v1517 = vpop.f32.mrf.mxu0
      %v1518 = vadd.f32 0.0, %v1517
      %v1519 = vpop.f32.mrf.mxu0
      %v1520 = vadd.f32 0.0, %v1519
      %1521 = vmatmul.bf16.gmra.mxu0 %v820
      %v1522 = vpop.f32.mrf.mxu0
      %v1523 = vadd.f32 0.0, %v1522
      %v1524 = vpop.f32.mrf.mxu0
      %v1525 = vadd.f32 0.0, %v1524
      %1526 = vmatmul.bf16.gmra.mxu0 %v823
      %v1527 = vpop.f32.mrf.mxu0
      %v1528 = vadd.f32 0.0, %v1527
      %v1529 = vpop.f32.mrf.mxu0
      %v1530 = vadd.f32 0.0, %v1529
      %1531 = vmatmul.bf16.gmra.mxu0 %v826
      %v1532 = vpop.f32.mrf.mxu0
      %v1533 = vadd.f32 0.0, %v1532
      %v1534 = vpop.f32.mrf.mxu0
      %v1535 = vadd.f32 0.0, %v1534
      %1536 = vmatmul.bf16.gmra.mxu0 %v829
      %v1537 = vpop.f32.mrf.mxu0
      %v1538 = vadd.f32 0.0, %v1537
      %v1539 = vpop.f32.mrf.mxu0
      %v1540 = vadd.f32 0.0, %v1539
      %1541 = vmatmul.bf16.gmra.mxu0 %v832
      %v1542 = vpop.f32.mrf.mxu0
      %v1543 = vadd.f32 0.0, %v1542
      %v1544 = vpop.f32.mrf.mxu0
      %1545 = vmatmul.bf16.gmra.mxu0 %v835
      %v1546 = vpop.f32.mrf.mxu0
      %v1547 = vpop.f32.mrf.mxu0
      %1548 = vmatmul.bf16.gmra.mxu0 %v838
      %v1549 = vpop.f32.mrf.mxu0
      %v1550 = vpop.f32.mrf.mxu0
      %1551 = vdwg.mxu0
      %vm1685 = vcmask 1046528
      %v1686 = vrot.slane %v1213, 1
      %v1687 = vrot.slane %v1215, 1
      %v1688 = vsel %vm1685, %v1686, %v1687
      %v1689 = vrot.slane %v1218, 1
      %v1690 = vsel %vm1685, %v1687, %v1689
      %v1691 = vrot.slane %v1220, 1
      %v1692 = vsel %vm1685, %v1689, %v1691
      %v1693 = vrot.slane %v1223, 1
      %v1694 = vsel %vm1685, %v1691, %v1693
      %v1695 = vrot.slane %v1225, 1
      %v1696 = vsel %vm1685, %v1693, %v1695
      %v1697 = vrot.slane %v1228, 1
      %v1698 = vsel %vm1685, %v1695, %v1697
      %v1699 = vrot.slane %v1230, 1
      %v1700 = vsel %vm1685, %v1697, %v1699
      %v1701 = vrot.slane %v1233, 1
      %v1702 = vsel %vm1685, %v1699, %v1701
      %v1703 = vrot.slane %v1235, 1
      %v1704 = vsel %vm1685, %v1701, %v1703
      %v1705 = vrot.slane %v1238, 1
      %v1706 = vsel %vm1685, %v1703, %v1705
      %v1707 = vrot.slane %v1240, 1
      %v1708 = vsel %vm1685, %v1705, %v1707
      %v1709 = vrot.slane %v1243, 1
      %v1710 = vsel %vm1685, %v1707, %v1709
      %v1711 = vrot.slane %v1245, 1
      %v1712 = vsel %vm1685, %v1709, %v1711
      %v1713 = vrot.slane %v1248, 1
      %v1714 = vsel %vm1685, %v1711, %v1713
      %v1715 = vrot.slane %v1250, 1
      %v1716 = vsel %vm1685, %v1713, %v1715
      %v1717 = vrot.slane %v1253, 1
      %v1718 = vsel %vm1685, %v1715, %v1717
      %v1719 = vrot.slane %v1255, 1
      %v1720 = vsel %vm1685, %v1717, %v1719
      %v1721 = vrot.slane %v1258, 1
      %v1722 = vsel %vm1685, %v1719, %v1721
      %v1723 = vrot.slane %v1260, 1
      %v1724 = vsel %vm1685, %v1721, %v1723
      %v1725 = vrot.slane %v1263, 1
      %v1726 = vsel %vm1685, %v1723, %v1725
      %v1727 = vrot.slane %v1265, 1
      %v1728 = vsel %vm1685, %v1725, %v1727
      %v1729 = vrot.slane %v1268, 1
      %v1730 = vsel %vm1685, %v1727, %v1729
      %v1731 = vrot.slane %v1270, 1
      %v1732 = vsel %vm1685, %v1729, %v1731
      %v1733 = vrot.slane %v1273, 1
      %v1734 = vsel %vm1685, %v1731, %v1733
      %v1735 = vrot.slane %v1275, 1
      %v1736 = vsel %vm1685, %v1733, %v1735
      %v1737 = vrot.slane %v1278, 1
      %v1738 = vsel %vm1685, %v1735, %v1737
      %v1739 = vrot.slane %v1280, 1
      %v1740 = vsel %vm1685, %v1737, %v1739
      %v1741 = vrot.slane %v1283, 1
      %v1742 = vsel %vm1685, %v1739, %v1741
      %v1743 = vrot.slane %v1285, 1
      %v1744 = vsel %vm1685, %v1741, %v1743
      %v1745 = vrot.slane %v1288, 1
      %v1746 = vsel %vm1685, %v1743, %v1745
      %v1747 = vrot.slane %v1290, 1
      %v1748 = vsel %vm1685, %v1745, %v1747
      %v1749 = vrot.slane %v1293, 1
      %v1750 = vsel %vm1685, %v1747, %v1749
      %v1751 = vrot.slane %v1295, 1
      %v1752 = vsel %vm1685, %v1749, %v1751
      %v1753 = vrot.slane %v1298, 1
      %v1754 = vsel %vm1685, %v1751, %v1753
      %v1755 = vrot.slane %v1300, 1
      %v1756 = vsel %vm1685, %v1753, %v1755
      %v1757 = vrot.slane %v1303, 1
      %v1758 = vsel %vm1685, %v1755, %v1757
      %v1759 = vrot.slane %v1305, 1
      %v1760 = vsel %vm1685, %v1757, %v1759
      %v1761 = vrot.slane %v1308, 1
      %v1762 = vsel %vm1685, %v1759, %v1761
      %v1763 = vrot.slane %v1310, 1
      %v1764 = vsel %vm1685, %v1761, %v1763
      %v1765 = vrot.slane %v1313, 1
      %v1766 = vsel %vm1685, %v1763, %v1765
      %v1767 = vrot.slane %v1315, 1
      %v1768 = vsel %vm1685, %v1765, %v1767
      %v1769 = vrot.slane %v1318, 1
      %v1770 = vsel %vm1685, %v1767, %v1769
      %v1771 = vrot.slane %v1320, 1
      %v1772 = vsel %vm1685, %v1769, %v1771
      %v1773 = vrot.slane %v1323, 1
      %v1774 = vsel %vm1685, %v1771, %v1773
      %v1775 = vrot.slane %v1325, 1
      %v1776 = vsel %vm1685, %v1773, %v1775
      %v1777 = vrot.slane %v1328, 1
      %v1778 = vsel %vm1685, %v1775, %v1777
      %v1779 = vrot.slane %v1330, 1
      %v1780 = vsel %vm1685, %v1777, %v1779
      %v1781 = vrot.slane %v1333, 1
      %v1782 = vsel %vm1685, %v1779, %v1781
      %v1783 = vrot.slane %v1335, 1
      %v1784 = vsel %vm1685, %v1781, %v1783
      %v1785 = vrot.slane %v1338, 1
      %v1786 = vsel %vm1685, %v1783, %v1785
      %v1787 = vrot.slane %v1340, 1
      %v1788 = vsel %vm1685, %v1785, %v1787
      %v1789 = vrot.slane %v1343, 1
      %v1790 = vsel %vm1685, %v1787, %v1789
      %v1791 = vrot.slane %v1345, 1
      %v1792 = vsel %vm1685, %v1789, %v1791
      %v1793 = vrot.slane %v1348, 1
      %v1794 = vsel %vm1685, %v1791, %v1793
      %v1795 = vrot.slane %v1350, 1
      %v1796 = vsel %vm1685, %v1793, %v1795
      %v1797 = vrot.slane %v1353, 1
      %v1798 = vsel %vm1685, %v1795, %v1797
      %v1799 = vrot.slane %v1355, 1
      %v1800 = vsel %vm1685, %v1797, %v1799
      %v1801 = vrot.slane %v1358, 1
      %v1802 = vsel %vm1685, %v1799, %v1801
      %v1803 = vrot.slane %v1360, 1
      %v1804 = vsel %vm1685, %v1801, %v1803
      %v1805 = vrot.slane %v1363, 1
      %v1806 = vsel %vm1685, %v1803, %v1805
      %v1807 = vrot.slane %v1365, 1
      %v1808 = vsel %vm1685, %v1805, %v1807
      %v1809 = vrot.slane %v1368, 1
      %v1810 = vsel %vm1685, %v1807, %v1809
      %v1811 = vrot.slane %v1370, 1
      %v1812 = vsel %vm1685, %v1809, %v1811
      %v1813 = vrot.slane %v1373, 1
      %v1814 = vsel %vm1685, %v1811, %v1813
      %v1815 = vrot.slane %v1375, 1
      %v1816 = vsel %vm1685, %v1813, %v1815
      %v1817 = vrot.slane %v1378, 1
      %v1818 = vsel %vm1685, %v1815, %v1817
      %v1819 = vrot.slane %v1380, 1
      %v1820 = vsel %vm1685, %v1817, %v1819
      %v1821 = vrot.slane %v1383, 1
      %v1822 = vsel %vm1685, %v1819, %v1821
      %v1823 = vrot.slane %v1385, 1
      %v1824 = vsel %vm1685, %v1821, %v1823
      %v1825 = vrot.slane %v1388, 1
      %v1826 = vsel %vm1685, %v1823, %v1825
      %v1827 = vrot.slane %v1390, 1
      %v1828 = vsel %vm1685, %v1825, %v1827
      %v1829 = vrot.slane %v1393, 1
      %v1830 = vsel %vm1685, %v1827, %v1829
      %v1831 = vrot.slane %v1395, 1
      %v1832 = vsel %vm1685, %v1829, %v1831
      %v1833 = vrot.slane %v1398, 1
      %v1834 = vsel %vm1685, %v1831, %v1833
      %v1835 = vrot.slane %v1400, 1
      %v1836 = vsel %vm1685, %v1833, %v1835
      %v1837 = vrot.slane %v1403, 1
      %v1838 = vsel %vm1685, %v1835, %v1837
      %v1839 = vrot.slane %v1405, 1
      %v1840 = vsel %vm1685, %v1837, %v1839
      %v1841 = vrot.slane %v1408, 1
      %v1842 = vsel %vm1685, %v1839, %v1841
      %v1843 = vrot.slane %v1410, 1
      %v1844 = vsel %vm1685, %v1841, %v1843
      %v1845 = vrot.slane %v1413, 1
      %v1846 = vsel %vm1685, %v1843, %v1845
      %v1847 = vrot.slane %v1415, 1
      %v1848 = vsel %vm1685, %v1845, %v1847
      %v1849 = vrot.slane %v1418, 1
      %v1850 = vsel %vm1685, %v1847, %v1849
      %v1851 = vrot.slane %v1420, 1
      %v1852 = vsel %vm1685, %v1849, %v1851
      %v1853 = vrot.slane %v1423, 1
      %v1854 = vsel %vm1685, %v1851, %v1853
      %v1855 = vrot.slane %v1425, 1
      %v1856 = vsel %vm1685, %v1853, %v1855
      %v1857 = vrot.slane %v1428, 1
      %v1858 = vsel %vm1685, %v1855, %v1857
      %v1859 = vrot.slane %v1430, 1
      %v1860 = vsel %vm1685, %v1857, %v1859
      %v1861 = vrot.slane %v1433, 1
      %v1862 = vsel %vm1685, %v1859, %v1861
      %v1863 = vrot.slane %v1435, 1
      %v1864 = vsel %vm1685, %v1861, %v1863
      %v1865 = vrot.slane %v1438, 1
      %v1866 = vsel %vm1685, %v1863, %v1865
      %v1867 = vrot.slane %v1440, 1
      %v1868 = vsel %vm1685, %v1865, %v1867
      %v1869 = vrot.slane %v1443, 1
      %v1870 = vsel %vm1685, %v1867, %v1869
      %v1871 = vrot.slane %v1445, 1
      %v1872 = vsel %vm1685, %v1869, %v1871
      %v1873 = vrot.slane %v1448, 1
      %v1874 = vsel %vm1685, %v1871, %v1873
      %v1875 = vrot.slane %v1450, 1
      %v1876 = vsel %vm1685, %v1873, %v1875
      %v1877 = vrot.slane %v1453, 1
      %v1878 = vsel %vm1685, %v1875, %v1877
      %v1879 = vrot.slane %v1455, 1
      %v1880 = vsel %vm1685, %v1877, %v1879
      %v1881 = vrot.slane %v1458, 1
      %v1882 = vsel %vm1685, %v1879, %v1881
      %v1883 = vrot.slane %v1460, 1
      %v1884 = vsel %vm1685, %v1881, %v1883
      %v1885 = vrot.slane %v1463, 1
      %v1886 = vsel %vm1685, %v1883, %v1885
      %v1887 = vrot.slane %v1465, 1
      %v1888 = vsel %vm1685, %v1885, %v1887
      %v1889 = vrot.slane %v1468, 1
      %v1890 = vsel %vm1685, %v1887, %v1889
      %v1891 = vrot.slane %v1470, 1
      %v1892 = vsel %vm1685, %v1889, %v1891
      %v1893 = vrot.slane %v1473, 1
      %v1894 = vsel %vm1685, %v1891, %v1893
      %v1895 = vrot.slane %v1475, 1
      %v1896 = vsel %vm1685, %v1893, %v1895
      %v1897 = vrot.slane %v1478, 1
      %v1898 = vsel %vm1685, %v1895, %v1897
      %v1899 = vrot.slane %v1480, 1
      %v1900 = vsel %vm1685, %v1897, %v1899
      %v1901 = vrot.slane %v1483, 1
      %v1902 = vsel %vm1685, %v1899, %v1901
      %v1903 = vrot.slane %v1485, 1
      %v1904 = vsel %vm1685, %v1901, %v1903
      %v1905 = vrot.slane %v1488, 1
      %v1906 = vsel %vm1685, %v1903, %v1905
      %v1907 = vrot.slane %v1490, 1
      %v1908 = vsel %vm1685, %v1905, %v1907
      %v1909 = vrot.slane %v1493, 1
      %v1910 = vsel %vm1685, %v1907, %v1909
      %v1911 = vrot.slane %v1495, 1
      %v1912 = vsel %vm1685, %v1909, %v1911
      %v1913 = vrot.slane %v1498, 1
      %v1914 = vsel %vm1685, %v1911, %v1913
      %v1915 = vrot.slane %v1500, 1
      %v1916 = vsel %vm1685, %v1913, %v1915
      %v1917 = vrot.slane %v1503, 1
      %v1918 = vsel %vm1685, %v1915, %v1917
      %v1919 = vrot.slane %v1505, 1
      %v1920 = vsel %vm1685, %v1917, %v1919
      %v1921 = vrot.slane %v1508, 1
      %v1922 = vsel %vm1685, %v1919, %v1921
      %v1923 = vrot.slane %v1510, 1
      %v1924 = vsel %vm1685, %v1921, %v1923
      %v1925 = vrot.slane %v1513, 1
      %v1926 = vsel %vm1685, %v1923, %v1925
      %v1927 = vrot.slane %v1515, 1
      %v1928 = vsel %vm1685, %v1925, %v1927
      %v1929 = vrot.slane %v1518, 1
      %v1930 = vsel %vm1685, %v1927, %v1929
      %v1931 = vrot.slane %v1520, 1
      %v1932 = vsel %vm1685, %v1929, %v1931
      %v1933 = vrot.slane %v1523, 1
      %v1934 = vsel %vm1685, %v1931, %v1933
      %v1935 = vrot.slane %v1525, 1
      %v1936 = vsel %vm1685, %v1933, %v1935
      %v1937 = vrot.slane %v1528, 1
      %v1938 = vsel %vm1685, %v1935, %v1937
      %v1939 = vrot.slane %v1530, 1
      %v1940 = vsel %vm1685, %v1937, %v1939
      %v1941 = vrot.slane %v1533, 1
      %v1942 = vsel %vm1685, %v1939, %v1941
      %v1943 = vrot.slane %v1535, 1
      %v1944 = vsel %vm1685, %v1941, %v1943
      %v1945 = vrot.slane %v1538, 1
      %v1946 = vsel %vm1685, %v1943, %v1945
      %v1947 = vrot.slane %v1540, 1
      %v1948 = vsel %vm1685, %v1945, %v1947
      %v1949 = vrot.slane %v1543, 1
      %v1950 = vsel %vm1685, %v1947, %v1949
      %v2083 = vadd.f32 %v854, %v1688
      %v2084 = vadd.f32 %v856, %v1690
      %v2085 = vadd.f32 %v859, %v1692
      %v2086 = vadd.f32 %v861, %v1694
      %v2087 = vadd.f32 %v864, %v1696
      %v2088 = vadd.f32 %v866, %v1698
      %v2089 = vadd.f32 %v869, %v1700
      %v2090 = vadd.f32 %v871, %v1702
      %v2091 = vadd.f32 %v874, %v1704
      %v2092 = vadd.f32 %v876, %v1706
      %v2093 = vadd.f32 %v879, %v1708
      %v2094 = vadd.f32 %v881, %v1710
      %v2095 = vadd.f32 %v884, %v1712
      %v2096 = vadd.f32 %v886, %v1714
      %v2097 = vadd.f32 %v889, %v1716
      %v2098 = vadd.f32 %v891, %v1718
      %v2099 = vadd.f32 %v894, %v1720
      %v2100 = vadd.f32 %v896, %v1722
      %v2101 = vadd.f32 %v899, %v1724
      %v2102 = vadd.f32 %v901, %v1726
      %v2103 = vadd.f32 %v904, %v1728
      %v2104 = vadd.f32 %v906, %v1730
      %v2105 = vadd.f32 %v909, %v1732
      %v2106 = vadd.f32 %v911, %v1734
      %v2107 = vadd.f32 %v914, %v1736
      %v2108 = vadd.f32 %v916, %v1738
      %v2109 = vadd.f32 %v919, %v1740
      %v2110 = vadd.f32 %v921, %v1742
      %v2111 = vadd.f32 %v924, %v1744
      %v2112 = vadd.f32 %v926, %v1746
      %v2113 = vadd.f32 %v929, %v1748
      %v2114 = vadd.f32 %v931, %v1750
      %v2115 = vadd.f32 %v934, %v1752
      %v2116 = vadd.f32 %v936, %v1754
      %v2117 = vadd.f32 %v939, %v1756
      %v2118 = vadd.f32 %v941, %v1758
      %v2119 = vadd.f32 %v944, %v1760
      %v2120 = vadd.f32 %v946, %v1762
      %v2121 = vadd.f32 %v949, %v1764
      %v2122 = vadd.f32 %v951, %v1766
      %v2123 = vadd.f32 %v954, %v1768
      %v2124 = vadd.f32 %v956, %v1770
      %v2125 = vadd.f32 %v959, %v1772
      %v2126 = vadd.f32 %v961, %v1774
      %v2127 = vadd.f32 %v964, %v1776
      %v2128 = vadd.f32 %v966, %v1778
      %v2129 = vadd.f32 %v969, %v1780
      %v2130 = vadd.f32 %v971, %v1782
      %v2131 = vadd.f32 %v974, %v1784
      %v2132 = vadd.f32 %v976, %v1786
      %v2133 = vadd.f32 %v979, %v1788
      %v2134 = vadd.f32 %v981, %v1790
      %v2135 = vadd.f32 %v984, %v1792
      %v2136 = vadd.f32 %v986, %v1794
      %v2137 = vadd.f32 %v989, %v1796
      %v2138 = vadd.f32 %v991, %v1798
      %v2139 = vadd.f32 %v994, %v1800
      %v2140 = vadd.f32 %v996, %v1802
      %v2141 = vadd.f32 %v999, %v1804
      %v2142 = vadd.f32 %v1001, %v1806
      %v2143 = vadd.f32 %v1004, %v1808
      %v2144 = vadd.f32 %v1006, %v1810
      %v2145 = vadd.f32 %v1009, %v1812
      %v2146 = vadd.f32 %v1011, %v1814
      %v2147 = vadd.f32 %v1014, %v1816
      %v2148 = vadd.f32 %v1016, %v1818
      %v2149 = vadd.f32 %v1019, %v1820
      %v2150 = vadd.f32 %v1021, %v1822
      %v2151 = vadd.f32 %v1024, %v1824
      %v2152 = vadd.f32 %v1026, %v1826
      %v2153 = vadd.f32 %v1029, %v1828
      %v2154 = vadd.f32 %v1031, %v1830
      %v2155 = vadd.f32 %v1034, %v1832
      %v2156 = vadd.f32 %v1036, %v1834
      %v2157 = vadd.f32 %v1039, %v1836
      %v2158 = vadd.f32 %v1041, %v1838
      %v2159 = vadd.f32 %v1044, %v1840
      %v2160 = vadd.f32 %v1046, %v1842
      %v2161 = vadd.f32 %v1049, %v1844
      %v2162 = vadd.f32 %v1051, %v1846
      %v2163 = vadd.f32 %v1054, %v1848
      %v2164 = vadd.f32 %v1056, %v1850
      %v2165 = vadd.f32 %v1059, %v1852
      %v2166 = vadd.f32 %v1061, %v1854
      %v2167 = vadd.f32 %v1064, %v1856
      %v2168 = vadd.f32 %v1066, %v1858
      %v2169 = vadd.f32 %v1069, %v1860
      %v2170 = vadd.f32 %v1071, %v1862
      %v2171 = vadd.f32 %v1074, %v1864
      %v2172 = vadd.f32 %v1076, %v1866
      %v2173 = vadd.f32 %v1079, %v1868
      %v2174 = vadd.f32 %v1081, %v1870
      %v2175 = vadd.f32 %v1084, %v1872
      %v2176 = vadd.f32 %v1086, %v1874
      %v2177 = vadd.f32 %v1089, %v1876
      %v2178 = vadd.f32 %v1091, %v1878
      %v2179 = vadd.f32 %v1094, %v1880
      %v2180 = vadd.f32 %v1096, %v1882
      %v2181 = vadd.f32 %v1099, %v1884
      %v2182 = vadd.f32 %v1101, %v1886
      %v2183 = vadd.f32 %v1104, %v1888
      %v2184 = vadd.f32 %v1106, %v1890
      %v2185 = vadd.f32 %v1109, %v1892
      %v2186 = vadd.f32 %v1111, %v1894
      %v2187 = vadd.f32 %v1114, %v1896
      %v2188 = vadd.f32 %v1116, %v1898
      %v2189 = vadd.f32 %v1119, %v1900
      %v2190 = vadd.f32 %v1121, %v1902
      %v2191 = vadd.f32 %v1124, %v1904
      %v2192 = vadd.f32 %v1126, %v1906
      %v2193 = vadd.f32 %v1129, %v1908
      %v2194 = vadd.f32 %v1131, %v1910
      %v2195 = vadd.f32 %v1134, %v1912
      %v2196 = vadd.f32 %v1136, %v1914
      %v2197 = vadd.f32 %v1139, %v1916
      %v2198 = vadd.f32 %v1141, %v1918
      %v2199 = vadd.f32 %v1144, %v1920
      %v2200 = vadd.f32 %v1146, %v1922
      %v2201 = vadd.f32 %v1149, %v1924
      %v2202 = vadd.f32 %v1151, %v1926
      %v2203 = vadd.f32 %v1154, %v1928
      %v2204 = vadd.f32 %v1156, %v1930
      %v2205 = vadd.f32 %v1159, %v1932
      %v2206 = vadd.f32 %v1161, %v1934
      %v2207 = vadd.f32 %v1164, %v1936
      %v2208 = vadd.f32 %v1166, %v1938
      %v2209 = vadd.f32 %v1169, %v1940
      %v2210 = vadd.f32 %v1171, %v1942
      %v2211 = vadd.f32 %v1174, %v1944
      %v2212 = vadd.f32 %v1176, %v1946
      %v2213 = vadd.f32 %v1179, %v1948
      %v2214 = vadd.f32 %v1181, %v1950
      %s2215 = scalar_lea.vmem %s1, 16
      %v2216 = vld [vmem:[%s2215] sm:$0xf]
      %v2217 = vld [vmem:[%s2215 + $0x4] sm:$0x3]
      %v2220 = vunpack.c.l.b16 %v2216
      %v2221 = vunpack.c.l.b16 %v2217
      %v2222 = vpack.c.b16 %v2221, %v2220
      %v2224 = vsel %vm840, %v2222, 0
      %2226 = vmatpush.bf16.msra.mxu0 0
      %2227 = vmatpush.bf16.msra.mxu0 0
      %2228 = vmatpush.bf16.msra.mxu0 0
      %2229 = vmatpush.bf16.msra.mxu0 0
      %2230 = vmatpush.bf16.msra.mxu0 0
      %2231 = vmatpush.bf16.msra.mxu0 0
      %2232 = vmatpush.bf16.msra.mxu0 0
      %2233 = vmatpush.bf16.msra.mxu0 %v2224
      %2234 = vmatmul.bf16.gmra.mxu0 %v634
      %v2235 = vpop.f32.mrf.mxu0
      %v2236 = vpop.f32.mrf.mxu0
      %2237 = vmatmul.bf16.gmra.mxu0 %v637
      %v2238 = vpop.f32.mrf.mxu0
      %v2239 = vpop.f32.mrf.mxu0
      %2240 = vmatmul.bf16.gmra.mxu0 %v640
      %v2241 = vpop.f32.mrf.mxu0
      %v2242 = vadd.f32 0.0, %v2241
      %v2243 = vpop.f32.mrf.mxu0
      %v2244 = vadd.f32 0.0, %v2243
      %2245 = vmatmul.bf16.gmra.mxu0 %v643
      %v2246 = vpop.f32.mrf.mxu0
      %v2247 = vadd.f32 0.0, %v2246
      %v2248 = vpop.f32.mrf.mxu0
      %v2249 = vadd.f32 0.0, %v2248
      %2250 = vmatmul.bf16.gmra.mxu0 %v646
      %v2251 = vpop.f32.mrf.mxu0
      %v2252 = vadd.f32 0.0, %v2251
      %v2253 = vpop.f32.mrf.mxu0
      %v2254 = vadd.f32 0.0, %v2253
      %2255 = vmatmul.bf16.gmra.mxu0 %v649
      %v2256 = vpop.f32.mrf.mxu0
      %v2257 = vadd.f32 0.0, %v2256
      %v2258 = vpop.f32.mrf.mxu0
      %v2259 = vadd.f32 0.0, %v2258
      %2260 = vmatmul.bf16.gmra.mxu0 %v652
      %v2261 = vpop.f32.mrf.mxu0
      %v2262 = vadd.f32 0.0, %v2261
      %v2263 = vpop.f32.mrf.mxu0
      %v2264 = vadd.f32 0.0, %v2263
      %2265 = vmatmul.bf16.gmra.mxu0 %v655
      %v2266 = vpop.f32.mrf.mxu0
      %v2267 = vadd.f32 0.0, %v2266
      %v2268 = vpop.f32.mrf.mxu0
      %v2269 = vadd.f32 0.0, %v2268
      %2270 = vmatmul.bf16.gmra.mxu0 %v658
      %v2271 = vpop.f32.mrf.mxu0
      %v2272 = vadd.f32 0.0, %v2271
      %v2273 = vpop.f32.mrf.mxu0
      %v2274 = vadd.f32 0.0, %v2273
      %2275 = vmatmul.bf16.gmra.mxu0 %v661
      %v2276 = vpop.f32.mrf.mxu0
      %v2277 = vadd.f32 0.0, %v2276
      %v2278 = vpop.f32.mrf.mxu0
      %v2279 = vadd.f32 0.0, %v2278
      %2280 = vmatmul.bf16.gmra.mxu0 %v664
      %v2281 = vpop.f32.mrf.mxu0
      %v2282 = vadd.f32 0.0, %v2281
      %v2283 = vpop.f32.mrf.mxu0
      %v2284 = vadd.f32 0.0, %v2283
      %2285 = vmatmul.bf16.gmra.mxu0 %v667
      %v2286 = vpop.f32.mrf.mxu0
      %v2287 = vadd.f32 0.0, %v2286
      %v2288 = vpop.f32.mrf.mxu0
      %v2289 = vadd.f32 0.0, %v2288
      %2290 = vmatmul.bf16.gmra.mxu0 %v670
      %v2291 = vpop.f32.mrf.mxu0
      %v2292 = vadd.f32 0.0, %v2291
      %v2293 = vpop.f32.mrf.mxu0
      %v2294 = vadd.f32 0.0, %v2293
      %2295 = vmatmul.bf16.gmra.mxu0 %v673
      %v2296 = vpop.f32.mrf.mxu0
      %v2297 = vadd.f32 0.0, %v2296
      %v2298 = vpop.f32.mrf.mxu0
      %v2299 = vadd.f32 0.0, %v2298
      %2300 = vmatmul.bf16.gmra.mxu0 %v676
      %v2301 = vpop.f32.mrf.mxu0
      %v2302 = vadd.f32 0.0, %v2301
      %v2303 = vpop.f32.mrf.mxu0
      %v2304 = vadd.f32 0.0, %v2303
      %2305 = vmatmul.bf16.gmra.mxu0 %v679
      %v2306 = vpop.f32.mrf.mxu0
      %v2307 = vadd.f32 0.0, %v2306
      %v2308 = vpop.f32.mrf.mxu0
      %v2309 = vadd.f32 0.0, %v2308
      %2310 = vmatmul.bf16.gmra.mxu0 %v682
      %v2311 = vpop.f32.mrf.mxu0
      %v2312 = vadd.f32 0.0, %v2311
      %v2313 = vpop.f32.mrf.mxu0
      %v2314 = vadd.f32 0.0, %v2313
      %2315 = vmatmul.bf16.gmra.mxu0 %v685
      %v2316 = vpop.f32.mrf.mxu0
      %v2317 = vadd.f32 0.0, %v2316
      %v2318 = vpop.f32.mrf.mxu0
      %v2319 = vadd.f32 0.0, %v2318
      %2320 = vmatmul.bf16.gmra.mxu0 %v688
      %v2321 = vpop.f32.mrf.mxu0
      %v2322 = vadd.f32 0.0, %v2321
      %v2323 = vpop.f32.mrf.mxu0
      %v2324 = vadd.f32 0.0, %v2323
      %2325 = vmatmul.bf16.gmra.mxu0 %v691
      %v2326 = vpop.f32.mrf.mxu0
      %v2327 = vadd.f32 0.0, %v2326
      %v2328 = vpop.f32.mrf.mxu0
      %v2329 = vadd.f32 0.0, %v2328
      %2330 = vmatmul.bf16.gmra.mxu0 %v694
      %v2331 = vpop.f32.mrf.mxu0
      %v2332 = vadd.f32 0.0, %v2331
      %v2333 = vpop.f32.mrf.mxu0
      %v2334 = vadd.f32 0.0, %v2333
      %2335 = vmatmul.bf16.gmra.mxu0 %v697
      %v2336 = vpop.f32.mrf.mxu0
      %v2337 = vadd.f32 0.0, %v2336
      %v2338 = vpop.f32.mrf.mxu0
      %v2339 = vadd.f32 0.0, %v2338
      %2340 = vmatmul.bf16.gmra.mxu0 %v700
      %v2341 = vpop.f32.mrf.mxu0
      %v2342 = vadd.f32 0.0, %v2341
      %v2343 = vpop.f32.mrf.mxu0
      %v2344 = vadd.f32 0.0, %v2343
      %2345 = vmatmul.bf16.gmra.mxu0 %v703
      %v2346 = vpop.f32.mrf.mxu0
      %v2347 = vadd.f32 0.0, %v2346
      %v2348 = vpop.f32.mrf.mxu0
      %v2349 = vadd.f32 0.0, %v2348
      %2350 = vmatmul.bf16.gmra.mxu0 %v706
      %v2351 = vpop.f32.mrf.mxu0
      %v2352 = vadd.f32 0.0, %v2351
      %v2353 = vpop.f32.mrf.mxu0
      %v2354 = vadd.f32 0.0, %v2353
      %2355 = vmatmul.bf16.gmra.mxu0 %v709
      %v2356 = vpop.f32.mrf.mxu0
      %v2357 = vadd.f32 0.0, %v2356
      %v2358 = vpop.f32.mrf.mxu0
      %v2359 = vadd.f32 0.0, %v2358
      %2360 = vmatmul.bf16.gmra.mxu0 %v712
      %v2361 = vpop.f32.mrf.mxu0
      %v2362 = vadd.f32 0.0, %v2361
      %v2363 = vpop.f32.mrf.mxu0
      %v2364 = vadd.f32 0.0, %v2363
      %2365 = vmatmul.bf16.gmra.mxu0 %v715
      %v2366 = vpop.f32.mrf.mxu0
      %v2367 = vadd.f32 0.0, %v2366
      %v2368 = vpop.f32.mrf.mxu0
      %v2369 = vadd.f32 0.0, %v2368
      %2370 = vmatmul.bf16.gmra.mxu0 %v718
      %v2371 = vpop.f32.mrf.mxu0
      %v2372 = vadd.f32 0.0, %v2371
      %v2373 = vpop.f32.mrf.mxu0
      %v2374 = vadd.f32 0.0, %v2373
      %2375 = vmatmul.bf16.gmra.mxu0 %v721
      %v2376 = vpop.f32.mrf.mxu0
      %v2377 = vadd.f32 0.0, %v2376
      %v2378 = vpop.f32.mrf.mxu0
      %v2379 = vadd.f32 0.0, %v2378
      %2380 = vmatmul.bf16.gmra.mxu0 %v724
      %v2381 = vpop.f32.mrf.mxu0
      %v2382 = vadd.f32 0.0, %v2381
      %v2383 = vpop.f32.mrf.mxu0
      %v2384 = vadd.f32 0.0, %v2383
      %2385 = vmatmul.bf16.gmra.mxu0 %v727
      %v2386 = vpop.f32.mrf.mxu0
      %v2387 = vadd.f32 0.0, %v2386
      %v2388 = vpop.f32.mrf.mxu0
      %v2389 = vadd.f32 0.0, %v2388
      %2390 = vmatmul.bf16.gmra.mxu0 %v730
      %v2391 = vpop.f32.mrf.mxu0
      %v2392 = vadd.f32 0.0, %v2391
      %v2393 = vpop.f32.mrf.mxu0
      %v2394 = vadd.f32 0.0, %v2393
      %2395 = vmatmul.bf16.gmra.mxu0 %v733
      %v2396 = vpop.f32.mrf.mxu0
      %v2397 = vadd.f32 0.0, %v2396
      %v2398 = vpop.f32.mrf.mxu0
      %v2399 = vadd.f32 0.0, %v2398
      %2400 = vmatmul.bf16.gmra.mxu0 %v736
      %v2401 = vpop.f32.mrf.mxu0
      %v2402 = vadd.f32 0.0, %v2401
      %v2403 = vpop.f32.mrf.mxu0
      %v2404 = vadd.f32 0.0, %v2403
      %2405 = vmatmul.bf16.gmra.mxu0 %v739
      %v2406 = vpop.f32.mrf.mxu0
      %v2407 = vadd.f32 0.0, %v2406
      %v2408 = vpop.f32.mrf.mxu0
      %v2409 = vadd.f32 0.0, %v2408
      %2410 = vmatmul.bf16.gmra.mxu0 %v742
      %v2411 = vpop.f32.mrf.mxu0
      %v2412 = vadd.f32 0.0, %v2411
      %v2413 = vpop.f32.mrf.mxu0
      %v2414 = vadd.f32 0.0, %v2413
      %2415 = vmatmul.bf16.gmra.mxu0 %v745
      %v2416 = vpop.f32.mrf.mxu0
      %v2417 = vadd.f32 0.0, %v2416
      %v2418 = vpop.f32.mrf.mxu0
      %v2419 = vadd.f32 0.0, %v2418
      %2420 = vmatmul.bf16.gmra.mxu0 %v748
      %v2421 = vpop.f32.mrf.mxu0
      %v2422 = vadd.f32 0.0, %v2421
      %v2423 = vpop.f32.mrf.mxu0
      %v2424 = vadd.f32 0.0, %v2423
      %2425 = vmatmul.bf16.gmra.mxu0 %v751
      %v2426 = vpop.f32.mrf.mxu0
      %v2427 = vadd.f32 0.0, %v2426
      %v2428 = vpop.f32.mrf.mxu0
      %v2429 = vadd.f32 0.0, %v2428
      %2430 = vmatmul.bf16.gmra.mxu0 %v754
      %v2431 = vpop.f32.mrf.mxu0
      %v2432 = vadd.f32 0.0, %v2431
      %v2433 = vpop.f32.mrf.mxu0
      %v2434 = vadd.f32 0.0, %v2433
      %2435 = vmatmul.bf16.gmra.mxu0 %v757
      %v2436 = vpop.f32.mrf.mxu0
      %v2437 = vadd.f32 0.0, %v2436
      %v2438 = vpop.f32.mrf.mxu0
      %v2439 = vadd.f32 0.0, %v2438
      %2440 = vmatmul.bf16.gmra.mxu0 %v760
      %v2441 = vpop.f32.mrf.mxu0
      %v2442 = vadd.f32 0.0, %v2441
      %v2443 = vpop.f32.mrf.mxu0
      %v2444 = vadd.f32 0.0, %v2443
      %2445 = vmatmul.bf16.gmra.mxu0 %v763
      %v2446 = vpop.f32.mrf.mxu0
      %v2447 = vadd.f32 0.0, %v2446
      %v2448 = vpop.f32.mrf.mxu0
      %v2449 = vadd.f32 0.0, %v2448
      %2450 = vmatmul.bf16.gmra.mxu0 %v766
      %v2451 = vpop.f32.mrf.mxu0
      %v2452 = vadd.f32 0.0, %v2451
      %v2453 = vpop.f32.mrf.mxu0
      %v2454 = vadd.f32 0.0, %v2453
      %2455 = vmatmul.bf16.gmra.mxu0 %v769
      %v2456 = vpop.f32.mrf.mxu0
      %v2457 = vadd.f32 0.0, %v2456
      %v2458 = vpop.f32.mrf.mxu0
      %v2459 = vadd.f32 0.0, %v2458
      %2460 = vmatmul.bf16.gmra.mxu0 %v772
      %v2461 = vpop.f32.mrf.mxu0
      %v2462 = vadd.f32 0.0, %v2461
      %v2463 = vpop.f32.mrf.mxu0
      %v2464 = vadd.f32 0.0, %v2463
      %2465 = vmatmul.bf16.gmra.mxu0 %v775
      %v2466 = vpop.f32.mrf.mxu0
      %v2467 = vadd.f32 0.0, %v2466
      %v2468 = vpop.f32.mrf.mxu0
      %v2469 = vadd.f32 0.0, %v2468
      %2470 = vmatmul.bf16.gmra.mxu0 %v778
      %v2471 = vpop.f32.mrf.mxu0
      %v2472 = vadd.f32 0.0, %v2471
      %v2473 = vpop.f32.mrf.mxu0
      %v2474 = vadd.f32 0.0, %v2473
      %2475 = vmatmul.bf16.gmra.mxu0 %v781
      %v2476 = vpop.f32.mrf.mxu0
      %v2477 = vadd.f32 0.0, %v2476
      %v2478 = vpop.f32.mrf.mxu0
      %v2479 = vadd.f32 0.0, %v2478
      %2480 = vmatmul.bf16.gmra.mxu0 %v784
      %v2481 = vpop.f32.mrf.mxu0
      %v2482 = vadd.f32 0.0, %v2481
      %v2483 = vpop.f32.mrf.mxu0
      %v2484 = vadd.f32 0.0, %v2483
      %2485 = vmatmul.bf16.gmra.mxu0 %v787
      %v2486 = vpop.f32.mrf.mxu0
      %v2487 = vadd.f32 0.0, %v2486
      %v2488 = vpop.f32.mrf.mxu0
      %v2489 = vadd.f32 0.0, %v2488
      %2490 = vmatmul.bf16.gmra.mxu0 %v790
      %v2491 = vpop.f32.mrf.mxu0
      %v2492 = vadd.f32 0.0, %v2491
      %v2493 = vpop.f32.mrf.mxu0
      %v2494 = vadd.f32 0.0, %v2493
      %2495 = vmatmul.bf16.gmra.mxu0 %v793
      %v2496 = vpop.f32.mrf.mxu0
      %v2497 = vadd.f32 0.0, %v2496
      %v2498 = vpop.f32.mrf.mxu0
      %v2499 = vadd.f32 0.0, %v2498
      %2500 = vmatmul.bf16.gmra.mxu0 %v796
      %v2501 = vpop.f32.mrf.mxu0
      %v2502 = vadd.f32 0.0, %v2501
      %v2503 = vpop.f32.mrf.mxu0
      %v2504 = vadd.f32 0.0, %v2503
      %2505 = vmatmul.bf16.gmra.mxu0 %v799
      %v2506 = vpop.f32.mrf.mxu0
      %v2507 = vadd.f32 0.0, %v2506
      %v2508 = vpop.f32.mrf.mxu0
      %v2509 = vadd.f32 0.0, %v2508
      %2510 = vmatmul.bf16.gmra.mxu0 %v802
      %v2511 = vpop.f32.mrf.mxu0
      %v2512 = vadd.f32 0.0, %v2511
      %v2513 = vpop.f32.mrf.mxu0
      %v2514 = vadd.f32 0.0, %v2513
      %2515 = vmatmul.bf16.gmra.mxu0 %v805
      %v2516 = vpop.f32.mrf.mxu0
      %v2517 = vadd.f32 0.0, %v2516
      %v2518 = vpop.f32.mrf.mxu0
      %v2519 = vadd.f32 0.0, %v2518
      %2520 = vmatmul.bf16.gmra.mxu0 %v808
      %v2521 = vpop.f32.mrf.mxu0
      %v2522 = vadd.f32 0.0, %v2521
      %v2523 = vpop.f32.mrf.mxu0
      %v2524 = vadd.f32 0.0, %v2523
      %2525 = vmatmul.bf16.gmra.mxu0 %v811
      %v2526 = vpop.f32.mrf.mxu0
      %v2527 = vadd.f32 0.0, %v2526
      %v2528 = vpop.f32.mrf.mxu0
      %v2529 = vadd.f32 0.0, %v2528
      %2530 = vmatmul.bf16.gmra.mxu0 %v814
      %v2531 = vpop.f32.mrf.mxu0
      %v2532 = vadd.f32 0.0, %v2531
      %v2533 = vpop.f32.mrf.mxu0
      %v2534 = vadd.f32 0.0, %v2533
      %2535 = vmatmul.bf16.gmra.mxu0 %v817
      %v2536 = vpop.f32.mrf.mxu0
      %v2537 = vadd.f32 0.0, %v2536
      %v2538 = vpop.f32.mrf.mxu0
      %v2539 = vadd.f32 0.0, %v2538
      %2540 = vmatmul.bf16.gmra.mxu0 %v820
      %v2541 = vpop.f32.mrf.mxu0
      %v2542 = vadd.f32 0.0, %v2541
      %v2543 = vpop.f32.mrf.mxu0
      %v2544 = vadd.f32 0.0, %v2543
      %2545 = vmatmul.bf16.gmra.mxu0 %v823
      %v2546 = vpop.f32.mrf.mxu0
      %v2547 = vadd.f32 0.0, %v2546
      %v2548 = vpop.f32.mrf.mxu0
      %v2549 = vadd.f32 0.0, %v2548
      %2550 = vmatmul.bf16.gmra.mxu0 %v826
      %v2551 = vpop.f32.mrf.mxu0
      %v2552 = vadd.f32 0.0, %v2551
      %v2553 = vpop.f32.mrf.mxu0
      %v2554 = vadd.f32 0.0, %v2553
      %2555 = vmatmul.bf16.gmra.mxu0 %v829
      %v2556 = vpop.f32.mrf.mxu0
      %v2557 = vadd.f32 0.0, %v2556
      %v2558 = vpop.f32.mrf.mxu0
      %v2559 = vadd.f32 0.0, %v2558
      %2560 = vmatmul.bf16.gmra.mxu0 %v832
      %v2561 = vpop.f32.mrf.mxu0
      %v2562 = vadd.f32 0.0, %v2561
      %v2563 = vpop.f32.mrf.mxu0
      %v2564 = vadd.f32 0.0, %v2563
      %2565 = vmatmul.bf16.gmra.mxu0 %v835
      %v2566 = vpop.f32.mrf.mxu0
      %v2567 = vadd.f32 0.0, %v2566
      %v2568 = vpop.f32.mrf.mxu0
      %v2569 = vadd.f32 0.0, %v2568
      %2570 = vmatmul.bf16.gmra.mxu0 %v838
      %v2571 = vpop.f32.mrf.mxu0
      %v2572 = vadd.f32 0.0, %v2571
      %v2573 = vpop.f32.mrf.mxu0
      %2574 = vdwg.mxu0
      %v2708 = vrot.slane %v2242, 1
      %v2709 = vrot.slane %v2244, 1
      %v2710 = vsel %vm1685, %v2708, %v2709
      %v2711 = vrot.slane %v2247, 1
      %v2712 = vsel %vm1685, %v2709, %v2711
      %v2713 = vrot.slane %v2249, 1
      %v2714 = vsel %vm1685, %v2711, %v2713
      %v2715 = vrot.slane %v2252, 1
      %v2716 = vsel %vm1685, %v2713, %v2715
      %v2717 = vrot.slane %v2254, 1
      %v2718 = vsel %vm1685, %v2715, %v2717
      %v2719 = vrot.slane %v2257, 1
      %v2720 = vsel %vm1685, %v2717, %v2719
      %v2721 = vrot.slane %v2259, 1
      %v2722 = vsel %vm1685, %v2719, %v2721
      %v2723 = vrot.slane %v2262, 1
      %v2724 = vsel %vm1685, %v2721, %v2723
      %v2725 = vrot.slane %v2264, 1
      %v2726 = vsel %vm1685, %v2723, %v2725
      %v2727 = vrot.slane %v2267, 1
      %v2728 = vsel %vm1685, %v2725, %v2727
      %v2729 = vrot.slane %v2269, 1
      %v2730 = vsel %vm1685, %v2727, %v2729
      %v2731 = vrot.slane %v2272, 1
      %v2732 = vsel %vm1685, %v2729, %v2731
      %v2733 = vrot.slane %v2274, 1
      %v2734 = vsel %vm1685, %v2731, %v2733
      %v2735 = vrot.slane %v2277, 1
      %v2736 = vsel %vm1685, %v2733, %v2735
      %v2737 = vrot.slane %v2279, 1
      %v2738 = vsel %vm1685, %v2735, %v2737
      %v2739 = vrot.slane %v2282, 1
      %v2740 = vsel %vm1685, %v2737, %v2739
      %v2741 = vrot.slane %v2284, 1
      %v2742 = vsel %vm1685, %v2739, %v2741
      %v2743 = vrot.slane %v2287, 1
      %v2744 = vsel %vm1685, %v2741, %v2743
      %v2745 = vrot.slane %v2289, 1
      %v2746 = vsel %vm1685, %v2743, %v2745
      %v2747 = vrot.slane %v2292, 1
      %v2748 = vsel %vm1685, %v2745, %v2747
      %v2749 = vrot.slane %v2294, 1
      %v2750 = vsel %vm1685, %v2747, %v2749
      %v2751 = vrot.slane %v2297, 1
      %v2752 = vsel %vm1685, %v2749, %v2751
      %v2753 = vrot.slane %v2299, 1
      %v2754 = vsel %vm1685, %v2751, %v2753
      %v2755 = vrot.slane %v2302, 1
      %v2756 = vsel %vm1685, %v2753, %v2755
      %v2757 = vrot.slane %v2304, 1
      %v2758 = vsel %vm1685, %v2755, %v2757
      %v2759 = vrot.slane %v2307, 1
      %v2760 = vsel %vm1685, %v2757, %v2759
      %v2761 = vrot.slane %v2309, 1
      %v2762 = vsel %vm1685, %v2759, %v2761
      %v2763 = vrot.slane %v2312, 1
      %v2764 = vsel %vm1685, %v2761, %v2763
      %v2765 = vrot.slane %v2314, 1
      %v2766 = vsel %vm1685, %v2763, %v2765
      %v2767 = vrot.slane %v2317, 1
      %v2768 = vsel %vm1685, %v2765, %v2767
      %v2769 = vrot.slane %v2319, 1
      %v2770 = vsel %vm1685, %v2767, %v2769
      %v2771 = vrot.slane %v2322, 1
      %v2772 = vsel %vm1685, %v2769, %v2771
      %v2773 = vrot.slane %v2324, 1
      %v2774 = vsel %vm1685, %v2771, %v2773
      %v2775 = vrot.slane %v2327, 1
      %v2776 = vsel %vm1685, %v2773, %v2775
      %v2777 = vrot.slane %v2329, 1
      %v2778 = vsel %vm1685, %v2775, %v2777
      %v2779 = vrot.slane %v2332, 1
      %v2780 = vsel %vm1685, %v2777, %v2779
      %v2781 = vrot.slane %v2334, 1
      %v2782 = vsel %vm1685, %v2779, %v2781
      %v2783 = vrot.slane %v2337, 1
      %v2784 = vsel %vm1685, %v2781, %v2783
      %v2785 = vrot.slane %v2339, 1
      %v2786 = vsel %vm1685, %v2783, %v2785
      %v2787 = vrot.slane %v2342, 1
      %v2788 = vsel %vm1685, %v2785, %v2787
      %v2789 = vrot.slane %v2344, 1
      %v2790 = vsel %vm1685, %v2787, %v2789
      %v2791 = vrot.slane %v2347, 1
      %v2792 = vsel %vm1685, %v2789, %v2791
      %v2793 = vrot.slane %v2349, 1
      %v2794 = vsel %vm1685, %v2791, %v2793
      %v2795 = vrot.slane %v2352, 1
      %v2796 = vsel %vm1685, %v2793, %v2795
      %v2797 = vrot.slane %v2354, 1
      %v2798 = vsel %vm1685, %v2795, %v2797
      %v2799 = vrot.slane %v2357, 1
      %v2800 = vsel %vm1685, %v2797, %v2799
      %v2801 = vrot.slane %v2359, 1
      %v2802 = vsel %vm1685, %v2799, %v2801
      %v2803 = vrot.slane %v2362, 1
      %v2804 = vsel %vm1685, %v2801, %v2803
      %v2805 = vrot.slane %v2364, 1
      %v2806 = vsel %vm1685, %v2803, %v2805
      %v2807 = vrot.slane %v2367, 1
      %v2808 = vsel %vm1685, %v2805, %v2807
      %v2809 = vrot.slane %v2369, 1
      %v2810 = vsel %vm1685, %v2807, %v2809
      %v2811 = vrot.slane %v2372, 1
      %v2812 = vsel %vm1685, %v2809, %v2811
      %v2813 = vrot.slane %v2374, 1
      %v2814 = vsel %vm1685, %v2811, %v2813
      %v2815 = vrot.slane %v2377, 1
      %v2816 = vsel %vm1685, %v2813, %v2815
      %v2817 = vrot.slane %v2379, 1
      %v2818 = vsel %vm1685, %v2815, %v2817
      %v2819 = vrot.slane %v2382, 1
      %v2820 = vsel %vm1685, %v2817, %v2819
      %v2821 = vrot.slane %v2384, 1
      %v2822 = vsel %vm1685, %v2819, %v2821
      %v2823 = vrot.slane %v2387, 1
      %v2824 = vsel %vm1685, %v2821, %v2823
      %v2825 = vrot.slane %v2389, 1
      %v2826 = vsel %vm1685, %v2823, %v2825
      %v2827 = vrot.slane %v2392, 1
      %v2828 = vsel %vm1685, %v2825, %v2827
      %v2829 = vrot.slane %v2394, 1
      %v2830 = vsel %vm1685, %v2827, %v2829
      %v2831 = vrot.slane %v2397, 1
      %v2832 = vsel %vm1685, %v2829, %v2831
      %v2833 = vrot.slane %v2399, 1
      %v2834 = vsel %vm1685, %v2831, %v2833
      %v2835 = vrot.slane %v2402, 1
      %v2836 = vsel %vm1685, %v2833, %v2835
      %v2837 = vrot.slane %v2404, 1
      %v2838 = vsel %vm1685, %v2835, %v2837
      %v2839 = vrot.slane %v2407, 1
      %v2840 = vsel %vm1685, %v2837, %v2839
      %v2841 = vrot.slane %v2409, 1
      %v2842 = vsel %vm1685, %v2839, %v2841
      %v2843 = vrot.slane %v2412, 1
      %v2844 = vsel %vm1685, %v2841, %v2843
      %v2845 = vrot.slane %v2414, 1
      %v2846 = vsel %vm1685, %v2843, %v2845
      %v2847 = vrot.slane %v2417, 1
      %v2848 = vsel %vm1685, %v2845, %v2847
      %v2849 = vrot.slane %v2419, 1
      %v2850 = vsel %vm1685, %v2847, %v2849
      %v2851 = vrot.slane %v2422, 1
      %v2852 = vsel %vm1685, %v2849, %v2851
      %v2853 = vrot.slane %v2424, 1
      %v2854 = vsel %vm1685, %v2851, %v2853
      %v2855 = vrot.slane %v2427, 1
      %v2856 = vsel %vm1685, %v2853, %v2855
      %v2857 = vrot.slane %v2429, 1
      %v2858 = vsel %vm1685, %v2855, %v2857
      %v2859 = vrot.slane %v2432, 1
      %v2860 = vsel %vm1685, %v2857, %v2859
      %v2861 = vrot.slane %v2434, 1
      %v2862 = vsel %vm1685, %v2859, %v2861
      %v2863 = vrot.slane %v2437, 1
      %v2864 = vsel %vm1685, %v2861, %v2863
      %v2865 = vrot.slane %v2439, 1
      %v2866 = vsel %vm1685, %v2863, %v2865
      %v2867 = vrot.slane %v2442, 1
      %v2868 = vsel %vm1685, %v2865, %v2867
      %v2869 = vrot.slane %v2444, 1
      %v2870 = vsel %vm1685, %v2867, %v2869
      %v2871 = vrot.slane %v2447, 1
      %v2872 = vsel %vm1685, %v2869, %v2871
      %v2873 = vrot.slane %v2449, 1
      %v2874 = vsel %vm1685, %v2871, %v2873
      %v2875 = vrot.slane %v2452, 1
      %v2876 = vsel %vm1685, %v2873, %v2875
      %v2877 = vrot.slane %v2454, 1
      %v2878 = vsel %vm1685, %v2875, %v2877
      %v2879 = vrot.slane %v2457, 1
      %v2880 = vsel %vm1685, %v2877, %v2879
      %v2881 = vrot.slane %v2459, 1
      %v2882 = vsel %vm1685, %v2879, %v2881
      %v2883 = vrot.slane %v2462, 1
      %v2884 = vsel %vm1685, %v2881, %v2883
      %v2885 = vrot.slane %v2464, 1
      %v2886 = vsel %vm1685, %v2883, %v2885
      %v2887 = vrot.slane %v2467, 1
      %v2888 = vsel %vm1685, %v2885, %v2887
      %v2889 = vrot.slane %v2469, 1
      %v2890 = vsel %vm1685, %v2887, %v2889
      %v2891 = vrot.slane %v2472, 1
      %v2892 = vsel %vm1685, %v2889, %v2891
      %v2893 = vrot.slane %v2474, 1
      %v2894 = vsel %vm1685, %v2891, %v2893
      %v2895 = vrot.slane %v2477, 1
      %v2896 = vsel %vm1685, %v2893, %v2895
      %v2897 = vrot.slane %v2479, 1
      %v2898 = vsel %vm1685, %v2895, %v2897
      %v2899 = vrot.slane %v2482, 1
      %v2900 = vsel %vm1685, %v2897, %v2899
      %v2901 = vrot.slane %v2484, 1
      %v2902 = vsel %vm1685, %v2899, %v2901
      %v2903 = vrot.slane %v2487, 1
      %v2904 = vsel %vm1685, %v2901, %v2903
      %v2905 = vrot.slane %v2489, 1
      %v2906 = vsel %vm1685, %v2903, %v2905
      %v2907 = vrot.slane %v2492, 1
      %v2908 = vsel %vm1685, %v2905, %v2907
      %v2909 = vrot.slane %v2494, 1
      %v2910 = vsel %vm1685, %v2907, %v2909
      %v2911 = vrot.slane %v2497, 1
      %v2912 = vsel %vm1685, %v2909, %v2911
      %v2913 = vrot.slane %v2499, 1
      %v2914 = vsel %vm1685, %v2911, %v2913
      %v2915 = vrot.slane %v2502, 1
      %v2916 = vsel %vm1685, %v2913, %v2915
      %v2917 = vrot.slane %v2504, 1
      %v2918 = vsel %vm1685, %v2915, %v2917
      %v2919 = vrot.slane %v2507, 1
      %v2920 = vsel %vm1685, %v2917, %v2919
      %v2921 = vrot.slane %v2509, 1
      %v2922 = vsel %vm1685, %v2919, %v2921
      %v2923 = vrot.slane %v2512, 1
      %v2924 = vsel %vm1685, %v2921, %v2923
      %v2925 = vrot.slane %v2514, 1
      %v2926 = vsel %vm1685, %v2923, %v2925
      %v2927 = vrot.slane %v2517, 1
      %v2928 = vsel %vm1685, %v2925, %v2927
      %v2929 = vrot.slane %v2519, 1
      %v2930 = vsel %vm1685, %v2927, %v2929
      %v2931 = vrot.slane %v2522, 1
      %v2932 = vsel %vm1685, %v2929, %v2931
      %v2933 = vrot.slane %v2524, 1
      %v2934 = vsel %vm1685, %v2931, %v2933
      %v2935 = vrot.slane %v2527, 1
      %v2936 = vsel %vm1685, %v2933, %v2935
      %v2937 = vrot.slane %v2529, 1
      %v2938 = vsel %vm1685, %v2935, %v2937
      %v2939 = vrot.slane %v2532, 1
      %v2940 = vsel %vm1685, %v2937, %v2939
      %v2941 = vrot.slane %v2534, 1
      %v2942 = vsel %vm1685, %v2939, %v2941
      %v2943 = vrot.slane %v2537, 1
      %v2944 = vsel %vm1685, %v2941, %v2943
      %v2945 = vrot.slane %v2539, 1
      %v2946 = vsel %vm1685, %v2943, %v2945
      %v2947 = vrot.slane %v2542, 1
      %v2948 = vsel %vm1685, %v2945, %v2947
      %v2949 = vrot.slane %v2544, 1
      %v2950 = vsel %vm1685, %v2947, %v2949
      %v2951 = vrot.slane %v2547, 1
      %v2952 = vsel %vm1685, %v2949, %v2951
      %v2953 = vrot.slane %v2549, 1
      %v2954 = vsel %vm1685, %v2951, %v2953
      %v2955 = vrot.slane %v2552, 1
      %v2956 = vsel %vm1685, %v2953, %v2955
      %v2957 = vrot.slane %v2554, 1
      %v2958 = vsel %vm1685, %v2955, %v2957
      %v2959 = vrot.slane %v2557, 1
      %v2960 = vsel %vm1685, %v2957, %v2959
      %v2961 = vrot.slane %v2559, 1
      %v2962 = vsel %vm1685, %v2959, %v2961
      %v2963 = vrot.slane %v2562, 1
      %v2964 = vsel %vm1685, %v2961, %v2963
      %v2965 = vrot.slane %v2564, 1
      %v2966 = vsel %vm1685, %v2963, %v2965
      %v2967 = vrot.slane %v2567, 1
      %v2968 = vsel %vm1685, %v2965, %v2967
      %v2969 = vrot.slane %v2569, 1
      %v2970 = vsel %vm1685, %v2967, %v2969
      %v2971 = vrot.slane %v2572, 1
      %v2972 = vsel %vm1685, %v2969, %v2971
      %v3105 = vadd.f32 %v2083, %v2710
      %v3106 = vadd.f32 %v2084, %v2712
      %v3107 = vadd.f32 %v2085, %v2714
      %v3108 = vadd.f32 %v2086, %v2716
      %v3109 = vadd.f32 %v2087, %v2718
      %v3110 = vadd.f32 %v2088, %v2720
      %v3111 = vadd.f32 %v2089, %v2722
      %v3112 = vadd.f32 %v2090, %v2724
      %v3113 = vadd.f32 %v2091, %v2726
      %v3114 = vadd.f32 %v2092, %v2728
      %v3115 = vadd.f32 %v2093, %v2730
      %v3116 = vadd.f32 %v2094, %v2732
      %v3117 = vadd.f32 %v2095, %v2734
      %v3118 = vadd.f32 %v2096, %v2736
      %v3119 = vadd.f32 %v2097, %v2738
      %v3120 = vadd.f32 %v2098, %v2740
      %v3121 = vadd.f32 %v2099, %v2742
      %v3122 = vadd.f32 %v2100, %v2744
      %v3123 = vadd.f32 %v2101, %v2746
      %v3124 = vadd.f32 %v2102, %v2748
      %v3125 = vadd.f32 %v2103, %v2750
      %v3126 = vadd.f32 %v2104, %v2752
      %v3127 = vadd.f32 %v2105, %v2754
      %v3128 = vadd.f32 %v2106, %v2756
      %v3129 = vadd.f32 %v2107, %v2758
      %v3130 = vadd.f32 %v2108, %v2760
      %v3131 = vadd.f32 %v2109, %v2762
      %v3132 = vadd.f32 %v2110, %v2764
      %v3133 = vadd.f32 %v2111, %v2766
      %v3134 = vadd.f32 %v2112, %v2768
      %v3135 = vadd.f32 %v2113, %v2770
      %v3136 = vadd.f32 %v2114, %v2772
      %v3137 = vadd.f32 %v2115, %v2774
      %v3138 = vadd.f32 %v2116, %v2776
      %v3139 = vadd.f32 %v2117, %v2778
      %v3140 = vadd.f32 %v2118, %v2780
      %v3141 = vadd.f32 %v2119, %v2782
      %v3142 = vadd.f32 %v2120, %v2784
      %v3143 = vadd.f32 %v2121, %v2786
      %v3144 = vadd.f32 %v2122, %v2788
      %v3145 = vadd.f32 %v2123, %v2790
      %v3146 = vadd.f32 %v2124, %v2792
      %v3147 = vadd.f32 %v2125, %v2794
      %v3148 = vadd.f32 %v2126, %v2796
      %v3149 = vadd.f32 %v2127, %v2798
      %v3150 = vadd.f32 %v2128, %v2800
      %v3151 = vadd.f32 %v2129, %v2802
      %v3152 = vadd.f32 %v2130, %v2804
      %v3153 = vadd.f32 %v2131, %v2806
      %v3154 = vadd.f32 %v2132, %v2808
      %v3155 = vadd.f32 %v2133, %v2810
      %v3156 = vadd.f32 %v2134, %v2812
      %v3157 = vadd.f32 %v2135, %v2814
      %v3158 = vadd.f32 %v2136, %v2816
      %v3159 = vadd.f32 %v2137, %v2818
      %v3160 = vadd.f32 %v2138, %v2820
      %v3161 = vadd.f32 %v2139, %v2822
      %v3162 = vadd.f32 %v2140, %v2824
      %v3163 = vadd.f32 %v2141, %v2826
      %v3164 = vadd.f32 %v2142, %v2828
      %v3165 = vadd.f32 %v2143, %v2830
      %v3166 = vadd.f32 %v2144, %v2832
      %v3167 = vadd.f32 %v2145, %v2834
      %v3168 = vadd.f32 %v2146, %v2836
      %v3169 = vadd.f32 %v2147, %v2838
      %v3170 = vadd.f32 %v2148, %v2840
      %v3171 = vadd.f32 %v2149, %v2842
      %v3172 = vadd.f32 %v2150, %v2844
      %v3173 = vadd.f32 %v2151, %v2846
      %v3174 = vadd.f32 %v2152, %v2848
      %v3175 = vadd.f32 %v2153, %v2850
      %v3176 = vadd.f32 %v2154, %v2852
      %v3177 = vadd.f32 %v2155, %v2854
      %v3178 = vadd.f32 %v2156, %v2856
      %v3179 = vadd.f32 %v2157, %v2858
      %v3180 = vadd.f32 %v2158, %v2860
      %v3181 = vadd.f32 %v2159, %v2862
      %v3182 = vadd.f32 %v2160, %v2864
      %v3183 = vadd.f32 %v2161, %v2866
      %v3184 = vadd.f32 %v2162, %v2868
      %v3185 = vadd.f32 %v2163, %v2870
      %v3186 = vadd.f32 %v2164, %v2872
      %v3187 = vadd.f32 %v2165, %v2874
      %v3188 = vadd.f32 %v2166, %v2876
      %v3189 = vadd.f32 %v2167, %v2878
      %v3190 = vadd.f32 %v2168, %v2880
      %v3191 = vadd.f32 %v2169, %v2882
      %v3192 = vadd.f32 %v2170, %v2884
      %v3193 = vadd.f32 %v2171, %v2886
      %v3194 = vadd.f32 %v2172, %v2888
      %v3195 = vadd.f32 %v2173, %v2890
      %v3196 = vadd.f32 %v2174, %v2892
      %v3197 = vadd.f32 %v2175, %v2894
      %v3198 = vadd.f32 %v2176, %v2896
      %v3199 = vadd.f32 %v2177, %v2898
      %v3200 = vadd.f32 %v2178, %v2900
      %v3201 = vadd.f32 %v2179, %v2902
      %v3202 = vadd.f32 %v2180, %v2904
      %v3203 = vadd.f32 %v2181, %v2906
      %v3204 = vadd.f32 %v2182, %v2908
      %v3205 = vadd.f32 %v2183, %v2910
      %v3206 = vadd.f32 %v2184, %v2912
      %v3207 = vadd.f32 %v2185, %v2914
      %v3208 = vadd.f32 %v2186, %v2916
      %v3209 = vadd.f32 %v2187, %v2918
      %v3210 = vadd.f32 %v2188, %v2920
      %v3211 = vadd.f32 %v2189, %v2922
      %v3212 = vadd.f32 %v2190, %v2924
      %v3213 = vadd.f32 %v2191, %v2926
      %v3214 = vadd.f32 %v2192, %v2928
      %v3215 = vadd.f32 %v2193, %v2930
      %v3216 = vadd.f32 %v2194, %v2932
      %v3217 = vadd.f32 %v2195, %v2934
      %v3218 = vadd.f32 %v2196, %v2936
      %v3219 = vadd.f32 %v2197, %v2938
      %v3220 = vadd.f32 %v2198, %v2940
      %v3221 = vadd.f32 %v2199, %v2942
      %v3222 = vadd.f32 %v2200, %v2944
      %v3223 = vadd.f32 %v2201, %v2946
      %v3224 = vadd.f32 %v2202, %v2948
      %v3225 = vadd.f32 %v2203, %v2950
      %v3226 = vadd.f32 %v2204, %v2952
      %v3227 = vadd.f32 %v2205, %v2954
      %v3228 = vadd.f32 %v2206, %v2956
      %v3229 = vadd.f32 %v2207, %v2958
      %v3230 = vadd.f32 %v2208, %v2960
      %v3231 = vadd.f32 %v2209, %v2962
      %v3232 = vadd.f32 %v2210, %v2964
      %v3233 = vadd.f32 %v2211, %v2966
      %v3234 = vadd.f32 %v2212, %v2968
      %v3235 = vadd.f32 %v2213, %v2970
      %v3236 = vadd.f32 %v2214, %v2972
      %s3237 = scalar_lea.vmem %s1, 24
      %v3238 = vld [vmem:[%s3237] sm:$0xf]
      %v3239 = vld [vmem:[%s3237 + $0x4] sm:$0x3]
      %v3242 = vunpack.c.l.b16 %v3238
      %v3243 = vunpack.c.l.b16 %v3239
      %v3244 = vpack.c.b16 %v3243, %v3242
      %v3246 = vsel %vm840, %v3244, 0
      %3248 = vmatpush.bf16.msra.mxu0 0
      %3249 = vmatpush.bf16.msra.mxu0 0
      %3250 = vmatpush.bf16.msra.mxu0 0
      %3251 = vmatpush.bf16.msra.mxu0 0
      %3252 = vmatpush.bf16.msra.mxu0 0
      %3253 = vmatpush.bf16.msra.mxu0 0
      %3254 = vmatpush.bf16.msra.mxu0 0
      %3255 = vmatpush.bf16.msra.mxu0 %v3246
      %3256 = vmatmul.bf16.gmra.mxu0 %v634
      %v3257 = vpop.f32.mrf.mxu0
      %v3258 = vpop.f32.mrf.mxu0
      %3259 = vmatmul.bf16.gmra.mxu0 %v637
      %v3260 = vpop.f32.mrf.mxu0
      %v3261 = vpop.f32.mrf.mxu0
      %3262 = vmatmul.bf16.gmra.mxu0 %v640
      %v3263 = vpop.f32.mrf.mxu0
      %v3264 = vadd.f32 0.0, %v3263
      %v3265 = vpop.f32.mrf.mxu0
      %v3266 = vadd.f32 0.0, %v3265
      %3267 = vmatmul.bf16.gmra.mxu0 %v643
      %v3268 = vpop.f32.mrf.mxu0
      %v3269 = vadd.f32 0.0, %v3268
      %v3270 = vpop.f32.mrf.mxu0
      %v3271 = vadd.f32 0.0, %v3270
      %3272 = vmatmul.bf16.gmra.mxu0 %v646
      %v3273 = vpop.f32.mrf.mxu0
      %v3274 = vadd.f32 0.0, %v3273
      %v3275 = vpop.f32.mrf.mxu0
      %v3276 = vadd.f32 0.0, %v3275
      %3277 = vmatmul.bf16.gmra.mxu0 %v649
      %v3278 = vpop.f32.mrf.mxu0
      %v3279 = vadd.f32 0.0, %v3278
      %v3280 = vpop.f32.mrf.mxu0
      %v3281 = vadd.f32 0.0, %v3280
      %3282 = vmatmul.bf16.gmra.mxu0 %v652
      %v3283 = vpop.f32.mrf.mxu0
      %v3284 = vadd.f32 0.0, %v3283
      %v3285 = vpop.f32.mrf.mxu0
      %v3286 = vadd.f32 0.0, %v3285
      %3287 = vmatmul.bf16.gmra.mxu0 %v655
      %v3288 = vpop.f32.mrf.mxu0
      %v3289 = vadd.f32 0.0, %v3288
      %v3290 = vpop.f32.mrf.mxu0
      %v3291 = vadd.f32 0.0, %v3290
      %3292 = vmatmul.bf16.gmra.mxu0 %v658
      %v3293 = vpop.f32.mrf.mxu0
      %v3294 = vadd.f32 0.0, %v3293
      %v3295 = vpop.f32.mrf.mxu0
      %v3296 = vadd.f32 0.0, %v3295
      %3297 = vmatmul.bf16.gmra.mxu0 %v661
      %v3298 = vpop.f32.mrf.mxu0
      %v3299 = vadd.f32 0.0, %v3298
      %v3300 = vpop.f32.mrf.mxu0
      %v3301 = vadd.f32 0.0, %v3300
      %3302 = vmatmul.bf16.gmra.mxu0 %v664
      %v3303 = vpop.f32.mrf.mxu0
      %v3304 = vadd.f32 0.0, %v3303
      %v3305 = vpop.f32.mrf.mxu0
      %v3306 = vadd.f32 0.0, %v3305
      %3307 = vmatmul.bf16.gmra.mxu0 %v667
      %v3308 = vpop.f32.mrf.mxu0
      %v3309 = vadd.f32 0.0, %v3308
      %v3310 = vpop.f32.mrf.mxu0
      %v3311 = vadd.f32 0.0, %v3310
      %3312 = vmatmul.bf16.gmra.mxu0 %v670
      %v3313 = vpop.f32.mrf.mxu0
      %v3314 = vadd.f32 0.0, %v3313
      %v3315 = vpop.f32.mrf.mxu0
      %v3316 = vadd.f32 0.0, %v3315
      %3317 = vmatmul.bf16.gmra.mxu0 %v673
      %v3318 = vpop.f32.mrf.mxu0
      %v3319 = vadd.f32 0.0, %v3318
      %v3320 = vpop.f32.mrf.mxu0
      %v3321 = vadd.f32 0.0, %v3320
      %3322 = vmatmul.bf16.gmra.mxu0 %v676
      %v3323 = vpop.f32.mrf.mxu0
      %v3324 = vadd.f32 0.0, %v3323
      %v3325 = vpop.f32.mrf.mxu0
      %v3326 = vadd.f32 0.0, %v3325
      %3327 = vmatmul.bf16.gmra.mxu0 %v679
      %v3328 = vpop.f32.mrf.mxu0
      %v3329 = vadd.f32 0.0, %v3328
      %v3330 = vpop.f32.mrf.mxu0
      %v3331 = vadd.f32 0.0, %v3330
      %3332 = vmatmul.bf16.gmra.mxu0 %v682
      %v3333 = vpop.f32.mrf.mxu0
      %v3334 = vadd.f32 0.0, %v3333
      %v3335 = vpop.f32.mrf.mxu0
      %v3336 = vadd.f32 0.0, %v3335
      %3337 = vmatmul.bf16.gmra.mxu0 %v685
      %v3338 = vpop.f32.mrf.mxu0
      %v3339 = vadd.f32 0.0, %v3338
      %v3340 = vpop.f32.mrf.mxu0
      %v3341 = vadd.f32 0.0, %v3340
      %3342 = vmatmul.bf16.gmra.mxu0 %v688
      %v3343 = vpop.f32.mrf.mxu0
      %v3344 = vadd.f32 0.0, %v3343
      %v3345 = vpop.f32.mrf.mxu0
      %v3346 = vadd.f32 0.0, %v3345
      %3347 = vmatmul.bf16.gmra.mxu0 %v691
      %v3348 = vpop.f32.mrf.mxu0
      %v3349 = vadd.f32 0.0, %v3348
      %v3350 = vpop.f32.mrf.mxu0
      %v3351 = vadd.f32 0.0, %v3350
      %3352 = vmatmul.bf16.gmra.mxu0 %v694
      %v3353 = vpop.f32.mrf.mxu0
      %v3354 = vadd.f32 0.0, %v3353
      %v3355 = vpop.f32.mrf.mxu0
      %v3356 = vadd.f32 0.0, %v3355
      %3357 = vmatmul.bf16.gmra.mxu0 %v697
      %v3358 = vpop.f32.mrf.mxu0
      %v3359 = vadd.f32 0.0, %v3358
      %v3360 = vpop.f32.mrf.mxu0
      %v3361 = vadd.f32 0.0, %v3360
      %3362 = vmatmul.bf16.gmra.mxu0 %v700
      %v3363 = vpop.f32.mrf.mxu0
      %v3364 = vadd.f32 0.0, %v3363
      %v3365 = vpop.f32.mrf.mxu0
      %v3366 = vadd.f32 0.0, %v3365
      %3367 = vmatmul.bf16.gmra.mxu0 %v703
      %v3368 = vpop.f32.mrf.mxu0
      %v3369 = vadd.f32 0.0, %v3368
      %v3370 = vpop.f32.mrf.mxu0
      %v3371 = vadd.f32 0.0, %v3370
      %3372 = vmatmul.bf16.gmra.mxu0 %v706
      %v3373 = vpop.f32.mrf.mxu0
      %v3374 = vadd.f32 0.0, %v3373
      %v3375 = vpop.f32.mrf.mxu0
      %v3376 = vadd.f32 0.0, %v3375
      %3377 = vmatmul.bf16.gmra.mxu0 %v709
      %v3378 = vpop.f32.mrf.mxu0
      %v3379 = vadd.f32 0.0, %v3378
      %v3380 = vpop.f32.mrf.mxu0
      %v3381 = vadd.f32 0.0, %v3380
      %3382 = vmatmul.bf16.gmra.mxu0 %v712
      %v3383 = vpop.f32.mrf.mxu0
      %v3384 = vadd.f32 0.0, %v3383
      %v3385 = vpop.f32.mrf.mxu0
      %v3386 = vadd.f32 0.0, %v3385
      %3387 = vmatmul.bf16.gmra.mxu0 %v715
      %v3388 = vpop.f32.mrf.mxu0
      %v3389 = vadd.f32 0.0, %v3388
      %v3390 = vpop.f32.mrf.mxu0
      %v3391 = vadd.f32 0.0, %v3390
      %3392 = vmatmul.bf16.gmra.mxu0 %v718
      %v3393 = vpop.f32.mrf.mxu0
      %v3394 = vadd.f32 0.0, %v3393
      %v3395 = vpop.f32.mrf.mxu0
      %v3396 = vadd.f32 0.0, %v3395
      %3397 = vmatmul.bf16.gmra.mxu0 %v721
      %v3398 = vpop.f32.mrf.mxu0
      %v3399 = vadd.f32 0.0, %v3398
      %v3400 = vpop.f32.mrf.mxu0
      %v3401 = vadd.f32 0.0, %v3400
      %3402 = vmatmul.bf16.gmra.mxu0 %v724
      %v3403 = vpop.f32.mrf.mxu0
      %v3404 = vadd.f32 0.0, %v3403
      %v3405 = vpop.f32.mrf.mxu0
      %v3406 = vadd.f32 0.0, %v3405
      %3407 = vmatmul.bf16.gmra.mxu0 %v727
      %v3408 = vpop.f32.mrf.mxu0
      %v3409 = vadd.f32 0.0, %v3408
      %v3410 = vpop.f32.mrf.mxu0
      %v3411 = vadd.f32 0.0, %v3410
      %3412 = vmatmul.bf16.gmra.mxu0 %v730
      %v3413 = vpop.f32.mrf.mxu0
      %v3414 = vadd.f32 0.0, %v3413
      %v3415 = vpop.f32.mrf.mxu0
      %v3416 = vadd.f32 0.0, %v3415
      %3417 = vmatmul.bf16.gmra.mxu0 %v733
      %v3418 = vpop.f32.mrf.mxu0
      %v3419 = vadd.f32 0.0, %v3418
      %v3420 = vpop.f32.mrf.mxu0
      %v3421 = vadd.f32 0.0, %v3420
      %3422 = vmatmul.bf16.gmra.mxu0 %v736
      %v3423 = vpop.f32.mrf.mxu0
      %v3424 = vadd.f32 0.0, %v3423
      %v3425 = vpop.f32.mrf.mxu0
      %v3426 = vadd.f32 0.0, %v3425
      %3427 = vmatmul.bf16.gmra.mxu0 %v739
      %v3428 = vpop.f32.mrf.mxu0
      %v3429 = vadd.f32 0.0, %v3428
      %v3430 = vpop.f32.mrf.mxu0
      %v3431 = vadd.f32 0.0, %v3430
      %3432 = vmatmul.bf16.gmra.mxu0 %v742
      %v3433 = vpop.f32.mrf.mxu0
      %v3434 = vadd.f32 0.0, %v3433
      %v3435 = vpop.f32.mrf.mxu0
      %v3436 = vadd.f32 0.0, %v3435
      %3437 = vmatmul.bf16.gmra.mxu0 %v745
      %v3438 = vpop.f32.mrf.mxu0
      %v3439 = vadd.f32 0.0, %v3438
      %v3440 = vpop.f32.mrf.mxu0
      %v3441 = vadd.f32 0.0, %v3440
      %3442 = vmatmul.bf16.gmra.mxu0 %v748
      %v3443 = vpop.f32.mrf.mxu0
      %v3444 = vadd.f32 0.0, %v3443
      %v3445 = vpop.f32.mrf.mxu0
      %v3446 = vadd.f32 0.0, %v3445
      %3447 = vmatmul.bf16.gmra.mxu0 %v751
      %v3448 = vpop.f32.mrf.mxu0
      %v3449 = vadd.f32 0.0, %v3448
      %v3450 = vpop.f32.mrf.mxu0
      %v3451 = vadd.f32 0.0, %v3450
      %3452 = vmatmul.bf16.gmra.mxu0 %v754
      %v3453 = vpop.f32.mrf.mxu0
      %v3454 = vadd.f32 0.0, %v3453
      %v3455 = vpop.f32.mrf.mxu0
      %v3456 = vadd.f32 0.0, %v3455
      %3457 = vmatmul.bf16.gmra.mxu0 %v757
      %v3458 = vpop.f32.mrf.mxu0
      %v3459 = vadd.f32 0.0, %v3458
      %v3460 = vpop.f32.mrf.mxu0
      %v3461 = vadd.f32 0.0, %v3460
      %3462 = vmatmul.bf16.gmra.mxu0 %v760
      %v3463 = vpop.f32.mrf.mxu0
      %v3464 = vadd.f32 0.0, %v3463
      %v3465 = vpop.f32.mrf.mxu0
      %v3466 = vadd.f32 0.0, %v3465
      %3467 = vmatmul.bf16.gmra.mxu0 %v763
      %v3468 = vpop.f32.mrf.mxu0
      %v3469 = vadd.f32 0.0, %v3468
      %v3470 = vpop.f32.mrf.mxu0
      %v3471 = vadd.f32 0.0, %v3470
      %3472 = vmatmul.bf16.gmra.mxu0 %v766
      %v3473 = vpop.f32.mrf.mxu0
      %v3474 = vadd.f32 0.0, %v3473
      %v3475 = vpop.f32.mrf.mxu0
      %v3476 = vadd.f32 0.0, %v3475
      %3477 = vmatmul.bf16.gmra.mxu0 %v769
      %v3478 = vpop.f32.mrf.mxu0
      %v3479 = vadd.f32 0.0, %v3478
      %v3480 = vpop.f32.mrf.mxu0
      %v3481 = vadd.f32 0.0, %v3480
      %3482 = vmatmul.bf16.gmra.mxu0 %v772
      %v3483 = vpop.f32.mrf.mxu0
      %v3484 = vadd.f32 0.0, %v3483
      %v3485 = vpop.f32.mrf.mxu0
      %v3486 = vadd.f32 0.0, %v3485
      %3487 = vmatmul.bf16.gmra.mxu0 %v775
      %v3488 = vpop.f32.mrf.mxu0
      %v3489 = vadd.f32 0.0, %v3488
      %v3490 = vpop.f32.mrf.mxu0
      %v3491 = vadd.f32 0.0, %v3490
      %3492 = vmatmul.bf16.gmra.mxu0 %v778
      %v3493 = vpop.f32.mrf.mxu0
      %v3494 = vadd.f32 0.0, %v3493
      %v3495 = vpop.f32.mrf.mxu0
      %v3496 = vadd.f32 0.0, %v3495
      %3497 = vmatmul.bf16.gmra.mxu0 %v781
      %v3498 = vpop.f32.mrf.mxu0
      %v3499 = vadd.f32 0.0, %v3498
      %v3500 = vpop.f32.mrf.mxu0
      %v3501 = vadd.f32 0.0, %v3500
      %3502 = vmatmul.bf16.gmra.mxu0 %v784
      %v3503 = vpop.f32.mrf.mxu0
      %v3504 = vadd.f32 0.0, %v3503
      %v3505 = vpop.f32.mrf.mxu0
      %v3506 = vadd.f32 0.0, %v3505
      %3507 = vmatmul.bf16.gmra.mxu0 %v787
      %v3508 = vpop.f32.mrf.mxu0
      %v3509 = vadd.f32 0.0, %v3508
      %v3510 = vpop.f32.mrf.mxu0
      %v3511 = vadd.f32 0.0, %v3510
      %3512 = vmatmul.bf16.gmra.mxu0 %v790
      %v3513 = vpop.f32.mrf.mxu0
      %v3514 = vadd.f32 0.0, %v3513
      %v3515 = vpop.f32.mrf.mxu0
      %v3516 = vadd.f32 0.0, %v3515
      %3517 = vmatmul.bf16.gmra.mxu0 %v793
      %v3518 = vpop.f32.mrf.mxu0
      %v3519 = vadd.f32 0.0, %v3518
      %v3520 = vpop.f32.mrf.mxu0
      %v3521 = vadd.f32 0.0, %v3520
      %3522 = vmatmul.bf16.gmra.mxu0 %v796
      %v3523 = vpop.f32.mrf.mxu0
      %v3524 = vadd.f32 0.0, %v3523
      %v3525 = vpop.f32.mrf.mxu0
      %v3526 = vadd.f32 0.0, %v3525
      %3527 = vmatmul.bf16.gmra.mxu0 %v799
      %v3528 = vpop.f32.mrf.mxu0
      %v3529 = vadd.f32 0.0, %v3528
      %v3530 = vpop.f32.mrf.mxu0
      %v3531 = vadd.f32 0.0, %v3530
      %3532 = vmatmul.bf16.gmra.mxu0 %v802
      %v3533 = vpop.f32.mrf.mxu0
      %v3534 = vadd.f32 0.0, %v3533
      %v3535 = vpop.f32.mrf.mxu0
      %v3536 = vadd.f32 0.0, %v3535
      %3537 = vmatmul.bf16.gmra.mxu0 %v805
      %v3538 = vpop.f32.mrf.mxu0
      %v3539 = vadd.f32 0.0, %v3538
      %v3540 = vpop.f32.mrf.mxu0
      %v3541 = vadd.f32 0.0, %v3540
      %3542 = vmatmul.bf16.gmra.mxu0 %v808
      %v3543 = vpop.f32.mrf.mxu0
      %v3544 = vadd.f32 0.0, %v3543
      %v3545 = vpop.f32.mrf.mxu0
      %v3546 = vadd.f32 0.0, %v3545
      %3547 = vmatmul.bf16.gmra.mxu0 %v811
      %v3548 = vpop.f32.mrf.mxu0
      %v3549 = vadd.f32 0.0, %v3548
      %v3550 = vpop.f32.mrf.mxu0
      %v3551 = vadd.f32 0.0, %v3550
      %3552 = vmatmul.bf16.gmra.mxu0 %v814
      %v3553 = vpop.f32.mrf.mxu0
      %v3554 = vadd.f32 0.0, %v3553
      %v3555 = vpop.f32.mrf.mxu0
      %v3556 = vadd.f32 0.0, %v3555
      %3557 = vmatmul.bf16.gmra.mxu0 %v817
      %v3558 = vpop.f32.mrf.mxu0
      %v3559 = vadd.f32 0.0, %v3558
      %v3560 = vpop.f32.mrf.mxu0
      %v3561 = vadd.f32 0.0, %v3560
      %3562 = vmatmul.bf16.gmra.mxu0 %v820
      %v3563 = vpop.f32.mrf.mxu0
      %v3564 = vadd.f32 0.0, %v3563
      %v3565 = vpop.f32.mrf.mxu0
      %v3566 = vadd.f32 0.0, %v3565
      %3567 = vmatmul.bf16.gmra.mxu0 %v823
      %v3568 = vpop.f32.mrf.mxu0
      %v3569 = vadd.f32 0.0, %v3568
      %v3570 = vpop.f32.mrf.mxu0
      %v3571 = vadd.f32 0.0, %v3570
      %3572 = vmatmul.bf16.gmra.mxu0 %v826
      %v3573 = vpop.f32.mrf.mxu0
      %v3574 = vadd.f32 0.0, %v3573
      %v3575 = vpop.f32.mrf.mxu0
      %v3576 = vadd.f32 0.0, %v3575
      %3577 = vmatmul.bf16.gmra.mxu0 %v829
      %v3578 = vpop.f32.mrf.mxu0
      %v3579 = vadd.f32 0.0, %v3578
      %v3580 = vpop.f32.mrf.mxu0
      %v3581 = vadd.f32 0.0, %v3580
      %3582 = vmatmul.bf16.gmra.mxu0 %v832
      %v3583 = vpop.f32.mrf.mxu0
      %v3584 = vadd.f32 0.0, %v3583
      %v3585 = vpop.f32.mrf.mxu0
      %v3586 = vadd.f32 0.0, %v3585
      %3587 = vmatmul.bf16.gmra.mxu0 %v835
      %v3588 = vpop.f32.mrf.mxu0
      %v3589 = vadd.f32 0.0, %v3588
      %v3590 = vpop.f32.mrf.mxu0
      %v3591 = vadd.f32 0.0, %v3590
      %3592 = vmatmul.bf16.gmra.mxu0 %v838
      %v3593 = vpop.f32.mrf.mxu0
      %v3594 = vadd.f32 0.0, %v3593
      %v3595 = vpop.f32.mrf.mxu0
      %3596 = vdwg.mxu0
      %v3730 = vrot.slane %v3264, 2
      %v3731 = vrot.slane %v3266, 2
      %v3732 = vsel %vm840, %v3730, %v3731
      %v3733 = vrot.slane %v3269, 2
      %v3734 = vsel %vm840, %v3731, %v3733
      %v3735 = vrot.slane %v3271, 2
      %v3736 = vsel %vm840, %v3733, %v3735
      %v3737 = vrot.slane %v3274, 2
      %v3738 = vsel %vm840, %v3735, %v3737
      %v3739 = vrot.slane %v3276, 2
      %v3740 = vsel %vm840, %v3737, %v3739
      %v3741 = vrot.slane %v3279, 2
      %v3742 = vsel %vm840, %v3739, %v3741
      %v3743 = vrot.slane %v3281, 2
      %v3744 = vsel %vm840, %v3741, %v3743
      %v3745 = vrot.slane %v3284, 2
      %v3746 = vsel %vm840, %v3743, %v3745
      %v3747 = vrot.slane %v3286, 2
      %v3748 = vsel %vm840, %v3745, %v3747
      %v3749 = vrot.slane %v3289, 2
      %v3750 = vsel %vm840, %v3747, %v3749
      %v3751 = vrot.slane %v3291, 2
      %v3752 = vsel %vm840, %v3749, %v3751
      %v3753 = vrot.slane %v3294, 2
      %v3754 = vsel %vm840, %v3751, %v3753
      %v3755 = vrot.slane %v3296, 2
      %v3756 = vsel %vm840, %v3753, %v3755
      %v3757 = vrot.slane %v3299, 2
      %v3758 = vsel %vm840, %v3755, %v3757
      %v3759 = vrot.slane %v3301, 2
      %v3760 = vsel %vm840, %v3757, %v3759
      %v3761 = vrot.slane %v3304, 2
      %v3762 = vsel %vm840, %v3759, %v3761
      %v3763 = vrot.slane %v3306, 2
      %v3764 = vsel %vm840, %v3761, %v3763
      %v3765 = vrot.slane %v3309, 2
      %v3766 = vsel %vm840, %v3763, %v3765
      %v3767 = vrot.slane %v3311, 2
      %v3768 = vsel %vm840, %v3765, %v3767
      %v3769 = vrot.slane %v3314, 2
      %v3770 = vsel %vm840, %v3767, %v3769
      %v3771 = vrot.slane %v3316, 2
      %v3772 = vsel %vm840, %v3769, %v3771
      %v3773 = vrot.slane %v3319, 2
      %v3774 = vsel %vm840, %v3771, %v3773
      %v3775 = vrot.slane %v3321, 2
      %v3776 = vsel %vm840, %v3773, %v3775
      %v3777 = vrot.slane %v3324, 2
      %v3778 = vsel %vm840, %v3775, %v3777
      %v3779 = vrot.slane %v3326, 2
      %v3780 = vsel %vm840, %v3777, %v3779
      %v3781 = vrot.slane %v3329, 2
      %v3782 = vsel %vm840, %v3779, %v3781
      %v3783 = vrot.slane %v3331, 2
      %v3784 = vsel %vm840, %v3781, %v3783
      %v3785 = vrot.slane %v3334, 2
      %v3786 = vsel %vm840, %v3783, %v3785
      %v3787 = vrot.slane %v3336, 2
      %v3788 = vsel %vm840, %v3785, %v3787
      %v3789 = vrot.slane %v3339, 2
      %v3790 = vsel %vm840, %v3787, %v3789
      %v3791 = vrot.slane %v3341, 2
      %v3792 = vsel %vm840, %v3789, %v3791
      %v3793 = vrot.slane %v3344, 2
      %v3794 = vsel %vm840, %v3791, %v3793
      %v3795 = vrot.slane %v3346, 2
      %v3796 = vsel %vm840, %v3793, %v3795
      %v3797 = vrot.slane %v3349, 2
      %v3798 = vsel %vm840, %v3795, %v3797
      %v3799 = vrot.slane %v3351, 2
      %v3800 = vsel %vm840, %v3797, %v3799
      %v3801 = vrot.slane %v3354, 2
      %v3802 = vsel %vm840, %v3799, %v3801
      %v3803 = vrot.slane %v3356, 2
      %v3804 = vsel %vm840, %v3801, %v3803
      %v3805 = vrot.slane %v3359, 2
      %v3806 = vsel %vm840, %v3803, %v3805
      %v3807 = vrot.slane %v3361, 2
      %v3808 = vsel %vm840, %v3805, %v3807
      %v3809 = vrot.slane %v3364, 2
      %v3810 = vsel %vm840, %v3807, %v3809
      %v3811 = vrot.slane %v3366, 2
      %v3812 = vsel %vm840, %v3809, %v3811
      %v3813 = vrot.slane %v3369, 2
      %v3814 = vsel %vm840, %v3811, %v3813
      %v3815 = vrot.slane %v3371, 2
      %v3816 = vsel %vm840, %v3813, %v3815
      %v3817 = vrot.slane %v3374, 2
      %v3818 = vsel %vm840, %v3815, %v3817
      %v3819 = vrot.slane %v3376, 2
      %v3820 = vsel %vm840, %v3817, %v3819
      %v3821 = vrot.slane %v3379, 2
      %v3822 = vsel %vm840, %v3819, %v3821
      %v3823 = vrot.slane %v3381, 2
      %v3824 = vsel %vm840, %v3821, %v3823
      %v3825 = vrot.slane %v3384, 2
      %v3826 = vsel %vm840, %v3823, %v3825
      %v3827 = vrot.slane %v3386, 2
      %v3828 = vsel %vm840, %v3825, %v3827
      %v3829 = vrot.slane %v3389, 2
      %v3830 = vsel %vm840, %v3827, %v3829
      %v3831 = vrot.slane %v3391, 2
      %v3832 = vsel %vm840, %v3829, %v3831
      %v3833 = vrot.slane %v3394, 2
      %v3834 = vsel %vm840, %v3831, %v3833
      %v3835 = vrot.slane %v3396, 2
      %v3836 = vsel %vm840, %v3833, %v3835
      %v3837 = vrot.slane %v3399, 2
      %v3838 = vsel %vm840, %v3835, %v3837
      %v3839 = vrot.slane %v3401, 2
      %v3840 = vsel %vm840, %v3837, %v3839
      %v3841 = vrot.slane %v3404, 2
      %v3842 = vsel %vm840, %v3839, %v3841
      %v3843 = vrot.slane %v3406, 2
      %v3844 = vsel %vm840, %v3841, %v3843
      %v3845 = vrot.slane %v3409, 2
      %v3846 = vsel %vm840, %v3843, %v3845
      %v3847 = vrot.slane %v3411, 2
      %v3848 = vsel %vm840, %v3845, %v3847
      %v3849 = vrot.slane %v3414, 2
      %v3850 = vsel %vm840, %v3847, %v3849
      %v3851 = vrot.slane %v3416, 2
      %v3852 = vsel %vm840, %v3849, %v3851
      %v3853 = vrot.slane %v3419, 2
      %v3854 = vsel %vm840, %v3851, %v3853
      %v3855 = vrot.slane %v3421, 2
      %v3856 = vsel %vm840, %v3853, %v3855
      %v3857 = vrot.slane %v3424, 2
      %v3858 = vsel %vm840, %v3855, %v3857
      %v3859 = vrot.slane %v3426, 2
      %v3860 = vsel %vm840, %v3857, %v3859
      %v3861 = vrot.slane %v3429, 2
      %v3862 = vsel %vm840, %v3859, %v3861
      %v3863 = vrot.slane %v3431, 2
      %v3864 = vsel %vm840, %v3861, %v3863
      %v3865 = vrot.slane %v3434, 2
      %v3866 = vsel %vm840, %v3863, %v3865
      %v3867 = vrot.slane %v3436, 2
      %v3868 = vsel %vm840, %v3865, %v3867
      %v3869 = vrot.slane %v3439, 2
      %v3870 = vsel %vm840, %v3867, %v3869
      %v3871 = vrot.slane %v3441, 2
      %v3872 = vsel %vm840, %v3869, %v3871
      %v3873 = vrot.slane %v3444, 2
      %v3874 = vsel %vm840, %v3871, %v3873
      %v3875 = vrot.slane %v3446, 2
      %v3876 = vsel %vm840, %v3873, %v3875
      %v3877 = vrot.slane %v3449, 2
      %v3878 = vsel %vm840, %v3875, %v3877
      %v3879 = vrot.slane %v3451, 2
      %v3880 = vsel %vm840, %v3877, %v3879
      %v3881 = vrot.slane %v3454, 2
      %v3882 = vsel %vm840, %v3879, %v3881
      %v3883 = vrot.slane %v3456, 2
      %v3884 = vsel %vm840, %v3881, %v3883
      %v3885 = vrot.slane %v3459, 2
      %v3886 = vsel %vm840, %v3883, %v3885
      %v3887 = vrot.slane %v3461, 2
      %v3888 = vsel %vm840, %v3885, %v3887
      %v3889 = vrot.slane %v3464, 2
      %v3890 = vsel %vm840, %v3887, %v3889
      %v3891 = vrot.slane %v3466, 2
      %v3892 = vsel %vm840, %v3889, %v3891
      %v3893 = vrot.slane %v3469, 2
      %v3894 = vsel %vm840, %v3891, %v3893
      %v3895 = vrot.slane %v3471, 2
      %v3896 = vsel %vm840, %v3893, %v3895
      %v3897 = vrot.slane %v3474, 2
      %v3898 = vsel %vm840, %v3895, %v3897
      %v3899 = vrot.slane %v3476, 2
      %v3900 = vsel %vm840, %v3897, %v3899
      %v3901 = vrot.slane %v3479, 2
      %v3902 = vsel %vm840, %v3899, %v3901
      %v3903 = vrot.slane %v3481, 2
      %v3904 = vsel %vm840, %v3901, %v3903
      %v3905 = vrot.slane %v3484, 2
      %v3906 = vsel %vm840, %v3903, %v3905
      %v3907 = vrot.slane %v3486, 2
      %v3908 = vsel %vm840, %v3905, %v3907
      %v3909 = vrot.slane %v3489, 2
      %v3910 = vsel %vm840, %v3907, %v3909
      %v3911 = vrot.slane %v3491, 2
      %v3912 = vsel %vm840, %v3909, %v3911
      %v3913 = vrot.slane %v3494, 2
      %v3914 = vsel %vm840, %v3911, %v3913
      %v3915 = vrot.slane %v3496, 2
      %v3916 = vsel %vm840, %v3913, %v3915
      %v3917 = vrot.slane %v3499, 2
      %v3918 = vsel %vm840, %v3915, %v3917
      %v3919 = vrot.slane %v3501, 2
      %v3920 = vsel %vm840, %v3917, %v3919
      %v3921 = vrot.slane %v3504, 2
      %v3922 = vsel %vm840, %v3919, %v3921
      %v3923 = vrot.slane %v3506, 2
      %v3924 = vsel %vm840, %v3921, %v3923
      %v3925 = vrot.slane %v3509, 2
      %v3926 = vsel %vm840, %v3923, %v3925
      %v3927 = vrot.slane %v3511, 2
      %v3928 = vsel %vm840, %v3925, %v3927
      %v3929 = vrot.slane %v3514, 2
      %v3930 = vsel %vm840, %v3927, %v3929
      %v3931 = vrot.slane %v3516, 2
      %v3932 = vsel %vm840, %v3929, %v3931
      %v3933 = vrot.slane %v3519, 2
      %v3934 = vsel %vm840, %v3931, %v3933
      %v3935 = vrot.slane %v3521, 2
      %v3936 = vsel %vm840, %v3933, %v3935
      %v3937 = vrot.slane %v3524, 2
      %v3938 = vsel %vm840, %v3935, %v3937
      %v3939 = vrot.slane %v3526, 2
      %v3940 = vsel %vm840, %v3937, %v3939
      %v3941 = vrot.slane %v3529, 2
      %v3942 = vsel %vm840, %v3939, %v3941
      %v3943 = vrot.slane %v3531, 2
      %v3944 = vsel %vm840, %v3941, %v3943
      %v3945 = vrot.slane %v3534, 2
      %v3946 = vsel %vm840, %v3943, %v3945
      %v3947 = vrot.slane %v3536, 2
      %v3948 = vsel %vm840, %v3945, %v3947
      %v3949 = vrot.slane %v3539, 2
      %v3950 = vsel %vm840, %v3947, %v3949
      %v3951 = vrot.slane %v3541, 2
      %v3952 = vsel %vm840, %v3949, %v3951
      %v3953 = vrot.slane %v3544, 2
      %v3954 = vsel %vm840, %v3951, %v3953
      %v3955 = vrot.slane %v3546, 2
      %v3956 = vsel %vm840, %v3953, %v3955
      %v3957 = vrot.slane %v3549, 2
      %v3958 = vsel %vm840, %v3955, %v3957
      %v3959 = vrot.slane %v3551, 2
      %v3960 = vsel %vm840, %v3957, %v3959
      %v3961 = vrot.slane %v3554, 2
      %v3962 = vsel %vm840, %v3959, %v3961
      %v3963 = vrot.slane %v3556, 2
      %v3964 = vsel %vm840, %v3961, %v3963
      %v3965 = vrot.slane %v3559, 2
      %v3966 = vsel %vm840, %v3963, %v3965
      %v3967 = vrot.slane %v3561, 2
      %v3968 = vsel %vm840, %v3965, %v3967
      %v3969 = vrot.slane %v3564, 2
      %v3970 = vsel %vm840, %v3967, %v3969
      %v3971 = vrot.slane %v3566, 2
      %v3972 = vsel %vm840, %v3969, %v3971
      %v3973 = vrot.slane %v3569, 2
      %v3974 = vsel %vm840, %v3971, %v3973
      %v3975 = vrot.slane %v3571, 2
      %v3976 = vsel %vm840, %v3973, %v3975
      %v3977 = vrot.slane %v3574, 2
      %v3978 = vsel %vm840, %v3975, %v3977
      %v3979 = vrot.slane %v3576, 2
      %v3980 = vsel %vm840, %v3977, %v3979
      %v3981 = vrot.slane %v3579, 2
      %v3982 = vsel %vm840, %v3979, %v3981
      %v3983 = vrot.slane %v3581, 2
      %v3984 = vsel %vm840, %v3981, %v3983
      %v3985 = vrot.slane %v3584, 2
      %v3986 = vsel %vm840, %v3983, %v3985
      %v3987 = vrot.slane %v3586, 2
      %v3988 = vsel %vm840, %v3985, %v3987
      %v3989 = vrot.slane %v3589, 2
      %v3990 = vsel %vm840, %v3987, %v3989
      %v3991 = vrot.slane %v3591, 2
      %v3992 = vsel %vm840, %v3989, %v3991
      %v3993 = vrot.slane %v3594, 2
      %v3994 = vsel %vm840, %v3991, %v3993
      %v4127 = vadd.f32 %v3105, %v3732
      %v4128 = vadd.f32 %v3106, %v3734
      %v4129 = vadd.f32 %v3107, %v3736
      %v4130 = vadd.f32 %v3108, %v3738
      %v4131 = vadd.f32 %v3109, %v3740
      %v4132 = vadd.f32 %v3110, %v3742
      %v4133 = vadd.f32 %v3111, %v3744
      %v4134 = vadd.f32 %v3112, %v3746
      %v4135 = vadd.f32 %v3113, %v3748
      %v4136 = vadd.f32 %v3114, %v3750
      %v4137 = vadd.f32 %v3115, %v3752
      %v4138 = vadd.f32 %v3116, %v3754
      %v4139 = vadd.f32 %v3117, %v3756
      %v4140 = vadd.f32 %v3118, %v3758
      %v4141 = vadd.f32 %v3119, %v3760
      %v4142 = vadd.f32 %v3120, %v3762
      %v4143 = vadd.f32 %v3121, %v3764
      %v4144 = vadd.f32 %v3122, %v3766
      %v4145 = vadd.f32 %v3123, %v3768
      %v4146 = vadd.f32 %v3124, %v3770
      %v4147 = vadd.f32 %v3125, %v3772
      %v4148 = vadd.f32 %v3126, %v3774
      %v4149 = vadd.f32 %v3127, %v3776
      %v4150 = vadd.f32 %v3128, %v3778
      %v4151 = vadd.f32 %v3129, %v3780
      %v4152 = vadd.f32 %v3130, %v3782
      %v4153 = vadd.f32 %v3131, %v3784
      %v4154 = vadd.f32 %v3132, %v3786
      %v4155 = vadd.f32 %v3133, %v3788
      %v4156 = vadd.f32 %v3134, %v3790
      %v4157 = vadd.f32 %v3135, %v3792
      %v4158 = vadd.f32 %v3136, %v3794
      %v4159 = vadd.f32 %v3137, %v3796
      %v4160 = vadd.f32 %v3138, %v3798
      %v4161 = vadd.f32 %v3139, %v3800
      %v4162 = vadd.f32 %v3140, %v3802
      %v4163 = vadd.f32 %v3141, %v3804
      %v4164 = vadd.f32 %v3142, %v3806
      %v4165 = vadd.f32 %v3143, %v3808
      %v4166 = vadd.f32 %v3144, %v3810
      %v4167 = vadd.f32 %v3145, %v3812
      %v4168 = vadd.f32 %v3146, %v3814
      %v4169 = vadd.f32 %v3147, %v3816
      %v4170 = vadd.f32 %v3148, %v3818
      %v4171 = vadd.f32 %v3149, %v3820
      %v4172 = vadd.f32 %v3150, %v3822
      %v4173 = vadd.f32 %v3151, %v3824
      %v4174 = vadd.f32 %v3152, %v3826
      %v4175 = vadd.f32 %v3153, %v3828
      %v4176 = vadd.f32 %v3154, %v3830
      %v4177 = vadd.f32 %v3155, %v3832
      %v4178 = vadd.f32 %v3156, %v3834
      %v4179 = vadd.f32 %v3157, %v3836
      %v4180 = vadd.f32 %v3158, %v3838
      %v4181 = vadd.f32 %v3159, %v3840
      %v4182 = vadd.f32 %v3160, %v3842
      %v4183 = vadd.f32 %v3161, %v3844
      %v4184 = vadd.f32 %v3162, %v3846
      %v4185 = vadd.f32 %v3163, %v3848
      %v4186 = vadd.f32 %v3164, %v3850
      %v4187 = vadd.f32 %v3165, %v3852
      %v4188 = vadd.f32 %v3166, %v3854
      %v4189 = vadd.f32 %v3167, %v3856
      %v4190 = vadd.f32 %v3168, %v3858
      %v4191 = vadd.f32 %v3169, %v3860
      %v4192 = vadd.f32 %v3170, %v3862
      %v4193 = vadd.f32 %v3171, %v3864
      %v4194 = vadd.f32 %v3172, %v3866
      %v4195 = vadd.f32 %v3173, %v3868
      %v4196 = vadd.f32 %v3174, %v3870
      %v4197 = vadd.f32 %v3175, %v3872
      %v4198 = vadd.f32 %v3176, %v3874
      %v4199 = vadd.f32 %v3177, %v3876
      %v4200 = vadd.f32 %v3178, %v3878
      %v4201 = vadd.f32 %v3179, %v3880
      %v4202 = vadd.f32 %v3180, %v3882
      %v4203 = vadd.f32 %v3181, %v3884
      %v4204 = vadd.f32 %v3182, %v3886
      %v4205 = vadd.f32 %v3183, %v3888
      %v4206 = vadd.f32 %v3184, %v3890
      %v4207 = vadd.f32 %v3185, %v3892
      %v4208 = vadd.f32 %v3186, %v3894
      %v4209 = vadd.f32 %v3187, %v3896
      %v4210 = vadd.f32 %v3188, %v3898
      %v4211 = vadd.f32 %v3189, %v3900
      %v4212 = vadd.f32 %v3190, %v3902
      %v4213 = vadd.f32 %v3191, %v3904
      %v4214 = vadd.f32 %v3192, %v3906
      %v4215 = vadd.f32 %v3193, %v3908
      %v4216 = vadd.f32 %v3194, %v3910
      %v4217 = vadd.f32 %v3195, %v3912
      %v4218 = vadd.f32 %v3196, %v3914
      %v4219 = vadd.f32 %v3197, %v3916
      %v4220 = vadd.f32 %v3198, %v3918
      %v4221 = vadd.f32 %v3199, %v3920
      %v4222 = vadd.f32 %v3200, %v3922
      %v4223 = vadd.f32 %v3201, %v3924
      %v4224 = vadd.f32 %v3202, %v3926
      %v4225 = vadd.f32 %v3203, %v3928
      %v4226 = vadd.f32 %v3204, %v3930
      %v4227 = vadd.f32 %v3205, %v3932
      %v4228 = vadd.f32 %v3206, %v3934
      %v4229 = vadd.f32 %v3207, %v3936
      %v4230 = vadd.f32 %v3208, %v3938
      %v4231 = vadd.f32 %v3209, %v3940
      %v4232 = vadd.f32 %v3210, %v3942
      %v4233 = vadd.f32 %v3211, %v3944
      %v4234 = vadd.f32 %v3212, %v3946
      %v4235 = vadd.f32 %v3213, %v3948
      %v4236 = vadd.f32 %v3214, %v3950
      %v4237 = vadd.f32 %v3215, %v3952
      %v4238 = vadd.f32 %v3216, %v3954
      %v4239 = vadd.f32 %v3217, %v3956
      %v4240 = vadd.f32 %v3218, %v3958
      %v4241 = vadd.f32 %v3219, %v3960
      %v4242 = vadd.f32 %v3220, %v3962
      %v4243 = vadd.f32 %v3221, %v3964
      %v4244 = vadd.f32 %v3222, %v3966
      %v4245 = vadd.f32 %v3223, %v3968
      %v4246 = vadd.f32 %v3224, %v3970
      %v4247 = vadd.f32 %v3225, %v3972
      %v4248 = vadd.f32 %v3226, %v3974
      %v4249 = vadd.f32 %v3227, %v3976
      %v4250 = vadd.f32 %v3228, %v3978
      %v4251 = vadd.f32 %v3229, %v3980
      %v4252 = vadd.f32 %v3230, %v3982
      %v4253 = vadd.f32 %v3231, %v3984
      %v4254 = vadd.f32 %v3232, %v3986
      %v4255 = vadd.f32 %v3233, %v3988
      %v4256 = vadd.f32 %v3234, %v3990
      %v4257 = vadd.f32 %v3235, %v3992
      %v4258 = vadd.f32 %v3236, %v3994
      %vm4259 = vcmp.ge.f32.partialorder %v4127, 0.0
      %vm4260 = vcmp.ge.f32.partialorder %v4128, 0.0
      %vm4261 = vcmp.ge.f32.partialorder %v4129, 0.0
      %vm4262 = vcmp.ge.f32.partialorder %v4130, 0.0
      %vm4263 = vcmp.ge.f32.partialorder %v4131, 0.0
      %vm4264 = vcmp.ge.f32.partialorder %v4132, 0.0
      %vm4265 = vcmp.ge.f32.partialorder %v4133, 0.0
      %vm4266 = vcmp.ge.f32.partialorder %v4134, 0.0
      %vm4267 = vcmp.ge.f32.partialorder %v4135, 0.0
      %vm4268 = vcmp.ge.f32.partialorder %v4136, 0.0
      %vm4269 = vcmp.ge.f32.partialorder %v4137, 0.0
      %vm4270 = vcmp.ge.f32.partialorder %v4138, 0.0
      %vm4271 = vcmp.ge.f32.partialorder %v4139, 0.0
      %vm4272 = vcmp.ge.f32.partialorder %v4140, 0.0
      %vm4273 = vcmp.ge.f32.partialorder %v4141, 0.0
      %vm4274 = vcmp.ge.f32.partialorder %v4142, 0.0
      %vm4275 = vcmp.ge.f32.partialorder %v4143, 0.0
      %vm4276 = vcmp.ge.f32.partialorder %v4144, 0.0
      %vm4277 = vcmp.ge.f32.partialorder %v4145, 0.0
      %vm4278 = vcmp.ge.f32.partialorder %v4146, 0.0
      %vm4279 = vcmp.ge.f32.partialorder %v4147, 0.0
      %vm4280 = vcmp.ge.f32.partialorder %v4148, 0.0
      %vm4281 = vcmp.ge.f32.partialorder %v4149, 0.0
      %vm4282 = vcmp.ge.f32.partialorder %v4150, 0.0
      %vm4283 = vcmp.ge.f32.partialorder %v4151, 0.0
      %vm4284 = vcmp.ge.f32.partialorder %v4152, 0.0
      %vm4285 = vcmp.ge.f32.partialorder %v4153, 0.0
      %vm4286 = vcmp.ge.f32.partialorder %v4154, 0.0
      %vm4287 = vcmp.ge.f32.partialorder %v4155, 0.0
      %vm4288 = vcmp.ge.f32.partialorder %v4156, 0.0
      %vm4289 = vcmp.ge.f32.partialorder %v4157, 0.0
      %vm4290 = vcmp.ge.f32.partialorder %v4158, 0.0
      %vm4291 = vcmp.ge.f32.partialorder %v4159, 0.0
      %vm4292 = vcmp.ge.f32.partialorder %v4160, 0.0
      %vm4293 = vcmp.ge.f32.partialorder %v4161, 0.0
      %vm4294 = vcmp.ge.f32.partialorder %v4162, 0.0
      %vm4295 = vcmp.ge.f32.partialorder %v4163, 0.0
      %vm4296 = vcmp.ge.f32.partialorder %v4164, 0.0
      %vm4297 = vcmp.ge.f32.partialorder %v4165, 0.0
      %vm4298 = vcmp.ge.f32.partialorder %v4166, 0.0
      %vm4299 = vcmp.ge.f32.partialorder %v4167, 0.0
      %vm4300 = vcmp.ge.f32.partialorder %v4168, 0.0
      %vm4301 = vcmp.ge.f32.partialorder %v4169, 0.0
      %vm4302 = vcmp.ge.f32.partialorder %v4170, 0.0
      %vm4303 = vcmp.ge.f32.partialorder %v4171, 0.0
      %vm4304 = vcmp.ge.f32.partialorder %v4172, 0.0
      %vm4305 = vcmp.ge.f32.partialorder %v4173, 0.0
      %vm4306 = vcmp.ge.f32.partialorder %v4174, 0.0
      %vm4307 = vcmp.ge.f32.partialorder %v4175, 0.0
      %vm4308 = vcmp.ge.f32.partialorder %v4176, 0.0
      %vm4309 = vcmp.ge.f32.partialorder %v4177, 0.0
      %vm4310 = vcmp.ge.f32.partialorder %v4178, 0.0
      %vm4311 = vcmp.ge.f32.partialorder %v4179, 0.0
      %vm4312 = vcmp.ge.f32.partialorder %v4180, 0.0
      %vm4313 = vcmp.ge.f32.partialorder %v4181, 0.0
      %vm4314 = vcmp.ge.f32.partialorder %v4182, 0.0
      %vm4315 = vcmp.ge.f32.partialorder %v4183, 0.0
      %vm4316 = vcmp.ge.f32.partialorder %v4184, 0.0
      %vm4317 = vcmp.ge.f32.partialorder %v4185, 0.0
      %vm4318 = vcmp.ge.f32.partialorder %v4186, 0.0
      %vm4319 = vcmp.ge.f32.partialorder %v4187, 0.0
      %vm4320 = vcmp.ge.f32.partialorder %v4188, 0.0
      %vm4321 = vcmp.ge.f32.partialorder %v4189, 0.0
      %vm4322 = vcmp.ge.f32.partialorder %v4190, 0.0
      %vm4323 = vcmp.ge.f32.partialorder %v4191, 0.0
      %vm4324 = vcmp.ge.f32.partialorder %v4192, 0.0
      %vm4325 = vcmp.ge.f32.partialorder %v4193, 0.0
      %vm4326 = vcmp.ge.f32.partialorder %v4194, 0.0
      %vm4327 = vcmp.ge.f32.partialorder %v4195, 0.0
      %vm4328 = vcmp.ge.f32.partialorder %v4196, 0.0
      %vm4329 = vcmp.ge.f32.partialorder %v4197, 0.0
      %vm4330 = vcmp.ge.f32.partialorder %v4198, 0.0
      %vm4331 = vcmp.ge.f32.partialorder %v4199, 0.0
      %vm4332 = vcmp.ge.f32.partialorder %v4200, 0.0
      %vm4333 = vcmp.ge.f32.partialorder %v4201, 0.0
      %vm4334 = vcmp.ge.f32.partialorder %v4202, 0.0
      %vm4335 = vcmp.ge.f32.partialorder %v4203, 0.0
      %vm4336 = vcmp.ge.f32.partialorder %v4204, 0.0
      %vm4337 = vcmp.ge.f32.partialorder %v4205, 0.0
      %vm4338 = vcmp.ge.f32.partialorder %v4206, 0.0
      %vm4339 = vcmp.ge.f32.partialorder %v4207, 0.0
      %vm4340 = vcmp.ge.f32.partialorder %v4208, 0.0
      %vm4341 = vcmp.ge.f32.partialorder %v4209, 0.0
      %vm4342 = vcmp.ge.f32.partialorder %v4210, 0.0
      %vm4343 = vcmp.ge.f32.partialorder %v4211, 0.0
      %vm4344 = vcmp.ge.f32.partialorder %v4212, 0.0
      %vm4345 = vcmp.ge.f32.partialorder %v4213, 0.0
      %vm4346 = vcmp.ge.f32.partialorder %v4214, 0.0
      %vm4347 = vcmp.ge.f32.partialorder %v4215, 0.0
      %vm4348 = vcmp.ge.f32.partialorder %v4216, 0.0
      %vm4349 = vcmp.ge.f32.partialorder %v4217, 0.0
      %vm4350 = vcmp.ge.f32.partialorder %v4218, 0.0
      %vm4351 = vcmp.ge.f32.partialorder %v4219, 0.0
      %vm4352 = vcmp.ge.f32.partialorder %v4220, 0.0
      %vm4353 = vcmp.ge.f32.partialorder %v4221, 0.0
      %vm4354 = vcmp.ge.f32.partialorder %v4222, 0.0
      %vm4355 = vcmp.ge.f32.partialorder %v4223, 0.0
      %vm4356 = vcmp.ge.f32.partialorder %v4224, 0.0
      %vm4357 = vcmp.ge.f32.partialorder %v4225, 0.0
      %vm4358 = vcmp.ge.f32.partialorder %v4226, 0.0
      %vm4359 = vcmp.ge.f32.partialorder %v4227, 0.0
      %vm4360 = vcmp.ge.f32.partialorder %v4228, 0.0
      %vm4361 = vcmp.ge.f32.partialorder %v4229, 0.0
      %vm4362 = vcmp.ge.f32.partialorder %v4230, 0.0
      %vm4363 = vcmp.ge.f32.partialorder %v4231, 0.0
      %vm4364 = vcmp.ge.f32.partialorder %v4232, 0.0
      %vm4365 = vcmp.ge.f32.partialorder %v4233, 0.0
      %vm4366 = vcmp.ge.f32.partialorder %v4234, 0.0
      %vm4367 = vcmp.ge.f32.partialorder %v4235, 0.0
      %vm4368 = vcmp.ge.f32.partialorder %v4236, 0.0
      %vm4369 = vcmp.ge.f32.partialorder %v4237, 0.0
      %vm4370 = vcmp.ge.f32.partialorder %v4238, 0.0
      %vm4371 = vcmp.ge.f32.partialorder %v4239, 0.0
      %vm4372 = vcmp.ge.f32.partialorder %v4240, 0.0
      %vm4373 = vcmp.ge.f32.partialorder %v4241, 0.0
      %vm4374 = vcmp.ge.f32.partialorder %v4242, 0.0
      %vm4375 = vcmp.ge.f32.partialorder %v4243, 0.0
      %vm4376 = vcmp.ge.f32.partialorder %v4244, 0.0
      %vm4377 = vcmp.ge.f32.partialorder %v4245, 0.0
      %vm4378 = vcmp.ge.f32.partialorder %v4246, 0.0
      %vm4379 = vcmp.ge.f32.partialorder %v4247, 0.0
      %vm4380 = vcmp.ge.f32.partialorder %v4248, 0.0
      %vm4381 = vcmp.ge.f32.partialorder %v4249, 0.0
      %vm4382 = vcmp.ge.f32.partialorder %v4250, 0.0
      %vm4383 = vcmp.ge.f32.partialorder %v4251, 0.0
      %vm4384 = vcmp.ge.f32.partialorder %v4252, 0.0
      %vm4385 = vcmp.ge.f32.partialorder %v4253, 0.0
      %vm4386 = vcmp.ge.f32.partialorder %v4254, 0.0
      %vm4387 = vcmp.ge.f32.partialorder %v4255, 0.0
      %vm4388 = vcmp.ge.f32.partialorder %v4256, 0.0
      %vm4389 = vcmp.ge.f32.partialorder %v4257, 0.0
      %vm4390 = vcmp.ge.f32.partialorder %v4258, 0.0
      %v4391 = vmul.f32 %v4127, 0.2
      %v4392 = vmul.f32 %v4128, 0.2
      %v4393 = vmul.f32 %v4129, 0.2
      %v4394 = vmul.f32 %v4130, 0.2
      %v4395 = vmul.f32 %v4131, 0.2
      %v4396 = vmul.f32 %v4132, 0.2
      %v4397 = vmul.f32 %v4133, 0.2
      %v4398 = vmul.f32 %v4134, 0.2
      %v4399 = vmul.f32 %v4135, 0.2
      %v4400 = vmul.f32 %v4136, 0.2
      %v4401 = vmul.f32 %v4137, 0.2
      %v4402 = vmul.f32 %v4138, 0.2
      %v4403 = vmul.f32 %v4139, 0.2
      %v4404 = vmul.f32 %v4140, 0.2
      %v4405 = vmul.f32 %v4141, 0.2
      %v4406 = vmul.f32 %v4142, 0.2
      %v4407 = vmul.f32 %v4143, 0.2
      %v4408 = vmul.f32 %v4144, 0.2
      %v4409 = vmul.f32 %v4145, 0.2
      %v4410 = vmul.f32 %v4146, 0.2
      %v4411 = vmul.f32 %v4147, 0.2
      %v4412 = vmul.f32 %v4148, 0.2
      %v4413 = vmul.f32 %v4149, 0.2
      %v4414 = vmul.f32 %v4150, 0.2
      %v4415 = vmul.f32 %v4151, 0.2
      %v4416 = vmul.f32 %v4152, 0.2
      %v4417 = vmul.f32 %v4153, 0.2
      %v4418 = vmul.f32 %v4154, 0.2
      %v4419 = vmul.f32 %v4155, 0.2
      %v4420 = vmul.f32 %v4156, 0.2
      %v4421 = vmul.f32 %v4157, 0.2
      %v4422 = vmul.f32 %v4158, 0.2
      %v4423 = vmul.f32 %v4159, 0.2
      %v4424 = vmul.f32 %v4160, 0.2
      %v4425 = vmul.f32 %v4161, 0.2
      %v4426 = vmul.f32 %v4162, 0.2
      %v4427 = vmul.f32 %v4163, 0.2
      %v4428 = vmul.f32 %v4164, 0.2
      %v4429 = vmul.f32 %v4165, 0.2
      %v4430 = vmul.f32 %v4166, 0.2
      %v4431 = vmul.f32 %v4167, 0.2
      %v4432 = vmul.f32 %v4168, 0.2
      %v4433 = vmul.f32 %v4169, 0.2
      %v4434 = vmul.f32 %v4170, 0.2
      %v4435 = vmul.f32 %v4171, 0.2
      %v4436 = vmul.f32 %v4172, 0.2
      %v4437 = vmul.f32 %v4173, 0.2
      %v4438 = vmul.f32 %v4174, 0.2
      %v4439 = vmul.f32 %v4175, 0.2
      %v4440 = vmul.f32 %v4176, 0.2
      %v4441 = vmul.f32 %v4177, 0.2
      %v4442 = vmul.f32 %v4178, 0.2
      %v4443 = vmul.f32 %v4179, 0.2
      %v4444 = vmul.f32 %v4180, 0.2
      %v4445 = vmul.f32 %v4181, 0.2
      %v4446 = vmul.f32 %v4182, 0.2
      %v4447 = vmul.f32 %v4183, 0.2
      %v4448 = vmul.f32 %v4184, 0.2
      %v4449 = vmul.f32 %v4185, 0.2
      %v4450 = vmul.f32 %v4186, 0.2
      %v4451 = vmul.f32 %v4187, 0.2
      %v4452 = vmul.f32 %v4188, 0.2
      %v4453 = vmul.f32 %v4189, 0.2
      %v4454 = vmul.f32 %v4190, 0.2
      %v4455 = vmul.f32 %v4191, 0.2
      %v4456 = vmul.f32 %v4192, 0.2
      %v4457 = vmul.f32 %v4193, 0.2
      %v4458 = vmul.f32 %v4194, 0.2
      %v4459 = vmul.f32 %v4195, 0.2
      %v4460 = vmul.f32 %v4196, 0.2
      %v4461 = vmul.f32 %v4197, 0.2
      %v4462 = vmul.f32 %v4198, 0.2
      %v4463 = vmul.f32 %v4199, 0.2
      %v4464 = vmul.f32 %v4200, 0.2
      %v4465 = vmul.f32 %v4201, 0.2
      %v4466 = vmul.f32 %v4202, 0.2
      %v4467 = vmul.f32 %v4203, 0.2
      %v4468 = vmul.f32 %v4204, 0.2
      %v4469 = vmul.f32 %v4205, 0.2
      %v4470 = vmul.f32 %v4206, 0.2
      %v4471 = vmul.f32 %v4207, 0.2
      %v4472 = vmul.f32 %v4208, 0.2
      %v4473 = vmul.f32 %v4209, 0.2
      %v4474 = vmul.f32 %v4210, 0.2
      %v4475 = vmul.f32 %v4211, 0.2
      %v4476 = vmul.f32 %v4212, 0.2
      %v4477 = vmul.f32 %v4213, 0.2
      %v4478 = vmul.f32 %v4214, 0.2
      %v4479 = vmul.f32 %v4215, 0.2
      %v4480 = vmul.f32 %v4216, 0.2
      %v4481 = vmul.f32 %v4217, 0.2
      %v4482 = vmul.f32 %v4218, 0.2
      %v4483 = vmul.f32 %v4219, 0.2
      %v4484 = vmul.f32 %v4220, 0.2
      %v4485 = vmul.f32 %v4221, 0.2
      %v4486 = vmul.f32 %v4222, 0.2
      %v4487 = vmul.f32 %v4223, 0.2
      %v4488 = vmul.f32 %v4224, 0.2
      %v4489 = vmul.f32 %v4225, 0.2
      %v4490 = vmul.f32 %v4226, 0.2
      %v4491 = vmul.f32 %v4227, 0.2
      %v4492 = vmul.f32 %v4228, 0.2
      %v4493 = vmul.f32 %v4229, 0.2
      %v4494 = vmul.f32 %v4230, 0.2
      %v4495 = vmul.f32 %v4231, 0.2
      %v4496 = vmul.f32 %v4232, 0.2
      %v4497 = vmul.f32 %v4233, 0.2
      %v4498 = vmul.f32 %v4234, 0.2
      %v4499 = vmul.f32 %v4235, 0.2
      %v4500 = vmul.f32 %v4236, 0.2
      %v4501 = vmul.f32 %v4237, 0.2
      %v4502 = vmul.f32 %v4238, 0.2
      %v4503 = vmul.f32 %v4239, 0.2
      %v4504 = vmul.f32 %v4240, 0.2
      %v4505 = vmul.f32 %v4241, 0.2
      %v4506 = vmul.f32 %v4242, 0.2
      %v4507 = vmul.f32 %v4243, 0.2
      %v4508 = vmul.f32 %v4244, 0.2
      %v4509 = vmul.f32 %v4245, 0.2
      %v4510 = vmul.f32 %v4246, 0.2
      %v4511 = vmul.f32 %v4247, 0.2
      %v4512 = vmul.f32 %v4248, 0.2
      %v4513 = vmul.f32 %v4249, 0.2
      %v4514 = vmul.f32 %v4250, 0.2
      %v4515 = vmul.f32 %v4251, 0.2
      %v4516 = vmul.f32 %v4252, 0.2
      %v4517 = vmul.f32 %v4253, 0.2
      %v4518 = vmul.f32 %v4254, 0.2
      %v4519 = vmul.f32 %v4255, 0.2
      %v4520 = vmul.f32 %v4256, 0.2
      %v4521 = vmul.f32 %v4257, 0.2
      %v4522 = vmul.f32 %v4258, 0.2
      %v4523 = vsel %vm4259, %v4127, %v4391
      %v4524 = vsel %vm4260, %v4128, %v4392
      %v4525 = vsel %vm4261, %v4129, %v4393
      %v4526 = vsel %vm4262, %v4130, %v4394
      %v4527 = vsel %vm4263, %v4131, %v4395
      %v4528 = vsel %vm4264, %v4132, %v4396
      %v4529 = vsel %vm4265, %v4133, %v4397
      %v4530 = vsel %vm4266, %v4134, %v4398
      %v4531 = vsel %vm4267, %v4135, %v4399
      %v4532 = vsel %vm4268, %v4136, %v4400
      %v4533 = vsel %vm4269, %v4137, %v4401
      %v4534 = vsel %vm4270, %v4138, %v4402
      %v4535 = vsel %vm4271, %v4139, %v4403
      %v4536 = vsel %vm4272, %v4140, %v4404
      %v4537 = vsel %vm4273, %v4141, %v4405
      %v4538 = vsel %vm4274, %v4142, %v4406
      %v4539 = vsel %vm4275, %v4143, %v4407
      %v4540 = vsel %vm4276, %v4144, %v4408
      %v4541 = vsel %vm4277, %v4145, %v4409
      %v4542 = vsel %vm4278, %v4146, %v4410
      %v4543 = vsel %vm4279, %v4147, %v4411
      %v4544 = vsel %vm4280, %v4148, %v4412
      %v4545 = vsel %vm4281, %v4149, %v4413
      %v4546 = vsel %vm4282, %v4150, %v4414
      %v4547 = vsel %vm4283, %v4151, %v4415
      %v4548 = vsel %vm4284, %v4152, %v4416
      %v4549 = vsel %vm4285, %v4153, %v4417
      %v4550 = vsel %vm4286, %v4154, %v4418
      %v4551 = vsel %vm4287, %v4155, %v4419
      %v4552 = vsel %vm4288, %v4156, %v4420
      %v4553 = vsel %vm4289, %v4157, %v4421
      %v4554 = vsel %vm4290, %v4158, %v4422
      %v4555 = vsel %vm4291, %v4159, %v4423
      %v4556 = vsel %vm4292, %v4160, %v4424
      %v4557 = vsel %vm4293, %v4161, %v4425
      %v4558 = vsel %vm4294, %v4162, %v4426
      %v4559 = vsel %vm4295, %v4163, %v4427
      %v4560 = vsel %vm4296, %v4164, %v4428
      %v4561 = vsel %vm4297, %v4165, %v4429
      %v4562 = vsel %vm4298, %v4166, %v4430
      %v4563 = vsel %vm4299, %v4167, %v4431
      %v4564 = vsel %vm4300, %v4168, %v4432
      %v4565 = vsel %vm4301, %v4169, %v4433
      %v4566 = vsel %vm4302, %v4170, %v4434
      %v4567 = vsel %vm4303, %v4171, %v4435
      %v4568 = vsel %vm4304, %v4172, %v4436
      %v4569 = vsel %vm4305, %v4173, %v4437
      %v4570 = vsel %vm4306, %v4174, %v4438
      %v4571 = vsel %vm4307, %v4175, %v4439
      %v4572 = vsel %vm4308, %v4176, %v4440
      %v4573 = vsel %vm4309, %v4177, %v4441
      %v4574 = vsel %vm4310, %v4178, %v4442
      %v4575 = vsel %vm4311, %v4179, %v4443
      %v4576 = vsel %vm4312, %v4180, %v4444
      %v4577 = vsel %vm4313, %v4181, %v4445
      %v4578 = vsel %vm4314, %v4182, %v4446
      %v4579 = vsel %vm4315, %v4183, %v4447
      %v4580 = vsel %vm4316, %v4184, %v4448
      %v4581 = vsel %vm4317, %v4185, %v4449
      %v4582 = vsel %vm4318, %v4186, %v4450
      %v4583 = vsel %vm4319, %v4187, %v4451
      %v4584 = vsel %vm4320, %v4188, %v4452
      %v4585 = vsel %vm4321, %v4189, %v4453
      %v4586 = vsel %vm4322, %v4190, %v4454
      %v4587 = vsel %vm4323, %v4191, %v4455
      %v4588 = vsel %vm4324, %v4192, %v4456
      %v4589 = vsel %vm4325, %v4193, %v4457
      %v4590 = vsel %vm4326, %v4194, %v4458
      %v4591 = vsel %vm4327, %v4195, %v4459
      %v4592 = vsel %vm4328, %v4196, %v4460
      %v4593 = vsel %vm4329, %v4197, %v4461
      %v4594 = vsel %vm4330, %v4198, %v4462
      %v4595 = vsel %vm4331, %v4199, %v4463
      %v4596 = vsel %vm4332, %v4200, %v4464
      %v4597 = vsel %vm4333, %v4201, %v4465
      %v4598 = vsel %vm4334, %v4202, %v4466
      %v4599 = vsel %vm4335, %v4203, %v4467
      %v4600 = vsel %vm4336, %v4204, %v4468
      %v4601 = vsel %vm4337, %v4205, %v4469
      %v4602 = vsel %vm4338, %v4206, %v4470
      %v4603 = vsel %vm4339, %v4207, %v4471
      %v4604 = vsel %vm4340, %v4208, %v4472
      %v4605 = vsel %vm4341, %v4209, %v4473
      %v4606 = vsel %vm4342, %v4210, %v4474
      %v4607 = vsel %vm4343, %v4211, %v4475
      %v4608 = vsel %vm4344, %v4212, %v4476
      %v4609 = vsel %vm4345, %v4213, %v4477
      %v4610 = vsel %vm4346, %v4214, %v4478
      %v4611 = vsel %vm4347, %v4215, %v4479
      %v4612 = vsel %vm4348, %v4216, %v4480
      %v4613 = vsel %vm4349, %v4217, %v4481
      %v4614 = vsel %vm4350, %v4218, %v4482
      %v4615 = vsel %vm4351, %v4219, %v4483
      %v4616 = vsel %vm4352, %v4220, %v4484
      %v4617 = vsel %vm4353, %v4221, %v4485
      %v4618 = vsel %vm4354, %v4222, %v4486
      %v4619 = vsel %vm4355, %v4223, %v4487
      %v4620 = vsel %vm4356, %v4224, %v4488
      %v4621 = vsel %vm4357, %v4225, %v4489
      %v4622 = vsel %vm4358, %v4226, %v4490
      %v4623 = vsel %vm4359, %v4227, %v4491
      %v4624 = vsel %vm4360, %v4228, %v4492
      %v4625 = vsel %vm4361, %v4229, %v4493
      %v4626 = vsel %vm4362, %v4230, %v4494
      %v4627 = vsel %vm4363, %v4231, %v4495
      %v4628 = vsel %vm4364, %v4232, %v4496
      %v4629 = vsel %vm4365, %v4233, %v4497
      %v4630 = vsel %vm4366, %v4234, %v4498
      %v4631 = vsel %vm4367, %v4235, %v4499
      %v4632 = vsel %vm4368, %v4236, %v4500
      %v4633 = vsel %vm4369, %v4237, %v4501
      %v4634 = vsel %vm4370, %v4238, %v4502
      %v4635 = vsel %vm4371, %v4239, %v4503
      %v4636 = vsel %vm4372, %v4240, %v4504
      %v4637 = vsel %vm4373, %v4241, %v4505
      %v4638 = vsel %vm4374, %v4242, %v4506
      %v4639 = vsel %vm4375, %v4243, %v4507
      %v4640 = vsel %vm4376, %v4244, %v4508
      %v4641 = vsel %vm4377, %v4245, %v4509
      %v4642 = vsel %vm4378, %v4246, %v4510
      %v4643 = vsel %vm4379, %v4247, %v4511
      %v4644 = vsel %vm4380, %v4248, %v4512
      %v4645 = vsel %vm4381, %v4249, %v4513
      %v4646 = vsel %vm4382, %v4250, %v4514
      %v4647 = vsel %vm4383, %v4251, %v4515
      %v4648 = vsel %vm4384, %v4252, %v4516
      %v4649 = vsel %vm4385, %v4253, %v4517
      %v4650 = vsel %vm4386, %v4254, %v4518
      %v4651 = vsel %vm4387, %v4255, %v4519
      %v4652 = vsel %vm4388, %v4256, %v4520
      %v4653 = vsel %vm4389, %v4257, %v4521
      %v4654 = vsel %vm4390, %v4258, %v4522
      %v4655 = vpack.c.bf16 %v4523, %v4523
      %v4656 = vpack.c.bf16 %v4524, %v4524
      %v4657 = vpack.c.bf16 %v4525, %v4525
      %v4658 = vpack.c.bf16 %v4526, %v4526
      %v4659 = vpack.c.bf16 %v4527, %v4527
      %v4660 = vpack.c.bf16 %v4528, %v4528
      %v4661 = vpack.c.bf16 %v4529, %v4529
      %v4662 = vpack.c.bf16 %v4530, %v4530
      %v4663 = vpack.c.bf16 %v4531, %v4531
      %v4664 = vpack.c.bf16 %v4532, %v4532
      %v4665 = vpack.c.bf16 %v4533, %v4533
      %v4666 = vpack.c.bf16 %v4534, %v4534
      %v4667 = vpack.c.bf16 %v4535, %v4535
      %v4668 = vpack.c.bf16 %v4536, %v4536
      %v4669 = vpack.c.bf16 %v4537, %v4537
      %v4670 = vpack.c.bf16 %v4538, %v4538
      %v4671 = vpack.c.bf16 %v4539, %v4539
      %v4672 = vpack.c.bf16 %v4540, %v4540
      %v4673 = vpack.c.bf16 %v4541, %v4541
      %v4674 = vpack.c.bf16 %v4542, %v4542
      %v4675 = vpack.c.bf16 %v4543, %v4543
      %v4676 = vpack.c.bf16 %v4544, %v4544
      %v4677 = vpack.c.bf16 %v4545, %v4545
      %v4678 = vpack.c.bf16 %v4546, %v4546
      %v4679 = vpack.c.bf16 %v4547, %v4547
      %v4680 = vpack.c.bf16 %v4548, %v4548
      %v4681 = vpack.c.bf16 %v4549, %v4549
      %v4682 = vpack.c.bf16 %v4550, %v4550
      %v4683 = vpack.c.bf16 %v4551, %v4551
      %v4684 = vpack.c.bf16 %v4552, %v4552
      %v4685 = vpack.c.bf16 %v4553, %v4553
      %v4686 = vpack.c.bf16 %v4554, %v4554
      %v4687 = vpack.c.bf16 %v4555, %v4555
      %v4688 = vpack.c.bf16 %v4556, %v4556
      %v4689 = vpack.c.bf16 %v4557, %v4557
      %v4690 = vpack.c.bf16 %v4558, %v4558
      %v4691 = vpack.c.bf16 %v4559, %v4559
      %v4692 = vpack.c.bf16 %v4560, %v4560
      %v4693 = vpack.c.bf16 %v4561, %v4561
      %v4694 = vpack.c.bf16 %v4562, %v4562
      %v4695 = vpack.c.bf16 %v4563, %v4563
      %v4696 = vpack.c.bf16 %v4564, %v4564
      %v4697 = vpack.c.bf16 %v4565, %v4565
      %v4698 = vpack.c.bf16 %v4566, %v4566
      %v4699 = vpack.c.bf16 %v4567, %v4567
      %v4700 = vpack.c.bf16 %v4568, %v4568
      %v4701 = vpack.c.bf16 %v4569, %v4569
      %v4702 = vpack.c.bf16 %v4570, %v4570
      %v4703 = vpack.c.bf16 %v4571, %v4571
      %v4704 = vpack.c.bf16 %v4572, %v4572
      %v4705 = vpack.c.bf16 %v4573, %v4573
      %v4706 = vpack.c.bf16 %v4574, %v4574
      %v4707 = vpack.c.bf16 %v4575, %v4575
      %v4708 = vpack.c.bf16 %v4576, %v4576
      %v4709 = vpack.c.bf16 %v4577, %v4577
      %v4710 = vpack.c.bf16 %v4578, %v4578
      %v4711 = vpack.c.bf16 %v4579, %v4579
      %v4712 = vpack.c.bf16 %v4580, %v4580
      %v4713 = vpack.c.bf16 %v4581, %v4581
      %v4714 = vpack.c.bf16 %v4582, %v4582
      %v4715 = vpack.c.bf16 %v4583, %v4583
      %v4716 = vpack.c.bf16 %v4584, %v4584
      %v4717 = vpack.c.bf16 %v4585, %v4585
      %v4718 = vpack.c.bf16 %v4586, %v4586
      %v4719 = vpack.c.bf16 %v4587, %v4587
      %v4720 = vpack.c.bf16 %v4588, %v4588
      %v4721 = vpack.c.bf16 %v4589, %v4589
      %v4722 = vpack.c.bf16 %v4590, %v4590
      %v4723 = vpack.c.bf16 %v4591, %v4591
      %v4724 = vpack.c.bf16 %v4592, %v4592
      %v4725 = vpack.c.bf16 %v4593, %v4593
      %v4726 = vpack.c.bf16 %v4594, %v4594
      %v4727 = vpack.c.bf16 %v4595, %v4595
      %v4728 = vpack.c.bf16 %v4596, %v4596
      %v4729 = vpack.c.bf16 %v4597, %v4597
      %v4730 = vpack.c.bf16 %v4598, %v4598
      %v4731 = vpack.c.bf16 %v4599, %v4599
      %v4732 = vpack.c.bf16 %v4600, %v4600
      %v4733 = vpack.c.bf16 %v4601, %v4601
      %v4734 = vpack.c.bf16 %v4602, %v4602
      %v4735 = vpack.c.bf16 %v4603, %v4603
      %v4736 = vpack.c.bf16 %v4604, %v4604
      %v4737 = vpack.c.bf16 %v4605, %v4605
      %v4738 = vpack.c.bf16 %v4606, %v4606
      %v4739 = vpack.c.bf16 %v4607, %v4607
      %v4740 = vpack.c.bf16 %v4608, %v4608
      %v4741 = vpack.c.bf16 %v4609, %v4609
      %v4742 = vpack.c.bf16 %v4610, %v4610
      %v4743 = vpack.c.bf16 %v4611, %v4611
      %v4744 = vpack.c.bf16 %v4612, %v4612
      %v4745 = vpack.c.bf16 %v4613, %v4613
      %v4746 = vpack.c.bf16 %v4614, %v4614
      %v4747 = vpack.c.bf16 %v4615, %v4615
      %v4748 = vpack.c.bf16 %v4616, %v4616
      %v4749 = vpack.c.bf16 %v4617, %v4617
      %v4750 = vpack.c.bf16 %v4618, %v4618
      %v4751 = vpack.c.bf16 %v4619, %v4619
      %v4752 = vpack.c.bf16 %v4620, %v4620
      %v4753 = vpack.c.bf16 %v4621, %v4621
      %v4754 = vpack.c.bf16 %v4622, %v4622
      %v4755 = vpack.c.bf16 %v4623, %v4623
      %v4756 = vpack.c.bf16 %v4624, %v4624
      %v4757 = vpack.c.bf16 %v4625, %v4625
      %v4758 = vpack.c.bf16 %v4626, %v4626
      %v4759 = vpack.c.bf16 %v4627, %v4627
      %v4760 = vpack.c.bf16 %v4628, %v4628
      %v4761 = vpack.c.bf16 %v4629, %v4629
      %v4762 = vpack.c.bf16 %v4630, %v4630
      %v4763 = vpack.c.bf16 %v4631, %v4631
      %v4764 = vpack.c.bf16 %v4632, %v4632
      %v4765 = vpack.c.bf16 %v4633, %v4633
      %v4766 = vpack.c.bf16 %v4634, %v4634
      %v4767 = vpack.c.bf16 %v4635, %v4635
      %v4768 = vpack.c.bf16 %v4636, %v4636
      %v4769 = vpack.c.bf16 %v4637, %v4637
      %v4770 = vpack.c.bf16 %v4638, %v4638
      %v4771 = vpack.c.bf16 %v4639, %v4639
      %v4772 = vpack.c.bf16 %v4640, %v4640
      %v4773 = vpack.c.bf16 %v4641, %v4641
      %v4774 = vpack.c.bf16 %v4642, %v4642
      %v4775 = vpack.c.bf16 %v4643, %v4643
      %v4776 = vpack.c.bf16 %v4644, %v4644
      %v4777 = vpack.c.bf16 %v4645, %v4645
      %v4778 = vpack.c.bf16 %v4646, %v4646
      %v4779 = vpack.c.bf16 %v4647, %v4647
      %v4780 = vpack.c.bf16 %v4648, %v4648
      %v4781 = vpack.c.bf16 %v4649, %v4649
      %v4782 = vpack.c.bf16 %v4650, %v4650
      %v4783 = vpack.c.bf16 %v4651, %v4651
      %v4784 = vpack.c.bf16 %v4652, %v4652
      %v4785 = vpack.c.bf16 %v4653, %v4653
      %v4786 = vpack.c.bf16 %v4654, %v4654
      %vm4787 = vcmask 125952
      %4788 = vst.msk [vmem:[%s143] sm:$0xf] %vm4787, %v4655
      %4789 = vst.msk [vmem:[%s143 + $0x4] sm:$0xf] %vm4787, %v4656
      %4790 = vst.msk [vmem:[%s143 + $0x8] sm:$0xf] %vm4787, %v4657
      %4791 = vst.msk [vmem:[%s143 + $0xc] sm:$0xf] %vm4787, %v4658
      %4792 = vst.msk [vmem:[%s143 + $0x10] sm:$0xf] %vm4787, %v4659
      %4793 = vst.msk [vmem:[%s143 + $0x14] sm:$0xf] %vm4787, %v4660
      %4794 = vst.msk [vmem:[%s143 + $0x18] sm:$0xf] %vm4787, %v4661
      %4795 = vst.msk [vmem:[%s143 + $0x1c] sm:$0xf] %vm4787, %v4662
      %4796 = vst.msk [vmem:[%s143 + $0x20] sm:$0xf] %vm4787, %v4663
      %4797 = vst.msk [vmem:[%s143 + $0x24] sm:$0xf] %vm4787, %v4664
      %4798 = vst.msk [vmem:[%s143 + $0x28] sm:$0xf] %vm4787, %v4665
      %4799 = vst.msk [vmem:[%s143 + $0x2c] sm:$0xf] %vm4787, %v4666
      %4800 = vst.msk [vmem:[%s143 + $0x30] sm:$0xf] %vm4787, %v4667
      %4801 = vst.msk [vmem:[%s143 + $0x34] sm:$0xf] %vm4787, %v4668
      %4802 = vst.msk [vmem:[%s143 + $0x38] sm:$0xf] %vm4787, %v4669
      %4803 = vst.msk [vmem:[%s143 + $0x3c] sm:$0xf] %vm4787, %v4670
      %4804 = vst.msk [vmem:[%s143 + $0x40] sm:$0xf] %vm4787, %v4671
      %4805 = vst.msk [vmem:[%s143 + $0x44] sm:$0xf] %vm4787, %v4672
      %4806 = vst.msk [vmem:[%s143 + $0x48] sm:$0xf] %vm4787, %v4673
      %4807 = vst.msk [vmem:[%s143 + $0x4c] sm:$0xf] %vm4787, %v4674
      %4808 = vst.msk [vmem:[%s143 + $0x50] sm:$0xf] %vm4787, %v4675
      %4809 = vst.msk [vmem:[%s143 + $0x54] sm:$0xf] %vm4787, %v4676
      %4810 = vst.msk [vmem:[%s143 + $0x58] sm:$0xf] %vm4787, %v4677
      %4811 = vst.msk [vmem:[%s143 + $0x5c] sm:$0xf] %vm4787, %v4678
      %4812 = vst.msk [vmem:[%s143 + $0x60] sm:$0xf] %vm4787, %v4679
      %4813 = vst.msk [vmem:[%s143 + $0x64] sm:$0xf] %vm4787, %v4680
      %4814 = vst.msk [vmem:[%s143 + $0x68] sm:$0xf] %vm4787, %v4681
      %4815 = vst.msk [vmem:[%s143 + $0x6c] sm:$0xf] %vm4787, %v4682
      %4816 = vst.msk [vmem:[%s143 + $0x70] sm:$0xf] %vm4787, %v4683
      %4817 = vst.msk [vmem:[%s143 + $0x74] sm:$0xf] %vm4787, %v4684
      %4818 = vst.msk [vmem:[%s143 + $0x78] sm:$0xf] %vm4787, %v4685
      %4819 = vst.msk [vmem:[%s143 + $0x7c] sm:$0xf] %vm4787, %v4686
      %4820 = vst.msk [vmem:[%s143 + $0x80] sm:$0xf] %vm4787, %v4687
      %4821 = vst.msk [vmem:[%s143 + $0x84] sm:$0xf] %vm4787, %v4688
      %4822 = vst.msk [vmem:[%s143 + $0x88] sm:$0xf] %vm4787, %v4689
      %4823 = vst.msk [vmem:[%s143 + $0x8c] sm:$0xf] %vm4787, %v4690
      %4824 = vst.msk [vmem:[%s143 + $0x90] sm:$0xf] %vm4787, %v4691
      %4825 = vst.msk [vmem:[%s143 + $0x94] sm:$0xf] %vm4787, %v4692
      %4826 = vst.msk [vmem:[%s143 + $0x98] sm:$0xf] %vm4787, %v4693
      %4827 = vst.msk [vmem:[%s143 + $0x9c] sm:$0xf] %vm4787, %v4694
      %4828 = vst.msk [vmem:[%s143 + $0xa0] sm:$0xf] %vm4787, %v4695
      %4829 = vst.msk [vmem:[%s143 + $0xa4] sm:$0xf] %vm4787, %v4696
      %4830 = vst.msk [vmem:[%s143 + $0xa8] sm:$0xf] %vm4787, %v4697
      %4831 = vst.msk [vmem:[%s143 + $0xac] sm:$0xf] %vm4787, %v4698
      %4832 = vst.msk [vmem:[%s143 + $0xb0] sm:$0xf] %vm4787, %v4699
      %4833 = vst.msk [vmem:[%s143 + $0xb4] sm:$0xf] %vm4787, %v4700
      %4834 = vst.msk [vmem:[%s143 + $0xb8] sm:$0xf] %vm4787, %v4701
      %4835 = vst.msk [vmem:[%s143 + $0xbc] sm:$0xf] %vm4787, %v4702
      %4836 = vst.msk [vmem:[%s143 + $0xc0] sm:$0xf] %vm4787, %v4703
      %4837 = vst.msk [vmem:[%s143 + $0xc4] sm:$0xf] %vm4787, %v4704
      %4838 = vst.msk [vmem:[%s143 + $0xc8] sm:$0xf] %vm4787, %v4705
      %4839 = vst.msk [vmem:[%s143 + $0xcc] sm:$0xf] %vm4787, %v4706
      %4840 = vst.msk [vmem:[%s143 + $0xd0] sm:$0xf] %vm4787, %v4707
      %4841 = vst.msk [vmem:[%s143 + $0xd4] sm:$0xf] %vm4787, %v4708
      %4842 = vst.msk [vmem:[%s143 + $0xd8] sm:$0xf] %vm4787, %v4709
      %4843 = vst.msk [vmem:[%s143 + $0xdc] sm:$0xf] %vm4787, %v4710
      %4844 = vst.msk [vmem:[%s143 + $0xe0] sm:$0xf] %vm4787, %v4711
      %4845 = vst.msk [vmem:[%s143 + $0xe4] sm:$0xf] %vm4787, %v4712
      %4846 = vst.msk [vmem:[%s143 + $0xe8] sm:$0xf] %vm4787, %v4713
      %4847 = vst.msk [vmem:[%s143 + $0xec] sm:$0xf] %vm4787, %v4714
      %4848 = vst.msk [vmem:[%s143 + $0xf0] sm:$0xf] %vm4787, %v4715
      %4849 = vst.msk [vmem:[%s143 + $0xf4] sm:$0xf] %vm4787, %v4716
      %4850 = vst.msk [vmem:[%s143 + $0xf8] sm:$0xf] %vm4787, %v4717
      %4851 = vst.msk [vmem:[%s143 + $0xfc] sm:$0xf] %vm4787, %v4718
      %4852 = vst.msk [vmem:[%s143 + $0x100] sm:$0xf] %vm4787, %v4719
      %4853 = vst.msk [vmem:[%s143 + $0x104] sm:$0xf] %vm4787, %v4720
      %4854 = vst.msk [vmem:[%s143 + $0x108] sm:$0xf] %vm4787, %v4721
      %4855 = vst.msk [vmem:[%s143 + $0x10c] sm:$0xf] %vm4787, %v4722
      %4856 = vst.msk [vmem:[%s143 + $0x110] sm:$0xf] %vm4787, %v4723
      %4857 = vst.msk [vmem:[%s143 + $0x114] sm:$0xf] %vm4787, %v4724
      %4858 = vst.msk [vmem:[%s143 + $0x118] sm:$0xf] %vm4787, %v4725
      %4859 = vst.msk [vmem:[%s143 + $0x11c] sm:$0xf] %vm4787, %v4726
      %4860 = vst.msk [vmem:[%s143 + $0x120] sm:$0xf] %vm4787, %v4727
      %4861 = vst.msk [vmem:[%s143 + $0x124] sm:$0xf] %vm4787, %v4728
      %4862 = vst.msk [vmem:[%s143 + $0x128] sm:$0xf] %vm4787, %v4729
      %4863 = vst.msk [vmem:[%s143 + $0x12c] sm:$0xf] %vm4787, %v4730
      %4864 = vst.msk [vmem:[%s143 + $0x130] sm:$0xf] %vm4787, %v4731
      %4865 = vst.msk [vmem:[%s143 + $0x134] sm:$0xf] %vm4787, %v4732
      %4866 = vst.msk [vmem:[%s143 + $0x138] sm:$0xf] %vm4787, %v4733
      %4867 = vst.msk [vmem:[%s143 + $0x13c] sm:$0xf] %vm4787, %v4734
      %4868 = vst.msk [vmem:[%s143 + $0x140] sm:$0xf] %vm4787, %v4735
      %4869 = vst.msk [vmem:[%s143 + $0x144] sm:$0xf] %vm4787, %v4736
      %4870 = vst.msk [vmem:[%s143 + $0x148] sm:$0xf] %vm4787, %v4737
      %4871 = vst.msk [vmem:[%s143 + $0x14c] sm:$0xf] %vm4787, %v4738
      %4872 = vst.msk [vmem:[%s143 + $0x150] sm:$0xf] %vm4787, %v4739
      %4873 = vst.msk [vmem:[%s143 + $0x154] sm:$0xf] %vm4787, %v4740
      %4874 = vst.msk [vmem:[%s143 + $0x158] sm:$0xf] %vm4787, %v4741
      %4875 = vst.msk [vmem:[%s143 + $0x15c] sm:$0xf] %vm4787, %v4742
      %4876 = vst.msk [vmem:[%s143 + $0x160] sm:$0xf] %vm4787, %v4743
      %4877 = vst.msk [vmem:[%s143 + $0x164] sm:$0xf] %vm4787, %v4744
      %4878 = vst.msk [vmem:[%s143 + $0x168] sm:$0xf] %vm4787, %v4745
      %4879 = vst.msk [vmem:[%s143 + $0x16c] sm:$0xf] %vm4787, %v4746
      %4880 = vst.msk [vmem:[%s143 + $0x170] sm:$0xf] %vm4787, %v4747
      %4881 = vst.msk [vmem:[%s143 + $0x174] sm:$0xf] %vm4787, %v4748
      %4882 = vst.msk [vmem:[%s143 + $0x178] sm:$0xf] %vm4787, %v4749
      %4883 = vst.msk [vmem:[%s143 + $0x17c] sm:$0xf] %vm4787, %v4750
      %4884 = vst.msk [vmem:[%s143 + $0x180] sm:$0xf] %vm4787, %v4751
      %4885 = vst.msk [vmem:[%s143 + $0x184] sm:$0xf] %vm4787, %v4752
      %4886 = vst.msk [vmem:[%s143 + $0x188] sm:$0xf] %vm4787, %v4753
      %4887 = vst.msk [vmem:[%s143 + $0x18c] sm:$0xf] %vm4787, %v4754
      %4888 = vst.msk [vmem:[%s143 + $0x190] sm:$0xf] %vm4787, %v4755
      %4889 = vst.msk [vmem:[%s143 + $0x194] sm:$0xf] %vm4787, %v4756
      %4890 = vst.msk [vmem:[%s143 + $0x198] sm:$0xf] %vm4787, %v4757
      %4891 = vst.msk [vmem:[%s143 + $0x19c] sm:$0xf] %vm4787, %v4758
      %4892 = vst.msk [vmem:[%s143 + $0x1a0] sm:$0xf] %vm4787, %v4759
      %4893 = vst.msk [vmem:[%s143 + $0x1a4] sm:$0xf] %vm4787, %v4760
      %4894 = vst.msk [vmem:[%s143 + $0x1a8] sm:$0xf] %vm4787, %v4761
      %4895 = vst.msk [vmem:[%s143 + $0x1ac] sm:$0xf] %vm4787, %v4762
      %4896 = vst.msk [vmem:[%s143 + $0x1b0] sm:$0xf] %vm4787, %v4763
      %4897 = vst.msk [vmem:[%s143 + $0x1b4] sm:$0xf] %vm4787, %v4764
      %4898 = vst.msk [vmem:[%s143 + $0x1b8] sm:$0xf] %vm4787, %v4765
      %4899 = vst.msk [vmem:[%s143 + $0x1bc] sm:$0xf] %vm4787, %v4766
      %4900 = vst.msk [vmem:[%s143 + $0x1c0] sm:$0xf] %vm4787, %v4767
      %4901 = vst.msk [vmem:[%s143 + $0x1c4] sm:$0xf] %vm4787, %v4768
      %4902 = vst.msk [vmem:[%s143 + $0x1c8] sm:$0xf] %vm4787, %v4769
      %4903 = vst.msk [vmem:[%s143 + $0x1cc] sm:$0xf] %vm4787, %v4770
      %4904 = vst.msk [vmem:[%s143 + $0x1d0] sm:$0xf] %vm4787, %v4771
      %4905 = vst.msk [vmem:[%s143 + $0x1d4] sm:$0xf] %vm4787, %v4772
      %4906 = vst.msk [vmem:[%s143 + $0x1d8] sm:$0xf] %vm4787, %v4773
      %4907 = vst.msk [vmem:[%s143 + $0x1dc] sm:$0xf] %vm4787, %v4774
      %4908 = vst.msk [vmem:[%s143 + $0x1e0] sm:$0xf] %vm4787, %v4775
      %4909 = vst.msk [vmem:[%s143 + $0x1e4] sm:$0xf] %vm4787, %v4776
      %4910 = vst.msk [vmem:[%s143 + $0x1e8] sm:$0xf] %vm4787, %v4777
      %4911 = vst.msk [vmem:[%s143 + $0x1ec] sm:$0xf] %vm4787, %v4778
      %4912 = vst.msk [vmem:[%s143 + $0x1f0] sm:$0xf] %vm4787, %v4779
      %4913 = vst.msk [vmem:[%s143 + $0x1f4] sm:$0xf] %vm4787, %v4780
      %4914 = vst.msk [vmem:[%s143 + $0x1f8] sm:$0xf] %vm4787, %v4781
      %4915 = vst.msk [vmem:[%s143 + $0x1fc] sm:$0xf] %vm4787, %v4782
      %4916 = vst.msk [vmem:[%s143 + $0x200] sm:$0xf] %vm4787, %v4783
      %4917 = vst.msk [vmem:[%s143 + $0x204] sm:$0xf] %vm4787, %v4784
      %4918 = vst.msk [vmem:[%s143 + $0x208] sm:$0xf] %vm4787, %v4785
      %4919 = vst.msk [vmem:[%s143 + $0x20c] sm:$0xf] %vm4787, %v4786
      %p4920 = scmp.lt.s32.totalorder %s13, 1
      %s4921 = scalar_select %p4920, %s13, 1
      %s4922 = smul.addr %s4921, 132
      %s4923 = smul.addr %s4922, 4
      %s4924 = scalar_lea.vmem %s2, %s4923
      // Predicated region
      $region29: #{_forward_impl.8} parent=27 // pred_check
        %p4925 = pneg %p78
      $region30: #{_forward_impl.8} parent=27 // pred_check_branch
        %4927 = sbr.rel (%p4925) target = $region32
      $region31: #{_forward_impl.8} parent=27 // pred_region
        _
      $region32: #{_forward_impl.8} parent=27 // pred_fallthru
        _
    $region28: #{_forward_impl.8} parent=5 // pred_fallthru
      _
    %p4928 = scmp.le.s32.totalorder 2, %s8
    // Predicated region
    $region33: #{_forward_impl.8} parent=5 // pred_check
      %p4929 = pneg %p4928
    $region34: #{_forward_impl.8} parent=5 // pred_check_branch
      %4931 = sbr.rel (%p4929) target = $region36
    $region35: #{_forward_impl.8} parent=5 // pred_region
      %s4932 = ssub.s32 %s8, 2
      // Predicated region
      $region37: #{_forward_impl.8} parent=35 // pred_check
        %p4933 = pneg %p84
      $region38: #{_forward_impl.8} parent=35 // pred_check_branch
        %4935 = sbr.rel (%p4933) target = $region40
      $region39: #{_forward_impl.8} parent=35 // pred_region
        %p4936 = scmp.lt.s32.totalorder %s14, 1
        %s4937 = scalar_select %p4936, %s14, 1
        %s4938 = smul.addr %s4937, 132
        %s4939 = smul.addr %s4938, 4
        %s4940 = scalar_lea.vmem %s2, %s4939
      $region40: #{_forward_impl.8} parent=35 // pred_fallthru
        _
    $region36: #{_forward_impl.8} parent=5 // pred_fallthru
      _
  $region6: #{_forward_impl.8} parent=0 // loop_footer
    %s12 = sadd.s32 1, %s8
  $region7: #{_forward_impl.8} parent=0 // loop_footer_branch
    %7 = sbr.rel target = $region3
  $region8: #{_forward_impl.8} parent=0 // loop_exit
    _

// kernel: _forward_impl.10
$region0: #{_forward_impl.10}
  #allocation0 [shape = 'u32[]', space=smem, size = 0x4, offset = 0x4, fixed_abs, tag = 'smem constant byte address 0x4 - core index']
  #allocation1 [shape = 'u32[72,128]{1,0:T(1,128)}', space=vmem, size = 0x9000, scoped, tag = 'internal scratch']
  %s0 = inlined_call_operand.vmem [shape: f32[2,272,32], index: 0, kind: input, shape index: {}]
  %s1 = inlined_call_operand.vmem [shape: f32[1,32], index: 1, kind: input, shape index: {}]
  %s2 = inlined_call_operand.vmem [shape: f32[1,32], index: 2, kind: input, shape index: {}]
  %s3 = inlined_call_operand.vmem [shape: bf16[2,272,32], index: 3, kind: output, shape index: {}]
  %s4 = sld [smem:[#allocation0]]
  $region45: #{_forward_impl.10} parent=0
    _
  %s6 = ssub.s32 1, %s4
  %s7 = scalar_select 0, %s6, %s4
  loop: start=0, step=1, limit=4
  $region2: #{_forward_impl.10} parent=0 // loop_pre_header
    _
  $region3: #{_forward_impl.10} parent=0 // loop_header
    %s9 = sphi 0, %s13
    %p10 = scmp.ge.s32.totalorder %s9, 4
    %s19 = sphi 0, %s21
    %s22 = sphi 0, %s19
    %s23 = sphi 0, %s22
    %s39 = sphi 0, %s23
    %s43 = sphi 0, %s43
    %s45 = sphi 0, %s43
    %s46 = sphi 0, %s45
    %s60 = sphi 0, %s46
    %s64 = sphi 0, %s64
    %s66 = sphi 0, %s64
    %s67 = sphi 0, %s66
    %s81 = sphi 0, %s67
    %s87 = sphi 0, %s89
    %s90 = sphi 0, %s87
    %s91 = sphi 0, %s90
    %s107 = sphi 0, %s91
  $region4: #{_forward_impl.10} parent=0 // loop_header_branch
    %12 = sbr.rel (%p10) target = $region8
  $region5: #{_forward_impl.10} parent=0 // loop_body
    %s14 = ssub.s32 %s9, 1
    %s15 = ssub.s32 %s9, 2
    %s16 = sadd.s32 %s9, 1
    %s17 = ssub.s32 %s9, %s16
    %p18 = scmp.eq.s32.totalorder %s17, 0
    %s20 = sadd.s32 %s19, 1
    %s21 = scalar_select %p18, %s19, %s20
    %p24 = pneg %p18
    %p25 = scmp.eq.s32.totalorder %s9, 1
    %p26 = por %p24, %p25
    %p27 = scmp.ne.s32.totalorder %s19, %s22
    %p28 = scmp.eq.s32.totalorder %s9, 0
    %p29 = por %p27, %p28
    %p30 = scmp.ne.s32.totalorder %s19, %s22
    %p31 = scmp.eq.s32.totalorder %s14, 1
    %p32 = por %p30, %p31
    %p33 = scmp.ne.s32.totalorder %s22, %s23
    %p34 = scmp.eq.s32.totalorder %s14, 0
    %p35 = por %p33, %p34
    %p36 = scmp.ne.s32.totalorder %s22, %s23
    %p37 = scmp.eq.s32.totalorder %s15, 1
    %p38 = por %p36, %p37
    %p40 = scmp.ne.s32.totalorder %s23, %s39
    %p41 = scmp.eq.s32.totalorder %s15, 0
    %p42 = por %p40, %p41
    %s44 = sadd.s32 %s43, 1
    %p47 = scmp.eq.s32.totalorder %s9, 1
    %p48 = scmp.ne.s32.totalorder %s43, %s45
    %p49 = scmp.eq.s32.totalorder %s9, 0
    %p50 = por %p48, %p49
    %p51 = scmp.ne.s32.totalorder %s43, %s45
    %p52 = scmp.eq.s32.totalorder %s14, 1
    %p53 = por %p51, %p52
    %p54 = scmp.ne.s32.totalorder %s45, %s46
    %p55 = scmp.eq.s32.totalorder %s14, 0
    %p56 = por %p54, %p55
    %p57 = scmp.ne.s32.totalorder %s45, %s46
    %p58 = scmp.eq.s32.totalorder %s15, 1
    %p59 = por %p57, %p58
    %p61 = scmp.ne.s32.totalorder %s46, %s60
    %p62 = scmp.eq.s32.totalorder %s15, 0
    %p63 = por %p61, %p62
    %s65 = sadd.s32 %s64, 1
    %p68 = scmp.eq.s32.totalorder %s9, 1
    %p69 = scmp.ne.s32.totalorder %s64, %s66
    %p70 = scmp.eq.s32.totalorder %s9, 0
    %p71 = por %p69, %p70
    %p72 = scmp.ne.s32.totalorder %s64, %s66
    %p73 = scmp.eq.s32.totalorder %s14, 1
    %p74 = por %p72, %p73
    %p75 = scmp.ne.s32.totalorder %s66, %s67
    %p76 = scmp.eq.s32.totalorder %s14, 0
    %p77 = por %p75, %p76
    %p78 = scmp.ne.s32.totalorder %s66, %s67
    %p79 = scmp.eq.s32.totalorder %s15, 1
    %p80 = por %p78, %p79
    %p82 = scmp.ne.s32.totalorder %s67, %s81
    %p83 = scmp.eq.s32.totalorder %s15, 0
    %p84 = por %p82, %p83
    %s85 = ssub.s32 %s9, %s16
    %p86 = scmp.eq.s32.totalorder %s85, 0
    %s88 = sadd.s32 %s87, 1
    %s89 = scalar_select %p86, %s87, %s88
    %p92 = pneg %p86
    %p93 = scmp.eq.s32.totalorder %s9, 1
    %p94 = por %p92, %p93
    %p95 = scmp.ne.s32.totalorder %s87, %s90
    %p96 = scmp.eq.s32.totalorder %s9, 0
    %p97 = por %p95, %p96
    %p98 = scmp.ne.s32.totalorder %s87, %s90
    %p99 = scmp.eq.s32.totalorder %s14, 1
    %p100 = por %p98, %p99
    %p101 = scmp.ne.s32.totalorder %s90, %s91
    %p102 = scmp.eq.s32.totalorder %s14, 0
    %p103 = por %p101, %p102
    %p104 = scmp.ne.s32.totalorder %s90, %s91
    %p105 = scmp.eq.s32.totalorder %s15, 1
    %p106 = por %p104, %p105
    %p108 = scmp.ne.s32.totalorder %s91, %s107
    %p109 = scmp.eq.s32.totalorder %s15, 0
    %p110 = por %p108, %p109
    %p111 = scmp.le.s32.totalorder 1, %s9
    %p112 = scmp.lt.s32.totalorder %s9, 3
    %p113 = pnand %p111, %p112
    %p114 = pneg %p113
    // Predicated region
    $region9: #{_forward_impl.10} parent=5 // pred_check
      _
    $region10: #{_forward_impl.10} parent=5 // pred_check_branch
      %116 = sbr.rel (%p113) target = $region12
    $region11: #{_forward_impl.10} parent=5 // pred_region
      %s117 = ssub.s32 %s9, 1
      // Predicated region
      $region13: #{_forward_impl.10} parent=11 // pred_check
        %p118 = pneg %p56
      $region14: #{_forward_impl.10} parent=11 // pred_check_branch
        %120 = sbr.rel (%p118) target = $region16
      $region15: #{_forward_impl.10} parent=11 // pred_region
        _
      $region16: #{_forward_impl.10} parent=11 // pred_fallthru
        _
      // Predicated region
      $region17: #{_forward_impl.10} parent=11 // pred_check
        %p121 = pneg %p77
      $region18: #{_forward_impl.10} parent=11 // pred_check_branch
        %123 = sbr.rel (%p121) target = $region20
      $region19: #{_forward_impl.10} parent=11 // pred_region
        _
      $region20: #{_forward_impl.10} parent=11 // pred_fallthru
        _
    $region12: #{_forward_impl.10} parent=5 // pred_fallthru
      _
    %p124 = scmp.lt.s32.totalorder %s9, 2
    // Predicated region
    $region21: #{_forward_impl.10} parent=5 // pred_check
      %p125 = pneg %p124
    $region22: #{_forward_impl.10} parent=5 // pred_check_branch
      %127 = sbr.rel (%p125) target = $region24
    $region23: #{_forward_impl.10} parent=5 // pred_region
      // Predicated region
      $region25: #{_forward_impl.10} parent=23 // pred_check
        %p128 = pneg %p29
      $region26: #{_forward_impl.10} parent=23 // pred_check_branch
        %130 = sbr.rel (%p128) target = $region28
      $region27: #{_forward_impl.10} parent=23 // pred_region
        %p131 = scmp.lt.s32.totalorder %s9, 1
        %s132 = scalar_select %p131, %s9, 1
        %s133 = smul.addr %s132, 34
        %s134 = smul.addr %s133, 8
        %s135 = scalar_lea.vmem %s0, %s134
      $region28: #{_forward_impl.10} parent=23 // pred_fallthru
        _
    $region24: #{_forward_impl.10} parent=5 // pred_fallthru
      _
    %p136 = scmp.le.s32.totalorder 1, %s9
    %p137 = scmp.lt.s32.totalorder %s9, 3
    %p138 = pnand %p136, %p137
    %p139 = pneg %p138
    // Predicated region
    $region29: #{_forward_impl.10} parent=5 // pred_check
      _
    $region30: #{_forward_impl.10} parent=5 // pred_check_branch
      %141 = sbr.rel (%p138) target = $region32
    $region31: #{_forward_impl.10} parent=5 // pred_region
      %s142 = ssub.s32 %s9, 1
      %p143 = scmp.lt.s32.totalorder %s14, 1
      %s144 = scalar_select %p143, %s14, 1
      %s145 = smul.addr %s144, 34
      %s146 = smul.addr %s145, 8
      %s147 = scalar_lea.vmem %s0, %s146
      %p148 = pneg %p35
      %p149 = pneg %p32
      %p150 = pneg %p56
      %p151 = pneg %p53
      %p152 = pneg %p77
      %p153 = pneg %p74
      %p154 = pneg %p103
      %p155 = pneg %p100
      %p156 = scmp.lt.s32.totalorder %s14, 1
      %s157 = scalar_select %p156, %s14, 1
      %s158 = smul.addr %s157, 34
      %s159 = smul.addr %s158, 4
      %s160 = scalar_lea.vmem %s3, %s159
      %p161 = scmp.lt.s32.totalorder %s14, 1
      %s162 = scalar_select %p161, %s14, 1
      %s163 = smul.addr %s162, 34
      %s164 = smul.addr %s163, 8
      %s165 = scalar_lea.vmem %s0, %s164
      %p166 = scmp.lt.s32.totalorder %s14, 1
      %s167 = scalar_select %p166, %s14, 1
      %s168 = smul.addr %s167, 34
      %s169 = smul.addr %s168, 4
      %s170 = scalar_lea.vmem %s3, %s169
      %v171 = vld [vmem:[%s165] sm:$0xff]
      %v172 = vld [vmem:[%s165 + $0x8] sm:$0xff]
      %v173 = vld [vmem:[%s165 + $0x10] sm:$0xff]
      %v174 = vld [vmem:[%s165 + $0x18] sm:$0xff]
      %v175 = vld [vmem:[%s165 + $0x20] sm:$0xff]
      %v176 = vld [vmem:[%s165 + $0x28] sm:$0xff]
      %v177 = vld [vmem:[%s165 + $0x30] sm:$0xff]
      %v178 = vld [vmem:[%s165 + $0x38] sm:$0xff]
      %v179 = vld [vmem:[%s165 + $0x40] sm:$0xff]
      %v180 = vld [vmem:[%s165 + $0x48] sm:$0xff]
      %v181 = vld [vmem:[%s165 + $0x50] sm:$0xff]
      %v182 = vld [vmem:[%s165 + $0x58] sm:$0xff]
      %v183 = vld [vmem:[%s165 + $0x60] sm:$0xff]
      %v184 = vld [vmem:[%s165 + $0x68] sm:$0xff]
      %v185 = vld [vmem:[%s165 + $0x70] sm:$0xff]
      %v186 = vld [vmem:[%s165 + $0x78] sm:$0xff]
      %v187 = vld [vmem:[%s165 + $0x80] sm:$0xff]
      %v188 = vld [vmem:[%s165 + $0x88] sm:$0xff]
      %v189 = vld [vmem:[%s165 + $0x90] sm:$0xff]
      %v190 = vld [vmem:[%s165 + $0x98] sm:$0xff]
      %v191 = vld [vmem:[%s165 + $0xa0] sm:$0xff]
      %v192 = vld [vmem:[%s165 + $0xa8] sm:$0xff]
      %v193 = vld [vmem:[%s165 + $0xb0] sm:$0xff]
      %v194 = vld [vmem:[%s165 + $0xb8] sm:$0xff]
      %v195 = vld [vmem:[%s165 + $0xc0] sm:$0xff]
      %v196 = vld [vmem:[%s165 + $0xc8] sm:$0xff]
      %v197 = vld [vmem:[%s165 + $0xd0] sm:$0xff]
      %v198 = vld [vmem:[%s165 + $0xd8] sm:$0xff]
      %v199 = vld [vmem:[%s165 + $0xe0] sm:$0xff]
      %v200 = vld [vmem:[%s165 + $0xe8] sm:$0xff]
      %v201 = vld [vmem:[%s165 + $0xf0] sm:$0xff]
      %v202 = vld [vmem:[%s165 + $0xf8] sm:$0xff]
      %v203 = vld [vmem:[%s165 + $0x100] sm:$0xff]
      %v204 = vld [vmem:[%s165 + $0x108] sm:$0xff]
      %v205 = vld [vmem:[%s1] sm:$0x1]
      %v207 = vperm.slane %v205, 0
      %v209 = vmul.f32 %v171, %v207
      %v210 = vmul.f32 %v172, %v207
      %v211 = vmul.f32 %v173, %v207
      %v212 = vmul.f32 %v174, %v207
      %v213 = vmul.f32 %v175, %v207
      %v214 = vmul.f32 %v176, %v207
      %v215 = vmul.f32 %v177, %v207
      %v216 = vmul.f32 %v178, %v207
      %v217 = vmul.f32 %v179, %v207
      %v218 = vmul.f32 %v180, %v207
      %v219 = vmul.f32 %v181, %v207
      %v220 = vmul.f32 %v182, %v207
      %v221 = vmul.f32 %v183, %v207
      %v222 = vmul.f32 %v184, %v207
      %v223 = vmul.f32 %v185, %v207
      %v224 = vmul.f32 %v186, %v207
      %v225 = vmul.f32 %v187, %v207
      %v226 = vmul.f32 %v188, %v207
      %v227 = vmul.f32 %v189, %v207
      %v228 = vmul.f32 %v190, %v207
      %v229 = vmul.f32 %v191, %v207
      %v230 = vmul.f32 %v192, %v207
      %v231 = vmul.f32 %v193, %v207
      %v232 = vmul.f32 %v194, %v207
      %v233 = vmul.f32 %v195, %v207
      %v234 = vmul.f32 %v196, %v207
      %v235 = vmul.f32 %v197, %v207
      %v236 = vmul.f32 %v198, %v207
      %v237 = vmul.f32 %v199, %v207
      %v238 = vmul.f32 %v200, %v207
      %v239 = vmul.f32 %v201, %v207
      %v240 = vmul.f32 %v202, %v207
      %v241 = vmul.f32 %v203, %v207
      %v242 = vmul.f32 %v204, %v207
      %v243 = vld [vmem:[%s2] sm:$0x1]
      %v245 = vperm.slane %v243, 0
      %v247 = vadd.f32 %v209, %v245
      %v248 = vadd.f32 %v210, %v245
      %v249 = vadd.f32 %v211, %v245
      %v250 = vadd.f32 %v212, %v245
      %v251 = vadd.f32 %v213, %v245
      %v252 = vadd.f32 %v214, %v245
      %v253 = vadd.f32 %v215, %v245
      %v254 = vadd.f32 %v216, %v245
      %v255 = vadd.f32 %v217, %v245
      %v256 = vadd.f32 %v218, %v245
      %v257 = vadd.f32 %v219, %v245
      %v258 = vadd.f32 %v220, %v245
      %v259 = vadd.f32 %v221, %v245
      %v260 = vadd.f32 %v222, %v245
      %v261 = vadd.f32 %v223, %v245
      %v262 = vadd.f32 %v224, %v245
      %v263 = vadd.f32 %v225, %v245
      %v264 = vadd.f32 %v226, %v245
      %v265 = vadd.f32 %v227, %v245
      %v266 = vadd.f32 %v228, %v245
      %v267 = vadd.f32 %v229, %v245
      %v268 = vadd.f32 %v230, %v245
      %v269 = vadd.f32 %v231, %v245
      %v270 = vadd.f32 %v232, %v245
      %v271 = vadd.f32 %v233, %v245
      %v272 = vadd.f32 %v234, %v245
      %v273 = vadd.f32 %v235, %v245
      %v274 = vadd.f32 %v236, %v245
      %v275 = vadd.f32 %v237, %v245
      %v276 = vadd.f32 %v238, %v245
      %v277 = vadd.f32 %v239, %v245
      %v278 = vadd.f32 %v240, %v245
      %v279 = vadd.f32 %v241, %v245
      %v280 = vadd.f32 %v242, %v245
      %vm281 = vcmp.ge.f32.partialorder %v247, 0.0
      %vm282 = vcmp.ge.f32.partialorder %v248, 0.0
      %vm283 = vcmp.ge.f32.partialorder %v249, 0.0
      %vm284 = vcmp.ge.f32.partialorder %v250, 0.0
      %vm285 = vcmp.ge.f32.partialorder %v251, 0.0
      %vm286 = vcmp.ge.f32.partialorder %v252, 0.0
      %vm287 = vcmp.ge.f32.partialorder %v253, 0.0
      %vm288 = vcmp.ge.f32.partialorder %v254, 0.0
      %vm289 = vcmp.ge.f32.partialorder %v255, 0.0
      %vm290 = vcmp.ge.f32.partialorder %v256, 0.0
      %vm291 = vcmp.ge.f32.partialorder %v257, 0.0
      %vm292 = vcmp.ge.f32.partialorder %v258, 0.0
      %vm293 = vcmp.ge.f32.partialorder %v259, 0.0
      %vm294 = vcmp.ge.f32.partialorder %v260, 0.0
      %vm295 = vcmp.ge.f32.partialorder %v261, 0.0
      %vm296 = vcmp.ge.f32.partialorder %v262, 0.0
      %vm297 = vcmp.ge.f32.partialorder %v263, 0.0
      %vm298 = vcmp.ge.f32.partialorder %v264, 0.0
      %vm299 = vcmp.ge.f32.partialorder %v265, 0.0
      %vm300 = vcmp.ge.f32.partialorder %v266, 0.0
      %vm301 = vcmp.ge.f32.partialorder %v267, 0.0
      %vm302 = vcmp.ge.f32.partialorder %v268, 0.0
      %vm303 = vcmp.ge.f32.partialorder %v269, 0.0
      %vm304 = vcmp.ge.f32.partialorder %v270, 0.0
      %vm305 = vcmp.ge.f32.partialorder %v271, 0.0
      %vm306 = vcmp.ge.f32.partialorder %v272, 0.0
      %vm307 = vcmp.ge.f32.partialorder %v273, 0.0
      %vm308 = vcmp.ge.f32.partialorder %v274, 0.0
      %vm309 = vcmp.ge.f32.partialorder %v275, 0.0
      %vm310 = vcmp.ge.f32.partialorder %v276, 0.0
      %vm311 = vcmp.ge.f32.partialorder %v277, 0.0
      %vm312 = vcmp.ge.f32.partialorder %v278, 0.0
      %vm313 = vcmp.ge.f32.partialorder %v279, 0.0
      %vm314 = vcmp.ge.f32.partialorder %v280, 0.0
      %v315 = vmul.f32 %v247, 0.2
      %v316 = vmul.f32 %v248, 0.2
      %v317 = vmul.f32 %v249, 0.2
      %v318 = vmul.f32 %v250, 0.2
      %v319 = vmul.f32 %v251, 0.2
      %v320 = vmul.f32 %v252, 0.2
      %v321 = vmul.f32 %v253, 0.2
      %v322 = vmul.f32 %v254, 0.2
      %v323 = vmul.f32 %v255, 0.2
      %v324 = vmul.f32 %v256, 0.2
      %v325 = vmul.f32 %v257, 0.2
      %v326 = vmul.f32 %v258, 0.2
      %v327 = vmul.f32 %v259, 0.2
      %v328 = vmul.f32 %v260, 0.2
      %v329 = vmul.f32 %v261, 0.2
      %v330 = vmul.f32 %v262, 0.2
      %v331 = vmul.f32 %v263, 0.2
      %v332 = vmul.f32 %v264, 0.2
      %v333 = vmul.f32 %v265, 0.2
      %v334 = vmul.f32 %v266, 0.2
      %v335 = vmul.f32 %v267, 0.2
      %v336 = vmul.f32 %v268, 0.2
      %v337 = vmul.f32 %v269, 0.2
      %v338 = vmul.f32 %v270, 0.2
      %v339 = vmul.f32 %v271, 0.2
      %v340 = vmul.f32 %v272, 0.2
      %v341 = vmul.f32 %v273, 0.2
      %v342 = vmul.f32 %v274, 0.2
      %v343 = vmul.f32 %v275, 0.2
      %v344 = vmul.f32 %v276, 0.2
      %v345 = vmul.f32 %v277, 0.2
      %v346 = vmul.f32 %v278, 0.2
      %v347 = vmul.f32 %v279, 0.2
      %v348 = vmul.f32 %v280, 0.2
      %v349 = vsel %vm281, %v247, %v315
      %v350 = vsel %vm282, %v248, %v316
      %v351 = vsel %vm283, %v249, %v317
      %v352 = vsel %vm284, %v250, %v318
      %v353 = vsel %vm285, %v251, %v319
      %v354 = vsel %vm286, %v252, %v320
      %v355 = vsel %vm287, %v253, %v321
      %v356 = vsel %vm288, %v254, %v322
      %v357 = vsel %vm289, %v255, %v323
      %v358 = vsel %vm290, %v256, %v324
      %v359 = vsel %vm291, %v257, %v325
      %v360 = vsel %vm292, %v258, %v326
      %v361 = vsel %vm293, %v259, %v327
      %v362 = vsel %vm294, %v260, %v328
      %v363 = vsel %vm295, %v261, %v329
      %v364 = vsel %vm296, %v262, %v330
      %v365 = vsel %vm297, %v263, %v331
      %v366 = vsel %vm298, %v264, %v332
      %v367 = vsel %vm299, %v265, %v333
      %v368 = vsel %vm300, %v266, %v334
      %v369 = vsel %vm301, %v267, %v335
      %v370 = vsel %vm302, %v268, %v336
      %v371 = vsel %vm303, %v269, %v337
      %v372 = vsel %vm304, %v270, %v338
      %v373 = vsel %vm305, %v271, %v339
      %v374 = vsel %vm306, %v272, %v340
      %v375 = vsel %vm307, %v273, %v341
      %v376 = vsel %vm308, %v274, %v342
      %v377 = vsel %vm309, %v275, %v343
      %v378 = vsel %vm310, %v276, %v344
      %v379 = vsel %vm311, %v277, %v345
      %v380 = vsel %vm312, %v278, %v346
      %v381 = vsel %vm313, %v279, %v347
      %v382 = vsel %vm314, %v280, %v348
      %v383 = vpack.c.bf16 %v349, %v349
      %v384 = vpack.c.bf16 %v350, %v350
      %v385 = vpack.c.bf16 %v351, %v351
      %v386 = vpack.c.bf16 %v352, %v352
      %v387 = vpack.c.bf16 %v353, %v353
      %v388 = vpack.c.bf16 %v354, %v354
      %v389 = vpack.c.bf16 %v355, %v355
      %v390 = vpack.c.bf16 %v356, %v356
      %v391 = vpack.c.bf16 %v357, %v357
      %v392 = vpack.c.bf16 %v358, %v358
      %v393 = vpack.c.bf16 %v359, %v359
      %v394 = vpack.c.bf16 %v360, %v360
      %v395 = vpack.c.bf16 %v361, %v361
      %v396 = vpack.c.bf16 %v362, %v362
      %v397 = vpack.c.bf16 %v363, %v363
      %v398 = vpack.c.bf16 %v364, %v364
      %v399 = vpack.c.bf16 %v365, %v365
      %v400 = vpack.c.bf16 %v366, %v366
      %v401 = vpack.c.bf16 %v367, %v367
      %v402 = vpack.c.bf16 %v368, %v368
      %v403 = vpack.c.bf16 %v369, %v369
      %v404 = vpack.c.bf16 %v370, %v370
      %v405 = vpack.c.bf16 %v371, %v371
      %v406 = vpack.c.bf16 %v372, %v372
      %v407 = vpack.c.bf16 %v373, %v373
      %v408 = vpack.c.bf16 %v374, %v374
      %v409 = vpack.c.bf16 %v375, %v375
      %v410 = vpack.c.bf16 %v376, %v376
      %v411 = vpack.c.bf16 %v377, %v377
      %v412 = vpack.c.bf16 %v378, %v378
      %v413 = vpack.c.bf16 %v379, %v379
      %v414 = vpack.c.bf16 %v380, %v380
      %v415 = vpack.c.bf16 %v381, %v381
      %v416 = vpack.c.bf16 %v382, %v382
      %vm417 = vcmask 257024
      %418 = vst.msk [vmem:[%s170] sm:$0xf] %vm417, %v383
      %419 = vst.msk [vmem:[%s170 + $0x4] sm:$0xf] %vm417, %v384
      %420 = vst.msk [vmem:[%s170 + $0x8] sm:$0xf] %vm417, %v385
      %421 = vst.msk [vmem:[%s170 + $0xc] sm:$0xf] %vm417, %v386
      %422 = vst.msk [vmem:[%s170 + $0x10] sm:$0xf] %vm417, %v387
      %423 = vst.msk [vmem:[%s170 + $0x14] sm:$0xf] %vm417, %v388
      %424 = vst.msk [vmem:[%s170 + $0x18] sm:$0xf] %vm417, %v389
      %425 = vst.msk [vmem:[%s170 + $0x1c] sm:$0xf] %vm417, %v390
      %426 = vst.msk [vmem:[%s170 + $0x20] sm:$0xf] %vm417, %v391
      %427 = vst.msk [vmem:[%s170 + $0x24] sm:$0xf] %vm417, %v392
      %428 = vst.msk [vmem:[%s170 + $0x28] sm:$0xf] %vm417, %v393
      %429 = vst.msk [vmem:[%s170 + $0x2c] sm:$0xf] %vm417, %v394
      %430 = vst.msk [vmem:[%s170 + $0x30] sm:$0xf] %vm417, %v395
      %431 = vst.msk [vmem:[%s170 + $0x34] sm:$0xf] %vm417, %v396
      %432 = vst.msk [vmem:[%s170 + $0x38] sm:$0xf] %vm417, %v397
      %433 = vst.msk [vmem:[%s170 + $0x3c] sm:$0xf] %vm417, %v398
      %434 = vst.msk [vmem:[%s170 + $0x40] sm:$0xf] %vm417, %v399
      %435 = vst.msk [vmem:[%s170 + $0x44] sm:$0xf] %vm417, %v400
      %436 = vst.msk [vmem:[%s170 + $0x48] sm:$0xf] %vm417, %v401
      %437 = vst.msk [vmem:[%s170 + $0x4c] sm:$0xf] %vm417, %v402
      %438 = vst.msk [vmem:[%s170 + $0x50] sm:$0xf] %vm417, %v403
      %439 = vst.msk [vmem:[%s170 + $0x54] sm:$0xf] %vm417, %v404
      %440 = vst.msk [vmem:[%s170 + $0x58] sm:$0xf] %vm417, %v405
      %441 = vst.msk [vmem:[%s170 + $0x5c] sm:$0xf] %vm417, %v406
      %442 = vst.msk [vmem:[%s170 + $0x60] sm:$0xf] %vm417, %v407
      %443 = vst.msk [vmem:[%s170 + $0x64] sm:$0xf] %vm417, %v408
      %444 = vst.msk [vmem:[%s170 + $0x68] sm:$0xf] %vm417, %v409
      %445 = vst.msk [vmem:[%s170 + $0x6c] sm:$0xf] %vm417, %v410
      %446 = vst.msk [vmem:[%s170 + $0x70] sm:$0xf] %vm417, %v411
      %447 = vst.msk [vmem:[%s170 + $0x74] sm:$0xf] %vm417, %v412
      %448 = vst.msk [vmem:[%s170 + $0x78] sm:$0xf] %vm417, %v413
      %449 = vst.msk [vmem:[%s170 + $0x7c] sm:$0xf] %vm417, %v414
      %450 = vst.msk [vmem:[%s170 + $0x80] sm:$0xf] %vm417, %v415
      %451 = vst.msk [vmem:[%s170 + $0x84] sm:$0xf] %vm417, %v416
      %p452 = scmp.lt.s32.totalorder %s14, 1
      %s453 = scalar_select %p452, %s14, 1
      %s454 = smul.addr %s453, 34
      %s455 = smul.addr %s454, 4
      %s456 = scalar_lea.vmem %s3, %s455
      // Predicated region
      $region33: #{_forward_impl.10} parent=31 // pred_check
        %p457 = pneg %p100
      $region34: #{_forward_impl.10} parent=31 // pred_check_branch
        %459 = sbr.rel (%p457) target = $region36
      $region35: #{_forward_impl.10} parent=31 // pred_region
        _
      $region36: #{_forward_impl.10} parent=31 // pred_fallthru
        _
    $region32: #{_forward_impl.10} parent=5 // pred_fallthru
      _
    %p460 = scmp.le.s32.totalorder 2, %s9
    // Predicated region
    $region37: #{_forward_impl.10} parent=5 // pred_check
      %p461 = pneg %p460
    $region38: #{_forward_impl.10} parent=5 // pred_check_branch
      %463 = sbr.rel (%p461) target = $region40
    $region39: #{_forward_impl.10} parent=5 // pred_region
      %s464 = ssub.s32 %s9, 2
      // Predicated region
      $region41: #{_forward_impl.10} parent=39 // pred_check
        %p465 = pneg %p106
      $region42: #{_forward_impl.10} parent=39 // pred_check_branch
        %467 = sbr.rel (%p465) target = $region44
      $region43: #{_forward_impl.10} parent=39 // pred_region
        %p468 = scmp.lt.s32.totalorder %s15, 1
        %s469 = scalar_select %p468, %s15, 1
        %s470 = smul.addr %s469, 34
        %s471 = smul.addr %s470, 4
        %s472 = scalar_lea.vmem %s3, %s471
      $region44: #{_forward_impl.10} parent=39 // pred_fallthru
        _
    $region40: #{_forward_impl.10} parent=5 // pred_fallthru
      _
  $region6: #{_forward_impl.10} parent=0 // loop_footer
    %s13 = sadd.s32 1, %s9
  $region7: #{_forward_impl.10} parent=0 // loop_footer_branch
    %8 = sbr.rel target = $region3
  $region8: #{_forward_impl.10} parent=0 // loop_exit
    _

// kernel: _forward_impl.9
$region0: #{_forward_impl.9}
  #allocation0 [shape = 'u32[]', space=smem, size = 0x4, offset = 0x4, fixed_abs, tag = 'smem constant byte address 0x4 - core index']
  #allocation1 [shape = 'u32[72,128]{1,0:T(1,128)}', space=vmem, size = 0x9000, scoped, tag = 'internal scratch']
  %s0 = inlined_call_operand.vmem [shape: bf16[2,296,64], index: 0, kind: input, shape index: {}]
  %s1 = inlined_call_operand.vmem [shape: bf16[4,64,32], index: 1, kind: input, shape index: {}]
  %s2 = inlined_call_operand.vmem [shape: f32[272,1], index: 2, kind: input, shape index: {}]
  %s3 = inlined_call_operand.vmem [shape: f32[2,272,32], index: 3, kind: output, shape index: {0}]
  %s4 = inlined_call_operand.vmem [shape: f32[2,1,32], index: 4, kind: output, shape index: {1}]
  %s5 = inlined_call_operand.vmem [shape: f32[2,1,32], index: 5, kind: output, shape index: {2}]
  %6 = xla_tuple %s3, %s4, %s5
  %s7 = sld [smem:[#allocation0]]
  $region61: #{_forward_impl.9} parent=0
    _
  %s9 = ssub.s32 1, %s7
  %s10 = scalar_select 0, %s9, %s7
  loop: start=0, step=1, limit=4
  $region2: #{_forward_impl.9} parent=0 // loop_pre_header
    _
  $region3: #{_forward_impl.9} parent=0 // loop_header
    %s12 = sphi 0, %s16
    %p13 = scmp.ge.s32.totalorder %s12, 4
    %s22 = sphi 0, %s24
    %s25 = sphi 0, %s22
    %s26 = sphi 0, %s25
    %s42 = sphi 0, %s26
    %s46 = sphi 0, %s46
    %s48 = sphi 0, %s46
    %s49 = sphi 0, %s48
    %s63 = sphi 0, %s49
    %s67 = sphi 0, %s67
    %s69 = sphi 0, %s67
    %s70 = sphi 0, %s69
    %s84 = sphi 0, %s70
    %s90 = sphi 0, %s92
    %s93 = sphi 0, %s90
    %s94 = sphi 0, %s93
    %s110 = sphi 0, %s94
    %s116 = sphi 0, %s118
    %s119 = sphi 0, %s116
    %s120 = sphi 0, %s119
    %s136 = sphi 0, %s120
    %s142 = sphi 0, %s144
    %s145 = sphi 0, %s142
    %s146 = sphi 0, %s145
    %s162 = sphi 0, %s146
  $region4: #{_forward_impl.9} parent=0 // loop_header_branch
    %15 = sbr.rel (%p13) target = $region8
  $region5: #{_forward_impl.9} parent=0 // loop_body
    %s17 = ssub.s32 %s12, 1
    %s18 = ssub.s32 %s12, 2
    %s19 = sadd.s32 %s12, 1
    %s20 = ssub.s32 %s12, %s19
    %p21 = scmp.eq.s32.totalorder %s20, 0
    %s23 = sadd.s32 %s22, 1
    %s24 = scalar_select %p21, %s22, %s23
    %p27 = pneg %p21
    %p28 = scmp.eq.s32.totalorder %s12, 1
    %p29 = por %p27, %p28
    %p30 = scmp.ne.s32.totalorder %s22, %s25
    %p31 = scmp.eq.s32.totalorder %s12, 0
    %p32 = por %p30, %p31
    %p33 = scmp.ne.s32.totalorder %s22, %s25
    %p34 = scmp.eq.s32.totalorder %s17, 1
    %p35 = por %p33, %p34
    %p36 = scmp.ne.s32.totalorder %s25, %s26
    %p37 = scmp.eq.s32.totalorder %s17, 0
    %p38 = por %p36, %p37
    %p39 = scmp.ne.s32.totalorder %s25, %s26
    %p40 = scmp.eq.s32.totalorder %s18, 1
    %p41 = por %p39, %p40
    %p43 = scmp.ne.s32.totalorder %s26, %s42
    %p44 = scmp.eq.s32.totalorder %s18, 0
    %p45 = por %p43, %p44
    %s47 = sadd.s32 %s46, 1
    %p50 = scmp.eq.s32.totalorder %s12, 1
    %p51 = scmp.ne.s32.totalorder %s46, %s48
    %p52 = scmp.eq.s32.totalorder %s12, 0
    %p53 = por %p51, %p52
    %p54 = scmp.ne.s32.totalorder %s46, %s48
    %p55 = scmp.eq.s32.totalorder %s17, 1
    %p56 = por %p54, %p55
    %p57 = scmp.ne.s32.totalorder %s48, %s49
    %p58 = scmp.eq.s32.totalorder %s17, 0
    %p59 = por %p57, %p58
    %p60 = scmp.ne.s32.totalorder %s48, %s49
    %p61 = scmp.eq.s32.totalorder %s18, 1
    %p62 = por %p60, %p61
    %p64 = scmp.ne.s32.totalorder %s49, %s63
    %p65 = scmp.eq.s32.totalorder %s18, 0
    %p66 = por %p64, %p65
    %s68 = sadd.s32 %s67, 1
    %p71 = scmp.eq.s32.totalorder %s12, 1
    %p72 = scmp.ne.s32.totalorder %s67, %s69
    %p73 = scmp.eq.s32.totalorder %s12, 0
    %p74 = por %p72, %p73
    %p75 = scmp.ne.s32.totalorder %s67, %s69
    %p76 = scmp.eq.s32.totalorder %s17, 1
    %p77 = por %p75, %p76
    %p78 = scmp.ne.s32.totalorder %s69, %s70
    %p79 = scmp.eq.s32.totalorder %s17, 0
    %p80 = por %p78, %p79
    %p81 = scmp.ne.s32.totalorder %s69, %s70
    %p82 = scmp.eq.s32.totalorder %s18, 1
    %p83 = por %p81, %p82
    %p85 = scmp.ne.s32.totalorder %s70, %s84
    %p86 = scmp.eq.s32.totalorder %s18, 0
    %p87 = por %p85, %p86
    %s88 = ssub.s32 %s12, %s19
    %p89 = scmp.eq.s32.totalorder %s88, 0
    %s91 = sadd.s32 %s90, 1
    %s92 = scalar_select %p89, %s90, %s91
    %p95 = pneg %p89
    %p96 = scmp.eq.s32.totalorder %s12, 1
    %p97 = por %p95, %p96
    %p98 = scmp.ne.s32.totalorder %s90, %s93
    %p99 = scmp.eq.s32.totalorder %s12, 0
    %p100 = por %p98, %p99
    %p101 = scmp.ne.s32.totalorder %s90, %s93
    %p102 = scmp.eq.s32.totalorder %s17, 1
    %p103 = por %p101, %p102
    %p104 = scmp.ne.s32.totalorder %s93, %s94
    %p105 = scmp.eq.s32.totalorder %s17, 0
    %p106 = por %p104, %p105
    %p107 = scmp.ne.s32.totalorder %s93, %s94
    %p108 = scmp.eq.s32.totalorder %s18, 1
    %p109 = por %p107, %p108
    %p111 = scmp.ne.s32.totalorder %s94, %s110
    %p112 = scmp.eq.s32.totalorder %s18, 0
    %p113 = por %p111, %p112
    %s114 = ssub.s32 %s12, %s19
    %p115 = scmp.eq.s32.totalorder %s114, 0
    %s117 = sadd.s32 %s116, 1
    %s118 = scalar_select %p115, %s116, %s117
    %p121 = pneg %p115
    %p122 = scmp.eq.s32.totalorder %s12, 1
    %p123 = por %p121, %p122
    %p124 = scmp.ne.s32.totalorder %s116, %s119
    %p125 = scmp.eq.s32.totalorder %s12, 0
    %p126 = por %p124, %p125
    %p127 = scmp.ne.s32.totalorder %s116, %s119
    %p128 = scmp.eq.s32.totalorder %s17, 1
    %p129 = por %p127, %p128
    %p130 = scmp.ne.s32.totalorder %s119, %s120
    %p131 = scmp.eq.s32.totalorder %s17, 0
    %p132 = por %p130, %p131
    %p133 = scmp.ne.s32.totalorder %s119, %s120
    %p134 = scmp.eq.s32.totalorder %s18, 1
    %p135 = por %p133, %p134
    %p137 = scmp.ne.s32.totalorder %s120, %s136
    %p138 = scmp.eq.s32.totalorder %s18, 0
    %p139 = por %p137, %p138
    %s140 = ssub.s32 %s12, %s19
    %p141 = scmp.eq.s32.totalorder %s140, 0
    %s143 = sadd.s32 %s142, 1
    %s144 = scalar_select %p141, %s142, %s143
    %p147 = pneg %p141
    %p148 = scmp.eq.s32.totalorder %s12, 1
    %p149 = por %p147, %p148
    %p150 = scmp.ne.s32.totalorder %s142, %s145
    %p151 = scmp.eq.s32.totalorder %s12, 0
    %p152 = por %p150, %p151
    %p153 = scmp.ne.s32.totalorder %s142, %s145
    %p154 = scmp.eq.s32.totalorder %s17, 1
    %p155 = por %p153, %p154
    %p156 = scmp.ne.s32.totalorder %s145, %s146
    %p157 = scmp.eq.s32.totalorder %s17, 0
    %p158 = por %p156, %p157
    %p159 = scmp.ne.s32.totalorder %s145, %s146
    %p160 = scmp.eq.s32.totalorder %s18, 1
    %p161 = por %p159, %p160
    %p163 = scmp.ne.s32.totalorder %s146, %s162
    %p164 = scmp.eq.s32.totalorder %s18, 0
    %p165 = por %p163, %p164
    %p166 = scmp.le.s32.totalorder 1, %s12
    %p167 = scmp.lt.s32.totalorder %s12, 3
    %p168 = pnand %p166, %p167
    %p169 = pneg %p168
    // Predicated region
    $region9: #{_forward_impl.9} parent=5 // pred_check
      _
    $region10: #{_forward_impl.9} parent=5 // pred_check_branch
      %171 = sbr.rel (%p168) target = $region12
    $region11: #{_forward_impl.9} parent=5 // pred_region
      %s172 = ssub.s32 %s12, 1
      // Predicated region
      $region13: #{_forward_impl.9} parent=11 // pred_check
        %p173 = pneg %p59
      $region14: #{_forward_impl.9} parent=11 // pred_check_branch
        %175 = sbr.rel (%p173) target = $region16
      $region15: #{_forward_impl.9} parent=11 // pred_region
        _
      $region16: #{_forward_impl.9} parent=11 // pred_fallthru
        _
      // Predicated region
      $region17: #{_forward_impl.9} parent=11 // pred_check
        %p176 = pneg %p80
      $region18: #{_forward_impl.9} parent=11 // pred_check_branch
        %178 = sbr.rel (%p176) target = $region20
      $region19: #{_forward_impl.9} parent=11 // pred_region
        _
      $region20: #{_forward_impl.9} parent=11 // pred_fallthru
        _
    $region12: #{_forward_impl.9} parent=5 // pred_fallthru
      _
    %p179 = scmp.lt.s32.totalorder %s12, 2
    // Predicated region
    $region21: #{_forward_impl.9} parent=5 // pred_check
      %p180 = pneg %p179
    $region22: #{_forward_impl.9} parent=5 // pred_check_branch
      %182 = sbr.rel (%p180) target = $region24
    $region23: #{_forward_impl.9} parent=5 // pred_region
      // Predicated region
      $region25: #{_forward_impl.9} parent=23 // pred_check
        %p183 = pneg %p32
      $region26: #{_forward_impl.9} parent=23 // pred_check_branch
        %185 = sbr.rel (%p183) target = $region28
      $region27: #{_forward_impl.9} parent=23 // pred_region
        %p186 = scmp.lt.s32.totalorder %s12, 1
        %s187 = scalar_select %p186, %s12, 1
        %s188 = smul.addr %s187, 37
        %s189 = smul.addr %s188, 4
        %s190 = scalar_lea.vmem %s0, %s189
      $region28: #{_forward_impl.9} parent=23 // pred_fallthru
        _
    $region24: #{_forward_impl.9} parent=5 // pred_fallthru
      _
    %p191 = scmp.le.s32.totalorder 1, %s12
    %p192 = scmp.lt.s32.totalorder %s12, 3
    %p193 = pnand %p191, %p192
    %p194 = pneg %p193
    // Predicated region
    $region29: #{_forward_impl.9} parent=5 // pred_check
      _
    $region30: #{_forward_impl.9} parent=5 // pred_check_branch
      %196 = sbr.rel (%p193) target = $region32
    $region31: #{_forward_impl.9} parent=5 // pred_region
      %s197 = ssub.s32 %s12, 1
      %p198 = scmp.lt.s32.totalorder %s17, 1
      %s199 = scalar_select %p198, %s17, 1
      %s200 = smul.addr %s199, 37
      %s201 = smul.addr %s200, 4
      %s202 = scalar_lea.vmem %s0, %s201
      %p203 = pneg %p38
      %p204 = pneg %p35
      %p205 = pneg %p59
      %p206 = pneg %p56
      %p207 = pneg %p80
      %p208 = pneg %p77
      %p209 = pneg %p106
      %p210 = pneg %p103
      %p211 = scmp.lt.s32.totalorder %s17, 1
      %s212 = scalar_select %p211, %s17, 1
      %s213 = smul.addr %s212, 34
      %s214 = smul.addr %s213, 8
      %s215 = scalar_lea.vmem %s3, %s214
      %p216 = pneg %p132
      %p217 = pneg %p129
      %p218 = scmp.lt.s32.totalorder %s17, 1
      %s219 = scalar_select %p218, %s17, 1
      %s220 = scalar_lea.vmem %s4, %s219
      %p221 = pneg %p158
      %p222 = pneg %p155
      %p223 = scmp.lt.s32.totalorder %s17, 1
      %s224 = scalar_select %p223, %s17, 1
      %s225 = scalar_lea.vmem %s5, %s224
      %p226 = scmp.lt.s32.totalorder %s17, 1
      %s227 = scalar_select %p226, %s17, 1
      %s228 = smul.addr %s227, 37
      %s229 = smul.addr %s228, 4
      %s230 = scalar_lea.vmem %s0, %s229
      %p231 = scmp.lt.s32.totalorder %s17, 1
      %s232 = scalar_select %p231, %s17, 1
      %s233 = smul.addr %s232, 34
      %s234 = smul.addr %s233, 8
      %s235 = scalar_lea.vmem %s3, %s234
      %p236 = scmp.lt.s32.totalorder %s17, 1
      %s237 = scalar_select %p236, %s17, 1
      %s238 = scalar_lea.vmem %s4, %s237
      %p239 = scmp.lt.s32.totalorder %s17, 1
      %s240 = scalar_select %p239, %s17, 1
      %s241 = scalar_lea.vmem %s5, %s240
      %v243 = vld [vmem:[%s230] sm:$0xf]
      %v244 = vld [vmem:[%s230 + $0x4] sm:$0xf]
      %v245 = vld [vmem:[%s230 + $0x8] sm:$0xf]
      %v246 = vld [vmem:[%s230 + $0xc] sm:$0xf]
      %v247 = vld [vmem:[%s230 + $0x10] sm:$0xf]
      %v248 = vld [vmem:[%s230 + $0x14] sm:$0xf]
      %v249 = vld [vmem:[%s230 + $0x18] sm:$0xf]
      %v250 = vld [vmem:[%s230 + $0x1c] sm:$0xf]
      %v251 = vld [vmem:[%s230 + $0x20] sm:$0xf]
      %v252 = vld [vmem:[%s230 + $0x24] sm:$0xf]
      %v253 = vld [vmem:[%s230 + $0x28] sm:$0xf]
      %v254 = vld [vmem:[%s230 + $0x2c] sm:$0xf]
      %v255 = vld [vmem:[%s230 + $0x30] sm:$0xf]
      %v256 = vld [vmem:[%s230 + $0x34] sm:$0xf]
      %v257 = vld [vmem:[%s230 + $0x38] sm:$0xf]
      %v258 = vld [vmem:[%s230 + $0x3c] sm:$0xf]
      %v259 = vld [vmem:[%s230 + $0x40] sm:$0xf]
      %v260 = vld [vmem:[%s230 + $0x44] sm:$0xf]
      %v261 = vld [vmem:[%s230 + $0x48] sm:$0xf]
      %v262 = vld [vmem:[%s230 + $0x4c] sm:$0xf]
      %v263 = vld [vmem:[%s230 + $0x50] sm:$0xf]
      %v264 = vld [vmem:[%s230 + $0x54] sm:$0xf]
      %v265 = vld [vmem:[%s230 + $0x58] sm:$0xf]
      %v266 = vld [vmem:[%s230 + $0x5c] sm:$0xf]
      %v267 = vld [vmem:[%s230 + $0x60] sm:$0xf]
      %v268 = vld [vmem:[%s230 + $0x64] sm:$0xf]
      %v269 = vld [vmem:[%s230 + $0x68] sm:$0xf]
      %v270 = vld [vmem:[%s230 + $0x6c] sm:$0xf]
      %v271 = vld [vmem:[%s230 + $0x70] sm:$0xf]
      %v272 = vld [vmem:[%s230 + $0x74] sm:$0xf]
      %v273 = vld [vmem:[%s230 + $0x78] sm:$0xf]
      %v274 = vld [vmem:[%s230 + $0x7c] sm:$0xf]
      %v275 = vld [vmem:[%s230 + $0x80] sm:$0xf]
      %v276 = vld [vmem:[%s230 + $0x84] sm:$0xf]
      %v277 = vld [vmem:[%s230 + $0x88] sm:$0xf]
      %v278 = vld [vmem:[%s230 + $0x8c] sm:$0xf]
      %v279 = vld [vmem:[%s230 + $0x90] sm:$0xf]
      %v280 = vld [vmem:[%s1] sm:$0xf]
      %v281 = vld [vmem:[%s1 + $0x4] sm:$0xf]
      %v282 = vld [vmem:[%s1 + $0x8] sm:$0xf]
      %v283 = vld [vmem:[%s1 + $0xc] sm:$0xf]
      %v284 = vld [vmem:[%s1 + $0x10] sm:$0xf]
      %v285 = vld [vmem:[%s1 + $0x14] sm:$0xf]
      %v286 = vld [vmem:[%s1 + $0x18] sm:$0xf]
      %v287 = vld [vmem:[%s1 + $0x1c] sm:$0xf]
      %v325 = vunpack.c.l.b16 %v243
      %v326 = vunpack.c.l.b16 %v244
      %v327 = vunpack.c.l.b16 %v245
      %v328 = vunpack.c.l.b16 %v246
      %v329 = vunpack.c.l.b16 %v247
      %v330 = vunpack.c.l.b16 %v248
      %v331 = vunpack.c.l.b16 %v249
      %v332 = vunpack.c.l.b16 %v250
      %v333 = vunpack.c.l.b16 %v251
      %v334 = vunpack.c.l.b16 %v252
      %v335 = vunpack.c.l.b16 %v253
      %v336 = vunpack.c.l.b16 %v254
      %v337 = vunpack.c.l.b16 %v255
      %v338 = vunpack.c.l.b16 %v256
      %v339 = vunpack.c.l.b16 %v257
      %v340 = vunpack.c.l.b16 %v258
      %v341 = vunpack.c.l.b16 %v259
      %v342 = vunpack.c.l.b16 %v260
      %v343 = vunpack.c.l.b16 %v261
      %v344 = vunpack.c.l.b16 %v262
      %v345 = vunpack.c.l.b16 %v263
      %v346 = vunpack.c.l.b16 %v264
      %v347 = vunpack.c.l.b16 %v265
      %v348 = vunpack.c.l.b16 %v266
      %v349 = vunpack.c.l.b16 %v267
      %v350 = vunpack.c.l.b16 %v268
      %v351 = vunpack.c.l.b16 %v269
      %v352 = vunpack.c.l.b16 %v270
      %v353 = vunpack.c.l.b16 %v271
      %v354 = vunpack.c.l.b16 %v272
      %v355 = vunpack.c.l.b16 %v273
      %v356 = vunpack.c.l.b16 %v274
      %v357 = vunpack.c.l.b16 %v275
      %v358 = vunpack.c.l.b16 %v276
      %v359 = vunpack.c.l.b16 %v277
      %v360 = vunpack.c.l.b16 %v278
      %v361 = vunpack.c.l.b16 %v279
      %v362 = vpack.c.b16 %v326, %v325
      %v363 = vpack.c.b16 %v328, %v327
      %v364 = vpack.c.b16 %v330, %v329
      %v365 = vpack.c.b16 %v332, %v331
      %v366 = vpack.c.b16 %v334, %v333
      %v367 = vpack.c.b16 %v336, %v335
      %v368 = vpack.c.b16 %v338, %v337
      %v369 = vpack.c.b16 %v340, %v339
      %v370 = vpack.c.b16 %v342, %v341
      %v371 = vpack.c.b16 %v344, %v343
      %v372 = vpack.c.b16 %v346, %v345
      %v373 = vpack.c.b16 %v348, %v347
      %v374 = vpack.c.b16 %v350, %v349
      %v375 = vpack.c.b16 %v352, %v351
      %v376 = vpack.c.b16 %v354, %v353
      %v377 = vpack.c.b16 %v356, %v355
      %v378 = vpack.c.b16 %v358, %v357
      %v379 = vpack.c.b16 %v360, %v359
      %v380 = vpack.c.b16 %v361, %v361
      %v389 = vunpack.c.l.b16 %v280
      %v390 = vunpack.c.l.b16 %v281
      %v391 = vunpack.c.l.b16 %v282
      %v392 = vunpack.c.l.b16 %v283
      %v393 = vunpack.c.l.b16 %v284
      %v394 = vunpack.c.l.b16 %v285
      %v395 = vunpack.c.l.b16 %v286
      %v396 = vunpack.c.l.b16 %v287
      %v397 = vpack.c.b16 %v390, %v389
      %v398 = vpack.c.b16 %v392, %v391
      %v399 = vpack.c.b16 %v394, %v393
      %v400 = vpack.c.b16 %v396, %v395
      %vm405 = vcmask 523264
      %v407 = vsel %vm405, %v362, 0
      %v410 = vsel %vm405, %v363, 0
      %v413 = vsel %vm405, %v364, 0
      %v416 = vsel %vm405, %v365, 0
      %v419 = vsel %vm405, %v366, 0
      %v422 = vsel %vm405, %v367, 0
      %v425 = vsel %vm405, %v368, 0
      %v428 = vsel %vm405, %v369, 0
      %v431 = vsel %vm405, %v370, 0
      %v434 = vsel %vm405, %v371, 0
      %v437 = vsel %vm405, %v372, 0
      %v440 = vsel %vm405, %v373, 0
      %v443 = vsel %vm405, %v374, 0
      %v446 = vsel %vm405, %v375, 0
      %v449 = vsel %vm405, %v376, 0
      %v452 = vsel %vm405, %v377, 0
      %v455 = vsel %vm405, %v378, 0
      %v458 = vsel %vm405, %v379, 0
      %v461 = vsel %vm405, %v380, 0
      %463 = vmatpush.bf16.msra.mxu0 0
      %464 = vmatpush.bf16.msra.mxu0 0
      %465 = vmatpush.bf16.msra.mxu0 0
      %466 = vmatpush.bf16.msra.mxu0 0
      %467 = vmatpush.bf16.msra.mxu0 %v400
      %468 = vmatpush.bf16.msra.mxu0 %v399
      %469 = vmatpush.bf16.msra.mxu0 %v398
      %470 = vmatpush.bf16.msra.mxu0 %v397
      %471 = vmatmul.bf16.gmra.mxu0 %v407
      %v472 = vpop.f32.mrf.mxu0
      %v473 = vadd.f32 0.0, %v472
      %v474 = vpop.f32.mrf.mxu0
      %v475 = vadd.f32 0.0, %v474
      %476 = vmatmul.bf16.gmra.mxu0 %v410
      %v477 = vpop.f32.mrf.mxu0
      %v478 = vadd.f32 0.0, %v477
      %v479 = vpop.f32.mrf.mxu0
      %v480 = vadd.f32 0.0, %v479
      %481 = vmatmul.bf16.gmra.mxu0 %v413
      %v482 = vpop.f32.mrf.mxu0
      %v483 = vadd.f32 0.0, %v482
      %v484 = vpop.f32.mrf.mxu0
      %v485 = vadd.f32 0.0, %v484
      %486 = vmatmul.bf16.gmra.mxu0 %v416
      %v487 = vpop.f32.mrf.mxu0
      %v488 = vadd.f32 0.0, %v487
      %v489 = vpop.f32.mrf.mxu0
      %v490 = vadd.f32 0.0, %v489
      %491 = vmatmul.bf16.gmra.mxu0 %v419
      %v492 = vpop.f32.mrf.mxu0
      %v493 = vadd.f32 0.0, %v492
      %v494 = vpop.f32.mrf.mxu0
      %v495 = vadd.f32 0.0, %v494
      %496 = vmatmul.bf16.gmra.mxu0 %v422
      %v497 = vpop.f32.mrf.mxu0
      %v498 = vadd.f32 0.0, %v497
      %v499 = vpop.f32.mrf.mxu0
      %v500 = vadd.f32 0.0, %v499
      %501 = vmatmul.bf16.gmra.mxu0 %v425
      %v502 = vpop.f32.mrf.mxu0
      %v503 = vadd.f32 0.0, %v502
      %v504 = vpop.f32.mrf.mxu0
      %v505 = vadd.f32 0.0, %v504
      %506 = vmatmul.bf16.gmra.mxu0 %v428
      %v507 = vpop.f32.mrf.mxu0
      %v508 = vadd.f32 0.0, %v507
      %v509 = vpop.f32.mrf.mxu0
      %v510 = vadd.f32 0.0, %v509
      %511 = vmatmul.bf16.gmra.mxu0 %v431
      %v512 = vpop.f32.mrf.mxu0
      %v513 = vadd.f32 0.0, %v512
      %v514 = vpop.f32.mrf.mxu0
      %v515 = vadd.f32 0.0, %v514
      %516 = vmatmul.bf16.gmra.mxu0 %v434
      %v517 = vpop.f32.mrf.mxu0
      %v518 = vadd.f32 0.0, %v517
      %v519 = vpop.f32.mrf.mxu0
      %v520 = vadd.f32 0.0, %v519
      %521 = vmatmul.bf16.gmra.mxu0 %v437
      %v522 = vpop.f32.mrf.mxu0
      %v523 = vadd.f32 0.0, %v522
      %v524 = vpop.f32.mrf.mxu0
      %v525 = vadd.f32 0.0, %v524
      %526 = vmatmul.bf16.gmra.mxu0 %v440
      %v527 = vpop.f32.mrf.mxu0
      %v528 = vadd.f32 0.0, %v527
      %v529 = vpop.f32.mrf.mxu0
      %v530 = vadd.f32 0.0, %v529
      %531 = vmatmul.bf16.gmra.mxu0 %v443
      %v532 = vpop.f32.mrf.mxu0
      %v533 = vadd.f32 0.0, %v532
      %v534 = vpop.f32.mrf.mxu0
      %v535 = vadd.f32 0.0, %v534
      %536 = vmatmul.bf16.gmra.mxu0 %v446
      %v537 = vpop.f32.mrf.mxu0
      %v538 = vadd.f32 0.0, %v537
      %v539 = vpop.f32.mrf.mxu0
      %v540 = vadd.f32 0.0, %v539
      %541 = vmatmul.bf16.gmra.mxu0 %v449
      %v542 = vpop.f32.mrf.mxu0
      %v543 = vadd.f32 0.0, %v542
      %v544 = vpop.f32.mrf.mxu0
      %v545 = vadd.f32 0.0, %v544
      %546 = vmatmul.bf16.gmra.mxu0 %v452
      %v547 = vpop.f32.mrf.mxu0
      %v548 = vadd.f32 0.0, %v547
      %v549 = vpop.f32.mrf.mxu0
      %v550 = vadd.f32 0.0, %v549
      %551 = vmatmul.bf16.gmra.mxu0 %v455
      %v552 = vpop.f32.mrf.mxu0
      %v553 = vadd.f32 0.0, %v552
      %v554 = vpop.f32.mrf.mxu0
      %v555 = vadd.f32 0.0, %v554
      %556 = vmatmul.bf16.gmra.mxu0 %v458
      %v557 = vpop.f32.mrf.mxu0
      %v558 = vpop.f32.mrf.mxu0
      %559 = vmatmul.bf16.gmra.mxu0 %v461
      %v560 = vpop.f32.mrf.mxu0
      %v561 = vpop.f32.mrf.mxu0
      %562 = vdwg.mxu0
      %s563 = scalar_lea.vmem %s1, 32
      %v564 = vld [vmem:[%s563] sm:$0xf]
      %v565 = vld [vmem:[%s563 + $0x4] sm:$0xf]
      %v566 = vld [vmem:[%s563 + $0x8] sm:$0xf]
      %v567 = vld [vmem:[%s563 + $0xc] sm:$0xf]
      %v568 = vld [vmem:[%s563 + $0x10] sm:$0xf]
      %v569 = vld [vmem:[%s563 + $0x14] sm:$0xf]
      %v570 = vld [vmem:[%s563 + $0x18] sm:$0xf]
      %v571 = vld [vmem:[%s563 + $0x1c] sm:$0xf]
      %v580 = vunpack.c.l.b16 %v564
      %v581 = vunpack.c.l.b16 %v565
      %v582 = vunpack.c.l.b16 %v566
      %v583 = vunpack.c.l.b16 %v567
      %v584 = vunpack.c.l.b16 %v568
      %v585 = vunpack.c.l.b16 %v569
      %v586 = vunpack.c.l.b16 %v570
      %v587 = vunpack.c.l.b16 %v571
      %v588 = vpack.c.b16 %v581, %v580
      %v589 = vpack.c.b16 %v583, %v582
      %v590 = vpack.c.b16 %v585, %v584
      %v591 = vpack.c.b16 %v587, %v586
      %596 = vmatpush.bf16.msra.mxu0 0
      %597 = vmatpush.bf16.msra.mxu0 0
      %598 = vmatpush.bf16.msra.mxu0 0
      %599 = vmatpush.bf16.msra.mxu0 0
      %600 = vmatpush.bf16.msra.mxu0 %v591
      %601 = vmatpush.bf16.msra.mxu0 %v590
      %602 = vmatpush.bf16.msra.mxu0 %v589
      %603 = vmatpush.bf16.msra.mxu0 %v588
      %604 = vmatmul.bf16.gmra.mxu0 %v407
      %v605 = vpop.f32.mrf.mxu0
      %v606 = vadd.f32 0.0, %v605
      %v607 = vpop.f32.mrf.mxu0
      %v608 = vadd.f32 0.0, %v607
      %609 = vmatmul.bf16.gmra.mxu0 %v410
      %v610 = vpop.f32.mrf.mxu0
      %v611 = vadd.f32 0.0, %v610
      %v612 = vpop.f32.mrf.mxu0
      %v613 = vadd.f32 0.0, %v612
      %614 = vmatmul.bf16.gmra.mxu0 %v413
      %v615 = vpop.f32.mrf.mxu0
      %v616 = vadd.f32 0.0, %v615
      %v617 = vpop.f32.mrf.mxu0
      %v618 = vadd.f32 0.0, %v617
      %619 = vmatmul.bf16.gmra.mxu0 %v416
      %v620 = vpop.f32.mrf.mxu0
      %v621 = vadd.f32 0.0, %v620
      %v622 = vpop.f32.mrf.mxu0
      %v623 = vadd.f32 0.0, %v622
      %624 = vmatmul.bf16.gmra.mxu0 %v419
      %v625 = vpop.f32.mrf.mxu0
      %v626 = vadd.f32 0.0, %v625
      %v627 = vpop.f32.mrf.mxu0
      %v628 = vadd.f32 0.0, %v627
      %629 = vmatmul.bf16.gmra.mxu0 %v422
      %v630 = vpop.f32.mrf.mxu0
      %v631 = vadd.f32 0.0, %v630
      %v632 = vpop.f32.mrf.mxu0
      %v633 = vadd.f32 0.0, %v632
      %634 = vmatmul.bf16.gmra.mxu0 %v425
      %v635 = vpop.f32.mrf.mxu0
      %v636 = vadd.f32 0.0, %v635
      %v637 = vpop.f32.mrf.mxu0
      %v638 = vadd.f32 0.0, %v637
      %639 = vmatmul.bf16.gmra.mxu0 %v428
      %v640 = vpop.f32.mrf.mxu0
      %v641 = vadd.f32 0.0, %v640
      %v642 = vpop.f32.mrf.mxu0
      %v643 = vadd.f32 0.0, %v642
      %644 = vmatmul.bf16.gmra.mxu0 %v431
      %v645 = vpop.f32.mrf.mxu0
      %v646 = vadd.f32 0.0, %v645
      %v647 = vpop.f32.mrf.mxu0
      %v648 = vadd.f32 0.0, %v647
      %649 = vmatmul.bf16.gmra.mxu0 %v434
      %v650 = vpop.f32.mrf.mxu0
      %v651 = vadd.f32 0.0, %v650
      %v652 = vpop.f32.mrf.mxu0
      %v653 = vadd.f32 0.0, %v652
      %654 = vmatmul.bf16.gmra.mxu0 %v437
      %v655 = vpop.f32.mrf.mxu0
      %v656 = vadd.f32 0.0, %v655
      %v657 = vpop.f32.mrf.mxu0
      %v658 = vadd.f32 0.0, %v657
      %659 = vmatmul.bf16.gmra.mxu0 %v440
      %v660 = vpop.f32.mrf.mxu0
      %v661 = vadd.f32 0.0, %v660
      %v662 = vpop.f32.mrf.mxu0
      %v663 = vadd.f32 0.0, %v662
      %664 = vmatmul.bf16.gmra.mxu0 %v443
      %v665 = vpop.f32.mrf.mxu0
      %v666 = vadd.f32 0.0, %v665
      %v667 = vpop.f32.mrf.mxu0
      %v668 = vadd.f32 0.0, %v667
      %669 = vmatmul.bf16.gmra.mxu0 %v446
      %v670 = vpop.f32.mrf.mxu0
      %v671 = vadd.f32 0.0, %v670
      %v672 = vpop.f32.mrf.mxu0
      %v673 = vadd.f32 0.0, %v672
      %674 = vmatmul.bf16.gmra.mxu0 %v449
      %v675 = vpop.f32.mrf.mxu0
      %v676 = vadd.f32 0.0, %v675
      %v677 = vpop.f32.mrf.mxu0
      %v678 = vadd.f32 0.0, %v677
      %679 = vmatmul.bf16.gmra.mxu0 %v452
      %v680 = vpop.f32.mrf.mxu0
      %v681 = vadd.f32 0.0, %v680
      %v682 = vpop.f32.mrf.mxu0
      %v683 = vadd.f32 0.0, %v682
      %684 = vmatmul.bf16.gmra.mxu0 %v455
      %v685 = vpop.f32.mrf.mxu0
      %v686 = vadd.f32 0.0, %v685
      %v687 = vpop.f32.mrf.mxu0
      %v688 = vadd.f32 0.0, %v687
      %689 = vmatmul.bf16.gmra.mxu0 %v458
      %v690 = vpop.f32.mrf.mxu0
      %v691 = vadd.f32 0.0, %v690
      %v692 = vpop.f32.mrf.mxu0
      %693 = vmatmul.bf16.gmra.mxu0 %v461
      %v694 = vpop.f32.mrf.mxu0
      %v695 = vpop.f32.mrf.mxu0
      %696 = vdwg.mxu0
      %vm732 = vcmask 1046528
      %v733 = vrot.slane %v606, 1
      %v734 = vrot.slane %v608, 1
      %v735 = vsel %vm732, %v733, %v734
      %v736 = vrot.slane %v611, 1
      %v737 = vsel %vm732, %v734, %v736
      %v738 = vrot.slane %v613, 1
      %v739 = vsel %vm732, %v736, %v738
      %v740 = vrot.slane %v616, 1
      %v741 = vsel %vm732, %v738, %v740
      %v742 = vrot.slane %v618, 1
      %v743 = vsel %vm732, %v740, %v742
      %v744 = vrot.slane %v621, 1
      %v745 = vsel %vm732, %v742, %v744
      %v746 = vrot.slane %v623, 1
      %v747 = vsel %vm732, %v744, %v746
      %v748 = vrot.slane %v626, 1
      %v749 = vsel %vm732, %v746, %v748
      %v750 = vrot.slane %v628, 1
      %v751 = vsel %vm732, %v748, %v750
      %v752 = vrot.slane %v631, 1
      %v753 = vsel %vm732, %v750, %v752
      %v754 = vrot.slane %v633, 1
      %v755 = vsel %vm732, %v752, %v754
      %v756 = vrot.slane %v636, 1
      %v757 = vsel %vm732, %v754, %v756
      %v758 = vrot.slane %v638, 1
      %v759 = vsel %vm732, %v756, %v758
      %v760 = vrot.slane %v641, 1
      %v761 = vsel %vm732, %v758, %v760
      %v762 = vrot.slane %v643, 1
      %v763 = vsel %vm732, %v760, %v762
      %v764 = vrot.slane %v646, 1
      %v765 = vsel %vm732, %v762, %v764
      %v766 = vrot.slane %v648, 1
      %v767 = vsel %vm732, %v764, %v766
      %v768 = vrot.slane %v651, 1
      %v769 = vsel %vm732, %v766, %v768
      %v770 = vrot.slane %v653, 1
      %v771 = vsel %vm732, %v768, %v770
      %v772 = vrot.slane %v656, 1
      %v773 = vsel %vm732, %v770, %v772
      %v774 = vrot.slane %v658, 1
      %v775 = vsel %vm732, %v772, %v774
      %v776 = vrot.slane %v661, 1
      %v777 = vsel %vm732, %v774, %v776
      %v778 = vrot.slane %v663, 1
      %v779 = vsel %vm732, %v776, %v778
      %v780 = vrot.slane %v666, 1
      %v781 = vsel %vm732, %v778, %v780
      %v782 = vrot.slane %v668, 1
      %v783 = vsel %vm732, %v780, %v782
      %v784 = vrot.slane %v671, 1
      %v785 = vsel %vm732, %v782, %v784
      %v786 = vrot.slane %v673, 1
      %v787 = vsel %vm732, %v784, %v786
      %v788 = vrot.slane %v676, 1
      %v789 = vsel %vm732, %v786, %v788
      %v790 = vrot.slane %v678, 1
      %v791 = vsel %vm732, %v788, %v790
      %v792 = vrot.slane %v681, 1
      %v793 = vsel %vm732, %v790, %v792
      %v794 = vrot.slane %v683, 1
      %v795 = vsel %vm732, %v792, %v794
      %v796 = vrot.slane %v686, 1
      %v797 = vsel %vm732, %v794, %v796
      %v798 = vrot.slane %v688, 1
      %v799 = vsel %vm732, %v796, %v798
      %v800 = vrot.slane %v691, 1
      %v801 = vsel %vm732, %v798, %v800
      %v836 = vadd.f32 %v473, %v735
      %v837 = vadd.f32 %v475, %v737
      %v838 = vadd.f32 %v478, %v739
      %v839 = vadd.f32 %v480, %v741
      %v840 = vadd.f32 %v483, %v743
      %v841 = vadd.f32 %v485, %v745
      %v842 = vadd.f32 %v488, %v747
      %v843 = vadd.f32 %v490, %v749
      %v844 = vadd.f32 %v493, %v751
      %v845 = vadd.f32 %v495, %v753
      %v846 = vadd.f32 %v498, %v755
      %v847 = vadd.f32 %v500, %v757
      %v848 = vadd.f32 %v503, %v759
      %v849 = vadd.f32 %v505, %v761
      %v850 = vadd.f32 %v508, %v763
      %v851 = vadd.f32 %v510, %v765
      %v852 = vadd.f32 %v513, %v767
      %v853 = vadd.f32 %v515, %v769
      %v854 = vadd.f32 %v518, %v771
      %v855 = vadd.f32 %v520, %v773
      %v856 = vadd.f32 %v523, %v775
      %v857 = vadd.f32 %v525, %v777
      %v858 = vadd.f32 %v528, %v779
      %v859 = vadd.f32 %v530, %v781
      %v860 = vadd.f32 %v533, %v783
      %v861 = vadd.f32 %v535, %v785
      %v862 = vadd.f32 %v538, %v787
      %v863 = vadd.f32 %v540, %v789
      %v864 = vadd.f32 %v543, %v791
      %v865 = vadd.f32 %v545, %v793
      %v866 = vadd.f32 %v548, %v795
      %v867 = vadd.f32 %v550, %v797
      %v868 = vadd.f32 %v553, %v799
      %v869 = vadd.f32 %v555, %v801
      %s870 = scalar_lea.vmem %s1, 64
      %v871 = vld [vmem:[%s870] sm:$0xf]
      %v872 = vld [vmem:[%s870 + $0x4] sm:$0xf]
      %v873 = vld [vmem:[%s870 + $0x8] sm:$0xf]
      %v874 = vld [vmem:[%s870 + $0xc] sm:$0xf]
      %v875 = vld [vmem:[%s870 + $0x10] sm:$0xf]
      %v876 = vld [vmem:[%s870 + $0x14] sm:$0xf]
      %v877 = vld [vmem:[%s870 + $0x18] sm:$0xf]
      %v878 = vld [vmem:[%s870 + $0x1c] sm:$0xf]
      %v887 = vunpack.c.l.b16 %v871
      %v888 = vunpack.c.l.b16 %v872
      %v889 = vunpack.c.l.b16 %v873
      %v890 = vunpack.c.l.b16 %v874
      %v891 = vunpack.c.l.b16 %v875
      %v892 = vunpack.c.l.b16 %v876
      %v893 = vunpack.c.l.b16 %v877
      %v894 = vunpack.c.l.b16 %v878
      %v895 = vpack.c.b16 %v888, %v887
      %v896 = vpack.c.b16 %v890, %v889
      %v897 = vpack.c.b16 %v892, %v891
      %v898 = vpack.c.b16 %v894, %v893
      %903 = vmatpush.bf16.msra.mxu0 0
      %904 = vmatpush.bf16.msra.mxu0 0
      %905 = vmatpush.bf16.msra.mxu0 0
      %906 = vmatpush.bf16.msra.mxu0 0
      %907 = vmatpush.bf16.msra.mxu0 %v898
      %908 = vmatpush.bf16.msra.mxu0 %v897
      %909 = vmatpush.bf16.msra.mxu0 %v896
      %910 = vmatpush.bf16.msra.mxu0 %v895
      %911 = vmatmul.bf16.gmra.mxu0 %v407
      %v912 = vpop.f32.mrf.mxu0
      %v913 = vpop.f32.mrf.mxu0
      %914 = vmatmul.bf16.gmra.mxu0 %v410
      %v915 = vpop.f32.mrf.mxu0
      %v916 = vadd.f32 0.0, %v915
      %v917 = vpop.f32.mrf.mxu0
      %v918 = vadd.f32 0.0, %v917
      %919 = vmatmul.bf16.gmra.mxu0 %v413
      %v920 = vpop.f32.mrf.mxu0
      %v921 = vadd.f32 0.0, %v920
      %v922 = vpop.f32.mrf.mxu0
      %v923 = vadd.f32 0.0, %v922
      %924 = vmatmul.bf16.gmra.mxu0 %v416
      %v925 = vpop.f32.mrf.mxu0
      %v926 = vadd.f32 0.0, %v925
      %v927 = vpop.f32.mrf.mxu0
      %v928 = vadd.f32 0.0, %v927
      %929 = vmatmul.bf16.gmra.mxu0 %v419
      %v930 = vpop.f32.mrf.mxu0
      %v931 = vadd.f32 0.0, %v930
      %v932 = vpop.f32.mrf.mxu0
      %v933 = vadd.f32 0.0, %v932
      %934 = vmatmul.bf16.gmra.mxu0 %v422
      %v935 = vpop.f32.mrf.mxu0
      %v936 = vadd.f32 0.0, %v935
      %v937 = vpop.f32.mrf.mxu0
      %v938 = vadd.f32 0.0, %v937
      %939 = vmatmul.bf16.gmra.mxu0 %v425
      %v940 = vpop.f32.mrf.mxu0
      %v941 = vadd.f32 0.0, %v940
      %v942 = vpop.f32.mrf.mxu0
      %v943 = vadd.f32 0.0, %v942
      %944 = vmatmul.bf16.gmra.mxu0 %v428
      %v945 = vpop.f32.mrf.mxu0
      %v946 = vadd.f32 0.0, %v945
      %v947 = vpop.f32.mrf.mxu0
      %v948 = vadd.f32 0.0, %v947
      %949 = vmatmul.bf16.gmra.mxu0 %v431
      %v950 = vpop.f32.mrf.mxu0
      %v951 = vadd.f32 0.0, %v950
      %v952 = vpop.f32.mrf.mxu0
      %v953 = vadd.f32 0.0, %v952
      %954 = vmatmul.bf16.gmra.mxu0 %v434
      %v955 = vpop.f32.mrf.mxu0
      %v956 = vadd.f32 0.0, %v955
      %v957 = vpop.f32.mrf.mxu0
      %v958 = vadd.f32 0.0, %v957
      %959 = vmatmul.bf16.gmra.mxu0 %v437
      %v960 = vpop.f32.mrf.mxu0
      %v961 = vadd.f32 0.0, %v960
      %v962 = vpop.f32.mrf.mxu0
      %v963 = vadd.f32 0.0, %v962
      %964 = vmatmul.bf16.gmra.mxu0 %v440
      %v965 = vpop.f32.mrf.mxu0
      %v966 = vadd.f32 0.0, %v965
      %v967 = vpop.f32.mrf.mxu0
      %v968 = vadd.f32 0.0, %v967
      %969 = vmatmul.bf16.gmra.mxu0 %v443
      %v970 = vpop.f32.mrf.mxu0
      %v971 = vadd.f32 0.0, %v970
      %v972 = vpop.f32.mrf.mxu0
      %v973 = vadd.f32 0.0, %v972
      %974 = vmatmul.bf16.gmra.mxu0 %v446
      %v975 = vpop.f32.mrf.mxu0
      %v976 = vadd.f32 0.0, %v975
      %v977 = vpop.f32.mrf.mxu0
      %v978 = vadd.f32 0.0, %v977
      %979 = vmatmul.bf16.gmra.mxu0 %v449
      %v980 = vpop.f32.mrf.mxu0
      %v981 = vadd.f32 0.0, %v980
      %v982 = vpop.f32.mrf.mxu0
      %v983 = vadd.f32 0.0, %v982
      %984 = vmatmul.bf16.gmra.mxu0 %v452
      %v985 = vpop.f32.mrf.mxu0
      %v986 = vadd.f32 0.0, %v985
      %v987 = vpop.f32.mrf.mxu0
      %v988 = vadd.f32 0.0, %v987
      %989 = vmatmul.bf16.gmra.mxu0 %v455
      %v990 = vpop.f32.mrf.mxu0
      %v991 = vadd.f32 0.0, %v990
      %v992 = vpop.f32.mrf.mxu0
      %v993 = vadd.f32 0.0, %v992
      %994 = vmatmul.bf16.gmra.mxu0 %v458
      %v995 = vpop.f32.mrf.mxu0
      %v996 = vadd.f32 0.0, %v995
      %v997 = vpop.f32.mrf.mxu0
      %v998 = vadd.f32 0.0, %v997
      %999 = vmatmul.bf16.gmra.mxu0 %v461
      %v1000 = vpop.f32.mrf.mxu0
      %v1001 = vadd.f32 0.0, %v1000
      %v1002 = vpop.f32.mrf.mxu0
      %1003 = vdwg.mxu0
      %v1039 = vrot.slane %v916, 1
      %v1040 = vrot.slane %v918, 1
      %v1041 = vsel %vm732, %v1039, %v1040
      %v1042 = vrot.slane %v921, 1
      %v1043 = vsel %vm732, %v1040, %v1042
      %v1044 = vrot.slane %v923, 1
      %v1045 = vsel %vm732, %v1042, %v1044
      %v1046 = vrot.slane %v926, 1
      %v1047 = vsel %vm732, %v1044, %v1046
      %v1048 = vrot.slane %v928, 1
      %v1049 = vsel %vm732, %v1046, %v1048
      %v1050 = vrot.slane %v931, 1
      %v1051 = vsel %vm732, %v1048, %v1050
      %v1052 = vrot.slane %v933, 1
      %v1053 = vsel %vm732, %v1050, %v1052
      %v1054 = vrot.slane %v936, 1
      %v1055 = vsel %vm732, %v1052, %v1054
      %v1056 = vrot.slane %v938, 1
      %v1057 = vsel %vm732, %v1054, %v1056
      %v1058 = vrot.slane %v941, 1
      %v1059 = vsel %vm732, %v1056, %v1058
      %v1060 = vrot.slane %v943, 1
      %v1061 = vsel %vm732, %v1058, %v1060
      %v1062 = vrot.slane %v946, 1
      %v1063 = vsel %vm732, %v1060, %v1062
      %v1064 = vrot.slane %v948, 1
      %v1065 = vsel %vm732, %v1062, %v1064
      %v1066 = vrot.slane %v951, 1
      %v1067 = vsel %vm732, %v1064, %v1066
      %v1068 = vrot.slane %v953, 1
      %v1069 = vsel %vm732, %v1066, %v1068
      %v1070 = vrot.slane %v956, 1
      %v1071 = vsel %vm732, %v1068, %v1070
      %v1072 = vrot.slane %v958, 1
      %v1073 = vsel %vm732, %v1070, %v1072
      %v1074 = vrot.slane %v961, 1
      %v1075 = vsel %vm732, %v1072, %v1074
      %v1076 = vrot.slane %v963, 1
      %v1077 = vsel %vm732, %v1074, %v1076
      %v1078 = vrot.slane %v966, 1
      %v1079 = vsel %vm732, %v1076, %v1078
      %v1080 = vrot.slane %v968, 1
      %v1081 = vsel %vm732, %v1078, %v1080
      %v1082 = vrot.slane %v971, 1
      %v1083 = vsel %vm732, %v1080, %v1082
      %v1084 = vrot.slane %v973, 1
      %v1085 = vsel %vm732, %v1082, %v1084
      %v1086 = vrot.slane %v976, 1
      %v1087 = vsel %vm732, %v1084, %v1086
      %v1088 = vrot.slane %v978, 1
      %v1089 = vsel %vm732, %v1086, %v1088
      %v1090 = vrot.slane %v981, 1
      %v1091 = vsel %vm732, %v1088, %v1090
      %v1092 = vrot.slane %v983, 1
      %v1093 = vsel %vm732, %v1090, %v1092
      %v1094 = vrot.slane %v986, 1
      %v1095 = vsel %vm732, %v1092, %v1094
      %v1096 = vrot.slane %v988, 1
      %v1097 = vsel %vm732, %v1094, %v1096
      %v1098 = vrot.slane %v991, 1
      %v1099 = vsel %vm732, %v1096, %v1098
      %v1100 = vrot.slane %v993, 1
      %v1101 = vsel %vm732, %v1098, %v1100
      %v1102 = vrot.slane %v996, 1
      %v1103 = vsel %vm732, %v1100, %v1102
      %v1104 = vrot.slane %v998, 1
      %v1105 = vsel %vm732, %v1102, %v1104
      %v1106 = vrot.slane %v1001, 1
      %v1107 = vsel %vm732, %v1104, %v1106
      %v1142 = vadd.f32 %v836, %v1041
      %v1143 = vadd.f32 %v837, %v1043
      %v1144 = vadd.f32 %v838, %v1045
      %v1145 = vadd.f32 %v839, %v1047
      %v1146 = vadd.f32 %v840, %v1049
      %v1147 = vadd.f32 %v841, %v1051
      %v1148 = vadd.f32 %v842, %v1053
      %v1149 = vadd.f32 %v843, %v1055
      %v1150 = vadd.f32 %v844, %v1057
      %v1151 = vadd.f32 %v845, %v1059
      %v1152 = vadd.f32 %v846, %v1061
      %v1153 = vadd.f32 %v847, %v1063
      %v1154 = vadd.f32 %v848, %v1065
      %v1155 = vadd.f32 %v849, %v1067
      %v1156 = vadd.f32 %v850, %v1069
      %v1157 = vadd.f32 %v851, %v1071
      %v1158 = vadd.f32 %v852, %v1073
      %v1159 = vadd.f32 %v853, %v1075
      %v1160 = vadd.f32 %v854, %v1077
      %v1161 = vadd.f32 %v855, %v1079
      %v1162 = vadd.f32 %v856, %v1081
      %v1163 = vadd.f32 %v857, %v1083
      %v1164 = vadd.f32 %v858, %v1085
      %v1165 = vadd.f32 %v859, %v1087
      %v1166 = vadd.f32 %v860, %v1089
      %v1167 = vadd.f32 %v861, %v1091
      %v1168 = vadd.f32 %v862, %v1093
      %v1169 = vadd.f32 %v863, %v1095
      %v1170 = vadd.f32 %v864, %v1097
      %v1171 = vadd.f32 %v865, %v1099
      %v1172 = vadd.f32 %v866, %v1101
      %v1173 = vadd.f32 %v867, %v1103
      %v1174 = vadd.f32 %v868, %v1105
      %v1175 = vadd.f32 %v869, %v1107
      %s1176 = scalar_lea.vmem %s1, 96
      %v1177 = vld [vmem:[%s1176] sm:$0xf]
      %v1178 = vld [vmem:[%s1176 + $0x4] sm:$0xf]
      %v1179 = vld [vmem:[%s1176 + $0x8] sm:$0xf]
      %v1180 = vld [vmem:[%s1176 + $0xc] sm:$0xf]
      %v1181 = vld [vmem:[%s1176 + $0x10] sm:$0xf]
      %v1182 = vld [vmem:[%s1176 + $0x14] sm:$0xf]
      %v1183 = vld [vmem:[%s1176 + $0x18] sm:$0xf]
      %v1184 = vld [vmem:[%s1176 + $0x1c] sm:$0xf]
      %v1193 = vunpack.c.l.b16 %v1177
      %v1194 = vunpack.c.l.b16 %v1178
      %v1195 = vunpack.c.l.b16 %v1179
      %v1196 = vunpack.c.l.b16 %v1180
      %v1197 = vunpack.c.l.b16 %v1181
      %v1198 = vunpack.c.l.b16 %v1182
      %v1199 = vunpack.c.l.b16 %v1183
      %v1200 = vunpack.c.l.b16 %v1184
      %v1201 = vpack.c.b16 %v1194, %v1193
      %v1202 = vpack.c.b16 %v1196, %v1195
      %v1203 = vpack.c.b16 %v1198, %v1197
      %v1204 = vpack.c.b16 %v1200, %v1199
      %1209 = vmatpush.bf16.msra.mxu0 0
      %1210 = vmatpush.bf16.msra.mxu0 0
      %1211 = vmatpush.bf16.msra.mxu0 0
      %1212 = vmatpush.bf16.msra.mxu0 0
      %1213 = vmatpush.bf16.msra.mxu0 %v1204
      %1214 = vmatpush.bf16.msra.mxu0 %v1203
      %1215 = vmatpush.bf16.msra.mxu0 %v1202
      %1216 = vmatpush.bf16.msra.mxu0 %v1201
      %1217 = vmatmul.bf16.gmra.mxu0 %v407
      %v1218 = vpop.f32.mrf.mxu0
      %v1219 = vpop.f32.mrf.mxu0
      %1220 = vmatmul.bf16.gmra.mxu0 %v410
      %v1221 = vpop.f32.mrf.mxu0
      %v1222 = vadd.f32 0.0, %v1221
      %v1223 = vpop.f32.mrf.mxu0
      %v1224 = vadd.f32 0.0, %v1223
      %1225 = vmatmul.bf16.gmra.mxu0 %v413
      %v1226 = vpop.f32.mrf.mxu0
      %v1227 = vadd.f32 0.0, %v1226
      %v1228 = vpop.f32.mrf.mxu0
      %v1229 = vadd.f32 0.0, %v1228
      %1230 = vmatmul.bf16.gmra.mxu0 %v416
      %v1231 = vpop.f32.mrf.mxu0
      %v1232 = vadd.f32 0.0, %v1231
      %v1233 = vpop.f32.mrf.mxu0
      %v1234 = vadd.f32 0.0, %v1233
      %1235 = vmatmul.bf16.gmra.mxu0 %v419
      %v1236 = vpop.f32.mrf.mxu0
      %v1237 = vadd.f32 0.0, %v1236
      %v1238 = vpop.f32.mrf.mxu0
      %v1239 = vadd.f32 0.0, %v1238
      %1240 = vmatmul.bf16.gmra.mxu0 %v422
      %v1241 = vpop.f32.mrf.mxu0
      %v1242 = vadd.f32 0.0, %v1241
      %v1243 = vpop.f32.mrf.mxu0
      %v1244 = vadd.f32 0.0, %v1243
      %1245 = vmatmul.bf16.gmra.mxu0 %v425
      %v1246 = vpop.f32.mrf.mxu0
      %v1247 = vadd.f32 0.0, %v1246
      %v1248 = vpop.f32.mrf.mxu0
      %v1249 = vadd.f32 0.0, %v1248
      %1250 = vmatmul.bf16.gmra.mxu0 %v428
      %v1251 = vpop.f32.mrf.mxu0
      %v1252 = vadd.f32 0.0, %v1251
      %v1253 = vpop.f32.mrf.mxu0
      %v1254 = vadd.f32 0.0, %v1253
      %1255 = vmatmul.bf16.gmra.mxu0 %v431
      %v1256 = vpop.f32.mrf.mxu0
      %v1257 = vadd.f32 0.0, %v1256
      %v1258 = vpop.f32.mrf.mxu0
      %v1259 = vadd.f32 0.0, %v1258
      %1260 = vmatmul.bf16.gmra.mxu0 %v434
      %v1261 = vpop.f32.mrf.mxu0
      %v1262 = vadd.f32 0.0, %v1261
      %v1263 = vpop.f32.mrf.mxu0
      %v1264 = vadd.f32 0.0, %v1263
      %1265 = vmatmul.bf16.gmra.mxu0 %v437
      %v1266 = vpop.f32.mrf.mxu0
      %v1267 = vadd.f32 0.0, %v1266
      %v1268 = vpop.f32.mrf.mxu0
      %v1269 = vadd.f32 0.0, %v1268
      %1270 = vmatmul.bf16.gmra.mxu0 %v440
      %v1271 = vpop.f32.mrf.mxu0
      %v1272 = vadd.f32 0.0, %v1271
      %v1273 = vpop.f32.mrf.mxu0
      %v1274 = vadd.f32 0.0, %v1273
      %1275 = vmatmul.bf16.gmra.mxu0 %v443
      %v1276 = vpop.f32.mrf.mxu0
      %v1277 = vadd.f32 0.0, %v1276
      %v1278 = vpop.f32.mrf.mxu0
      %v1279 = vadd.f32 0.0, %v1278
      %1280 = vmatmul.bf16.gmra.mxu0 %v446
      %v1281 = vpop.f32.mrf.mxu0
      %v1282 = vadd.f32 0.0, %v1281
      %v1283 = vpop.f32.mrf.mxu0
      %v1284 = vadd.f32 0.0, %v1283
      %1285 = vmatmul.bf16.gmra.mxu0 %v449
      %v1286 = vpop.f32.mrf.mxu0
      %v1287 = vadd.f32 0.0, %v1286
      %v1288 = vpop.f32.mrf.mxu0
      %v1289 = vadd.f32 0.0, %v1288
      %1290 = vmatmul.bf16.gmra.mxu0 %v452
      %v1291 = vpop.f32.mrf.mxu0
      %v1292 = vadd.f32 0.0, %v1291
      %v1293 = vpop.f32.mrf.mxu0
      %v1294 = vadd.f32 0.0, %v1293
      %1295 = vmatmul.bf16.gmra.mxu0 %v455
      %v1296 = vpop.f32.mrf.mxu0
      %v1297 = vadd.f32 0.0, %v1296
      %v1298 = vpop.f32.mrf.mxu0
      %v1299 = vadd.f32 0.0, %v1298
      %1300 = vmatmul.bf16.gmra.mxu0 %v458
      %v1301 = vpop.f32.mrf.mxu0
      %v1302 = vadd.f32 0.0, %v1301
      %v1303 = vpop.f32.mrf.mxu0
      %v1304 = vadd.f32 0.0, %v1303
      %1305 = vmatmul.bf16.gmra.mxu0 %v461
      %v1306 = vpop.f32.mrf.mxu0
      %v1307 = vadd.f32 0.0, %v1306
      %v1308 = vpop.f32.mrf.mxu0
      %1309 = vdwg.mxu0
      %vm1345 = vcmask 1045504
      %v1346 = vrot.slane %v1222, 2
      %v1347 = vrot.slane %v1224, 2
      %v1348 = vsel %vm1345, %v1346, %v1347
      %v1349 = vrot.slane %v1227, 2
      %v1350 = vsel %vm1345, %v1347, %v1349
      %v1351 = vrot.slane %v1229, 2
      %v1352 = vsel %vm1345, %v1349, %v1351
      %v1353 = vrot.slane %v1232, 2
      %v1354 = vsel %vm1345, %v1351, %v1353
      %v1355 = vrot.slane %v1234, 2
      %v1356 = vsel %vm1345, %v1353, %v1355
      %v1357 = vrot.slane %v1237, 2
      %v1358 = vsel %vm1345, %v1355, %v1357
      %v1359 = vrot.slane %v1239, 2
      %v1360 = vsel %vm1345, %v1357, %v1359
      %v1361 = vrot.slane %v1242, 2
      %v1362 = vsel %vm1345, %v1359, %v1361
      %v1363 = vrot.slane %v1244, 2
      %v1364 = vsel %vm1345, %v1361, %v1363
      %v1365 = vrot.slane %v1247, 2
      %v1366 = vsel %vm1345, %v1363, %v1365
      %v1367 = vrot.slane %v1249, 2
      %v1368 = vsel %vm1345, %v1365, %v1367
      %v1369 = vrot.slane %v1252, 2
      %v1370 = vsel %vm1345, %v1367, %v1369
      %v1371 = vrot.slane %v1254, 2
      %v1372 = vsel %vm1345, %v1369, %v1371
      %v1373 = vrot.slane %v1257, 2
      %v1374 = vsel %vm1345, %v1371, %v1373
      %v1375 = vrot.slane %v1259, 2
      %v1376 = vsel %vm1345, %v1373, %v1375
      %v1377 = vrot.slane %v1262, 2
      %v1378 = vsel %vm1345, %v1375, %v1377
      %v1379 = vrot.slane %v1264, 2
      %v1380 = vsel %vm1345, %v1377, %v1379
      %v1381 = vrot.slane %v1267, 2
      %v1382 = vsel %vm1345, %v1379, %v1381
      %v1383 = vrot.slane %v1269, 2
      %v1384 = vsel %vm1345, %v1381, %v1383
      %v1385 = vrot.slane %v1272, 2
      %v1386 = vsel %vm1345, %v1383, %v1385
      %v1387 = vrot.slane %v1274, 2
      %v1388 = vsel %vm1345, %v1385, %v1387
      %v1389 = vrot.slane %v1277, 2
      %v1390 = vsel %vm1345, %v1387, %v1389
      %v1391 = vrot.slane %v1279, 2
      %v1392 = vsel %vm1345, %v1389, %v1391
      %v1393 = vrot.slane %v1282, 2
      %v1394 = vsel %vm1345, %v1391, %v1393
      %v1395 = vrot.slane %v1284, 2
      %v1396 = vsel %vm1345, %v1393, %v1395
      %v1397 = vrot.slane %v1287, 2
      %v1398 = vsel %vm1345, %v1395, %v1397
      %v1399 = vrot.slane %v1289, 2
      %v1400 = vsel %vm1345, %v1397, %v1399
      %v1401 = vrot.slane %v1292, 2
      %v1402 = vsel %vm1345, %v1399, %v1401
      %v1403 = vrot.slane %v1294, 2
      %v1404 = vsel %vm1345, %v1401, %v1403
      %v1405 = vrot.slane %v1297, 2
      %v1406 = vsel %vm1345, %v1403, %v1405
      %v1407 = vrot.slane %v1299, 2
      %v1408 = vsel %vm1345, %v1405, %v1407
      %v1409 = vrot.slane %v1302, 2
      %v1410 = vsel %vm1345, %v1407, %v1409
      %v1411 = vrot.slane %v1304, 2
      %v1412 = vsel %vm1345, %v1409, %v1411
      %v1413 = vrot.slane %v1307, 2
      %v1414 = vsel %vm1345, %v1411, %v1413
      %v1449 = vadd.f32 %v1142, %v1348
      %v1450 = vadd.f32 %v1143, %v1350
      %v1451 = vadd.f32 %v1144, %v1352
      %v1452 = vadd.f32 %v1145, %v1354
      %v1453 = vadd.f32 %v1146, %v1356
      %v1454 = vadd.f32 %v1147, %v1358
      %v1455 = vadd.f32 %v1148, %v1360
      %v1456 = vadd.f32 %v1149, %v1362
      %v1457 = vadd.f32 %v1150, %v1364
      %v1458 = vadd.f32 %v1151, %v1366
      %v1459 = vadd.f32 %v1152, %v1368
      %v1460 = vadd.f32 %v1153, %v1370
      %v1461 = vadd.f32 %v1154, %v1372
      %v1462 = vadd.f32 %v1155, %v1374
      %v1463 = vadd.f32 %v1156, %v1376
      %v1464 = vadd.f32 %v1157, %v1378
      %v1465 = vadd.f32 %v1158, %v1380
      %v1466 = vadd.f32 %v1159, %v1382
      %v1467 = vadd.f32 %v1160, %v1384
      %v1468 = vadd.f32 %v1161, %v1386
      %v1469 = vadd.f32 %v1162, %v1388
      %v1470 = vadd.f32 %v1163, %v1390
      %v1471 = vadd.f32 %v1164, %v1392
      %v1472 = vadd.f32 %v1165, %v1394
      %v1473 = vadd.f32 %v1166, %v1396
      %v1474 = vadd.f32 %v1167, %v1398
      %v1475 = vadd.f32 %v1168, %v1400
      %v1476 = vadd.f32 %v1169, %v1402
      %v1477 = vadd.f32 %v1170, %v1404
      %v1478 = vadd.f32 %v1171, %v1406
      %v1479 = vadd.f32 %v1172, %v1408
      %v1480 = vadd.f32 %v1173, %v1410
      %v1481 = vadd.f32 %v1174, %v1412
      %v1482 = vadd.f32 %v1175, %v1414
      %v1483 = vld [vmem:[%s2] sm:$0xff]
      %v1484 = vld [vmem:[%s2 + $0x8] sm:$0xff]
      %v1485 = vld [vmem:[%s2 + $0x10] sm:$0xff]
      %v1486 = vld [vmem:[%s2 + $0x18] sm:$0xff]
      %v1487 = vld [vmem:[%s2 + $0x20] sm:$0xff]
      %v1488 = vld [vmem:[%s2 + $0x28] sm:$0xff]
      %v1489 = vld [vmem:[%s2 + $0x30] sm:$0xff]
      %v1490 = vld [vmem:[%s2 + $0x38] sm:$0xff]
      %v1491 = vld [vmem:[%s2 + $0x40] sm:$0xff]
      %v1492 = vld [vmem:[%s2 + $0x48] sm:$0xff]
      %v1493 = vld [vmem:[%s2 + $0x50] sm:$0xff]
      %v1494 = vld [vmem:[%s2 + $0x58] sm:$0xff]
      %v1495 = vld [vmem:[%s2 + $0x60] sm:$0xff]
      %v1496 = vld [vmem:[%s2 + $0x68] sm:$0xff]
      %v1497 = vld [vmem:[%s2 + $0x70] sm:$0xff]
      %v1498 = vld [vmem:[%s2 + $0x78] sm:$0xff]
      %v1499 = vld [vmem:[%s2 + $0x80] sm:$0xff]
      %v1500 = vld [vmem:[%s2 + $0x88] sm:$0xff]
      %v1501 = vld [vmem:[%s2 + $0x90] sm:$0xff]
      %v1502 = vld [vmem:[%s2 + $0x98] sm:$0xff]
      %v1503 = vld [vmem:[%s2 + $0xa0] sm:$0xff]
      %v1504 = vld [vmem:[%s2 + $0xa8] sm:$0xff]
      %v1505 = vld [vmem:[%s2 + $0xb0] sm:$0xff]
      %v1506 = vld [vmem:[%s2 + $0xb8] sm:$0xff]
      %v1507 = vld [vmem:[%s2 + $0xc0] sm:$0xff]
      %v1508 = vld [vmem:[%s2 + $0xc8] sm:$0xff]
      %v1509 = vld [vmem:[%s2 + $0xd0] sm:$0xff]
      %v1510 = vld [vmem:[%s2 + $0xd8] sm:$0xff]
      %v1511 = vld [vmem:[%s2 + $0xe0] sm:$0xff]
      %v1512 = vld [vmem:[%s2 + $0xe8] sm:$0xff]
      %v1513 = vld [vmem:[%s2 + $0xf0] sm:$0xff]
      %v1514 = vld [vmem:[%s2 + $0xf8] sm:$0xff]
      %v1515 = vld [vmem:[%s2 + $0x100] sm:$0xff]
      %v1516 = vld [vmem:[%s2 + $0x108] sm:$0xff]
      %1518 = vset.pattern.permute.xlu0 0
      %1519 = vperm.xlu0 %1518, %v1483
      %v1520 = vpop.permute.xlu0 %1519
      %1523 = vset.pattern.permute.xlu0 0
      %1524 = vperm.xlu0 %1523, %v1484
      %v1525 = vpop.permute.xlu0 %1524
      %1528 = vset.pattern.permute.xlu0 0
      %1529 = vperm.xlu0 %1528, %v1485
      %v1530 = vpop.permute.xlu0 %1529
      %1533 = vset.pattern.permute.xlu0 0
      %1534 = vperm.xlu0 %1533, %v1486
      %v1535 = vpop.permute.xlu0 %1534
      %1538 = vset.pattern.permute.xlu0 0
      %1539 = vperm.xlu0 %1538, %v1487
      %v1540 = vpop.permute.xlu0 %1539
      %1543 = vset.pattern.permute.xlu0 0
      %1544 = vperm.xlu0 %1543, %v1488
      %v1545 = vpop.permute.xlu0 %1544
      %1548 = vset.pattern.permute.xlu0 0
      %1549 = vperm.xlu0 %1548, %v1489
      %v1550 = vpop.permute.xlu0 %1549
      %1553 = vset.pattern.permute.xlu0 0
      %1554 = vperm.xlu0 %1553, %v1490
      %v1555 = vpop.permute.xlu0 %1554
      %1558 = vset.pattern.permute.xlu0 0
      %1559 = vperm.xlu0 %1558, %v1491
      %v1560 = vpop.permute.xlu0 %1559
      %1563 = vset.pattern.permute.xlu0 0
      %1564 = vperm.xlu0 %1563, %v1492
      %v1565 = vpop.permute.xlu0 %1564
      %1568 = vset.pattern.permute.xlu0 0
      %1569 = vperm.xlu0 %1568, %v1493
      %v1570 = vpop.permute.xlu0 %1569
      %1573 = vset.pattern.permute.xlu0 0
      %1574 = vperm.xlu0 %1573, %v1494
      %v1575 = vpop.permute.xlu0 %1574
      %1578 = vset.pattern.permute.xlu0 0
      %1579 = vperm.xlu0 %1578, %v1495
      %v1580 = vpop.permute.xlu0 %1579
      %1583 = vset.pattern.permute.xlu0 0
      %1584 = vperm.xlu0 %1583, %v1496
      %v1585 = vpop.permute.xlu0 %1584
      %1588 = vset.pattern.permute.xlu0 0
      %1589 = vperm.xlu0 %1588, %v1497
      %v1590 = vpop.permute.xlu0 %1589
      %1593 = vset.pattern.permute.xlu0 0
      %1594 = vperm.xlu0 %1593, %v1498
      %v1595 = vpop.permute.xlu0 %1594
      %1598 = vset.pattern.permute.xlu0 0
      %1599 = vperm.xlu0 %1598, %v1499
      %v1600 = vpop.permute.xlu0 %1599
      %1603 = vset.pattern.permute.xlu0 0
      %1604 = vperm.xlu0 %1603, %v1500
      %v1605 = vpop.permute.xlu0 %1604
      %1608 = vset.pattern.permute.xlu0 0
      %1609 = vperm.xlu0 %1608, %v1501
      %v1610 = vpop.permute.xlu0 %1609
      %1613 = vset.pattern.permute.xlu0 0
      %1614 = vperm.xlu0 %1613, %v1502
      %v1615 = vpop.permute.xlu0 %1614
      %1618 = vset.pattern.permute.xlu0 0
      %1619 = vperm.xlu0 %1618, %v1503
      %v1620 = vpop.permute.xlu0 %1619
      %1623 = vset.pattern.permute.xlu0 0
      %1624 = vperm.xlu0 %1623, %v1504
      %v1625 = vpop.permute.xlu0 %1624
      %1628 = vset.pattern.permute.xlu0 0
      %1629 = vperm.xlu0 %1628, %v1505
      %v1630 = vpop.permute.xlu0 %1629
      %1633 = vset.pattern.permute.xlu0 0
      %1634 = vperm.xlu0 %1633, %v1506
      %v1635 = vpop.permute.xlu0 %1634
      %1638 = vset.pattern.permute.xlu0 0
      %1639 = vperm.xlu0 %1638, %v1507
      %v1640 = vpop.permute.xlu0 %1639
      %1643 = vset.pattern.permute.xlu0 0
      %1644 = vperm.xlu0 %1643, %v1508
      %v1645 = vpop.permute.xlu0 %1644
      %1648 = vset.pattern.permute.xlu0 0
      %1649 = vperm.xlu0 %1648, %v1509
      %v1650 = vpop.permute.xlu0 %1649
      %1653 = vset.pattern.permute.xlu0 0
      %1654 = vperm.xlu0 %1653, %v1510
      %v1655 = vpop.permute.xlu0 %1654
      %1658 = vset.pattern.permute.xlu0 0
      %1659 = vperm.xlu0 %1658, %v1511
      %v1660 = vpop.permute.xlu0 %1659
      %1663 = vset.pattern.permute.xlu0 0
      %1664 = vperm.xlu0 %1663, %v1512
      %v1665 = vpop.permute.xlu0 %1664
      %1668 = vset.pattern.permute.xlu0 0
      %1669 = vperm.xlu0 %1668, %v1513
      %v1670 = vpop.permute.xlu0 %1669
      %1673 = vset.pattern.permute.xlu0 0
      %1674 = vperm.xlu0 %1673, %v1514
      %v1675 = vpop.permute.xlu0 %1674
      %1678 = vset.pattern.permute.xlu0 0
      %1679 = vperm.xlu0 %1678, %v1515
      %v1680 = vpop.permute.xlu0 %1679
      %1683 = vset.pattern.permute.xlu0 0
      %1684 = vperm.xlu0 %1683, %v1516
      %v1685 = vpop.permute.xlu0 %1684
      %v1687 = vmul.f32 %v1449, %v1520
      %v1688 = vmul.f32 %v1450, %v1525
      %v1689 = vmul.f32 %v1451, %v1530
      %v1690 = vmul.f32 %v1452, %v1535
      %v1691 = vmul.f32 %v1453, %v1540
      %v1692 = vmul.f32 %v1454, %v1545
      %v1693 = vmul.f32 %v1455, %v1550
      %v1694 = vmul.f32 %v1456, %v1555
      %v1695 = vmul.f32 %v1457, %v1560
      %v1696 = vmul.f32 %v1458, %v1565
      %v1697 = vmul.f32 %v1459, %v1570
      %v1698 = vmul.f32 %v1460, %v1575
      %v1699 = vmul.f32 %v1461, %v1580
      %v1700 = vmul.f32 %v1462, %v1585
      %v1701 = vmul.f32 %v1463, %v1590
      %v1702 = vmul.f32 %v1464, %v1595
      %v1703 = vmul.f32 %v1465, %v1600
      %v1704 = vmul.f32 %v1466, %v1605
      %v1705 = vmul.f32 %v1467, %v1610
      %v1706 = vmul.f32 %v1468, %v1615
      %v1707 = vmul.f32 %v1469, %v1620
      %v1708 = vmul.f32 %v1470, %v1625
      %v1709 = vmul.f32 %v1471, %v1630
      %v1710 = vmul.f32 %v1472, %v1635
      %v1711 = vmul.f32 %v1473, %v1640
      %v1712 = vmul.f32 %v1474, %v1645
      %v1713 = vmul.f32 %v1475, %v1650
      %v1714 = vmul.f32 %v1476, %v1655
      %v1715 = vmul.f32 %v1477, %v1660
      %v1716 = vmul.f32 %v1478, %v1665
      %v1717 = vmul.f32 %v1479, %v1670
      %v1718 = vmul.f32 %v1480, %v1675
      %v1719 = vmul.f32 %v1481, %v1680
      %v1720 = vmul.f32 %v1482, %v1685
      %vm1721 = vcmask 261120
      %v1722 = vsel %vm1721, %v1687, 0.0
      %v1723 = vsel %vm1721, %v1688, 0.0
      %v1724 = vadd.f32 %v1722, %v1723
      %v1725 = vsel %vm1721, %v1689, 0.0
      %v1726 = vadd.f32 %v1724, %v1725
      %v1727 = vsel %vm1721, %v1690, 0.0
      %v1728 = vadd.f32 %v1726, %v1727
      %v1729 = vsel %vm1721, %v1691, 0.0
      %v1730 = vadd.f32 %v1728, %v1729
      %v1731 = vsel %vm1721, %v1692, 0.0
      %v1732 = vadd.f32 %v1730, %v1731
      %v1733 = vsel %vm1721, %v1693, 0.0
      %v1734 = vadd.f32 %v1732, %v1733
      %v1735 = vsel %vm1721, %v1694, 0.0
      %v1736 = vadd.f32 %v1734, %v1735
      %v1737 = vsel %vm1721, %v1695, 0.0
      %v1738 = vadd.f32 %v1736, %v1737
      %v1739 = vsel %vm1721, %v1696, 0.0
      %v1740 = vadd.f32 %v1738, %v1739
      %v1741 = vsel %vm1721, %v1697, 0.0
      %v1742 = vadd.f32 %v1740, %v1741
      %v1743 = vsel %vm1721, %v1698, 0.0
      %v1744 = vadd.f32 %v1742, %v1743
      %v1745 = vsel %vm1721, %v1699, 0.0
      %v1746 = vadd.f32 %v1744, %v1745
      %v1747 = vsel %vm1721, %v1700, 0.0
      %v1748 = vadd.f32 %v1746, %v1747
      %v1749 = vsel %vm1721, %v1701, 0.0
      %v1750 = vadd.f32 %v1748, %v1749
      %v1751 = vsel %vm1721, %v1702, 0.0
      %v1752 = vadd.f32 %v1750, %v1751
      %v1753 = vsel %vm1721, %v1703, 0.0
      %v1754 = vadd.f32 %v1752, %v1753
      %v1755 = vsel %vm1721, %v1704, 0.0
      %v1756 = vadd.f32 %v1754, %v1755
      %v1757 = vsel %vm1721, %v1705, 0.0
      %v1758 = vadd.f32 %v1756, %v1757
      %v1759 = vsel %vm1721, %v1706, 0.0
      %v1760 = vadd.f32 %v1758, %v1759
      %v1761 = vsel %vm1721, %v1707, 0.0
      %v1762 = vadd.f32 %v1760, %v1761
      %v1763 = vsel %vm1721, %v1708, 0.0
      %v1764 = vadd.f32 %v1762, %v1763
      %v1765 = vsel %vm1721, %v1709, 0.0
      %v1766 = vadd.f32 %v1764, %v1765
      %v1767 = vsel %vm1721, %v1710, 0.0
      %v1768 = vadd.f32 %v1766, %v1767
      %v1769 = vsel %vm1721, %v1711, 0.0
      %v1770 = vadd.f32 %v1768, %v1769
      %v1771 = vsel %vm1721, %v1712, 0.0
      %v1772 = vadd.f32 %v1770, %v1771
      %v1773 = vsel %vm1721, %v1713, 0.0
      %v1774 = vadd.f32 %v1772, %v1773
      %v1775 = vsel %vm1721, %v1714, 0.0
      %v1776 = vadd.f32 %v1774, %v1775
      %v1777 = vsel %vm1721, %v1715, 0.0
      %v1778 = vadd.f32 %v1776, %v1777
      %v1779 = vsel %vm1721, %v1716, 0.0
      %v1780 = vadd.f32 %v1778, %v1779
      %v1781 = vsel %vm1721, %v1717, 0.0
      %v1782 = vadd.f32 %v1780, %v1781
      %v1783 = vsel %vm1721, %v1718, 0.0
      %v1784 = vadd.f32 %v1782, %v1783
      %v1785 = vsel %vm1721, %v1719, 0.0
      %v1786 = vadd.f32 %v1784, %v1785
      %v1787 = vsel %vm1721, %v1720, 0.0
      %v1788 = vadd.f32 %v1786, %v1787
      %v1789 = vrot.slane %v1788, 4
      %v1790 = vadd.f32 %v1788, %v1789
      %v1791 = vrot.slane %v1790, 2
      %v1792 = vadd.f32 %v1790, %v1791
      %v1793 = vrot.slane %v1792, 1
      %v1794 = vadd.f32 %v1792, %v1793
      %vm1795 = vcmask 253952
      %1796 = vst.msk [vmem:[%s238] sm:$0x1] %vm1795, %v1794
      %v1797 = vmul.f32 %v1687, %v1687
      %v1798 = vmul.f32 %v1688, %v1688
      %v1799 = vmul.f32 %v1689, %v1689
      %v1800 = vmul.f32 %v1690, %v1690
      %v1801 = vmul.f32 %v1691, %v1691
      %v1802 = vmul.f32 %v1692, %v1692
      %v1803 = vmul.f32 %v1693, %v1693
      %v1804 = vmul.f32 %v1694, %v1694
      %v1805 = vmul.f32 %v1695, %v1695
      %v1806 = vmul.f32 %v1696, %v1696
      %v1807 = vmul.f32 %v1697, %v1697
      %v1808 = vmul.f32 %v1698, %v1698
      %v1809 = vmul.f32 %v1699, %v1699
      %v1810 = vmul.f32 %v1700, %v1700
      %v1811 = vmul.f32 %v1701, %v1701
      %v1812 = vmul.f32 %v1702, %v1702
      %v1813 = vmul.f32 %v1703, %v1703
      %v1814 = vmul.f32 %v1704, %v1704
      %v1815 = vmul.f32 %v1705, %v1705
      %v1816 = vmul.f32 %v1706, %v1706
      %v1817 = vmul.f32 %v1707, %v1707
      %v1818 = vmul.f32 %v1708, %v1708
      %v1819 = vmul.f32 %v1709, %v1709
      %v1820 = vmul.f32 %v1710, %v1710
      %v1821 = vmul.f32 %v1711, %v1711
      %v1822 = vmul.f32 %v1712, %v1712
      %v1823 = vmul.f32 %v1713, %v1713
      %v1824 = vmul.f32 %v1714, %v1714
      %v1825 = vmul.f32 %v1715, %v1715
      %v1826 = vmul.f32 %v1716, %v1716
      %v1827 = vmul.f32 %v1717, %v1717
      %v1828 = vmul.f32 %v1718, %v1718
      %v1829 = vmul.f32 %v1719, %v1719
      %v1830 = vmul.f32 %v1720, %v1720
      %v1831 = vsel %vm1721, %v1797, 0.0
      %v1832 = vsel %vm1721, %v1798, 0.0
      %v1833 = vadd.f32 %v1831, %v1832
      %v1834 = vsel %vm1721, %v1799, 0.0
      %v1835 = vadd.f32 %v1833, %v1834
      %v1836 = vsel %vm1721, %v1800, 0.0
      %v1837 = vadd.f32 %v1835, %v1836
      %v1838 = vsel %vm1721, %v1801, 0.0
      %v1839 = vadd.f32 %v1837, %v1838
      %v1840 = vsel %vm1721, %v1802, 0.0
      %v1841 = vadd.f32 %v1839, %v1840
      %v1842 = vsel %vm1721, %v1803, 0.0
      %v1843 = vadd.f32 %v1841, %v1842
      %v1844 = vsel %vm1721, %v1804, 0.0
      %v1845 = vadd.f32 %v1843, %v1844
      %v1846 = vsel %vm1721, %v1805, 0.0
      %v1847 = vadd.f32 %v1845, %v1846
      %v1848 = vsel %vm1721, %v1806, 0.0
      %v1849 = vadd.f32 %v1847, %v1848
      %v1850 = vsel %vm1721, %v1807, 0.0
      %v1851 = vadd.f32 %v1849, %v1850
      %v1852 = vsel %vm1721, %v1808, 0.0
      %v1853 = vadd.f32 %v1851, %v1852
      %v1854 = vsel %vm1721, %v1809, 0.0
      %v1855 = vadd.f32 %v1853, %v1854
      %v1856 = vsel %vm1721, %v1810, 0.0
      %v1857 = vadd.f32 %v1855, %v1856
      %v1858 = vsel %vm1721, %v1811, 0.0
      %v1859 = vadd.f32 %v1857, %v1858
      %v1860 = vsel %vm1721, %v1812, 0.0
      %v1861 = vadd.f32 %v1859, %v1860
      %v1862 = vsel %vm1721, %v1813, 0.0
      %v1863 = vadd.f32 %v1861, %v1862
      %v1864 = vsel %vm1721, %v1814, 0.0
      %v1865 = vadd.f32 %v1863, %v1864
      %v1866 = vsel %vm1721, %v1815, 0.0
      %v1867 = vadd.f32 %v1865, %v1866
      %v1868 = vsel %vm1721, %v1816, 0.0
      %v1869 = vadd.f32 %v1867, %v1868
      %v1870 = vsel %vm1721, %v1817, 0.0
      %v1871 = vadd.f32 %v1869, %v1870
      %v1872 = vsel %vm1721, %v1818, 0.0
      %v1873 = vadd.f32 %v1871, %v1872
      %v1874 = vsel %vm1721, %v1819, 0.0
      %v1875 = vadd.f32 %v1873, %v1874
      %v1876 = vsel %vm1721, %v1820, 0.0
      %v1877 = vadd.f32 %v1875, %v1876
      %v1878 = vsel %vm1721, %v1821, 0.0
      %v1879 = vadd.f32 %v1877, %v1878
      %v1880 = vsel %vm1721, %v1822, 0.0
      %v1881 = vadd.f32 %v1879, %v1880
      %v1882 = vsel %vm1721, %v1823, 0.0
      %v1883 = vadd.f32 %v1881, %v1882
      %v1884 = vsel %vm1721, %v1824, 0.0
      %v1885 = vadd.f32 %v1883, %v1884
      %v1886 = vsel %vm1721, %v1825, 0.0
      %v1887 = vadd.f32 %v1885, %v1886
      %v1888 = vsel %vm1721, %v1826, 0.0
      %v1889 = vadd.f32 %v1887, %v1888
      %v1890 = vsel %vm1721, %v1827, 0.0
      %v1891 = vadd.f32 %v1889, %v1890
      %v1892 = vsel %vm1721, %v1828, 0.0
      %v1893 = vadd.f32 %v1891, %v1892
      %v1894 = vsel %vm1721, %v1829, 0.0
      %v1895 = vadd.f32 %v1893, %v1894
      %v1896 = vsel %vm1721, %v1830, 0.0
      %v1897 = vadd.f32 %v1895, %v1896
      %v1898 = vrot.slane %v1897, 4
      %v1899 = vadd.f32 %v1897, %v1898
      %v1900 = vrot.slane %v1899, 2
      %v1901 = vadd.f32 %v1899, %v1900
      %v1902 = vrot.slane %v1901, 1
      %v1903 = vadd.f32 %v1901, %v1902
      %1904 = vst.msk [vmem:[%s241] sm:$0x1] %vm1795, %v1903
      %1905 = vst.msk [vmem:[%s235] sm:$0xff] %vm1721, %v1449
      %1906 = vst.msk [vmem:[%s235 + $0x8] sm:$0xff] %vm1721, %v1450
      %1907 = vst.msk [vmem:[%s235 + $0x10] sm:$0xff] %vm1721, %v1451
      %1908 = vst.msk [vmem:[%s235 + $0x18] sm:$0xff] %vm1721, %v1452
      %1909 = vst.msk [vmem:[%s235 + $0x20] sm:$0xff] %vm1721, %v1453
      %1910 = vst.msk [vmem:[%s235 + $0x28] sm:$0xff] %vm1721, %v1454
      %1911 = vst.msk [vmem:[%s235 + $0x30] sm:$0xff] %vm1721, %v1455
      %1912 = vst.msk [vmem:[%s235 + $0x38] sm:$0xff] %vm1721, %v1456
      %1913 = vst.msk [vmem:[%s235 + $0x40] sm:$0xff] %vm1721, %v1457
      %1914 = vst.msk [vmem:[%s235 + $0x48] sm:$0xff] %vm1721, %v1458
      %1915 = vst.msk [vmem:[%s235 + $0x50] sm:$0xff] %vm1721, %v1459
      %1916 = vst.msk [vmem:[%s235 + $0x58] sm:$0xff] %vm1721, %v1460
      %1917 = vst.msk [vmem:[%s235 + $0x60] sm:$0xff] %vm1721, %v1461
      %1918 = vst.msk [vmem:[%s235 + $0x68] sm:$0xff] %vm1721, %v1462
      %1919 = vst.msk [vmem:[%s235 + $0x70] sm:$0xff] %vm1721, %v1463
      %1920 = vst.msk [vmem:[%s235 + $0x78] sm:$0xff] %vm1721, %v1464
      %1921 = vst.msk [vmem:[%s235 + $0x80] sm:$0xff] %vm1721, %v1465
      %1922 = vst.msk [vmem:[%s235 + $0x88] sm:$0xff] %vm1721, %v1466
      %1923 = vst.msk [vmem:[%s235 + $0x90] sm:$0xff] %vm1721, %v1467
      %1924 = vst.msk [vmem:[%s235 + $0x98] sm:$0xff] %vm1721, %v1468
      %1925 = vst.msk [vmem:[%s235 + $0xa0] sm:$0xff] %vm1721, %v1469
      %1926 = vst.msk [vmem:[%s235 + $0xa8] sm:$0xff] %vm1721, %v1470
      %1927 = vst.msk [vmem:[%s235 + $0xb0] sm:$0xff] %vm1721, %v1471
      %1928 = vst.msk [vmem:[%s235 + $0xb8] sm:$0xff] %vm1721, %v1472
      %1929 = vst.msk [vmem:[%s235 + $0xc0] sm:$0xff] %vm1721, %v1473
      %1930 = vst.msk [vmem:[%s235 + $0xc8] sm:$0xff] %vm1721, %v1474
      %1931 = vst.msk [vmem:[%s235 + $0xd0] sm:$0xff] %vm1721, %v1475
      %1932 = vst.msk [vmem:[%s235 + $0xd8] sm:$0xff] %vm1721, %v1476
      %1933 = vst.msk [vmem:[%s235 + $0xe0] sm:$0xff] %vm1721, %v1477
      %1934 = vst.msk [vmem:[%s235 + $0xe8] sm:$0xff] %vm1721, %v1478
      %1935 = vst.msk [vmem:[%s235 + $0xf0] sm:$0xff] %vm1721, %v1479
      %1936 = vst.msk [vmem:[%s235 + $0xf8] sm:$0xff] %vm1721, %v1480
      %1937 = vst.msk [vmem:[%s235 + $0x100] sm:$0xff] %vm1721, %v1481
      %1938 = vst.msk [vmem:[%s235 + $0x108] sm:$0xff] %vm1721, %v1482
      %p1939 = scmp.lt.s32.totalorder %s17, 1
      %s1940 = scalar_select %p1939, %s17, 1
      %s1941 = smul.addr %s1940, 34
      %s1942 = smul.addr %s1941, 8
      %s1943 = scalar_lea.vmem %s3, %s1942
      %p1944 = scmp.lt.s32.totalorder %s17, 1
      %s1945 = scalar_select %p1944, %s17, 1
      %s1946 = scalar_lea.vmem %s4, %s1945
      %p1947 = scmp.lt.s32.totalorder %s17, 1
      %s1948 = scalar_select %p1947, %s17, 1
      %s1949 = scalar_lea.vmem %s5, %s1948
      // Predicated region
      $region33: #{_forward_impl.9} parent=31 // pred_check
        %p1950 = pneg %p103
      $region34: #{_forward_impl.9} parent=31 // pred_check_branch
        %1952 = sbr.rel (%p1950) target = $region36
      $region35: #{_forward_impl.9} parent=31 // pred_region
        _
      $region36: #{_forward_impl.9} parent=31 // pred_fallthru
        _
      // Predicated region
      $region37: #{_forward_impl.9} parent=31 // pred_check
        %p1953 = pneg %p129
      $region38: #{_forward_impl.9} parent=31 // pred_check_branch
        %1955 = sbr.rel (%p1953) target = $region40
      $region39: #{_forward_impl.9} parent=31 // pred_region
        _
      $region40: #{_forward_impl.9} parent=31 // pred_fallthru
        _
      // Predicated region
      $region41: #{_forward_impl.9} parent=31 // pred_check
        %p1956 = pneg %p155
      $region42: #{_forward_impl.9} parent=31 // pred_check_branch
        %1958 = sbr.rel (%p1956) target = $region44
      $region43: #{_forward_impl.9} parent=31 // pred_region
        _
      $region44: #{_forward_impl.9} parent=31 // pred_fallthru
        _
    $region32: #{_forward_impl.9} parent=5 // pred_fallthru
      _
    %p1959 = scmp.le.s32.totalorder 2, %s12
    // Predicated region
    $region45: #{_forward_impl.9} parent=5 // pred_check
      %p1960 = pneg %p1959
    $region46: #{_forward_impl.9} parent=5 // pred_check_branch
      %1962 = sbr.rel (%p1960) target = $region48
    $region47: #{_forward_impl.9} parent=5 // pred_region
      %s1963 = ssub.s32 %s12, 2
      // Predicated region
      $region49: #{_forward_impl.9} parent=47 // pred_check
        %p1964 = pneg %p109
      $region50: #{_forward_impl.9} parent=47 // pred_check_branch
        %1966 = sbr.rel (%p1964) target = $region52
      $region51: #{_forward_impl.9} parent=47 // pred_region
        %p1967 = scmp.lt.s32.totalorder %s18, 1
        %s1968 = scalar_select %p1967, %s18, 1
        %s1969 = smul.addr %s1968, 34
        %s1970 = smul.addr %s1969, 8
        %s1971 = scalar_lea.vmem %s3, %s1970
      $region52: #{_forward_impl.9} parent=47 // pred_fallthru
        _
      // Predicated region
      $region53: #{_forward_impl.9} parent=47 // pred_check
        %p1972 = pneg %p135
      $region54: #{_forward_impl.9} parent=47 // pred_check_branch
        %1974 = sbr.rel (%p1972) target = $region56
      $region55: #{_forward_impl.9} parent=47 // pred_region
        %p1975 = scmp.lt.s32.totalorder %s18, 1
        %s1976 = scalar_select %p1975, %s18, 1
        %s1977 = scalar_lea.vmem %s4, %s1976
      $region56: #{_forward_impl.9} parent=47 // pred_fallthru
        _
      // Predicated region
      $region57: #{_forward_impl.9} parent=47 // pred_check
        %p1978 = pneg %p161
      $region58: #{_forward_impl.9} parent=47 // pred_check_branch
        %1980 = sbr.rel (%p1978) target = $region60
      $region59: #{_forward_impl.9} parent=47 // pred_region
        %p1981 = scmp.lt.s32.totalorder %s18, 1
        %s1982 = scalar_select %p1981, %s18, 1
        %s1983 = scalar_lea.vmem %s5, %s1982
      $region60: #{_forward_impl.9} parent=47 // pred_fallthru
        _
    $region48: #{_forward_impl.9} parent=5 // pred_fallthru
      _
  $region6: #{_forward_impl.9} parent=0 // loop_footer
    %s16 = sadd.s32 1, %s12
  $region7: #{_forward_impl.9} parent=0 // loop_footer_branch
    %11 = sbr.rel target = $region3
  $region8: #{_forward_impl.9} parent=0 // loop_exit
    _

// kernel: _forward_impl.11
$region0: #{_forward_impl.11}
  #allocation0 [shape = 'u32[]', space=smem, size = 0x4, offset = 0x4, fixed_abs, tag = 'smem constant byte address 0x4 - core index']
  #allocation1 [shape = 'u32[72,128]{1,0:T(1,128)}', space=vmem, size = 0x9000, scoped, tag = 'internal scratch']
  %s0 = inlined_call_operand.vmem [shape: bf16[2,88,128], index: 0, kind: input, shape index: {}]
  %s1 = inlined_call_operand.vmem [shape: bf16[4,128,64], index: 1, kind: input, shape index: {}]
  %s2 = inlined_call_operand.vmem [shape: f32[72,1], index: 2, kind: input, shape index: {}]
  %s3 = inlined_call_operand.vmem [shape: f32[2,72,64], index: 3, kind: output, shape index: {0}]
  %s4 = inlined_call_operand.vmem [shape: f32[2,1,64], index: 4, kind: output, shape index: {1}]
  %s5 = inlined_call_operand.vmem [shape: f32[2,1,64], index: 5, kind: output, shape index: {2}]
  %6 = xla_tuple %s3, %s4, %s5
  %s7 = sld [smem:[#allocation0]]
  $region61: #{_forward_impl.11} parent=0
    _
  %s9 = ssub.s32 1, %s7
  %s10 = scalar_select 0, %s9, %s7
  loop: start=0, step=1, limit=4
  $region2: #{_forward_impl.11} parent=0 // loop_pre_header
    _
  $region3: #{_forward_impl.11} parent=0 // loop_header
    %s12 = sphi 0, %s16
    %p13 = scmp.ge.s32.totalorder %s12, 4
    %s22 = sphi 0, %s24
    %s25 = sphi 0, %s22
    %s26 = sphi 0, %s25
    %s42 = sphi 0, %s26
    %s46 = sphi 0, %s46
    %s48 = sphi 0, %s46
    %s49 = sphi 0, %s48
    %s63 = sphi 0, %s49
    %s67 = sphi 0, %s67
    %s69 = sphi 0, %s67
    %s70 = sphi 0, %s69
    %s84 = sphi 0, %s70
    %s90 = sphi 0, %s92
    %s93 = sphi 0, %s90
    %s94 = sphi 0, %s93
    %s110 = sphi 0, %s94
    %s116 = sphi 0, %s118
    %s119 = sphi 0, %s116
    %s120 = sphi 0, %s119
    %s136 = sphi 0, %s120
    %s142 = sphi 0, %s144
    %s145 = sphi 0, %s142
    %s146 = sphi 0, %s145
    %s162 = sphi 0, %s146
  $region4: #{_forward_impl.11} parent=0 // loop_header_branch
    %15 = sbr.rel (%p13) target = $region8
  $region5: #{_forward_impl.11} parent=0 // loop_body
    %s17 = ssub.s32 %s12, 1
    %s18 = ssub.s32 %s12, 2
    %s19 = sadd.s32 %s12, 1
    %s20 = ssub.s32 %s12, %s19
    %p21 = scmp.eq.s32.totalorder %s20, 0
    %s23 = sadd.s32 %s22, 1
    %s24 = scalar_select %p21, %s22, %s23
    %p27 = pneg %p21
    %p28 = scmp.eq.s32.totalorder %s12, 1
    %p29 = por %p27, %p28
    %p30 = scmp.ne.s32.totalorder %s22, %s25
    %p31 = scmp.eq.s32.totalorder %s12, 0
    %p32 = por %p30, %p31
    %p33 = scmp.ne.s32.totalorder %s22, %s25
    %p34 = scmp.eq.s32.totalorder %s17, 1
    %p35 = por %p33, %p34
    %p36 = scmp.ne.s32.totalorder %s25, %s26
    %p37 = scmp.eq.s32.totalorder %s17, 0
    %p38 = por %p36, %p37
    %p39 = scmp.ne.s32.totalorder %s25, %s26
    %p40 = scmp.eq.s32.totalorder %s18, 1
    %p41 = por %p39, %p40
    %p43 = scmp.ne.s32.totalorder %s26, %s42
    %p44 = scmp.eq.s32.totalorder %s18, 0
    %p45 = por %p43, %p44
    %s47 = sadd.s32 %s46, 1
    %p50 = scmp.eq.s32.totalorder %s12, 1
    %p51 = scmp.ne.s32.totalorder %s46, %s48
    %p52 = scmp.eq.s32.totalorder %s12, 0
    %p53 = por %p51, %p52
    %p54 = scmp.ne.s32.totalorder %s46, %s48
    %p55 = scmp.eq.s32.totalorder %s17, 1
    %p56 = por %p54, %p55
    %p57 = scmp.ne.s32.totalorder %s48, %s49
    %p58 = scmp.eq.s32.totalorder %s17, 0
    %p59 = por %p57, %p58
    %p60 = scmp.ne.s32.totalorder %s48, %s49
    %p61 = scmp.eq.s32.totalorder %s18, 1
    %p62 = por %p60, %p61
    %p64 = scmp.ne.s32.totalorder %s49, %s63
    %p65 = scmp.eq.s32.totalorder %s18, 0
    %p66 = por %p64, %p65
    %s68 = sadd.s32 %s67, 1
    %p71 = scmp.eq.s32.totalorder %s12, 1
    %p72 = scmp.ne.s32.totalorder %s67, %s69
    %p73 = scmp.eq.s32.totalorder %s12, 0
    %p74 = por %p72, %p73
    %p75 = scmp.ne.s32.totalorder %s67, %s69
    %p76 = scmp.eq.s32.totalorder %s17, 1
    %p77 = por %p75, %p76
    %p78 = scmp.ne.s32.totalorder %s69, %s70
    %p79 = scmp.eq.s32.totalorder %s17, 0
    %p80 = por %p78, %p79
    %p81 = scmp.ne.s32.totalorder %s69, %s70
    %p82 = scmp.eq.s32.totalorder %s18, 1
    %p83 = por %p81, %p82
    %p85 = scmp.ne.s32.totalorder %s70, %s84
    %p86 = scmp.eq.s32.totalorder %s18, 0
    %p87 = por %p85, %p86
    %s88 = ssub.s32 %s12, %s19
    %p89 = scmp.eq.s32.totalorder %s88, 0
    %s91 = sadd.s32 %s90, 1
    %s92 = scalar_select %p89, %s90, %s91
    %p95 = pneg %p89
    %p96 = scmp.eq.s32.totalorder %s12, 1
    %p97 = por %p95, %p96
    %p98 = scmp.ne.s32.totalorder %s90, %s93
    %p99 = scmp.eq.s32.totalorder %s12, 0
    %p100 = por %p98, %p99
    %p101 = scmp.ne.s32.totalorder %s90, %s93
    %p102 = scmp.eq.s32.totalorder %s17, 1
    %p103 = por %p101, %p102
    %p104 = scmp.ne.s32.totalorder %s93, %s94
    %p105 = scmp.eq.s32.totalorder %s17, 0
    %p106 = por %p104, %p105
    %p107 = scmp.ne.s32.totalorder %s93, %s94
    %p108 = scmp.eq.s32.totalorder %s18, 1
    %p109 = por %p107, %p108
    %p111 = scmp.ne.s32.totalorder %s94, %s110
    %p112 = scmp.eq.s32.totalorder %s18, 0
    %p113 = por %p111, %p112
    %s114 = ssub.s32 %s12, %s19
    %p115 = scmp.eq.s32.totalorder %s114, 0
    %s117 = sadd.s32 %s116, 1
    %s118 = scalar_select %p115, %s116, %s117
    %p121 = pneg %p115
    %p122 = scmp.eq.s32.totalorder %s12, 1
    %p123 = por %p121, %p122
    %p124 = scmp.ne.s32.totalorder %s116, %s119
    %p125 = scmp.eq.s32.totalorder %s12, 0
    %p126 = por %p124, %p125
    %p127 = scmp.ne.s32.totalorder %s116, %s119
    %p128 = scmp.eq.s32.totalorder %s17, 1
    %p129 = por %p127, %p128
    %p130 = scmp.ne.s32.totalorder %s119, %s120
    %p131 = scmp.eq.s32.totalorder %s17, 0
    %p132 = por %p130, %p131
    %p133 = scmp.ne.s32.totalorder %s119, %s120
    %p134 = scmp.eq.s32.totalorder %s18, 1
    %p135 = por %p133, %p134
    %p137 = scmp.ne.s32.totalorder %s120, %s136
    %p138 = scmp.eq.s32.totalorder %s18, 0
    %p139 = por %p137, %p138
    %s140 = ssub.s32 %s12, %s19
    %p141 = scmp.eq.s32.totalorder %s140, 0
    %s143 = sadd.s32 %s142, 1
    %s144 = scalar_select %p141, %s142, %s143
    %p147 = pneg %p141
    %p148 = scmp.eq.s32.totalorder %s12, 1
    %p149 = por %p147, %p148
    %p150 = scmp.ne.s32.totalorder %s142, %s145
    %p151 = scmp.eq.s32.totalorder %s12, 0
    %p152 = por %p150, %p151
    %p153 = scmp.ne.s32.totalorder %s142, %s145
    %p154 = scmp.eq.s32.totalorder %s17, 1
    %p155 = por %p153, %p154
    %p156 = scmp.ne.s32.totalorder %s145, %s146
    %p157 = scmp.eq.s32.totalorder %s17, 0
    %p158 = por %p156, %p157
    %p159 = scmp.ne.s32.totalorder %s145, %s146
    %p160 = scmp.eq.s32.totalorder %s18, 1
    %p161 = por %p159, %p160
    %p163 = scmp.ne.s32.totalorder %s146, %s162
    %p164 = scmp.eq.s32.totalorder %s18, 0
    %p165 = por %p163, %p164
    %p166 = scmp.le.s32.totalorder 1, %s12
    %p167 = scmp.lt.s32.totalorder %s12, 3
    %p168 = pnand %p166, %p167
    %p169 = pneg %p168
    // Predicated region
    $region9: #{_forward_impl.11} parent=5 // pred_check
      _
    $region10: #{_forward_impl.11} parent=5 // pred_check_branch
      %171 = sbr.rel (%p168) target = $region12
    $region11: #{_forward_impl.11} parent=5 // pred_region
      %s172 = ssub.s32 %s12, 1
      // Predicated region
      $region13: #{_forward_impl.11} parent=11 // pred_check
        %p173 = pneg %p59
      $region14: #{_forward_impl.11} parent=11 // pred_check_branch
        %175 = sbr.rel (%p173) target = $region16
      $region15: #{_forward_impl.11} parent=11 // pred_region
        _
      $region16: #{_forward_impl.11} parent=11 // pred_fallthru
        _
      // Predicated region
      $region17: #{_forward_impl.11} parent=11 // pred_check
        %p176 = pneg %p80
      $region18: #{_forward_impl.11} parent=11 // pred_check_branch
        %178 = sbr.rel (%p176) target = $region20
      $region19: #{_forward_impl.11} parent=11 // pred_region
        _
      $region20: #{_forward_impl.11} parent=11 // pred_fallthru
        _
    $region12: #{_forward_impl.11} parent=5 // pred_fallthru
      _
    %p179 = scmp.lt.s32.totalorder %s12, 2
    // Predicated region
    $region21: #{_forward_impl.11} parent=5 // pred_check
      %p180 = pneg %p179
    $region22: #{_forward_impl.11} parent=5 // pred_check_branch
      %182 = sbr.rel (%p180) target = $region24
    $region23: #{_forward_impl.11} parent=5 // pred_region
      // Predicated region
      $region25: #{_forward_impl.11} parent=23 // pred_check
        %p183 = pneg %p32
      $region26: #{_forward_impl.11} parent=23 // pred_check_branch
        %185 = sbr.rel (%p183) target = $region28
      $region27: #{_forward_impl.11} parent=23 // pred_region
        %p186 = scmp.lt.s32.totalorder %s12, 1
        %s187 = scalar_select %p186, %s12, 1
        %s188 = smul.addr %s187, 11
        %s189 = smul.addr %s188, 4
        %s190 = scalar_lea.vmem %s0, %s189
      $region28: #{_forward_impl.11} parent=23 // pred_fallthru
        _
    $region24: #{_forward_impl.11} parent=5 // pred_fallthru
      _
    %p191 = scmp.le.s32.totalorder 1, %s12
    %p192 = scmp.lt.s32.totalorder %s12, 3
    %p193 = pnand %p191, %p192
    %p194 = pneg %p193
    // Predicated region
    $region29: #{_forward_impl.11} parent=5 // pred_check
      _
    $region30: #{_forward_impl.11} parent=5 // pred_check_branch
      %196 = sbr.rel (%p193) target = $region32
    $region31: #{_forward_impl.11} parent=5 // pred_region
      %s197 = ssub.s32 %s12, 1
      %p198 = scmp.lt.s32.totalorder %s17, 1
      %s199 = scalar_select %p198, %s17, 1
      %s200 = smul.addr %s199, 11
      %s201 = smul.addr %s200, 4
      %s202 = scalar_lea.vmem %s0, %s201
      %p203 = pneg %p38
      %p204 = pneg %p35
      %p205 = pneg %p59
      %p206 = pneg %p56
      %p207 = pneg %p80
      %p208 = pneg %p77
      %p209 = pneg %p106
      %p210 = pneg %p103
      %p211 = scmp.lt.s32.totalorder %s17, 1
      %s212 = scalar_select %p211, %s17, 1
      %s213 = smul.addr %s212, 9
      %s214 = smul.addr %s213, 8
      %s215 = scalar_lea.vmem %s3, %s214
      %p216 = pneg %p132
      %p217 = pneg %p129
      %p218 = scmp.lt.s32.totalorder %s17, 1
      %s219 = scalar_select %p218, %s17, 1
      %s220 = scalar_lea.vmem %s4, %s219
      %p221 = pneg %p158
      %p222 = pneg %p155
      %p223 = scmp.lt.s32.totalorder %s17, 1
      %s224 = scalar_select %p223, %s17, 1
      %s225 = scalar_lea.vmem %s5, %s224
      %p226 = scmp.lt.s32.totalorder %s17, 1
      %s227 = scalar_select %p226, %s17, 1
      %s228 = smul.addr %s227, 11
      %s229 = smul.addr %s228, 4
      %s230 = scalar_lea.vmem %s0, %s229
      %p231 = scmp.lt.s32.totalorder %s17, 1
      %s232 = scalar_select %p231, %s17, 1
      %s233 = smul.addr %s232, 9
      %s234 = smul.addr %s233, 8
      %s235 = scalar_lea.vmem %s3, %s234
      %p236 = scmp.lt.s32.totalorder %s17, 1
      %s237 = scalar_select %p236, %s17, 1
      %s238 = scalar_lea.vmem %s4, %s237
      %p239 = scmp.lt.s32.totalorder %s17, 1
      %s240 = scalar_select %p239, %s17, 1
      %s241 = scalar_lea.vmem %s5, %s240
      %v242 = vld [vmem:[%s230] sm:$0xf]
      %v243 = vld [vmem:[%s230 + $0x4] sm:$0xf]
      %v244 = vld [vmem:[%s230 + $0x8] sm:$0xf]
      %v245 = vld [vmem:[%s230 + $0xc] sm:$0xf]
      %v246 = vld [vmem:[%s230 + $0x10] sm:$0xf]
      %v247 = vld [vmem:[%s230 + $0x14] sm:$0xf]
      %v248 = vld [vmem:[%s230 + $0x18] sm:$0xf]
      %v249 = vld [vmem:[%s230 + $0x1c] sm:$0xf]
      %v250 = vld [vmem:[%s230 + $0x20] sm:$0xf]
      %v251 = vld [vmem:[%s230 + $0x24] sm:$0xf]
      %v252 = vld [vmem:[%s230 + $0x28] sm:$0xf]
      %v253 = vld [vmem:[%s1] sm:$0xf]
      %v254 = vld [vmem:[%s1 + $0x4] sm:$0xf]
      %v255 = vld [vmem:[%s1 + $0x8] sm:$0xf]
      %v256 = vld [vmem:[%s1 + $0xc] sm:$0xf]
      %v257 = vld [vmem:[%s1 + $0x10] sm:$0xf]
      %v258 = vld [vmem:[%s1 + $0x14] sm:$0xf]
      %v259 = vld [vmem:[%s1 + $0x18] sm:$0xf]
      %v260 = vld [vmem:[%s1 + $0x1c] sm:$0xf]
      %v261 = vld [vmem:[%s1 + $0x20] sm:$0xf]
      %v262 = vld [vmem:[%s1 + $0x24] sm:$0xf]
      %v263 = vld [vmem:[%s1 + $0x28] sm:$0xf]
      %v264 = vld [vmem:[%s1 + $0x2c] sm:$0xf]
      %v265 = vld [vmem:[%s1 + $0x30] sm:$0xf]
      %v266 = vld [vmem:[%s1 + $0x34] sm:$0xf]
      %v267 = vld [vmem:[%s1 + $0x38] sm:$0xf]
      %v268 = vld [vmem:[%s1 + $0x3c] sm:$0xf]
      %v280 = vunpack.c.l.b16 %v242
      %v281 = vunpack.c.l.b16 %v243
      %v282 = vunpack.c.l.b16 %v244
      %v283 = vunpack.c.l.b16 %v245
      %v284 = vunpack.c.l.b16 %v246
      %v285 = vunpack.c.l.b16 %v247
      %v286 = vunpack.c.l.b16 %v248
      %v287 = vunpack.c.l.b16 %v249
      %v288 = vunpack.c.l.b16 %v250
      %v289 = vunpack.c.l.b16 %v251
      %v290 = vunpack.c.l.b16 %v252
      %v291 = vpack.c.b16 %v281, %v280
      %v292 = vpack.c.b16 %v283, %v282
      %v293 = vpack.c.b16 %v285, %v284
      %v294 = vpack.c.b16 %v287, %v286
      %v295 = vpack.c.b16 %v289, %v288
      %v296 = vpack.c.b16 %v290, %v290
      %v319 = vunpack.c.l.b16 %v253
      %v320 = vunpack.c.l.b16 %v254
      %v321 = vunpack.c.l.b16 %v255
      %v322 = vunpack.c.l.b16 %v256
      %v323 = vunpack.c.l.b16 %v257
      %v324 = vunpack.c.l.b16 %v258
      %v325 = vunpack.c.l.b16 %v259
      %v326 = vunpack.c.l.b16 %v260
      %v327 = vunpack.c.l.b16 %v261
      %v328 = vunpack.c.l.b16 %v262
      %v329 = vunpack.c.l.b16 %v263
      %v330 = vunpack.c.l.b16 %v264
      %v331 = vunpack.c.l.b16 %v265
      %v332 = vunpack.c.l.b16 %v266
      %v333 = vunpack.c.l.b16 %v267
      %v334 = vunpack.c.l.b16 %v268
      %v335 = vpack.c.b16 %v320, %v319
      %v336 = vpack.c.b16 %v322, %v321
      %v337 = vpack.c.b16 %v324, %v323
      %v338 = vpack.c.b16 %v326, %v325
      %v339 = vpack.c.b16 %v328, %v327
      %v340 = vpack.c.b16 %v330, %v329
      %v341 = vpack.c.b16 %v332, %v331
      %v342 = vpack.c.b16 %v334, %v333
      %351 = vmatpush.bf16.msra.mxu0 %v342
      %352 = vmatpush.bf16.msra.mxu0 %v341
      %353 = vmatpush.bf16.msra.mxu0 %v340
      %354 = vmatpush.bf16.msra.mxu0 %v339
      %355 = vmatpush.bf16.msra.mxu0 %v338
      %356 = vmatpush.bf16.msra.mxu0 %v337
      %357 = vmatpush.bf16.msra.mxu0 %v336
      %358 = vmatpush.bf16.msra.mxu0 %v335
      %359 = vmatmul.bf16.gmra.mxu0 %v291
      %v360 = vpop.f32.mrf.mxu0
      %v361 = vadd.f32 0.0, %v360
      %v362 = vpop.f32.mrf.mxu0
      %v363 = vadd.f32 0.0, %v362
      %364 = vmatmul.bf16.gmra.mxu0 %v292
      %v365 = vpop.f32.mrf.mxu0
      %v366 = vadd.f32 0.0, %v365
      %v367 = vpop.f32.mrf.mxu0
      %v368 = vadd.f32 0.0, %v367
      %369 = vmatmul.bf16.gmra.mxu0 %v293
      %v370 = vpop.f32.mrf.mxu0
      %v371 = vadd.f32 0.0, %v370
      %v372 = vpop.f32.mrf.mxu0
      %v373 = vadd.f32 0.0, %v372
      %374 = vmatmul.bf16.gmra.mxu0 %v294
      %v375 = vpop.f32.mrf.mxu0
      %v376 = vadd.f32 0.0, %v375
      %v377 = vpop.f32.mrf.mxu0
      %v378 = vadd.f32 0.0, %v377
      %379 = vmatmul.bf16.gmra.mxu0 %v295
      %v380 = vpop.f32.mrf.mxu0
      %v381 = vadd.f32 0.0, %v380
      %v382 = vpop.f32.mrf.mxu0
      %383 = vmatmul.bf16.gmra.mxu0 %v296
      %v384 = vpop.f32.mrf.mxu0
      %v385 = vpop.f32.mrf.mxu0
      %386 = vdwg.mxu0
      %s387 = scalar_lea.vmem %s1, 64
      %v388 = vld [vmem:[%s387] sm:$0xf]
      %v389 = vld [vmem:[%s387 + $0x4] sm:$0xf]
      %v390 = vld [vmem:[%s387 + $0x8] sm:$0xf]
      %v391 = vld [vmem:[%s387 + $0xc] sm:$0xf]
      %v392 = vld [vmem:[%s387 + $0x10] sm:$0xf]
      %v393 = vld [vmem:[%s387 + $0x14] sm:$0xf]
      %v394 = vld [vmem:[%s387 + $0x18] sm:$0xf]
      %v395 = vld [vmem:[%s387 + $0x1c] sm:$0xf]
      %v396 = vld [vmem:[%s387 + $0x20] sm:$0xf]
      %v397 = vld [vmem:[%s387 + $0x24] sm:$0xf]
      %v398 = vld [vmem:[%s387 + $0x28] sm:$0xf]
      %v399 = vld [vmem:[%s387 + $0x2c] sm:$0xf]
      %v400 = vld [vmem:[%s387 + $0x30] sm:$0xf]
      %v401 = vld [vmem:[%s387 + $0x34] sm:$0xf]
      %v402 = vld [vmem:[%s387 + $0x38] sm:$0xf]
      %v403 = vld [vmem:[%s387 + $0x3c] sm:$0xf]
      %v420 = vunpack.c.l.b16 %v388
      %v421 = vunpack.c.l.b16 %v389
      %v422 = vunpack.c.l.b16 %v390
      %v423 = vunpack.c.l.b16 %v391
      %v424 = vunpack.c.l.b16 %v392
      %v425 = vunpack.c.l.b16 %v393
      %v426 = vunpack.c.l.b16 %v394
      %v427 = vunpack.c.l.b16 %v395
      %v428 = vunpack.c.l.b16 %v396
      %v429 = vunpack.c.l.b16 %v397
      %v430 = vunpack.c.l.b16 %v398
      %v431 = vunpack.c.l.b16 %v399
      %v432 = vunpack.c.l.b16 %v400
      %v433 = vunpack.c.l.b16 %v401
      %v434 = vunpack.c.l.b16 %v402
      %v435 = vunpack.c.l.b16 %v403
      %v436 = vpack.c.b16 %v421, %v420
      %v437 = vpack.c.b16 %v423, %v422
      %v438 = vpack.c.b16 %v425, %v424
      %v439 = vpack.c.b16 %v427, %v426
      %v440 = vpack.c.b16 %v429, %v428
      %v441 = vpack.c.b16 %v431, %v430
      %v442 = vpack.c.b16 %v433, %v432
      %v443 = vpack.c.b16 %v435, %v434
      %452 = vmatpush.bf16.msra.mxu0 %v443
      %453 = vmatpush.bf16.msra.mxu0 %v442
      %454 = vmatpush.bf16.msra.mxu0 %v441
      %455 = vmatpush.bf16.msra.mxu0 %v440
      %456 = vmatpush.bf16.msra.mxu0 %v439
      %457 = vmatpush.bf16.msra.mxu0 %v438
      %458 = vmatpush.bf16.msra.mxu0 %v437
      %459 = vmatpush.bf16.msra.mxu0 %v436
      %460 = vmatmul.bf16.gmra.mxu0 %v291
      %v461 = vpop.f32.mrf.mxu0
      %v462 = vadd.f32 0.0, %v461
      %v463 = vpop.f32.mrf.mxu0
      %v464 = vadd.f32 0.0, %v463
      %465 = vmatmul.bf16.gmra.mxu0 %v292
      %v466 = vpop.f32.mrf.mxu0
      %v467 = vadd.f32 0.0, %v466
      %v468 = vpop.f32.mrf.mxu0
      %v469 = vadd.f32 0.0, %v468
      %470 = vmatmul.bf16.gmra.mxu0 %v293
      %v471 = vpop.f32.mrf.mxu0
      %v472 = vadd.f32 0.0, %v471
      %v473 = vpop.f32.mrf.mxu0
      %v474 = vadd.f32 0.0, %v473
      %475 = vmatmul.bf16.gmra.mxu0 %v294
      %v476 = vpop.f32.mrf.mxu0
      %v477 = vadd.f32 0.0, %v476
      %v478 = vpop.f32.mrf.mxu0
      %v479 = vadd.f32 0.0, %v478
      %480 = vmatmul.bf16.gmra.mxu0 %v295
      %v481 = vpop.f32.mrf.mxu0
      %v482 = vadd.f32 0.0, %v481
      %v483 = vpop.f32.mrf.mxu0
      %v484 = vadd.f32 0.0, %v483
      %485 = vmatmul.bf16.gmra.mxu0 %v296
      %v486 = vpop.f32.mrf.mxu0
      %v487 = vpop.f32.mrf.mxu0
      %488 = vdwg.mxu0
      %vm499 = vcmask 1046528
      %v500 = vrot.slane %v462, 1
      %v501 = vrot.slane %v464, 1
      %v502 = vsel %vm499, %v500, %v501
      %v503 = vrot.slane %v467, 1
      %v504 = vsel %vm499, %v501, %v503
      %v505 = vrot.slane %v469, 1
      %v506 = vsel %vm499, %v503, %v505
      %v507 = vrot.slane %v472, 1
      %v508 = vsel %vm499, %v505, %v507
      %v509 = vrot.slane %v474, 1
      %v510 = vsel %vm499, %v507, %v509
      %v511 = vrot.slane %v477, 1
      %v512 = vsel %vm499, %v509, %v511
      %v513 = vrot.slane %v479, 1
      %v514 = vsel %vm499, %v511, %v513
      %v515 = vrot.slane %v482, 1
      %v516 = vsel %vm499, %v513, %v515
      %v517 = vrot.slane %v484, 1
      %v518 = vsel %vm499, %v515, %v517
      %v528 = vadd.f32 %v361, %v502
      %v529 = vadd.f32 %v363, %v504
      %v530 = vadd.f32 %v366, %v506
      %v531 = vadd.f32 %v368, %v508
      %v532 = vadd.f32 %v371, %v510
      %v533 = vadd.f32 %v373, %v512
      %v534 = vadd.f32 %v376, %v514
      %v535 = vadd.f32 %v378, %v516
      %v536 = vadd.f32 %v381, %v518
      %s537 = scalar_lea.vmem %s1, 128
      %v538 = vld [vmem:[%s537] sm:$0xf]
      %v539 = vld [vmem:[%s537 + $0x4] sm:$0xf]
      %v540 = vld [vmem:[%s537 + $0x8] sm:$0xf]
      %v541 = vld [vmem:[%s537 + $0xc] sm:$0xf]
      %v542 = vld [vmem:[%s537 + $0x10] sm:$0xf]
      %v543 = vld [vmem:[%s537 + $0x14] sm:$0xf]
      %v544 = vld [vmem:[%s537 + $0x18] sm:$0xf]
      %v545 = vld [vmem:[%s537 + $0x1c] sm:$0xf]
      %v546 = vld [vmem:[%s537 + $0x20] sm:$0xf]
      %v547 = vld [vmem:[%s537 + $0x24] sm:$0xf]
      %v548 = vld [vmem:[%s537 + $0x28] sm:$0xf]
      %v549 = vld [vmem:[%s537 + $0x2c] sm:$0xf]
      %v550 = vld [vmem:[%s537 + $0x30] sm:$0xf]
      %v551 = vld [vmem:[%s537 + $0x34] sm:$0xf]
      %v552 = vld [vmem:[%s537 + $0x38] sm:$0xf]
      %v553 = vld [vmem:[%s537 + $0x3c] sm:$0xf]
      %v570 = vunpack.c.l.b16 %v538
      %v571 = vunpack.c.l.b16 %v539
      %v572 = vunpack.c.l.b16 %v540
      %v573 = vunpack.c.l.b16 %v541
      %v574 = vunpack.c.l.b16 %v542
      %v575 = vunpack.c.l.b16 %v543
      %v576 = vunpack.c.l.b16 %v544
      %v577 = vunpack.c.l.b16 %v545
      %v578 = vunpack.c.l.b16 %v546
      %v579 = vunpack.c.l.b16 %v547
      %v580 = vunpack.c.l.b16 %v548
      %v581 = vunpack.c.l.b16 %v549
      %v582 = vunpack.c.l.b16 %v550
      %v583 = vunpack.c.l.b16 %v551
      %v584 = vunpack.c.l.b16 %v552
      %v585 = vunpack.c.l.b16 %v553
      %v586 = vpack.c.b16 %v571, %v570
      %v587 = vpack.c.b16 %v573, %v572
      %v588 = vpack.c.b16 %v575, %v574
      %v589 = vpack.c.b16 %v577, %v576
      %v590 = vpack.c.b16 %v579, %v578
      %v591 = vpack.c.b16 %v581, %v580
      %v592 = vpack.c.b16 %v583, %v582
      %v593 = vpack.c.b16 %v585, %v584
      %602 = vmatpush.bf16.msra.mxu0 %v593
      %603 = vmatpush.bf16.msra.mxu0 %v592
      %604 = vmatpush.bf16.msra.mxu0 %v591
      %605 = vmatpush.bf16.msra.mxu0 %v590
      %606 = vmatpush.bf16.msra.mxu0 %v589
      %607 = vmatpush.bf16.msra.mxu0 %v588
      %608 = vmatpush.bf16.msra.mxu0 %v587
      %609 = vmatpush.bf16.msra.mxu0 %v586
      %610 = vmatmul.bf16.gmra.mxu0 %v291
      %v611 = vpop.f32.mrf.mxu0
      %v612 = vpop.f32.mrf.mxu0
      %v613 = vadd.f32 0.0, %v612
      %614 = vmatmul.bf16.gmra.mxu0 %v292
      %v615 = vpop.f32.mrf.mxu0
      %v616 = vadd.f32 0.0, %v615
      %v617 = vpop.f32.mrf.mxu0
      %v618 = vadd.f32 0.0, %v617
      %619 = vmatmul.bf16.gmra.mxu0 %v293
      %v620 = vpop.f32.mrf.mxu0
      %v621 = vadd.f32 0.0, %v620
      %v622 = vpop.f32.mrf.mxu0
      %v623 = vadd.f32 0.0, %v622
      %624 = vmatmul.bf16.gmra.mxu0 %v294
      %v625 = vpop.f32.mrf.mxu0
      %v626 = vadd.f32 0.0, %v625
      %v627 = vpop.f32.mrf.mxu0
      %v628 = vadd.f32 0.0, %v627
      %629 = vmatmul.bf16.gmra.mxu0 %v295
      %v630 = vpop.f32.mrf.mxu0
      %v631 = vadd.f32 0.0, %v630
      %v632 = vpop.f32.mrf.mxu0
      %v633 = vadd.f32 0.0, %v632
      %634 = vmatmul.bf16.gmra.mxu0 %v296
      %v635 = vpop.f32.mrf.mxu0
      %v636 = vadd.f32 0.0, %v635
      %v637 = vpop.f32.mrf.mxu0
      %638 = vdwg.mxu0
      %v649 = vrot.slane %v613, 1
      %v650 = vrot.slane %v616, 1
      %v651 = vsel %vm499, %v649, %v650
      %v652 = vrot.slane %v618, 1
      %v653 = vsel %vm499, %v650, %v652
      %v654 = vrot.slane %v621, 1
      %v655 = vsel %vm499, %v652, %v654
      %v656 = vrot.slane %v623, 1
      %v657 = vsel %vm499, %v654, %v656
      %v658 = vrot.slane %v626, 1
      %v659 = vsel %vm499, %v656, %v658
      %v660 = vrot.slane %v628, 1
      %v661 = vsel %vm499, %v658, %v660
      %v662 = vrot.slane %v631, 1
      %v663 = vsel %vm499, %v660, %v662
      %v664 = vrot.slane %v633, 1
      %v665 = vsel %vm499, %v662, %v664
      %v666 = vrot.slane %v636, 1
      %v667 = vsel %vm499, %v664, %v666
      %v677 = vadd.f32 %v528, %v651
      %v678 = vadd.f32 %v529, %v653
      %v679 = vadd.f32 %v530, %v655
      %v680 = vadd.f32 %v531, %v657
      %v681 = vadd.f32 %v532, %v659
      %v682 = vadd.f32 %v533, %v661
      %v683 = vadd.f32 %v534, %v663
      %v684 = vadd.f32 %v535, %v665
      %v685 = vadd.f32 %v536, %v667
      %s686 = scalar_lea.vmem %s1, 192
      %v687 = vld [vmem:[%s686] sm:$0xf]
      %v688 = vld [vmem:[%s686 + $0x4] sm:$0xf]
      %v689 = vld [vmem:[%s686 + $0x8] sm:$0xf]
      %v690 = vld [vmem:[%s686 + $0xc] sm:$0xf]
      %v691 = vld [vmem:[%s686 + $0x10] sm:$0xf]
      %v692 = vld [vmem:[%s686 + $0x14] sm:$0xf]
      %v693 = vld [vmem:[%s686 + $0x18] sm:$0xf]
      %v694 = vld [vmem:[%s686 + $0x1c] sm:$0xf]
      %v695 = vld [vmem:[%s686 + $0x20] sm:$0xf]
      %v696 = vld [vmem:[%s686 + $0x24] sm:$0xf]
      %v697 = vld [vmem:[%s686 + $0x28] sm:$0xf]
      %v698 = vld [vmem:[%s686 + $0x2c] sm:$0xf]
      %v699 = vld [vmem:[%s686 + $0x30] sm:$0xf]
      %v700 = vld [vmem:[%s686 + $0x34] sm:$0xf]
      %v701 = vld [vmem:[%s686 + $0x38] sm:$0xf]
      %v702 = vld [vmem:[%s686 + $0x3c] sm:$0xf]
      %v719 = vunpack.c.l.b16 %v687
      %v720 = vunpack.c.l.b16 %v688
      %v721 = vunpack.c.l.b16 %v689
      %v722 = vunpack.c.l.b16 %v690
      %v723 = vunpack.c.l.b16 %v691
      %v724 = vunpack.c.l.b16 %v692
      %v725 = vunpack.c.l.b16 %v693
      %v726 = vunpack.c.l.b16 %v694
      %v727 = vunpack.c.l.b16 %v695
      %v728 = vunpack.c.l.b16 %v696
      %v729 = vunpack.c.l.b16 %v697
      %v730 = vunpack.c.l.b16 %v698
      %v731 = vunpack.c.l.b16 %v699
      %v732 = vunpack.c.l.b16 %v700
      %v733 = vunpack.c.l.b16 %v701
      %v734 = vunpack.c.l.b16 %v702
      %v735 = vpack.c.b16 %v720, %v719
      %v736 = vpack.c.b16 %v722, %v721
      %v737 = vpack.c.b16 %v724, %v723
      %v738 = vpack.c.b16 %v726, %v725
      %v739 = vpack.c.b16 %v728, %v727
      %v740 = vpack.c.b16 %v730, %v729
      %v741 = vpack.c.b16 %v732, %v731
      %v742 = vpack.c.b16 %v734, %v733
      %751 = vmatpush.bf16.msra.mxu0 %v742
      %752 = vmatpush.bf16.msra.mxu0 %v741
      %753 = vmatpush.bf16.msra.mxu0 %v740
      %754 = vmatpush.bf16.msra.mxu0 %v739
      %755 = vmatpush.bf16.msra.mxu0 %v738
      %756 = vmatpush.bf16.msra.mxu0 %v737
      %757 = vmatpush.bf16.msra.mxu0 %v736
      %758 = vmatpush.bf16.msra.mxu0 %v735
      %759 = vmatmul.bf16.gmra.mxu0 %v291
      %v760 = vpop.f32.mrf.mxu0
      %v761 = vpop.f32.mrf.mxu0
      %v762 = vadd.f32 0.0, %v761
      %763 = vmatmul.bf16.gmra.mxu0 %v292
      %v764 = vpop.f32.mrf.mxu0
      %v765 = vadd.f32 0.0, %v764
      %v766 = vpop.f32.mrf.mxu0
      %v767 = vadd.f32 0.0, %v766
      %768 = vmatmul.bf16.gmra.mxu0 %v293
      %v769 = vpop.f32.mrf.mxu0
      %v770 = vadd.f32 0.0, %v769
      %v771 = vpop.f32.mrf.mxu0
      %v772 = vadd.f32 0.0, %v771
      %773 = vmatmul.bf16.gmra.mxu0 %v294
      %v774 = vpop.f32.mrf.mxu0
      %v775 = vadd.f32 0.0, %v774
      %v776 = vpop.f32.mrf.mxu0
      %v777 = vadd.f32 0.0, %v776
      %778 = vmatmul.bf16.gmra.mxu0 %v295
      %v779 = vpop.f32.mrf.mxu0
      %v780 = vadd.f32 0.0, %v779
      %v781 = vpop.f32.mrf.mxu0
      %v782 = vadd.f32 0.0, %v781
      %783 = vmatmul.bf16.gmra.mxu0 %v296
      %v784 = vpop.f32.mrf.mxu0
      %v785 = vadd.f32 0.0, %v784
      %v786 = vpop.f32.mrf.mxu0
      %787 = vdwg.mxu0
      %vm798 = vcmask 1045504
      %v799 = vrot.slane %v762, 2
      %v800 = vrot.slane %v765, 2
      %v801 = vsel %vm798, %v799, %v800
      %v802 = vrot.slane %v767, 2
      %v803 = vsel %vm798, %v800, %v802
      %v804 = vrot.slane %v770, 2
      %v805 = vsel %vm798, %v802, %v804
      %v806 = vrot.slane %v772, 2
      %v807 = vsel %vm798, %v804, %v806
      %v808 = vrot.slane %v775, 2
      %v809 = vsel %vm798, %v806, %v808
      %v810 = vrot.slane %v777, 2
      %v811 = vsel %vm798, %v808, %v810
      %v812 = vrot.slane %v780, 2
      %v813 = vsel %vm798, %v810, %v812
      %v814 = vrot.slane %v782, 2
      %v815 = vsel %vm798, %v812, %v814
      %v816 = vrot.slane %v785, 2
      %v817 = vsel %vm798, %v814, %v816
      %v827 = vadd.f32 %v677, %v801
      %v828 = vadd.f32 %v678, %v803
      %v829 = vadd.f32 %v679, %v805
      %v830 = vadd.f32 %v680, %v807
      %v831 = vadd.f32 %v681, %v809
      %v832 = vadd.f32 %v682, %v811
      %v833 = vadd.f32 %v683, %v813
      %v834 = vadd.f32 %v684, %v815
      %v835 = vadd.f32 %v685, %v817
      %v836 = vld [vmem:[%s2] sm:$0xff]
      %v837 = vld [vmem:[%s2 + $0x8] sm:$0xff]
      %v838 = vld [vmem:[%s2 + $0x10] sm:$0xff]
      %v839 = vld [vmem:[%s2 + $0x18] sm:$0xff]
      %v840 = vld [vmem:[%s2 + $0x20] sm:$0xff]
      %v841 = vld [vmem:[%s2 + $0x28] sm:$0xff]
      %v842 = vld [vmem:[%s2 + $0x30] sm:$0xff]
      %v843 = vld [vmem:[%s2 + $0x38] sm:$0xff]
      %v844 = vld [vmem:[%s2 + $0x40] sm:$0xff]
      %846 = vset.pattern.permute.xlu0 0
      %847 = vperm.xlu0 %846, %v836
      %v848 = vpop.permute.xlu0 %847
      %851 = vset.pattern.permute.xlu0 0
      %852 = vperm.xlu0 %851, %v837
      %v853 = vpop.permute.xlu0 %852
      %856 = vset.pattern.permute.xlu0 0
      %857 = vperm.xlu0 %856, %v838
      %v858 = vpop.permute.xlu0 %857
      %861 = vset.pattern.permute.xlu0 0
      %862 = vperm.xlu0 %861, %v839
      %v863 = vpop.permute.xlu0 %862
      %866 = vset.pattern.permute.xlu0 0
      %867 = vperm.xlu0 %866, %v840
      %v868 = vpop.permute.xlu0 %867
      %871 = vset.pattern.permute.xlu0 0
      %872 = vperm.xlu0 %871, %v841
      %v873 = vpop.permute.xlu0 %872
      %876 = vset.pattern.permute.xlu0 0
      %877 = vperm.xlu0 %876, %v842
      %v878 = vpop.permute.xlu0 %877
      %881 = vset.pattern.permute.xlu0 0
      %882 = vperm.xlu0 %881, %v843
      %v883 = vpop.permute.xlu0 %882
      %886 = vset.pattern.permute.xlu0 0
      %887 = vperm.xlu0 %886, %v844
      %v888 = vpop.permute.xlu0 %887
      %v890 = vmul.f32 %v827, %v848
      %v891 = vmul.f32 %v828, %v853
      %v892 = vmul.f32 %v829, %v858
      %v893 = vmul.f32 %v830, %v863
      %v894 = vmul.f32 %v831, %v868
      %v895 = vmul.f32 %v832, %v873
      %v896 = vmul.f32 %v833, %v878
      %v897 = vmul.f32 %v834, %v883
      %v898 = vmul.f32 %v835, %v888
      %vm899 = vcmask 523264
      %v900 = vsel %vm899, %v890, 0.0
      %v901 = vsel %vm899, %v891, 0.0
      %v902 = vadd.f32 %v900, %v901
      %v903 = vsel %vm899, %v892, 0.0
      %v904 = vadd.f32 %v902, %v903
      %v905 = vsel %vm899, %v893, 0.0
      %v906 = vadd.f32 %v904, %v905
      %v907 = vsel %vm899, %v894, 0.0
      %v908 = vadd.f32 %v906, %v907
      %v909 = vsel %vm899, %v895, 0.0
      %v910 = vadd.f32 %v908, %v909
      %v911 = vsel %vm899, %v896, 0.0
      %v912 = vadd.f32 %v910, %v911
      %v913 = vsel %vm899, %v897, 0.0
      %v914 = vadd.f32 %v912, %v913
      %v915 = vsel %vm899, %v898, 0.0
      %v916 = vadd.f32 %v914, %v915
      %v917 = vrot.slane %v916, 4
      %v918 = vadd.f32 %v916, %v917
      %v919 = vrot.slane %v918, 2
      %v920 = vadd.f32 %v918, %v919
      %v921 = vrot.slane %v920, 1
      %v922 = vadd.f32 %v920, %v921
      %vm923 = vcmask 516096
      %924 = vst.msk [vmem:[%s238] sm:$0x1] %vm923, %v922
      %v925 = vmul.f32 %v890, %v890
      %v926 = vmul.f32 %v891, %v891
      %v927 = vmul.f32 %v892, %v892
      %v928 = vmul.f32 %v893, %v893
      %v929 = vmul.f32 %v894, %v894
      %v930 = vmul.f32 %v895, %v895
      %v931 = vmul.f32 %v896, %v896
      %v932 = vmul.f32 %v897, %v897
      %v933 = vmul.f32 %v898, %v898
      %v934 = vsel %vm899, %v925, 0.0
      %v935 = vsel %vm899, %v926, 0.0
      %v936 = vadd.f32 %v934, %v935
      %v937 = vsel %vm899, %v927, 0.0
      %v938 = vadd.f32 %v936, %v937
      %v939 = vsel %vm899, %v928, 0.0
      %v940 = vadd.f32 %v938, %v939
      %v941 = vsel %vm899, %v929, 0.0
      %v942 = vadd.f32 %v940, %v941
      %v943 = vsel %vm899, %v930, 0.0
      %v944 = vadd.f32 %v942, %v943
      %v945 = vsel %vm899, %v931, 0.0
      %v946 = vadd.f32 %v944, %v945
      %v947 = vsel %vm899, %v932, 0.0
      %v948 = vadd.f32 %v946, %v947
      %v949 = vsel %vm899, %v933, 0.0
      %v950 = vadd.f32 %v948, %v949
      %v951 = vrot.slane %v950, 4
      %v952 = vadd.f32 %v950, %v951
      %v953 = vrot.slane %v952, 2
      %v954 = vadd.f32 %v952, %v953
      %v955 = vrot.slane %v954, 1
      %v956 = vadd.f32 %v954, %v955
      %957 = vst.msk [vmem:[%s241] sm:$0x1] %vm923, %v956
      %958 = vst.msk [vmem:[%s235] sm:$0xff] %vm899, %v827
      %959 = vst.msk [vmem:[%s235 + $0x8] sm:$0xff] %vm899, %v828
      %960 = vst.msk [vmem:[%s235 + $0x10] sm:$0xff] %vm899, %v829
      %961 = vst.msk [vmem:[%s235 + $0x18] sm:$0xff] %vm899, %v830
      %962 = vst.msk [vmem:[%s235 + $0x20] sm:$0xff] %vm899, %v831
      %963 = vst.msk [vmem:[%s235 + $0x28] sm:$0xff] %vm899, %v832
      %964 = vst.msk [vmem:[%s235 + $0x30] sm:$0xff] %vm899, %v833
      %965 = vst.msk [vmem:[%s235 + $0x38] sm:$0xff] %vm899, %v834
      %966 = vst.msk [vmem:[%s235 + $0x40] sm:$0xff] %vm899, %v835
      %p967 = scmp.lt.s32.totalorder %s17, 1
      %s968 = scalar_select %p967, %s17, 1
      %s969 = smul.addr %s968, 9
      %s970 = smul.addr %s969, 8
      %s971 = scalar_lea.vmem %s3, %s970
      %p972 = scmp.lt.s32.totalorder %s17, 1
      %s973 = scalar_select %p972, %s17, 1
      %s974 = scalar_lea.vmem %s4, %s973
      %p975 = scmp.lt.s32.totalorder %s17, 1
      %s976 = scalar_select %p975, %s17, 1
      %s977 = scalar_lea.vmem %s5, %s976
      // Predicated region
      $region33: #{_forward_impl.11} parent=31 // pred_check
        %p978 = pneg %p103
      $region34: #{_forward_impl.11} parent=31 // pred_check_branch
        %980 = sbr.rel (%p978) target = $region36
      $region35: #{_forward_impl.11} parent=31 // pred_region
        _
      $region36: #{_forward_impl.11} parent=31 // pred_fallthru
        _
      // Predicated region
      $region37: #{_forward_impl.11} parent=31 // pred_check
        %p981 = pneg %p129
      $region38: #{_forward_impl.11} parent=31 // pred_check_branch
        %983 = sbr.rel (%p981) target = $region40
      $region39: #{_forward_impl.11} parent=31 // pred_region
        _
      $region40: #{_forward_impl.11} parent=31 // pred_fallthru
        _
      // Predicated region
      $region41: #{_forward_impl.11} parent=31 // pred_check
        %p984 = pneg %p155
      $region42: #{_forward_impl.11} parent=31 // pred_check_branch
        %986 = sbr.rel (%p984) target = $region44
      $region43: #{_forward_impl.11} parent=31 // pred_region
        _
      $region44: #{_forward_impl.11} parent=31 // pred_fallthru
        _
    $region32: #{_forward_impl.11} parent=5 // pred_fallthru
      _
    %p987 = scmp.le.s32.totalorder 2, %s12
    // Predicated region
    $region45: #{_forward_impl.11} parent=5 // pred_check
      %p988 = pneg %p987
    $region46: #{_forward_impl.11} parent=5 // pred_check_branch
      %990 = sbr.rel (%p988) target = $region48
    $region47: #{_forward_impl.11} parent=5 // pred_region
      %s991 = ssub.s32 %s12, 2
      // Predicated region
      $region49: #{_forward_impl.11} parent=47 // pred_check
        %p992 = pneg %p109
      $region50: #{_forward_impl.11} parent=47 // pred_check_branch
        %994 = sbr.rel (%p992) target = $region52
      $region51: #{_forward_impl.11} parent=47 // pred_region
        %p995 = scmp.lt.s32.totalorder %s18, 1
        %s996 = scalar_select %p995, %s18, 1
        %s997 = smul.addr %s996, 9
        %s998 = smul.addr %s997, 8
        %s999 = scalar_lea.vmem %s3, %s998
      $region52: #{_forward_impl.11} parent=47 // pred_fallthru
        _
      // Predicated region
      $region53: #{_forward_impl.11} parent=47 // pred_check
        %p1000 = pneg %p135
      $region54: #{_forward_impl.11} parent=47 // pred_check_branch
        %1002 = sbr.rel (%p1000) target = $region56
      $region55: #{_forward_impl.11} parent=47 // pred_region
        %p1003 = scmp.lt.s32.totalorder %s18, 1
        %s1004 = scalar_select %p1003, %s18, 1
        %s1005 = scalar_lea.vmem %s4, %s1004
      $region56: #{_forward_impl.11} parent=47 // pred_fallthru
        _
      // Predicated region
      $region57: #{_forward_impl.11} parent=47 // pred_check
        %p1006 = pneg %p161
      $region58: #{_forward_impl.11} parent=47 // pred_check_branch
        %1008 = sbr.rel (%p1006) target = $region60
      $region59: #{_forward_impl.11} parent=47 // pred_region
        %p1009 = scmp.lt.s32.totalorder %s18, 1
        %s1010 = scalar_select %p1009, %s18, 1
        %s1011 = scalar_lea.vmem %s5, %s1010
      $region60: #{_forward_impl.11} parent=47 // pred_fallthru
        _
    $region48: #{_forward_impl.11} parent=5 // pred_fallthru
      _
  $region6: #{_forward_impl.11} parent=0 // loop_footer
    %s16 = sadd.s32 1, %s12
  $region7: #{_forward_impl.11} parent=0 // loop_footer_branch
    %11 = sbr.rel target = $region3
  $region8: #{_forward_impl.11} parent=0 // loop_exit
    _

// kernel: _forward_impl.12
$region0: #{_forward_impl.12}
  #allocation0 [shape = 'u32[]', space=smem, size = 0x4, offset = 0x4, fixed_abs, tag = 'smem constant byte address 0x4 - core index']
  #allocation1 [shape = 'u32[72,128]{1,0:T(1,128)}', space=vmem, size = 0x9000, scoped, tag = 'internal scratch']
  %s0 = inlined_call_operand.vmem [shape: f32[2,72,64], index: 0, kind: input, shape index: {}]
  %s1 = inlined_call_operand.vmem [shape: f32[1,64], index: 1, kind: input, shape index: {}]
  %s2 = inlined_call_operand.vmem [shape: f32[1,64], index: 2, kind: input, shape index: {}]
  %s3 = inlined_call_operand.vmem [shape: bf16[2,72,64], index: 3, kind: output, shape index: {}]
  %s4 = sld [smem:[#allocation0]]
  $region45: #{_forward_impl.12} parent=0
    _
  %s6 = ssub.s32 1, %s4
  %s7 = scalar_select 0, %s6, %s4
  loop: start=0, step=1, limit=4
  $region2: #{_forward_impl.12} parent=0 // loop_pre_header
    _
  $region3: #{_forward_impl.12} parent=0 // loop_header
    %s9 = sphi 0, %s13
    %p10 = scmp.ge.s32.totalorder %s9, 4
    %s19 = sphi 0, %s21
    %s22 = sphi 0, %s19
    %s23 = sphi 0, %s22
    %s39 = sphi 0, %s23
    %s43 = sphi 0, %s43
    %s45 = sphi 0, %s43
    %s46 = sphi 0, %s45
    %s60 = sphi 0, %s46
    %s64 = sphi 0, %s64
    %s66 = sphi 0, %s64
    %s67 = sphi 0, %s66
    %s81 = sphi 0, %s67
    %s87 = sphi 0, %s89
    %s90 = sphi 0, %s87
    %s91 = sphi 0, %s90
    %s107 = sphi 0, %s91
  $region4: #{_forward_impl.12} parent=0 // loop_header_branch
    %12 = sbr.rel (%p10) target = $region8
  $region5: #{_forward_impl.12} parent=0 // loop_body
    %s14 = ssub.s32 %s9, 1
    %s15 = ssub.s32 %s9, 2
    %s16 = sadd.s32 %s9, 1
    %s17 = ssub.s32 %s9, %s16
    %p18 = scmp.eq.s32.totalorder %s17, 0
    %s20 = sadd.s32 %s19, 1
    %s21 = scalar_select %p18, %s19, %s20
    %p24 = pneg %p18
    %p25 = scmp.eq.s32.totalorder %s9, 1
    %p26 = por %p24, %p25
    %p27 = scmp.ne.s32.totalorder %s19, %s22
    %p28 = scmp.eq.s32.totalorder %s9, 0
    %p29 = por %p27, %p28
    %p30 = scmp.ne.s32.totalorder %s19, %s22
    %p31 = scmp.eq.s32.totalorder %s14, 1
    %p32 = por %p30, %p31
    %p33 = scmp.ne.s32.totalorder %s22, %s23
    %p34 = scmp.eq.s32.totalorder %s14, 0
    %p35 = por %p33, %p34
    %p36 = scmp.ne.s32.totalorder %s22, %s23
    %p37 = scmp.eq.s32.totalorder %s15, 1
    %p38 = por %p36, %p37
    %p40 = scmp.ne.s32.totalorder %s23, %s39
    %p41 = scmp.eq.s32.totalorder %s15, 0
    %p42 = por %p40, %p41
    %s44 = sadd.s32 %s43, 1
    %p47 = scmp.eq.s32.totalorder %s9, 1
    %p48 = scmp.ne.s32.totalorder %s43, %s45
    %p49 = scmp.eq.s32.totalorder %s9, 0
    %p50 = por %p48, %p49
    %p51 = scmp.ne.s32.totalorder %s43, %s45
    %p52 = scmp.eq.s32.totalorder %s14, 1
    %p53 = por %p51, %p52
    %p54 = scmp.ne.s32.totalorder %s45, %s46
    %p55 = scmp.eq.s32.totalorder %s14, 0
    %p56 = por %p54, %p55
    %p57 = scmp.ne.s32.totalorder %s45, %s46
    %p58 = scmp.eq.s32.totalorder %s15, 1
    %p59 = por %p57, %p58
    %p61 = scmp.ne.s32.totalorder %s46, %s60
    %p62 = scmp.eq.s32.totalorder %s15, 0
    %p63 = por %p61, %p62
    %s65 = sadd.s32 %s64, 1
    %p68 = scmp.eq.s32.totalorder %s9, 1
    %p69 = scmp.ne.s32.totalorder %s64, %s66
    %p70 = scmp.eq.s32.totalorder %s9, 0
    %p71 = por %p69, %p70
    %p72 = scmp.ne.s32.totalorder %s64, %s66
    %p73 = scmp.eq.s32.totalorder %s14, 1
    %p74 = por %p72, %p73
    %p75 = scmp.ne.s32.totalorder %s66, %s67
    %p76 = scmp.eq.s32.totalorder %s14, 0
    %p77 = por %p75, %p76
    %p78 = scmp.ne.s32.totalorder %s66, %s67
    %p79 = scmp.eq.s32.totalorder %s15, 1
    %p80 = por %p78, %p79
    %p82 = scmp.ne.s32.totalorder %s67, %s81
    %p83 = scmp.eq.s32.totalorder %s15, 0
    %p84 = por %p82, %p83
    %s85 = ssub.s32 %s9, %s16
    %p86 = scmp.eq.s32.totalorder %s85, 0
    %s88 = sadd.s32 %s87, 1
    %s89 = scalar_select %p86, %s87, %s88
    %p92 = pneg %p86
    %p93 = scmp.eq.s32.totalorder %s9, 1
    %p94 = por %p92, %p93
    %p95 = scmp.ne.s32.totalorder %s87, %s90
    %p96 = scmp.eq.s32.totalorder %s9, 0
    %p97 = por %p95, %p96
    %p98 = scmp.ne.s32.totalorder %s87, %s90
    %p99 = scmp.eq.s32.totalorder %s14, 1
    %p100 = por %p98, %p99
    %p101 = scmp.ne.s32.totalorder %s90, %s91
    %p102 = scmp.eq.s32.totalorder %s14, 0
    %p103 = por %p101, %p102
    %p104 = scmp.ne.s32.totalorder %s90, %s91
    %p105 = scmp.eq.s32.totalorder %s15, 1
    %p106 = por %p104, %p105
    %p108 = scmp.ne.s32.totalorder %s91, %s107
    %p109 = scmp.eq.s32.totalorder %s15, 0
    %p110 = por %p108, %p109
    %p111 = scmp.le.s32.totalorder 1, %s9
    %p112 = scmp.lt.s32.totalorder %s9, 3
    %p113 = pnand %p111, %p112
    %p114 = pneg %p113
    // Predicated region
    $region9: #{_forward_impl.12} parent=5 // pred_check
      _
    $region10: #{_forward_impl.12} parent=5 // pred_check_branch
      %116 = sbr.rel (%p113) target = $region12
    $region11: #{_forward_impl.12} parent=5 // pred_region
      %s117 = ssub.s32 %s9, 1
      // Predicated region
      $region13: #{_forward_impl.12} parent=11 // pred_check
        %p118 = pneg %p56
      $region14: #{_forward_impl.12} parent=11 // pred_check_branch
        %120 = sbr.rel (%p118) target = $region16
      $region15: #{_forward_impl.12} parent=11 // pred_region
        _
      $region16: #{_forward_impl.12} parent=11 // pred_fallthru
        _
      // Predicated region
      $region17: #{_forward_impl.12} parent=11 // pred_check
        %p121 = pneg %p77
      $region18: #{_forward_impl.12} parent=11 // pred_check_branch
        %123 = sbr.rel (%p121) target = $region20
      $region19: #{_forward_impl.12} parent=11 // pred_region
        _
      $region20: #{_forward_impl.12} parent=11 // pred_fallthru
        _
    $region12: #{_forward_impl.12} parent=5 // pred_fallthru
      _
    %p124 = scmp.lt.s32.totalorder %s9, 2
    // Predicated region
    $region21: #{_forward_impl.12} parent=5 // pred_check
      %p125 = pneg %p124
    $region22: #{_forward_impl.12} parent=5 // pred_check_branch
      %127 = sbr.rel (%p125) target = $region24
    $region23: #{_forward_impl.12} parent=5 // pred_region
      // Predicated region
      $region25: #{_forward_impl.12} parent=23 // pred_check
        %p128 = pneg %p29
      $region26: #{_forward_impl.12} parent=23 // pred_check_branch
        %130 = sbr.rel (%p128) target = $region28
      $region27: #{_forward_impl.12} parent=23 // pred_region
        %p131 = scmp.lt.s32.totalorder %s9, 1
        %s132 = scalar_select %p131, %s9, 1
        %s133 = smul.addr %s132, 9
        %s134 = smul.addr %s133, 8
        %s135 = scalar_lea.vmem %s0, %s134
      $region28: #{_forward_impl.12} parent=23 // pred_fallthru
        _
    $region24: #{_forward_impl.12} parent=5 // pred_fallthru
      _
    %p136 = scmp.le.s32.totalorder 1, %s9
    %p137 = scmp.lt.s32.totalorder %s9, 3
    %p138 = pnand %p136, %p137
    %p139 = pneg %p138
    // Predicated region
    $region29: #{_forward_impl.12} parent=5 // pred_check
      _
    $region30: #{_forward_impl.12} parent=5 // pred_check_branch
      %141 = sbr.rel (%p138) target = $region32
    $region31: #{_forward_impl.12} parent=5 // pred_region
      %s142 = ssub.s32 %s9, 1
      %p143 = scmp.lt.s32.totalorder %s14, 1
      %s144 = scalar_select %p143, %s14, 1
      %s145 = smul.addr %s144, 9
      %s146 = smul.addr %s145, 8
      %s147 = scalar_lea.vmem %s0, %s146
      %p148 = pneg %p35
      %p149 = pneg %p32
      %p150 = pneg %p56
      %p151 = pneg %p53
      %p152 = pneg %p77
      %p153 = pneg %p74
      %p154 = pneg %p103
      %p155 = pneg %p100
      %p156 = scmp.lt.s32.totalorder %s14, 1
      %s157 = scalar_select %p156, %s14, 1
      %s158 = smul.addr %s157, 9
      %s159 = smul.addr %s158, 4
      %s160 = scalar_lea.vmem %s3, %s159
      %p161 = scmp.lt.s32.totalorder %s14, 1
      %s162 = scalar_select %p161, %s14, 1
      %s163 = smul.addr %s162, 9
      %s164 = smul.addr %s163, 8
      %s165 = scalar_lea.vmem %s0, %s164
      %p166 = scmp.lt.s32.totalorder %s14, 1
      %s167 = scalar_select %p166, %s14, 1
      %s168 = smul.addr %s167, 9
      %s169 = smul.addr %s168, 4
      %s170 = scalar_lea.vmem %s3, %s169
      %v171 = vld [vmem:[%s165] sm:$0xff]
      %v172 = vld [vmem:[%s165 + $0x8] sm:$0xff]
      %v173 = vld [vmem:[%s165 + $0x10] sm:$0xff]
      %v174 = vld [vmem:[%s165 + $0x18] sm:$0xff]
      %v175 = vld [vmem:[%s165 + $0x20] sm:$0xff]
      %v176 = vld [vmem:[%s165 + $0x28] sm:$0xff]
      %v177 = vld [vmem:[%s165 + $0x30] sm:$0xff]
      %v178 = vld [vmem:[%s165 + $0x38] sm:$0xff]
      %v179 = vld [vmem:[%s165 + $0x40] sm:$0xff]
      %v180 = vld [vmem:[%s1] sm:$0x1]
      %v182 = vperm.slane %v180, 0
      %v184 = vmul.f32 %v171, %v182
      %v185 = vmul.f32 %v172, %v182
      %v186 = vmul.f32 %v173, %v182
      %v187 = vmul.f32 %v174, %v182
      %v188 = vmul.f32 %v175, %v182
      %v189 = vmul.f32 %v176, %v182
      %v190 = vmul.f32 %v177, %v182
      %v191 = vmul.f32 %v178, %v182
      %v192 = vmul.f32 %v179, %v182
      %v193 = vld [vmem:[%s2] sm:$0x1]
      %v195 = vperm.slane %v193, 0
      %v197 = vadd.f32 %v184, %v195
      %v198 = vadd.f32 %v185, %v195
      %v199 = vadd.f32 %v186, %v195
      %v200 = vadd.f32 %v187, %v195
      %v201 = vadd.f32 %v188, %v195
      %v202 = vadd.f32 %v189, %v195
      %v203 = vadd.f32 %v190, %v195
      %v204 = vadd.f32 %v191, %v195
      %v205 = vadd.f32 %v192, %v195
      %vm206 = vcmp.ge.f32.partialorder %v197, 0.0
      %vm207 = vcmp.ge.f32.partialorder %v198, 0.0
      %vm208 = vcmp.ge.f32.partialorder %v199, 0.0
      %vm209 = vcmp.ge.f32.partialorder %v200, 0.0
      %vm210 = vcmp.ge.f32.partialorder %v201, 0.0
      %vm211 = vcmp.ge.f32.partialorder %v202, 0.0
      %vm212 = vcmp.ge.f32.partialorder %v203, 0.0
      %vm213 = vcmp.ge.f32.partialorder %v204, 0.0
      %vm214 = vcmp.ge.f32.partialorder %v205, 0.0
      %v215 = vmul.f32 %v197, 0.2
      %v216 = vmul.f32 %v198, 0.2
      %v217 = vmul.f32 %v199, 0.2
      %v218 = vmul.f32 %v200, 0.2
      %v219 = vmul.f32 %v201, 0.2
      %v220 = vmul.f32 %v202, 0.2
      %v221 = vmul.f32 %v203, 0.2
      %v222 = vmul.f32 %v204, 0.2
      %v223 = vmul.f32 %v205, 0.2
      %v224 = vsel %vm206, %v197, %v215
      %v225 = vsel %vm207, %v198, %v216
      %v226 = vsel %vm208, %v199, %v217
      %v227 = vsel %vm209, %v200, %v218
      %v228 = vsel %vm210, %v201, %v219
      %v229 = vsel %vm211, %v202, %v220
      %v230 = vsel %vm212, %v203, %v221
      %v231 = vsel %vm213, %v204, %v222
      %v232 = vsel %vm214, %v205, %v223
      %v233 = vpack.c.bf16 %v224, %v224
      %v234 = vpack.c.bf16 %v225, %v225
      %v235 = vpack.c.bf16 %v226, %v226
      %v236 = vpack.c.bf16 %v227, %v227
      %v237 = vpack.c.bf16 %v228, %v228
      %v238 = vpack.c.bf16 %v229, %v229
      %v239 = vpack.c.bf16 %v230, %v230
      %v240 = vpack.c.bf16 %v231, %v231
      %v241 = vpack.c.bf16 %v232, %v232
      %vm242 = vcmask 519168
      %243 = vst.msk [vmem:[%s170] sm:$0xf] %vm242, %v233
      %244 = vst.msk [vmem:[%s170 + $0x4] sm:$0xf] %vm242, %v234
      %245 = vst.msk [vmem:[%s170 + $0x8] sm:$0xf] %vm242, %v235
      %246 = vst.msk [vmem:[%s170 + $0xc] sm:$0xf] %vm242, %v236
      %247 = vst.msk [vmem:[%s170 + $0x10] sm:$0xf] %vm242, %v237
      %248 = vst.msk [vmem:[%s170 + $0x14] sm:$0xf] %vm242, %v238
      %249 = vst.msk [vmem:[%s170 + $0x18] sm:$0xf] %vm242, %v239
      %250 = vst.msk [vmem:[%s170 + $0x1c] sm:$0xf] %vm242, %v240
      %251 = vst.msk [vmem:[%s170 + $0x20] sm:$0xf] %vm242, %v241
      %p252 = scmp.lt.s32.totalorder %s14, 1
      %s253 = scalar_select %p252, %s14, 1
      %s254 = smul.addr %s253, 9
      %s255 = smul.addr %s254, 4
      %s256 = scalar_lea.vmem %s3, %s255
      // Predicated region
      $region33: #{_forward_impl.12} parent=31 // pred_check
        %p257 = pneg %p100
      $region34: #{_forward_impl.12} parent=31 // pred_check_branch
        %259 = sbr.rel (%p257) target = $region36
      $region35: #{_forward_impl.12} parent=31 // pred_region
        _
      $region36: #{_forward_impl.12} parent=31 // pred_fallthru
        _
    $region32: #{_forward_impl.12} parent=5 // pred_fallthru
      _
    %p260 = scmp.le.s32.totalorder 2, %s9
    // Predicated region
    $region37: #{_forward_impl.12} parent=5 // pred_check
      %p261 = pneg %p260
    $region38: #{_forward_impl.12} parent=5 // pred_check_branch
      %263 = sbr.rel (%p261) target = $region40
    $region39: #{_forward_impl.12} parent=5 // pred_region
      %s264 = ssub.s32 %s9, 2
      // Predicated region
      $region41: #{_forward_impl.12} parent=39 // pred_check
        %p265 = pneg %p106
      $region42: #{_forward_impl.12} parent=39 // pred_check_branch
        %267 = sbr.rel (%p265) target = $region44
      $region43: #{_forward_impl.12} parent=39 // pred_region
        %p268 = scmp.lt.s32.totalorder %s15, 1
        %s269 = scalar_select %p268, %s15, 1
        %s270 = smul.addr %s269, 9
        %s271 = smul.addr %s270, 4
        %s272 = scalar_lea.vmem %s3, %s271
      $region44: #{_forward_impl.12} parent=39 // pred_fallthru
        _
    $region40: #{_forward_impl.12} parent=5 // pred_fallthru
      _
  $region6: #{_forward_impl.12} parent=0 // loop_footer
    %s13 = sadd.s32 1, %s9
  $region7: #{_forward_impl.12} parent=0 // loop_footer_branch
    %8 = sbr.rel target = $region3
  $region8: #{_forward_impl.12} parent=0 // loop_exit
    _

// kernel: _forward_impl.14
$region0: #{_forward_impl.14}
  #allocation0 [shape = 'u32[]', space=smem, size = 0x4, offset = 0x4, fixed_abs, tag = 'smem constant byte address 0x4 - core index']
  #allocation1 [shape = 'u32[72,128]{1,0:T(1,128)}', space=vmem, size = 0x9000, scoped, tag = 'internal scratch']
  %s0 = inlined_call_operand.vmem [shape: f32[2,20,128], index: 0, kind: input, shape index: {}]
  %s1 = inlined_call_operand.vmem [shape: f32[1,128], index: 1, kind: input, shape index: {}]
  %s2 = inlined_call_operand.vmem [shape: f32[1,128], index: 2, kind: input, shape index: {}]
  %s3 = inlined_call_operand.vmem [shape: bf16[2,20,128], index: 3, kind: output, shape index: {}]
  %s4 = sld [smem:[#allocation0]]
  $region45: #{_forward_impl.14} parent=0
    _
  %s6 = ssub.s32 1, %s4
  %s7 = scalar_select 0, %s6, %s4
  loop: start=0, step=1, limit=4
  $region2: #{_forward_impl.14} parent=0 // loop_pre_header
    _
  $region3: #{_forward_impl.14} parent=0 // loop_header
    %s9 = sphi 0, %s13
    %p10 = scmp.ge.s32.totalorder %s9, 4
    %s19 = sphi 0, %s21
    %s22 = sphi 0, %s19
    %s23 = sphi 0, %s22
    %s39 = sphi 0, %s23
    %s43 = sphi 0, %s43
    %s45 = sphi 0, %s43
    %s46 = sphi 0, %s45
    %s60 = sphi 0, %s46
    %s64 = sphi 0, %s64
    %s66 = sphi 0, %s64
    %s67 = sphi 0, %s66
    %s81 = sphi 0, %s67
    %s87 = sphi 0, %s89
    %s90 = sphi 0, %s87
    %s91 = sphi 0, %s90
    %s107 = sphi 0, %s91
  $region4: #{_forward_impl.14} parent=0 // loop_header_branch
    %12 = sbr.rel (%p10) target = $region8
  $region5: #{_forward_impl.14} parent=0 // loop_body
    %s14 = ssub.s32 %s9, 1
    %s15 = ssub.s32 %s9, 2
    %s16 = sadd.s32 %s9, 1
    %s17 = ssub.s32 %s9, %s16
    %p18 = scmp.eq.s32.totalorder %s17, 0
    %s20 = sadd.s32 %s19, 1
    %s21 = scalar_select %p18, %s19, %s20
    %p24 = pneg %p18
    %p25 = scmp.eq.s32.totalorder %s9, 1
    %p26 = por %p24, %p25
    %p27 = scmp.ne.s32.totalorder %s19, %s22
    %p28 = scmp.eq.s32.totalorder %s9, 0
    %p29 = por %p27, %p28
    %p30 = scmp.ne.s32.totalorder %s19, %s22
    %p31 = scmp.eq.s32.totalorder %s14, 1
    %p32 = por %p30, %p31
    %p33 = scmp.ne.s32.totalorder %s22, %s23
    %p34 = scmp.eq.s32.totalorder %s14, 0
    %p35 = por %p33, %p34
    %p36 = scmp.ne.s32.totalorder %s22, %s23
    %p37 = scmp.eq.s32.totalorder %s15, 1
    %p38 = por %p36, %p37
    %p40 = scmp.ne.s32.totalorder %s23, %s39
    %p41 = scmp.eq.s32.totalorder %s15, 0
    %p42 = por %p40, %p41
    %s44 = sadd.s32 %s43, 1
    %p47 = scmp.eq.s32.totalorder %s9, 1
    %p48 = scmp.ne.s32.totalorder %s43, %s45
    %p49 = scmp.eq.s32.totalorder %s9, 0
    %p50 = por %p48, %p49
    %p51 = scmp.ne.s32.totalorder %s43, %s45
    %p52 = scmp.eq.s32.totalorder %s14, 1
    %p53 = por %p51, %p52
    %p54 = scmp.ne.s32.totalorder %s45, %s46
    %p55 = scmp.eq.s32.totalorder %s14, 0
    %p56 = por %p54, %p55
    %p57 = scmp.ne.s32.totalorder %s45, %s46
    %p58 = scmp.eq.s32.totalorder %s15, 1
    %p59 = por %p57, %p58
    %p61 = scmp.ne.s32.totalorder %s46, %s60
    %p62 = scmp.eq.s32.totalorder %s15, 0
    %p63 = por %p61, %p62
    %s65 = sadd.s32 %s64, 1
    %p68 = scmp.eq.s32.totalorder %s9, 1
    %p69 = scmp.ne.s32.totalorder %s64, %s66
    %p70 = scmp.eq.s32.totalorder %s9, 0
    %p71 = por %p69, %p70
    %p72 = scmp.ne.s32.totalorder %s64, %s66
    %p73 = scmp.eq.s32.totalorder %s14, 1
    %p74 = por %p72, %p73
    %p75 = scmp.ne.s32.totalorder %s66, %s67
    %p76 = scmp.eq.s32.totalorder %s14, 0
    %p77 = por %p75, %p76
    %p78 = scmp.ne.s32.totalorder %s66, %s67
    %p79 = scmp.eq.s32.totalorder %s15, 1
    %p80 = por %p78, %p79
    %p82 = scmp.ne.s32.totalorder %s67, %s81
    %p83 = scmp.eq.s32.totalorder %s15, 0
    %p84 = por %p82, %p83
    %s85 = ssub.s32 %s9, %s16
    %p86 = scmp.eq.s32.totalorder %s85, 0
    %s88 = sadd.s32 %s87, 1
    %s89 = scalar_select %p86, %s87, %s88
    %p92 = pneg %p86
    %p93 = scmp.eq.s32.totalorder %s9, 1
    %p94 = por %p92, %p93
    %p95 = scmp.ne.s32.totalorder %s87, %s90
    %p96 = scmp.eq.s32.totalorder %s9, 0
    %p97 = por %p95, %p96
    %p98 = scmp.ne.s32.totalorder %s87, %s90
    %p99 = scmp.eq.s32.totalorder %s14, 1
    %p100 = por %p98, %p99
    %p101 = scmp.ne.s32.totalorder %s90, %s91
    %p102 = scmp.eq.s32.totalorder %s14, 0
    %p103 = por %p101, %p102
    %p104 = scmp.ne.s32.totalorder %s90, %s91
    %p105 = scmp.eq.s32.totalorder %s15, 1
    %p106 = por %p104, %p105
    %p108 = scmp.ne.s32.totalorder %s91, %s107
    %p109 = scmp.eq.s32.totalorder %s15, 0
    %p110 = por %p108, %p109
    %p111 = scmp.le.s32.totalorder 1, %s9
    %p112 = scmp.lt.s32.totalorder %s9, 3
    %p113 = pnand %p111, %p112
    %p114 = pneg %p113
    // Predicated region
    $region9: #{_forward_impl.14} parent=5 // pred_check
      _
    $region10: #{_forward_impl.14} parent=5 // pred_check_branch
      %116 = sbr.rel (%p113) target = $region12
    $region11: #{_forward_impl.14} parent=5 // pred_region
      %s117 = ssub.s32 %s9, 1
      // Predicated region
      $region13: #{_forward_impl.14} parent=11 // pred_check
        %p118 = pneg %p56
      $region14: #{_forward_impl.14} parent=11 // pred_check_branch
        %120 = sbr.rel (%p118) target = $region16
      $region15: #{_forward_impl.14} parent=11 // pred_region
        _
      $region16: #{_forward_impl.14} parent=11 // pred_fallthru
        _
      // Predicated region
      $region17: #{_forward_impl.14} parent=11 // pred_check
        %p121 = pneg %p77
      $region18: #{_forward_impl.14} parent=11 // pred_check_branch
        %123 = sbr.rel (%p121) target = $region20
      $region19: #{_forward_impl.14} parent=11 // pred_region
        _
      $region20: #{_forward_impl.14} parent=11 // pred_fallthru
        _
    $region12: #{_forward_impl.14} parent=5 // pred_fallthru
      _
    %p124 = scmp.lt.s32.totalorder %s9, 2
    // Predicated region
    $region21: #{_forward_impl.14} parent=5 // pred_check
      %p125 = pneg %p124
    $region22: #{_forward_impl.14} parent=5 // pred_check_branch
      %127 = sbr.rel (%p125) target = $region24
    $region23: #{_forward_impl.14} parent=5 // pred_region
      // Predicated region
      $region25: #{_forward_impl.14} parent=23 // pred_check
        %p128 = pneg %p29
      $region26: #{_forward_impl.14} parent=23 // pred_check_branch
        %130 = sbr.rel (%p128) target = $region28
      $region27: #{_forward_impl.14} parent=23 // pred_region
        %p131 = scmp.lt.s32.totalorder %s9, 1
        %s132 = scalar_select %p131, %s9, 1
        %s133 = smul.addr %s132, 3
        %s134 = smul.addr %s133, 8
        %s135 = scalar_lea.vmem %s0, %s134
      $region28: #{_forward_impl.14} parent=23 // pred_fallthru
        _
    $region24: #{_forward_impl.14} parent=5 // pred_fallthru
      _
    %p136 = scmp.le.s32.totalorder 1, %s9
    %p137 = scmp.lt.s32.totalorder %s9, 3
    %p138 = pnand %p136, %p137
    %p139 = pneg %p138
    // Predicated region
    $region29: #{_forward_impl.14} parent=5 // pred_check
      _
    $region30: #{_forward_impl.14} parent=5 // pred_check_branch
      %141 = sbr.rel (%p138) target = $region32
    $region31: #{_forward_impl.14} parent=5 // pred_region
      %s142 = ssub.s32 %s9, 1
      %p143 = scmp.lt.s32.totalorder %s14, 1
      %s144 = scalar_select %p143, %s14, 1
      %s145 = smul.addr %s144, 3
      %s146 = smul.addr %s145, 8
      %s147 = scalar_lea.vmem %s0, %s146
      %p148 = pneg %p35
      %p149 = pneg %p32
      %p150 = pneg %p56
      %p151 = pneg %p53
      %p152 = pneg %p77
      %p153 = pneg %p74
      %p154 = pneg %p103
      %p155 = pneg %p100
      %p156 = scmp.lt.s32.totalorder %s14, 1
      %s157 = scalar_select %p156, %s14, 1
      %s158 = smul.addr %s157, 3
      %s159 = smul.addr %s158, 4
      %s160 = scalar_lea.vmem %s3, %s159
      %p161 = scmp.lt.s32.totalorder %s14, 1
      %s162 = scalar_select %p161, %s14, 1
      %s163 = smul.addr %s162, 3
      %s164 = smul.addr %s163, 8
      %s165 = scalar_lea.vmem %s0, %s164
      %p166 = scmp.lt.s32.totalorder %s14, 1
      %s167 = scalar_select %p166, %s14, 1
      %s168 = smul.addr %s167, 3
      %s169 = smul.addr %s168, 4
      %s170 = scalar_lea.vmem %s3, %s169
      %v171 = vld [vmem:[%s165] sm:$0xff]
      %v172 = vld [vmem:[%s165 + $0x8] sm:$0xff]
      %v173 = vld [vmem:[%s165 + $0x10] sm:$0xf]
      %v174 = vld [vmem:[%s1] sm:$0x1]
      %v176 = vperm.slane %v174, 0
      %v178 = vmul.f32 %v171, %v176
      %v179 = vmul.f32 %v172, %v176
      %v180 = vmul.f32 %v173, %v176
      %v181 = vld [vmem:[%s2] sm:$0x1]
      %v183 = vperm.slane %v181, 0
      %v185 = vadd.f32 %v178, %v183
      %v186 = vadd.f32 %v179, %v183
      %v187 = vadd.f32 %v180, %v183
      %vm188 = vcmp.ge.f32.partialorder %v185, 0.0
      %vm189 = vcmp.ge.f32.partialorder %v186, 0.0
      %vm190 = vcmp.ge.f32.partialorder %v187, 0.0
      %v191 = vmul.f32 %v185, 0.2
      %v192 = vmul.f32 %v186, 0.2
      %v193 = vmul.f32 %v187, 0.2
      %v194 = vsel %vm188, %v185, %v191
      %v195 = vsel %vm189, %v186, %v192
      %v196 = vsel %vm190, %v187, %v193
      %v197 = vpack.c.bf16 %v194, %v194
      %v198 = vpack.c.bf16 %v195, %v195
      %v199 = vpack.c.bf16 %v196, %v196
      %200 = vst [vmem:[%s170] sm:$0xf] %v197
      %201 = vst [vmem:[%s170 + $0x4] sm:$0xf] %v198
      %202 = vst [vmem:[%s170 + $0x8] sm:$0x3] %v199
      %p203 = scmp.lt.s32.totalorder %s14, 1
      %s204 = scalar_select %p203, %s14, 1
      %s205 = smul.addr %s204, 3
      %s206 = smul.addr %s205, 4
      %s207 = scalar_lea.vmem %s3, %s206
      // Predicated region
      $region33: #{_forward_impl.14} parent=31 // pred_check
        %p208 = pneg %p100
      $region34: #{_forward_impl.14} parent=31 // pred_check_branch
        %210 = sbr.rel (%p208) target = $region36
      $region35: #{_forward_impl.14} parent=31 // pred_region
        _
      $region36: #{_forward_impl.14} parent=31 // pred_fallthru
        _
    $region32: #{_forward_impl.14} parent=5 // pred_fallthru
      _
    %p211 = scmp.le.s32.totalorder 2, %s9
    // Predicated region
    $region37: #{_forward_impl.14} parent=5 // pred_check
      %p212 = pneg %p211
    $region38: #{_forward_impl.14} parent=5 // pred_check_branch
      %214 = sbr.rel (%p212) target = $region40
    $region39: #{_forward_impl.14} parent=5 // pred_region
      %s215 = ssub.s32 %s9, 2
      // Predicated region
      $region41: #{_forward_impl.14} parent=39 // pred_check
        %p216 = pneg %p106
      $region42: #{_forward_impl.14} parent=39 // pred_check_branch
        %218 = sbr.rel (%p216) target = $region44
      $region43: #{_forward_impl.14} parent=39 // pred_region
        %p219 = scmp.lt.s32.totalorder %s15, 1
        %s220 = scalar_select %p219, %s15, 1
        %s221 = smul.addr %s220, 3
        %s222 = smul.addr %s221, 4
        %s223 = scalar_lea.vmem %s3, %s222
      $region44: #{_forward_impl.14} parent=39 // pred_fallthru
        _
    $region40: #{_forward_impl.14} parent=5 // pred_fallthru
      _
  $region6: #{_forward_impl.14} parent=0 // loop_footer
    %s13 = sadd.s32 1, %s9
  $region7: #{_forward_impl.14} parent=0 // loop_footer_branch
    %8 = sbr.rel target = $region3
  $region8: #{_forward_impl.14} parent=0 // loop_exit
    _

// kernel: _forward_impl.13
$region0: #{_forward_impl.13}
  #allocation0 [shape = 'u32[]', space=smem, size = 0x4, offset = 0x4, fixed_abs, tag = 'smem constant byte address 0x4 - core index']
  #allocation1 [shape = 'u32[72,128]{1,0:T(1,128)}', space=vmem, size = 0x9000, scoped, tag = 'internal scratch']
  %s0 = inlined_call_operand.vmem [shape: bf16[2,32,256], index: 0, kind: input, shape index: {}]
  %s1 = inlined_call_operand.vmem [shape: bf16[4,256,128], index: 1, kind: input, shape index: {}]
  %s2 = inlined_call_operand.vmem [shape: f32[20,1], index: 2, kind: input, shape index: {}]
  %s3 = inlined_call_operand.vmem [shape: f32[2,20,128], index: 3, kind: output, shape index: {0}]
  %s4 = inlined_call_operand.vmem [shape: f32[2,1,128], index: 4, kind: output, shape index: {1}]
  %s5 = inlined_call_operand.vmem [shape: f32[2,1,128], index: 5, kind: output, shape index: {2}]
  %6 = xla_tuple %s3, %s4, %s5
  %s7 = sld [smem:[#allocation0]]
  $region61: #{_forward_impl.13} parent=0
    _
  %s9 = ssub.s32 1, %s7
  %s10 = scalar_select 0, %s9, %s7
  loop: start=0, step=1, limit=4
  $region2: #{_forward_impl.13} parent=0 // loop_pre_header
    _
  $region3: #{_forward_impl.13} parent=0 // loop_header
    %s12 = sphi 0, %s16
    %p13 = scmp.ge.s32.totalorder %s12, 4
    %s22 = sphi 0, %s24
    %s25 = sphi 0, %s22
    %s26 = sphi 0, %s25
    %s42 = sphi 0, %s26
    %s46 = sphi 0, %s46
    %s48 = sphi 0, %s46
    %s49 = sphi 0, %s48
    %s63 = sphi 0, %s49
    %s67 = sphi 0, %s67
    %s69 = sphi 0, %s67
    %s70 = sphi 0, %s69
    %s84 = sphi 0, %s70
    %s90 = sphi 0, %s92
    %s93 = sphi 0, %s90
    %s94 = sphi 0, %s93
    %s110 = sphi 0, %s94
    %s116 = sphi 0, %s118
    %s119 = sphi 0, %s116
    %s120 = sphi 0, %s119
    %s136 = sphi 0, %s120
    %s142 = sphi 0, %s144
    %s145 = sphi 0, %s142
    %s146 = sphi 0, %s145
    %s162 = sphi 0, %s146
  $region4: #{_forward_impl.13} parent=0 // loop_header_branch
    %15 = sbr.rel (%p13) target = $region8
  $region5: #{_forward_impl.13} parent=0 // loop_body
    %s17 = ssub.s32 %s12, 1
    %s18 = ssub.s32 %s12, 2
    %s19 = sadd.s32 %s12, 1
    %s20 = ssub.s32 %s12, %s19
    %p21 = scmp.eq.s32.totalorder %s20, 0
    %s23 = sadd.s32 %s22, 1
    %s24 = scalar_select %p21, %s22, %s23
    %p27 = pneg %p21
    %p28 = scmp.eq.s32.totalorder %s12, 1
    %p29 = por %p27, %p28
    %p30 = scmp.ne.s32.totalorder %s22, %s25
    %p31 = scmp.eq.s32.totalorder %s12, 0
    %p32 = por %p30, %p31
    %p33 = scmp.ne.s32.totalorder %s22, %s25
    %p34 = scmp.eq.s32.totalorder %s17, 1
    %p35 = por %p33, %p34
    %p36 = scmp.ne.s32.totalorder %s25, %s26
    %p37 = scmp.eq.s32.totalorder %s17, 0
    %p38 = por %p36, %p37
    %p39 = scmp.ne.s32.totalorder %s25, %s26
    %p40 = scmp.eq.s32.totalorder %s18, 1
    %p41 = por %p39, %p40
    %p43 = scmp.ne.s32.totalorder %s26, %s42
    %p44 = scmp.eq.s32.totalorder %s18, 0
    %p45 = por %p43, %p44
    %s47 = sadd.s32 %s46, 1
    %p50 = scmp.eq.s32.totalorder %s12, 1
    %p51 = scmp.ne.s32.totalorder %s46, %s48
    %p52 = scmp.eq.s32.totalorder %s12, 0
    %p53 = por %p51, %p52
    %p54 = scmp.ne.s32.totalorder %s46, %s48
    %p55 = scmp.eq.s32.totalorder %s17, 1
    %p56 = por %p54, %p55
    %p57 = scmp.ne.s32.totalorder %s48, %s49
    %p58 = scmp.eq.s32.totalorder %s17, 0
    %p59 = por %p57, %p58
    %p60 = scmp.ne.s32.totalorder %s48, %s49
    %p61 = scmp.eq.s32.totalorder %s18, 1
    %p62 = por %p60, %p61
    %p64 = scmp.ne.s32.totalorder %s49, %s63
    %p65 = scmp.eq.s32.totalorder %s18, 0
    %p66 = por %p64, %p65
    %s68 = sadd.s32 %s67, 1
    %p71 = scmp.eq.s32.totalorder %s12, 1
    %p72 = scmp.ne.s32.totalorder %s67, %s69
    %p73 = scmp.eq.s32.totalorder %s12, 0
    %p74 = por %p72, %p73
    %p75 = scmp.ne.s32.totalorder %s67, %s69
    %p76 = scmp.eq.s32.totalorder %s17, 1
    %p77 = por %p75, %p76
    %p78 = scmp.ne.s32.totalorder %s69, %s70
    %p79 = scmp.eq.s32.totalorder %s17, 0
    %p80 = por %p78, %p79
    %p81 = scmp.ne.s32.totalorder %s69, %s70
    %p82 = scmp.eq.s32.totalorder %s18, 1
    %p83 = por %p81, %p82
    %p85 = scmp.ne.s32.totalorder %s70, %s84
    %p86 = scmp.eq.s32.totalorder %s18, 0
    %p87 = por %p85, %p86
    %s88 = ssub.s32 %s12, %s19
    %p89 = scmp.eq.s32.totalorder %s88, 0
    %s91 = sadd.s32 %s90, 1
    %s92 = scalar_select %p89, %s90, %s91
    %p95 = pneg %p89
    %p96 = scmp.eq.s32.totalorder %s12, 1
    %p97 = por %p95, %p96
    %p98 = scmp.ne.s32.totalorder %s90, %s93
    %p99 = scmp.eq.s32.totalorder %s12, 0
    %p100 = por %p98, %p99
    %p101 = scmp.ne.s32.totalorder %s90, %s93
    %p102 = scmp.eq.s32.totalorder %s17, 1
    %p103 = por %p101, %p102
    %p104 = scmp.ne.s32.totalorder %s93, %s94
    %p105 = scmp.eq.s32.totalorder %s17, 0
    %p106 = por %p104, %p105
    %p107 = scmp.ne.s32.totalorder %s93, %s94
    %p108 = scmp.eq.s32.totalorder %s18, 1
    %p109 = por %p107, %p108
    %p111 = scmp.ne.s32.totalorder %s94, %s110
    %p112 = scmp.eq.s32.totalorder %s18, 0
    %p113 = por %p111, %p112
    %s114 = ssub.s32 %s12, %s19
    %p115 = scmp.eq.s32.totalorder %s114, 0
    %s117 = sadd.s32 %s116, 1
    %s118 = scalar_select %p115, %s116, %s117
    %p121 = pneg %p115
    %p122 = scmp.eq.s32.totalorder %s12, 1
    %p123 = por %p121, %p122
    %p124 = scmp.ne.s32.totalorder %s116, %s119
    %p125 = scmp.eq.s32.totalorder %s12, 0
    %p126 = por %p124, %p125
    %p127 = scmp.ne.s32.totalorder %s116, %s119
    %p128 = scmp.eq.s32.totalorder %s17, 1
    %p129 = por %p127, %p128
    %p130 = scmp.ne.s32.totalorder %s119, %s120
    %p131 = scmp.eq.s32.totalorder %s17, 0
    %p132 = por %p130, %p131
    %p133 = scmp.ne.s32.totalorder %s119, %s120
    %p134 = scmp.eq.s32.totalorder %s18, 1
    %p135 = por %p133, %p134
    %p137 = scmp.ne.s32.totalorder %s120, %s136
    %p138 = scmp.eq.s32.totalorder %s18, 0
    %p139 = por %p137, %p138
    %s140 = ssub.s32 %s12, %s19
    %p141 = scmp.eq.s32.totalorder %s140, 0
    %s143 = sadd.s32 %s142, 1
    %s144 = scalar_select %p141, %s142, %s143
    %p147 = pneg %p141
    %p148 = scmp.eq.s32.totalorder %s12, 1
    %p149 = por %p147, %p148
    %p150 = scmp.ne.s32.totalorder %s142, %s145
    %p151 = scmp.eq.s32.totalorder %s12, 0
    %p152 = por %p150, %p151
    %p153 = scmp.ne.s32.totalorder %s142, %s145
    %p154 = scmp.eq.s32.totalorder %s17, 1
    %p155 = por %p153, %p154
    %p156 = scmp.ne.s32.totalorder %s145, %s146
    %p157 = scmp.eq.s32.totalorder %s17, 0
    %p158 = por %p156, %p157
    %p159 = scmp.ne.s32.totalorder %s145, %s146
    %p160 = scmp.eq.s32.totalorder %s18, 1
    %p161 = por %p159, %p160
    %p163 = scmp.ne.s32.totalorder %s146, %s162
    %p164 = scmp.eq.s32.totalorder %s18, 0
    %p165 = por %p163, %p164
    %p166 = scmp.le.s32.totalorder 1, %s12
    %p167 = scmp.lt.s32.totalorder %s12, 3
    %p168 = pnand %p166, %p167
    %p169 = pneg %p168
    // Predicated region
    $region9: #{_forward_impl.13} parent=5 // pred_check
      _
    $region10: #{_forward_impl.13} parent=5 // pred_check_branch
      %171 = sbr.rel (%p168) target = $region12
    $region11: #{_forward_impl.13} parent=5 // pred_region
      %s172 = ssub.s32 %s12, 1
      // Predicated region
      $region13: #{_forward_impl.13} parent=11 // pred_check
        %p173 = pneg %p59
      $region14: #{_forward_impl.13} parent=11 // pred_check_branch
        %175 = sbr.rel (%p173) target = $region16
      $region15: #{_forward_impl.13} parent=11 // pred_region
        _
      $region16: #{_forward_impl.13} parent=11 // pred_fallthru
        _
      // Predicated region
      $region17: #{_forward_impl.13} parent=11 // pred_check
        %p176 = pneg %p80
      $region18: #{_forward_impl.13} parent=11 // pred_check_branch
        %178 = sbr.rel (%p176) target = $region20
      $region19: #{_forward_impl.13} parent=11 // pred_region
        _
      $region20: #{_forward_impl.13} parent=11 // pred_fallthru
        _
    $region12: #{_forward_impl.13} parent=5 // pred_fallthru
      _
    %p179 = scmp.lt.s32.totalorder %s12, 2
    // Predicated region
    $region21: #{_forward_impl.13} parent=5 // pred_check
      %p180 = pneg %p179
    $region22: #{_forward_impl.13} parent=5 // pred_check_branch
      %182 = sbr.rel (%p180) target = $region24
    $region23: #{_forward_impl.13} parent=5 // pred_region
      // Predicated region
      $region25: #{_forward_impl.13} parent=23 // pred_check
        %p183 = pneg %p32
      $region26: #{_forward_impl.13} parent=23 // pred_check_branch
        %185 = sbr.rel (%p183) target = $region28
      $region27: #{_forward_impl.13} parent=23 // pred_region
        %p186 = scmp.lt.s32.totalorder %s12, 1
        %s187 = scalar_select %p186, %s12, 1
        %s188 = smul.addr %s187, 8
        %s189 = smul.addr %s188, 4
        %s190 = scalar_lea.vmem %s0, %s189
      $region28: #{_forward_impl.13} parent=23 // pred_fallthru
        _
    $region24: #{_forward_impl.13} parent=5 // pred_fallthru
      _
    %p191 = scmp.le.s32.totalorder 1, %s12
    %p192 = scmp.lt.s32.totalorder %s12, 3
    %p193 = pnand %p191, %p192
    %p194 = pneg %p193
    // Predicated region
    $region29: #{_forward_impl.13} parent=5 // pred_check
      _
    $region30: #{_forward_impl.13} parent=5 // pred_check_branch
      %196 = sbr.rel (%p193) target = $region32
    $region31: #{_forward_impl.13} parent=5 // pred_region
      %s197 = ssub.s32 %s12, 1
      %p198 = scmp.lt.s32.totalorder %s17, 1
      %s199 = scalar_select %p198, %s17, 1
      %s200 = smul.addr %s199, 8
      %s201 = smul.addr %s200, 4
      %s202 = scalar_lea.vmem %s0, %s201
      %p203 = pneg %p38
      %p204 = pneg %p35
      %p205 = pneg %p59
      %p206 = pneg %p56
      %p207 = pneg %p80
      %p208 = pneg %p77
      %p209 = pneg %p106
      %p210 = pneg %p103
      %p211 = scmp.lt.s32.totalorder %s17, 1
      %s212 = scalar_select %p211, %s17, 1
      %s213 = smul.addr %s212, 3
      %s214 = smul.addr %s213, 8
      %s215 = scalar_lea.vmem %s3, %s214
      %p216 = pneg %p132
      %p217 = pneg %p129
      %p218 = scmp.lt.s32.totalorder %s17, 1
      %s219 = scalar_select %p218, %s17, 1
      %s220 = scalar_lea.vmem %s4, %s219
      %p221 = pneg %p158
      %p222 = pneg %p155
      %p223 = scmp.lt.s32.totalorder %s17, 1
      %s224 = scalar_select %p223, %s17, 1
      %s225 = scalar_lea.vmem %s5, %s224
      %p226 = scmp.lt.s32.totalorder %s17, 1
      %s227 = scalar_select %p226, %s17, 1
      %s228 = smul.addr %s227, 8
      %s229 = smul.addr %s228, 4
      %s230 = scalar_lea.vmem %s0, %s229
      %p231 = scmp.lt.s32.totalorder %s17, 1
      %s232 = scalar_select %p231, %s17, 1
      %s233 = smul.addr %s232, 3
      %s234 = smul.addr %s233, 8
      %s235 = scalar_lea.vmem %s3, %s234
      %p236 = scmp.lt.s32.totalorder %s17, 1
      %s237 = scalar_select %p236, %s17, 1
      %s238 = scalar_lea.vmem %s4, %s237
      %p239 = scmp.lt.s32.totalorder %s17, 1
      %s240 = scalar_select %p239, %s17, 1
      %s241 = scalar_lea.vmem %s5, %s240
      %v242 = vld [vmem:[%s230] sm:$0xff]
      %v243 = vld [vmem:[%s230 + $0x8] sm:$0xff]
      %v244 = vld [vmem:[%s230 + $0x10] sm:$0xff]
      %v245 = vld [vmem:[%s230 + $0x18] sm:$0xff]
      %v246 = vld [vmem:[%s1] sm:$0xf]
      %v247 = vld [vmem:[%s1 + $0x4] sm:$0xf]
      %v248 = vld [vmem:[%s1 + $0x8] sm:$0xf]
      %v249 = vld [vmem:[%s1 + $0xc] sm:$0xf]
      %v250 = vld [vmem:[%s1 + $0x10] sm:$0xf]
      %v251 = vld [vmem:[%s1 + $0x14] sm:$0xf]
      %v252 = vld [vmem:[%s1 + $0x18] sm:$0xf]
      %v253 = vld [vmem:[%s1 + $0x1c] sm:$0xf]
      %v254 = vld [vmem:[%s1 + $0x20] sm:$0xf]
      %v255 = vld [vmem:[%s1 + $0x24] sm:$0xf]
      %v256 = vld [vmem:[%s1 + $0x28] sm:$0xf]
      %v257 = vld [vmem:[%s1 + $0x2c] sm:$0xf]
      %v258 = vld [vmem:[%s1 + $0x30] sm:$0xf]
      %v259 = vld [vmem:[%s1 + $0x34] sm:$0xf]
      %v260 = vld [vmem:[%s1 + $0x38] sm:$0xf]
      %v261 = vld [vmem:[%s1 + $0x3c] sm:$0xf]
      %v262 = vld [vmem:[%s1 + $0x40] sm:$0xf]
      %v263 = vld [vmem:[%s1 + $0x44] sm:$0xf]
      %v264 = vld [vmem:[%s1 + $0x48] sm:$0xf]
      %v265 = vld [vmem:[%s1 + $0x4c] sm:$0xf]
      %v266 = vld [vmem:[%s1 + $0x50] sm:$0xf]
      %v267 = vld [vmem:[%s1 + $0x54] sm:$0xf]
      %v268 = vld [vmem:[%s1 + $0x58] sm:$0xf]
      %v269 = vld [vmem:[%s1 + $0x5c] sm:$0xf]
      %v270 = vld [vmem:[%s1 + $0x60] sm:$0xf]
      %v271 = vld [vmem:[%s1 + $0x64] sm:$0xf]
      %v272 = vld [vmem:[%s1 + $0x68] sm:$0xf]
      %v273 = vld [vmem:[%s1 + $0x6c] sm:$0xf]
      %v274 = vld [vmem:[%s1 + $0x70] sm:$0xf]
      %v275 = vld [vmem:[%s1 + $0x74] sm:$0xf]
      %v276 = vld [vmem:[%s1 + $0x78] sm:$0xf]
      %v277 = vld [vmem:[%s1 + $0x7c] sm:$0xf]
      %v282 = vunpack.c.l.b16 %v242
      %v283 = vunpack.c.h.b16 %v242
      %v284 = vunpack.c.l.b16 %v243
      %v285 = vunpack.c.h.b16 %v243
      %v286 = vunpack.c.l.b16 %v244
      %v287 = vunpack.c.h.b16 %v244
      %v288 = vunpack.c.l.b16 %v245
      %v289 = vunpack.c.h.b16 %v245
      %v290 = vpack.c.b16 %v284, %v282
      %v291 = vpack.c.b16 %v285, %v283
      %v292 = vpack.c.b16 %v288, %v286
      %v293 = vpack.c.b16 %v289, %v287
      %v330 = vunpack.c.l.b16 %v246
      %v331 = vunpack.c.l.b16 %v247
      %v332 = vunpack.c.l.b16 %v248
      %v333 = vunpack.c.l.b16 %v249
      %v334 = vunpack.c.l.b16 %v250
      %v335 = vunpack.c.l.b16 %v251
      %v336 = vunpack.c.l.b16 %v252
      %v337 = vunpack.c.l.b16 %v253
      %v338 = vunpack.c.l.b16 %v254
      %v339 = vunpack.c.l.b16 %v255
      %v340 = vunpack.c.l.b16 %v256
      %v341 = vunpack.c.l.b16 %v257
      %v342 = vunpack.c.l.b16 %v258
      %v343 = vunpack.c.l.b16 %v259
      %v344 = vunpack.c.l.b16 %v260
      %v345 = vunpack.c.l.b16 %v261
      %v346 = vunpack.c.l.b16 %v262
      %v347 = vunpack.c.l.b16 %v263
      %v348 = vunpack.c.l.b16 %v264
      %v349 = vunpack.c.l.b16 %v265
      %v350 = vunpack.c.l.b16 %v266
      %v351 = vunpack.c.l.b16 %v267
      %v352 = vunpack.c.l.b16 %v268
      %v353 = vunpack.c.l.b16 %v269
      %v354 = vunpack.c.l.b16 %v270
      %v355 = vunpack.c.l.b16 %v271
      %v356 = vunpack.c.l.b16 %v272
      %v357 = vunpack.c.l.b16 %v273
      %v358 = vunpack.c.l.b16 %v274
      %v359 = vunpack.c.l.b16 %v275
      %v360 = vunpack.c.l.b16 %v276
      %v361 = vunpack.c.l.b16 %v277
      %v362 = vpack.c.b16 %v331, %v330
      %v363 = vpack.c.b16 %v333, %v332
      %v364 = vpack.c.b16 %v335, %v334
      %v365 = vpack.c.b16 %v337, %v336
      %v366 = vpack.c.b16 %v339, %v338
      %v367 = vpack.c.b16 %v341, %v340
      %v368 = vpack.c.b16 %v343, %v342
      %v369 = vpack.c.b16 %v345, %v344
      %v370 = vpack.c.b16 %v347, %v346
      %v371 = vpack.c.b16 %v349, %v348
      %v372 = vpack.c.b16 %v351, %v350
      %v373 = vpack.c.b16 %v353, %v352
      %v374 = vpack.c.b16 %v355, %v354
      %v375 = vpack.c.b16 %v357, %v356
      %v376 = vpack.c.b16 %v359, %v358
      %v377 = vpack.c.b16 %v361, %v360
      %394 = vmatpush.bf16.msra.mxu0 %v369
      %395 = vmatpush.bf16.msra.mxu0 %v368
      %396 = vmatpush.bf16.msra.mxu0 %v367
      %397 = vmatpush.bf16.msra.mxu0 %v366
      %398 = vmatpush.bf16.msra.mxu0 %v365
      %399 = vmatpush.bf16.msra.mxu0 %v364
      %400 = vmatpush.bf16.msra.mxu0 %v363
      %401 = vmatpush.bf16.msra.mxu0 %v362
      %402 = vmatmul.bf16.gmra.mxu0 %v290
      %v403 = vpop.f32.mrf.mxu0
      %v404 = vadd.f32 0.0, %v403
      %v405 = vpop.f32.mrf.mxu0
      %v406 = vadd.f32 0.0, %v405
      %407 = vmatmul.bf16.gmra.mxu0 %v292
      %v408 = vpop.f32.mrf.mxu0
      %v409 = vadd.f32 0.0, %v408
      %v410 = vpop.f32.mrf.mxu0
      %411 = vdwg.mxu0
      %412 = vmatpush.bf16.msra.mxu0 %v377
      %413 = vmatpush.bf16.msra.mxu0 %v376
      %414 = vmatpush.bf16.msra.mxu0 %v375
      %415 = vmatpush.bf16.msra.mxu0 %v374
      %416 = vmatpush.bf16.msra.mxu0 %v373
      %417 = vmatpush.bf16.msra.mxu0 %v372
      %418 = vmatpush.bf16.msra.mxu0 %v371
      %419 = vmatpush.bf16.msra.mxu0 %v370
      %420 = vmatmul.bf16.gmra.mxu0 %v291
      %v421 = vpop.f32.mrf.mxu0
      %v422 = vadd.f32 %v404, %v421
      %v423 = vpop.f32.mrf.mxu0
      %v424 = vadd.f32 %v406, %v423
      %425 = vmatmul.bf16.gmra.mxu0 %v293
      %v426 = vpop.f32.mrf.mxu0
      %v427 = vadd.f32 %v409, %v426
      %v428 = vpop.f32.mrf.mxu0
      %429 = vdwg.mxu0
      %s430 = scalar_lea.vmem %s1, 128
      %v431 = vld [vmem:[%s430] sm:$0xf]
      %v432 = vld [vmem:[%s430 + $0x4] sm:$0xf]
      %v433 = vld [vmem:[%s430 + $0x8] sm:$0xf]
      %v434 = vld [vmem:[%s430 + $0xc] sm:$0xf]
      %v435 = vld [vmem:[%s430 + $0x10] sm:$0xf]
      %v436 = vld [vmem:[%s430 + $0x14] sm:$0xf]
      %v437 = vld [vmem:[%s430 + $0x18] sm:$0xf]
      %v438 = vld [vmem:[%s430 + $0x1c] sm:$0xf]
      %v439 = vld [vmem:[%s430 + $0x20] sm:$0xf]
      %v440 = vld [vmem:[%s430 + $0x24] sm:$0xf]
      %v441 = vld [vmem:[%s430 + $0x28] sm:$0xf]
      %v442 = vld [vmem:[%s430 + $0x2c] sm:$0xf]
      %v443 = vld [vmem:[%s430 + $0x30] sm:$0xf]
      %v444 = vld [vmem:[%s430 + $0x34] sm:$0xf]
      %v445 = vld [vmem:[%s430 + $0x38] sm:$0xf]
      %v446 = vld [vmem:[%s430 + $0x3c] sm:$0xf]
      %v447 = vld [vmem:[%s430 + $0x40] sm:$0xf]
      %v448 = vld [vmem:[%s430 + $0x44] sm:$0xf]
      %v449 = vld [vmem:[%s430 + $0x48] sm:$0xf]
      %v450 = vld [vmem:[%s430 + $0x4c] sm:$0xf]
      %v451 = vld [vmem:[%s430 + $0x50] sm:$0xf]
      %v452 = vld [vmem:[%s430 + $0x54] sm:$0xf]
      %v453 = vld [vmem:[%s430 + $0x58] sm:$0xf]
      %v454 = vld [vmem:[%s430 + $0x5c] sm:$0xf]
      %v455 = vld [vmem:[%s430 + $0x60] sm:$0xf]
      %v456 = vld [vmem:[%s430 + $0x64] sm:$0xf]
      %v457 = vld [vmem:[%s430 + $0x68] sm:$0xf]
      %v458 = vld [vmem:[%s430 + $0x6c] sm:$0xf]
      %v459 = vld [vmem:[%s430 + $0x70] sm:$0xf]
      %v460 = vld [vmem:[%s430 + $0x74] sm:$0xf]
      %v461 = vld [vmem:[%s430 + $0x78] sm:$0xf]
      %v462 = vld [vmem:[%s430 + $0x7c] sm:$0xf]
      %v495 = vunpack.c.l.b16 %v431
      %v496 = vunpack.c.l.b16 %v432
      %v497 = vunpack.c.l.b16 %v433
      %v498 = vunpack.c.l.b16 %v434
      %v499 = vunpack.c.l.b16 %v435
      %v500 = vunpack.c.l.b16 %v436
      %v501 = vunpack.c.l.b16 %v437
      %v502 = vunpack.c.l.b16 %v438
      %v503 = vunpack.c.l.b16 %v439
      %v504 = vunpack.c.l.b16 %v440
      %v505 = vunpack.c.l.b16 %v441
      %v506 = vunpack.c.l.b16 %v442
      %v507 = vunpack.c.l.b16 %v443
      %v508 = vunpack.c.l.b16 %v444
      %v509 = vunpack.c.l.b16 %v445
      %v510 = vunpack.c.l.b16 %v446
      %v511 = vunpack.c.l.b16 %v447
      %v512 = vunpack.c.l.b16 %v448
      %v513 = vunpack.c.l.b16 %v449
      %v514 = vunpack.c.l.b16 %v450
      %v515 = vunpack.c.l.b16 %v451
      %v516 = vunpack.c.l.b16 %v452
      %v517 = vunpack.c.l.b16 %v453
      %v518 = vunpack.c.l.b16 %v454
      %v519 = vunpack.c.l.b16 %v455
      %v520 = vunpack.c.l.b16 %v456
      %v521 = vunpack.c.l.b16 %v457
      %v522 = vunpack.c.l.b16 %v458
      %v523 = vunpack.c.l.b16 %v459
      %v524 = vunpack.c.l.b16 %v460
      %v525 = vunpack.c.l.b16 %v461
      %v526 = vunpack.c.l.b16 %v462
      %v527 = vpack.c.b16 %v496, %v495
      %v528 = vpack.c.b16 %v498, %v497
      %v529 = vpack.c.b16 %v500, %v499
      %v530 = vpack.c.b16 %v502, %v501
      %v531 = vpack.c.b16 %v504, %v503
      %v532 = vpack.c.b16 %v506, %v505
      %v533 = vpack.c.b16 %v508, %v507
      %v534 = vpack.c.b16 %v510, %v509
      %v535 = vpack.c.b16 %v512, %v511
      %v536 = vpack.c.b16 %v514, %v513
      %v537 = vpack.c.b16 %v516, %v515
      %v538 = vpack.c.b16 %v518, %v517
      %v539 = vpack.c.b16 %v520, %v519
      %v540 = vpack.c.b16 %v522, %v521
      %v541 = vpack.c.b16 %v524, %v523
      %v542 = vpack.c.b16 %v526, %v525
      %559 = vmatpush.bf16.msra.mxu0 %v534
      %560 = vmatpush.bf16.msra.mxu0 %v533
      %561 = vmatpush.bf16.msra.mxu0 %v532
      %562 = vmatpush.bf16.msra.mxu0 %v531
      %563 = vmatpush.bf16.msra.mxu0 %v530
      %564 = vmatpush.bf16.msra.mxu0 %v529
      %565 = vmatpush.bf16.msra.mxu0 %v528
      %566 = vmatpush.bf16.msra.mxu0 %v527
      %567 = vmatmul.bf16.gmra.mxu0 %v290
      %v568 = vpop.f32.mrf.mxu0
      %v569 = vadd.f32 0.0, %v568
      %v570 = vpop.f32.mrf.mxu0
      %v571 = vadd.f32 0.0, %v570
      %572 = vmatmul.bf16.gmra.mxu0 %v292
      %v573 = vpop.f32.mrf.mxu0
      %v574 = vadd.f32 0.0, %v573
      %v575 = vpop.f32.mrf.mxu0
      %576 = vdwg.mxu0
      %577 = vmatpush.bf16.msra.mxu0 %v542
      %578 = vmatpush.bf16.msra.mxu0 %v541
      %579 = vmatpush.bf16.msra.mxu0 %v540
      %580 = vmatpush.bf16.msra.mxu0 %v539
      %581 = vmatpush.bf16.msra.mxu0 %v538
      %582 = vmatpush.bf16.msra.mxu0 %v537
      %583 = vmatpush.bf16.msra.mxu0 %v536
      %584 = vmatpush.bf16.msra.mxu0 %v535
      %585 = vmatmul.bf16.gmra.mxu0 %v291
      %v586 = vpop.f32.mrf.mxu0
      %v587 = vadd.f32 %v569, %v586
      %v588 = vpop.f32.mrf.mxu0
      %v589 = vadd.f32 %v571, %v588
      %590 = vmatmul.bf16.gmra.mxu0 %v293
      %v591 = vpop.f32.mrf.mxu0
      %v592 = vadd.f32 %v574, %v591
      %v593 = vpop.f32.mrf.mxu0
      %594 = vdwg.mxu0
      %vm598 = vcmask 1046528
      %v599 = vrot.slane %v587, 1
      %v600 = vrot.slane %v589, 1
      %v601 = vsel %vm598, %v599, %v600
      %v602 = vrot.slane %v592, 1
      %v603 = vsel %vm598, %v600, %v602
      %v607 = vadd.f32 %v422, %v601
      %v608 = vadd.f32 %v424, %v603
      %v609 = vadd.f32 %v427, %v602
      %s610 = scalar_lea.vmem %s1, 256
      %v611 = vld [vmem:[%s610] sm:$0xf]
      %v612 = vld [vmem:[%s610 + $0x4] sm:$0xf]
      %v613 = vld [vmem:[%s610 + $0x8] sm:$0xf]
      %v614 = vld [vmem:[%s610 + $0xc] sm:$0xf]
      %v615 = vld [vmem:[%s610 + $0x10] sm:$0xf]
      %v616 = vld [vmem:[%s610 + $0x14] sm:$0xf]
      %v617 = vld [vmem:[%s610 + $0x18] sm:$0xf]
      %v618 = vld [vmem:[%s610 + $0x1c] sm:$0xf]
      %v619 = vld [vmem:[%s610 + $0x20] sm:$0xf]
      %v620 = vld [vmem:[%s610 + $0x24] sm:$0xf]
      %v621 = vld [vmem:[%s610 + $0x28] sm:$0xf]
      %v622 = vld [vmem:[%s610 + $0x2c] sm:$0xf]
      %v623 = vld [vmem:[%s610 + $0x30] sm:$0xf]
      %v624 = vld [vmem:[%s610 + $0x34] sm:$0xf]
      %v625 = vld [vmem:[%s610 + $0x38] sm:$0xf]
      %v626 = vld [vmem:[%s610 + $0x3c] sm:$0xf]
      %v627 = vld [vmem:[%s610 + $0x40] sm:$0xf]
      %v628 = vld [vmem:[%s610 + $0x44] sm:$0xf]
      %v629 = vld [vmem:[%s610 + $0x48] sm:$0xf]
      %v630 = vld [vmem:[%s610 + $0x4c] sm:$0xf]
      %v631 = vld [vmem:[%s610 + $0x50] sm:$0xf]
      %v632 = vld [vmem:[%s610 + $0x54] sm:$0xf]
      %v633 = vld [vmem:[%s610 + $0x58] sm:$0xf]
      %v634 = vld [vmem:[%s610 + $0x5c] sm:$0xf]
      %v635 = vld [vmem:[%s610 + $0x60] sm:$0xf]
      %v636 = vld [vmem:[%s610 + $0x64] sm:$0xf]
      %v637 = vld [vmem:[%s610 + $0x68] sm:$0xf]
      %v638 = vld [vmem:[%s610 + $0x6c] sm:$0xf]
      %v639 = vld [vmem:[%s610 + $0x70] sm:$0xf]
      %v640 = vld [vmem:[%s610 + $0x74] sm:$0xf]
      %v641 = vld [vmem:[%s610 + $0x78] sm:$0xf]
      %v642 = vld [vmem:[%s610 + $0x7c] sm:$0xf]
      %v675 = vunpack.c.l.b16 %v611
      %v676 = vunpack.c.l.b16 %v612
      %v677 = vunpack.c.l.b16 %v613
      %v678 = vunpack.c.l.b16 %v614
      %v679 = vunpack.c.l.b16 %v615
      %v680 = vunpack.c.l.b16 %v616
      %v681 = vunpack.c.l.b16 %v617
      %v682 = vunpack.c.l.b16 %v618
      %v683 = vunpack.c.l.b16 %v619
      %v684 = vunpack.c.l.b16 %v620
      %v685 = vunpack.c.l.b16 %v621
      %v686 = vunpack.c.l.b16 %v622
      %v687 = vunpack.c.l.b16 %v623
      %v688 = vunpack.c.l.b16 %v624
      %v689 = vunpack.c.l.b16 %v625
      %v690 = vunpack.c.l.b16 %v626
      %v691 = vunpack.c.l.b16 %v627
      %v692 = vunpack.c.l.b16 %v628
      %v693 = vunpack.c.l.b16 %v629
      %v694 = vunpack.c.l.b16 %v630
      %v695 = vunpack.c.l.b16 %v631
      %v696 = vunpack.c.l.b16 %v632
      %v697 = vunpack.c.l.b16 %v633
      %v698 = vunpack.c.l.b16 %v634
      %v699 = vunpack.c.l.b16 %v635
      %v700 = vunpack.c.l.b16 %v636
      %v701 = vunpack.c.l.b16 %v637
      %v702 = vunpack.c.l.b16 %v638
      %v703 = vunpack.c.l.b16 %v639
      %v704 = vunpack.c.l.b16 %v640
      %v705 = vunpack.c.l.b16 %v641
      %v706 = vunpack.c.l.b16 %v642
      %v707 = vpack.c.b16 %v676, %v675
      %v708 = vpack.c.b16 %v678, %v677
      %v709 = vpack.c.b16 %v680, %v679
      %v710 = vpack.c.b16 %v682, %v681
      %v711 = vpack.c.b16 %v684, %v683
      %v712 = vpack.c.b16 %v686, %v685
      %v713 = vpack.c.b16 %v688, %v687
      %v714 = vpack.c.b16 %v690, %v689
      %v715 = vpack.c.b16 %v692, %v691
      %v716 = vpack.c.b16 %v694, %v693
      %v717 = vpack.c.b16 %v696, %v695
      %v718 = vpack.c.b16 %v698, %v697
      %v719 = vpack.c.b16 %v700, %v699
      %v720 = vpack.c.b16 %v702, %v701
      %v721 = vpack.c.b16 %v704, %v703
      %v722 = vpack.c.b16 %v706, %v705
      %739 = vmatpush.bf16.msra.mxu0 %v714
      %740 = vmatpush.bf16.msra.mxu0 %v713
      %741 = vmatpush.bf16.msra.mxu0 %v712
      %742 = vmatpush.bf16.msra.mxu0 %v711
      %743 = vmatpush.bf16.msra.mxu0 %v710
      %744 = vmatpush.bf16.msra.mxu0 %v709
      %745 = vmatpush.bf16.msra.mxu0 %v708
      %746 = vmatpush.bf16.msra.mxu0 %v707
      %747 = vmatmul.bf16.gmra.mxu0 %v290
      %v748 = vpop.f32.mrf.mxu0
      %v749 = vadd.f32 0.0, %v748
      %v750 = vpop.f32.mrf.mxu0
      %v751 = vadd.f32 0.0, %v750
      %752 = vmatmul.bf16.gmra.mxu0 %v292
      %v753 = vpop.f32.mrf.mxu0
      %v754 = vadd.f32 0.0, %v753
      %v755 = vpop.f32.mrf.mxu0
      %v756 = vadd.f32 0.0, %v755
      %757 = vdwg.mxu0
      %758 = vmatpush.bf16.msra.mxu0 %v722
      %759 = vmatpush.bf16.msra.mxu0 %v721
      %760 = vmatpush.bf16.msra.mxu0 %v720
      %761 = vmatpush.bf16.msra.mxu0 %v719
      %762 = vmatpush.bf16.msra.mxu0 %v718
      %763 = vmatpush.bf16.msra.mxu0 %v717
      %764 = vmatpush.bf16.msra.mxu0 %v716
      %765 = vmatpush.bf16.msra.mxu0 %v715
      %766 = vmatmul.bf16.gmra.mxu0 %v291
      %v767 = vpop.f32.mrf.mxu0
      %v768 = vadd.f32 %v749, %v767
      %v769 = vpop.f32.mrf.mxu0
      %v770 = vadd.f32 %v751, %v769
      %771 = vmatmul.bf16.gmra.mxu0 %v293
      %v772 = vpop.f32.mrf.mxu0
      %v773 = vadd.f32 %v754, %v772
      %v774 = vpop.f32.mrf.mxu0
      %v775 = vadd.f32 %v756, %v774
      %776 = vdwg.mxu0
      %vm781 = vcmask 1042432
      %v782 = vrot.slane %v768, 5
      %v783 = vrot.slane %v770, 5
      %v784 = vsel %vm781, %v782, %v783
      %v785 = vrot.slane %v773, 5
      %v786 = vsel %vm781, %v783, %v785
      %v787 = vrot.slane %v775, 5
      %v788 = vsel %vm781, %v785, %v787
      %v792 = vadd.f32 %v607, %v784
      %v793 = vadd.f32 %v608, %v786
      %v794 = vadd.f32 %v609, %v788
      %s795 = scalar_lea.vmem %s1, 384
      %v796 = vld [vmem:[%s795] sm:$0xf]
      %v797 = vld [vmem:[%s795 + $0x4] sm:$0xf]
      %v798 = vld [vmem:[%s795 + $0x8] sm:$0xf]
      %v799 = vld [vmem:[%s795 + $0xc] sm:$0xf]
      %v800 = vld [vmem:[%s795 + $0x10] sm:$0xf]
      %v801 = vld [vmem:[%s795 + $0x14] sm:$0xf]
      %v802 = vld [vmem:[%s795 + $0x18] sm:$0xf]
      %v803 = vld [vmem:[%s795 + $0x1c] sm:$0xf]
      %v804 = vld [vmem:[%s795 + $0x20] sm:$0xf]
      %v805 = vld [vmem:[%s795 + $0x24] sm:$0xf]
      %v806 = vld [vmem:[%s795 + $0x28] sm:$0xf]
      %v807 = vld [vmem:[%s795 + $0x2c] sm:$0xf]
      %v808 = vld [vmem:[%s795 + $0x30] sm:$0xf]
      %v809 = vld [vmem:[%s795 + $0x34] sm:$0xf]
      %v810 = vld [vmem:[%s795 + $0x38] sm:$0xf]
      %v811 = vld [vmem:[%s795 + $0x3c] sm:$0xf]
      %v812 = vld [vmem:[%s795 + $0x40] sm:$0xf]
      %v813 = vld [vmem:[%s795 + $0x44] sm:$0xf]
      %v814 = vld [vmem:[%s795 + $0x48] sm:$0xf]
      %v815 = vld [vmem:[%s795 + $0x4c] sm:$0xf]
      %v816 = vld [vmem:[%s795 + $0x50] sm:$0xf]
      %v817 = vld [vmem:[%s795 + $0x54] sm:$0xf]
      %v818 = vld [vmem:[%s795 + $0x58] sm:$0xf]
      %v819 = vld [vmem:[%s795 + $0x5c] sm:$0xf]
      %v820 = vld [vmem:[%s795 + $0x60] sm:$0xf]
      %v821 = vld [vmem:[%s795 + $0x64] sm:$0xf]
      %v822 = vld [vmem:[%s795 + $0x68] sm:$0xf]
      %v823 = vld [vmem:[%s795 + $0x6c] sm:$0xf]
      %v824 = vld [vmem:[%s795 + $0x70] sm:$0xf]
      %v825 = vld [vmem:[%s795 + $0x74] sm:$0xf]
      %v826 = vld [vmem:[%s795 + $0x78] sm:$0xf]
      %v827 = vld [vmem:[%s795 + $0x7c] sm:$0xf]
      %v860 = vunpack.c.l.b16 %v796
      %v861 = vunpack.c.l.b16 %v797
      %v862 = vunpack.c.l.b16 %v798
      %v863 = vunpack.c.l.b16 %v799
      %v864 = vunpack.c.l.b16 %v800
      %v865 = vunpack.c.l.b16 %v801
      %v866 = vunpack.c.l.b16 %v802
      %v867 = vunpack.c.l.b16 %v803
      %v868 = vunpack.c.l.b16 %v804
      %v869 = vunpack.c.l.b16 %v805
      %v870 = vunpack.c.l.b16 %v806
      %v871 = vunpack.c.l.b16 %v807
      %v872 = vunpack.c.l.b16 %v808
      %v873 = vunpack.c.l.b16 %v809
      %v874 = vunpack.c.l.b16 %v810
      %v875 = vunpack.c.l.b16 %v811
      %v876 = vunpack.c.l.b16 %v812
      %v877 = vunpack.c.l.b16 %v813
      %v878 = vunpack.c.l.b16 %v814
      %v879 = vunpack.c.l.b16 %v815
      %v880 = vunpack.c.l.b16 %v816
      %v881 = vunpack.c.l.b16 %v817
      %v882 = vunpack.c.l.b16 %v818
      %v883 = vunpack.c.l.b16 %v819
      %v884 = vunpack.c.l.b16 %v820
      %v885 = vunpack.c.l.b16 %v821
      %v886 = vunpack.c.l.b16 %v822
      %v887 = vunpack.c.l.b16 %v823
      %v888 = vunpack.c.l.b16 %v824
      %v889 = vunpack.c.l.b16 %v825
      %v890 = vunpack.c.l.b16 %v826
      %v891 = vunpack.c.l.b16 %v827
      %v892 = vpack.c.b16 %v861, %v860
      %v893 = vpack.c.b16 %v863, %v862
      %v894 = vpack.c.b16 %v865, %v864
      %v895 = vpack.c.b16 %v867, %v866
      %v896 = vpack.c.b16 %v869, %v868
      %v897 = vpack.c.b16 %v871, %v870
      %v898 = vpack.c.b16 %v873, %v872
      %v899 = vpack.c.b16 %v875, %v874
      %v900 = vpack.c.b16 %v877, %v876
      %v901 = vpack.c.b16 %v879, %v878
      %v902 = vpack.c.b16 %v881, %v880
      %v903 = vpack.c.b16 %v883, %v882
      %v904 = vpack.c.b16 %v885, %v884
      %v905 = vpack.c.b16 %v887, %v886
      %v906 = vpack.c.b16 %v889, %v888
      %v907 = vpack.c.b16 %v891, %v890
      %924 = vmatpush.bf16.msra.mxu0 %v899
      %925 = vmatpush.bf16.msra.mxu0 %v898
      %926 = vmatpush.bf16.msra.mxu0 %v897
      %927 = vmatpush.bf16.msra.mxu0 %v896
      %928 = vmatpush.bf16.msra.mxu0 %v895
      %929 = vmatpush.bf16.msra.mxu0 %v894
      %930 = vmatpush.bf16.msra.mxu0 %v893
      %931 = vmatpush.bf16.msra.mxu0 %v892
      %932 = vmatmul.bf16.gmra.mxu0 %v290
      %v933 = vpop.f32.mrf.mxu0
      %v934 = vadd.f32 0.0, %v933
      %v935 = vpop.f32.mrf.mxu0
      %v936 = vadd.f32 0.0, %v935
      %937 = vmatmul.bf16.gmra.mxu0 %v292
      %v938 = vpop.f32.mrf.mxu0
      %v939 = vadd.f32 0.0, %v938
      %v940 = vpop.f32.mrf.mxu0
      %v941 = vadd.f32 0.0, %v940
      %942 = vdwg.mxu0
      %943 = vmatpush.bf16.msra.mxu0 %v907
      %944 = vmatpush.bf16.msra.mxu0 %v906
      %945 = vmatpush.bf16.msra.mxu0 %v905
      %946 = vmatpush.bf16.msra.mxu0 %v904
      %947 = vmatpush.bf16.msra.mxu0 %v903
      %948 = vmatpush.bf16.msra.mxu0 %v902
      %949 = vmatpush.bf16.msra.mxu0 %v901
      %950 = vmatpush.bf16.msra.mxu0 %v900
      %951 = vmatmul.bf16.gmra.mxu0 %v291
      %v952 = vpop.f32.mrf.mxu0
      %v953 = vadd.f32 %v934, %v952
      %v954 = vpop.f32.mrf.mxu0
      %v955 = vadd.f32 %v936, %v954
      %956 = vmatmul.bf16.gmra.mxu0 %v293
      %v957 = vpop.f32.mrf.mxu0
      %v958 = vadd.f32 %v939, %v957
      %v959 = vpop.f32.mrf.mxu0
      %v960 = vadd.f32 %v941, %v959
      %961 = vdwg.mxu0
      %vm966 = vcmask 1041408
      %v967 = vrot.slane %v953, 6
      %v968 = vrot.slane %v955, 6
      %v969 = vsel %vm966, %v967, %v968
      %v970 = vrot.slane %v958, 6
      %v971 = vsel %vm966, %v968, %v970
      %v972 = vrot.slane %v960, 6
      %v973 = vsel %vm966, %v970, %v972
      %v977 = vadd.f32 %v792, %v969
      %v978 = vadd.f32 %v793, %v971
      %v979 = vadd.f32 %v794, %v973
      %v980 = vld [vmem:[%s2] sm:$0xff]
      %v981 = vld [vmem:[%s2 + $0x8] sm:$0xff]
      %v982 = vld [vmem:[%s2 + $0x10] sm:$0xf]
      %984 = vset.pattern.permute.xlu0 0
      %985 = vperm.xlu0 %984, %v980
      %v986 = vpop.permute.xlu0 %985
      %989 = vset.pattern.permute.xlu0 0
      %990 = vperm.xlu0 %989, %v981
      %v991 = vpop.permute.xlu0 %990
      %994 = vset.pattern.permute.xlu0 0
      %995 = vperm.xlu0 %994, %v982
      %v996 = vpop.permute.xlu0 %995
      %v998 = vmul.f32 %v977, %v986
      %v999 = vmul.f32 %v978, %v991
      %v1000 = vmul.f32 %v979, %v996
      %v1001 = vadd.f32 %v998, %v999
      %vm1002 = vcmask 1043456
      %v1003 = vsel %vm1002, %v1000, 0.0
      %v1004 = vadd.f32 %v1001, %v1003
      %v1005 = vrot.slane %v1004, 4
      %v1006 = vadd.f32 %v1004, %v1005
      %v1007 = vrot.slane %v1006, 2
      %v1008 = vadd.f32 %v1006, %v1007
      %v1009 = vrot.slane %v1008, 1
      %v1010 = vadd.f32 %v1008, %v1009
      %1011 = vst [vmem:[%s238] sm:$0x1] %v1010
      %v1012 = vmul.f32 %v998, %v998
      %v1013 = vmul.f32 %v999, %v999
      %v1014 = vmul.f32 %v1000, %v1000
      %v1015 = vadd.f32 %v1012, %v1013
      %v1016 = vsel %vm1002, %v1014, 0.0
      %v1017 = vadd.f32 %v1015, %v1016
      %v1018 = vrot.slane %v1017, 4
      %v1019 = vadd.f32 %v1017, %v1018
      %v1020 = vrot.slane %v1019, 2
      %v1021 = vadd.f32 %v1019, %v1020
      %v1022 = vrot.slane %v1021, 1
      %v1023 = vadd.f32 %v1021, %v1022
      %1024 = vst [vmem:[%s241] sm:$0x1] %v1023
      %1025 = vst [vmem:[%s235] sm:$0xff] %v977
      %1026 = vst [vmem:[%s235 + $0x8] sm:$0xff] %v978
      %1027 = vst [vmem:[%s235 + $0x10] sm:$0xf] %v979
      %p1028 = scmp.lt.s32.totalorder %s17, 1
      %s1029 = scalar_select %p1028, %s17, 1
      %s1030 = smul.addr %s1029, 3
      %s1031 = smul.addr %s1030, 8
      %s1032 = scalar_lea.vmem %s3, %s1031
      %p1033 = scmp.lt.s32.totalorder %s17, 1
      %s1034 = scalar_select %p1033, %s17, 1
      %s1035 = scalar_lea.vmem %s4, %s1034
      %p1036 = scmp.lt.s32.totalorder %s17, 1
      %s1037 = scalar_select %p1036, %s17, 1
      %s1038 = scalar_lea.vmem %s5, %s1037
      // Predicated region
      $region33: #{_forward_impl.13} parent=31 // pred_check
        %p1039 = pneg %p103
      $region34: #{_forward_impl.13} parent=31 // pred_check_branch
        %1041 = sbr.rel (%p1039) target = $region36
      $region35: #{_forward_impl.13} parent=31 // pred_region
        _
      $region36: #{_forward_impl.13} parent=31 // pred_fallthru
        _
      // Predicated region
      $region37: #{_forward_impl.13} parent=31 // pred_check
        %p1042 = pneg %p129
      $region38: #{_forward_impl.13} parent=31 // pred_check_branch
        %1044 = sbr.rel (%p1042) target = $region40
      $region39: #{_forward_impl.13} parent=31 // pred_region
        _
      $region40: #{_forward_impl.13} parent=31 // pred_fallthru
        _
      // Predicated region
      $region41: #{_forward_impl.13} parent=31 // pred_check
        %p1045 = pneg %p155
      $region42: #{_forward_impl.13} parent=31 // pred_check_branch
        %1047 = sbr.rel (%p1045) target = $region44
      $region43: #{_forward_impl.13} parent=31 // pred_region
        _
      $region44: #{_forward_impl.13} parent=31 // pred_fallthru
        _
    $region32: #{_forward_impl.13} parent=5 // pred_fallthru
      _
    %p1048 = scmp.le.s32.totalorder 2, %s12
    // Predicated region
    $region45: #{_forward_impl.13} parent=5 // pred_check
      %p1049 = pneg %p1048
    $region46: #{_forward_impl.13} parent=5 // pred_check_branch
      %1051 = sbr.rel (%p1049) target = $region48
    $region47: #{_forward_impl.13} parent=5 // pred_region
      %s1052 = ssub.s32 %s12, 2
      // Predicated region
      $region49: #{_forward_impl.13} parent=47 // pred_check
        %p1053 = pneg %p109
      $region50: #{_forward_impl.13} parent=47 // pred_check_branch
        %1055 = sbr.rel (%p1053) target = $region52
      $region51: #{_forward_impl.13} parent=47 // pred_region
        %p1056 = scmp.lt.s32.totalorder %s18, 1
        %s1057 = scalar_select %p1056, %s18, 1
        %s1058 = smul.addr %s1057, 3
        %s1059 = smul.addr %s1058, 8
        %s1060 = scalar_lea.vmem %s3, %s1059
      $region52: #{_forward_impl.13} parent=47 // pred_fallthru
        _
      // Predicated region
      $region53: #{_forward_impl.13} parent=47 // pred_check
        %p1061 = pneg %p135
      $region54: #{_forward_impl.13} parent=47 // pred_check_branch
        %1063 = sbr.rel (%p1061) target = $region56
      $region55: #{_forward_impl.13} parent=47 // pred_region
        %p1064 = scmp.lt.s32.totalorder %s18, 1
        %s1065 = scalar_select %p1064, %s18, 1
        %s1066 = scalar_lea.vmem %s4, %s1065
      $region56: #{_forward_impl.13} parent=47 // pred_fallthru
        _
      // Predicated region
      $region57: #{_forward_impl.13} parent=47 // pred_check
        %p1067 = pneg %p161
      $region58: #{_forward_impl.13} parent=47 // pred_check_branch
        %1069 = sbr.rel (%p1067) target = $region60
      $region59: #{_forward_impl.13} parent=47 // pred_region
        %p1070 = scmp.lt.s32.totalorder %s18, 1
        %s1071 = scalar_select %p1070, %s18, 1
        %s1072 = scalar_lea.vmem %s5, %s1071
      $region60: #{_forward_impl.13} parent=47 // pred_fallthru
        _
    $region48: #{_forward_impl.13} parent=5 // pred_fallthru
      _
  $region6: #{_forward_impl.13} parent=0 // loop_footer
    %s16 = sadd.s32 1, %s12
  $region7: #{_forward_impl.13} parent=0 // loop_footer_branch
    %11 = sbr.rel target = $region3
  $region8: #{_forward_impl.13} parent=0 // loop_exit
    _

// kernel: _forward_impl.15
$region0: #{_forward_impl.15}
  #allocation0 [shape = 'u32[]', space=smem, size = 0x4, offset = 0x4, fixed_abs, tag = 'smem constant byte address 0x4 - core index']
  #allocation1 [shape = 'u32[72,128]{1,0:T(1,128)}', space=vmem, size = 0x9000, scoped, tag = 'internal scratch']
  %s0 = inlined_call_operand.vmem [shape: bf16[2,2048], index: 0, kind: input, shape index: {}]
  %s1 = inlined_call_operand.vmem [shape: bf16[2048,1], index: 1, kind: input, shape index: {}]
  %s2 = inlined_call_operand.vmem [shape: f32[2,1], index: 2, kind: output, shape index: {}]
  %s3 = sld [smem:[#allocation0]]
  $region18: #{_forward_impl.15} parent=0
    _
  %s5 = ssub.s32 1, %s3
  %s6 = scalar_select 0, %s5, %s3
  // Predicated region
  $region2: #{_forward_impl.15} parent=0 // pred_check
    _
  $region3: #{_forward_impl.15} parent=0 // pred_check_branch
    %8 = sbr.rel (0) target = $region5
  $region4: #{_forward_impl.15} parent=0 // pred_region
    _
  $region5: #{_forward_impl.15} parent=0 // pred_fallthru
    _
  // Predicated region
  $region6: #{_forward_impl.15} parent=0 // pred_check
    _
  $region7: #{_forward_impl.15} parent=0 // pred_check_branch
    %10 = sbr.rel (0) target = $region9
  $region8: #{_forward_impl.15} parent=0 // pred_region
    _
  $region9: #{_forward_impl.15} parent=0 // pred_fallthru
    _
  %v11 = vld [vmem:[%s0] sm:$0xff]
  %v12 = vld [vmem:[%s0 + $0x8] sm:$0xff]
  %v13 = vld [vmem:[%s1] sm:$0xf]
  %v14 = vld [vmem:[%s1 + $0x4] sm:$0xf]
  %v15 = vld [vmem:[%s1 + $0x8] sm:$0xf]
  %v16 = vld [vmem:[%s1 + $0xc] sm:$0xf]
  %v17 = vld [vmem:[%s1 + $0x10] sm:$0xf]
  %v18 = vld [vmem:[%s1 + $0x14] sm:$0xf]
  %v19 = vld [vmem:[%s1 + $0x18] sm:$0xf]
  %v20 = vld [vmem:[%s1 + $0x1c] sm:$0xf]
  %v21 = vld [vmem:[%s1 + $0x20] sm:$0xf]
  %v22 = vld [vmem:[%s1 + $0x24] sm:$0xf]
  %v23 = vld [vmem:[%s1 + $0x28] sm:$0xf]
  %v24 = vld [vmem:[%s1 + $0x2c] sm:$0xf]
  %v25 = vld [vmem:[%s1 + $0x30] sm:$0xf]
  %v26 = vld [vmem:[%s1 + $0x34] sm:$0xf]
  %v27 = vld [vmem:[%s1 + $0x38] sm:$0xf]
  %v28 = vld [vmem:[%s1 + $0x3c] sm:$0xf]
  %v29 = vld [vmem:[%s1 + $0x40] sm:$0xf]
  %v30 = vld [vmem:[%s1 + $0x44] sm:$0xf]
  %v31 = vld [vmem:[%s1 + $0x48] sm:$0xf]
  %v32 = vld [vmem:[%s1 + $0x4c] sm:$0xf]
  %v33 = vld [vmem:[%s1 + $0x50] sm:$0xf]
  %v34 = vld [vmem:[%s1 + $0x54] sm:$0xf]
  %v35 = vld [vmem:[%s1 + $0x58] sm:$0xf]
  %v36 = vld [vmem:[%s1 + $0x5c] sm:$0xf]
  %v37 = vld [vmem:[%s1 + $0x60] sm:$0xf]
  %v38 = vld [vmem:[%s1 + $0x64] sm:$0xf]
  %v39 = vld [vmem:[%s1 + $0x68] sm:$0xf]
  %v40 = vld [vmem:[%s1 + $0x6c] sm:$0xf]
  %v41 = vld [vmem:[%s1 + $0x70] sm:$0xf]
  %v42 = vld [vmem:[%s1 + $0x74] sm:$0xf]
  %v43 = vld [vmem:[%s1 + $0x78] sm:$0xf]
  %v44 = vld [vmem:[%s1 + $0x7c] sm:$0xf]
  %v45 = vld [vmem:[%s1 + $0x80] sm:$0xf]
  %v46 = vld [vmem:[%s1 + $0x84] sm:$0xf]
  %v47 = vld [vmem:[%s1 + $0x88] sm:$0xf]
  %v48 = vld [vmem:[%s1 + $0x8c] sm:$0xf]
  %v49 = vld [vmem:[%s1 + $0x90] sm:$0xf]
  %v50 = vld [vmem:[%s1 + $0x94] sm:$0xf]
  %v51 = vld [vmem:[%s1 + $0x98] sm:$0xf]
  %v52 = vld [vmem:[%s1 + $0x9c] sm:$0xf]
  %v53 = vld [vmem:[%s1 + $0xa0] sm:$0xf]
  %v54 = vld [vmem:[%s1 + $0xa4] sm:$0xf]
  %v55 = vld [vmem:[%s1 + $0xa8] sm:$0xf]
  %v56 = vld [vmem:[%s1 + $0xac] sm:$0xf]
  %v57 = vld [vmem:[%s1 + $0xb0] sm:$0xf]
  %v58 = vld [vmem:[%s1 + $0xb4] sm:$0xf]
  %v59 = vld [vmem:[%s1 + $0xb8] sm:$0xf]
  %v60 = vld [vmem:[%s1 + $0xbc] sm:$0xf]
  %v61 = vld [vmem:[%s1 + $0xc0] sm:$0xf]
  %v62 = vld [vmem:[%s1 + $0xc4] sm:$0xf]
  %v63 = vld [vmem:[%s1 + $0xc8] sm:$0xf]
  %v64 = vld [vmem:[%s1 + $0xcc] sm:$0xf]
  %v65 = vld [vmem:[%s1 + $0xd0] sm:$0xf]
  %v66 = vld [vmem:[%s1 + $0xd4] sm:$0xf]
  %v67 = vld [vmem:[%s1 + $0xd8] sm:$0xf]
  %v68 = vld [vmem:[%s1 + $0xdc] sm:$0xf]
  %v69 = vld [vmem:[%s1 + $0xe0] sm:$0xf]
  %v70 = vld [vmem:[%s1 + $0xe4] sm:$0xf]
  %v71 = vld [vmem:[%s1 + $0xe8] sm:$0xf]
  %v72 = vld [vmem:[%s1 + $0xec] sm:$0xf]
  %v73 = vld [vmem:[%s1 + $0xf0] sm:$0xf]
  %v74 = vld [vmem:[%s1 + $0xf4] sm:$0xf]
  %v75 = vld [vmem:[%s1 + $0xf8] sm:$0xf]
  %v76 = vld [vmem:[%s1 + $0xfc] sm:$0xf]
  %v77 = vld [vmem:[%s1 + $0x100] sm:$0xf]
  %v78 = vld [vmem:[%s1 + $0x104] sm:$0xf]
  %v79 = vld [vmem:[%s1 + $0x108] sm:$0xf]
  %v80 = vld [vmem:[%s1 + $0x10c] sm:$0xf]
  %v81 = vld [vmem:[%s1 + $0x110] sm:$0xf]
  %v82 = vld [vmem:[%s1 + $0x114] sm:$0xf]
  %v83 = vld [vmem:[%s1 + $0x118] sm:$0xf]
  %v84 = vld [vmem:[%s1 + $0x11c] sm:$0xf]
  %v85 = vld [vmem:[%s1 + $0x120] sm:$0xf]
  %v86 = vld [vmem:[%s1 + $0x124] sm:$0xf]
  %v87 = vld [vmem:[%s1 + $0x128] sm:$0xf]
  %v88 = vld [vmem:[%s1 + $0x12c] sm:$0xf]
  %v89 = vld [vmem:[%s1 + $0x130] sm:$0xf]
  %v90 = vld [vmem:[%s1 + $0x134] sm:$0xf]
  %v91 = vld [vmem:[%s1 + $0x138] sm:$0xf]
  %v92 = vld [vmem:[%s1 + $0x13c] sm:$0xf]
  %v93 = vld [vmem:[%s1 + $0x140] sm:$0xf]
  %v94 = vld [vmem:[%s1 + $0x144] sm:$0xf]
  %v95 = vld [vmem:[%s1 + $0x148] sm:$0xf]
  %v96 = vld [vmem:[%s1 + $0x14c] sm:$0xf]
  %v97 = vld [vmem:[%s1 + $0x150] sm:$0xf]
  %v98 = vld [vmem:[%s1 + $0x154] sm:$0xf]
  %v99 = vld [vmem:[%s1 + $0x158] sm:$0xf]
  %v100 = vld [vmem:[%s1 + $0x15c] sm:$0xf]
  %v101 = vld [vmem:[%s1 + $0x160] sm:$0xf]
  %v102 = vld [vmem:[%s1 + $0x164] sm:$0xf]
  %v103 = vld [vmem:[%s1 + $0x168] sm:$0xf]
  %v104 = vld [vmem:[%s1 + $0x16c] sm:$0xf]
  %v105 = vld [vmem:[%s1 + $0x170] sm:$0xf]
  %v106 = vld [vmem:[%s1 + $0x174] sm:$0xf]
  %v107 = vld [vmem:[%s1 + $0x178] sm:$0xf]
  %v108 = vld [vmem:[%s1 + $0x17c] sm:$0xf]
  %v109 = vld [vmem:[%s1 + $0x180] sm:$0xf]
  %v110 = vld [vmem:[%s1 + $0x184] sm:$0xf]
  %v111 = vld [vmem:[%s1 + $0x188] sm:$0xf]
  %v112 = vld [vmem:[%s1 + $0x18c] sm:$0xf]
  %v113 = vld [vmem:[%s1 + $0x190] sm:$0xf]
  %v114 = vld [vmem:[%s1 + $0x194] sm:$0xf]
  %v115 = vld [vmem:[%s1 + $0x198] sm:$0xf]
  %v116 = vld [vmem:[%s1 + $0x19c] sm:$0xf]
  %v117 = vld [vmem:[%s1 + $0x1a0] sm:$0xf]
  %v118 = vld [vmem:[%s1 + $0x1a4] sm:$0xf]
  %v119 = vld [vmem:[%s1 + $0x1a8] sm:$0xf]
  %v120 = vld [vmem:[%s1 + $0x1ac] sm:$0xf]
  %v121 = vld [vmem:[%s1 + $0x1b0] sm:$0xf]
  %v122 = vld [vmem:[%s1 + $0x1b4] sm:$0xf]
  %v123 = vld [vmem:[%s1 + $0x1b8] sm:$0xf]
  %v124 = vld [vmem:[%s1 + $0x1bc] sm:$0xf]
  %v125 = vld [vmem:[%s1 + $0x1c0] sm:$0xf]
  %v126 = vld [vmem:[%s1 + $0x1c4] sm:$0xf]
  %v127 = vld [vmem:[%s1 + $0x1c8] sm:$0xf]
  %v128 = vld [vmem:[%s1 + $0x1cc] sm:$0xf]
  %v129 = vld [vmem:[%s1 + $0x1d0] sm:$0xf]
  %v130 = vld [vmem:[%s1 + $0x1d4] sm:$0xf]
  %v131 = vld [vmem:[%s1 + $0x1d8] sm:$0xf]
  %v132 = vld [vmem:[%s1 + $0x1dc] sm:$0xf]
  %v133 = vld [vmem:[%s1 + $0x1e0] sm:$0xf]
  %v134 = vld [vmem:[%s1 + $0x1e4] sm:$0xf]
  %v135 = vld [vmem:[%s1 + $0x1e8] sm:$0xf]
  %v136 = vld [vmem:[%s1 + $0x1ec] sm:$0xf]
  %v137 = vld [vmem:[%s1 + $0x1f0] sm:$0xf]
  %v138 = vld [vmem:[%s1 + $0x1f4] sm:$0xf]
  %v139 = vld [vmem:[%s1 + $0x1f8] sm:$0xf]
  %v140 = vld [vmem:[%s1 + $0x1fc] sm:$0xf]
  %v141 = vld [vmem:[%s1 + $0x200] sm:$0xf]
  %v142 = vld [vmem:[%s1 + $0x204] sm:$0xf]
  %v143 = vld [vmem:[%s1 + $0x208] sm:$0xf]
  %v144 = vld [vmem:[%s1 + $0x20c] sm:$0xf]
  %v145 = vld [vmem:[%s1 + $0x210] sm:$0xf]
  %v146 = vld [vmem:[%s1 + $0x214] sm:$0xf]
  %v147 = vld [vmem:[%s1 + $0x218] sm:$0xf]
  %v148 = vld [vmem:[%s1 + $0x21c] sm:$0xf]
  %v149 = vld [vmem:[%s1 + $0x220] sm:$0xf]
  %v150 = vld [vmem:[%s1 + $0x224] sm:$0xf]
  %v151 = vld [vmem:[%s1 + $0x228] sm:$0xf]
  %v152 = vld [vmem:[%s1 + $0x22c] sm:$0xf]
  %v153 = vld [vmem:[%s1 + $0x230] sm:$0xf]
  %v154 = vld [vmem:[%s1 + $0x234] sm:$0xf]
  %v155 = vld [vmem:[%s1 + $0x238] sm:$0xf]
  %v156 = vld [vmem:[%s1 + $0x23c] sm:$0xf]
  %v157 = vld [vmem:[%s1 + $0x240] sm:$0xf]
  %v158 = vld [vmem:[%s1 + $0x244] sm:$0xf]
  %v159 = vld [vmem:[%s1 + $0x248] sm:$0xf]
  %v160 = vld [vmem:[%s1 + $0x24c] sm:$0xf]
  %v161 = vld [vmem:[%s1 + $0x250] sm:$0xf]
  %v162 = vld [vmem:[%s1 + $0x254] sm:$0xf]
  %v163 = vld [vmem:[%s1 + $0x258] sm:$0xf]
  %v164 = vld [vmem:[%s1 + $0x25c] sm:$0xf]
  %v165 = vld [vmem:[%s1 + $0x260] sm:$0xf]
  %v166 = vld [vmem:[%s1 + $0x264] sm:$0xf]
  %v167 = vld [vmem:[%s1 + $0x268] sm:$0xf]
  %v168 = vld [vmem:[%s1 + $0x26c] sm:$0xf]
  %v169 = vld [vmem:[%s1 + $0x270] sm:$0xf]
  %v170 = vld [vmem:[%s1 + $0x274] sm:$0xf]
  %v171 = vld [vmem:[%s1 + $0x278] sm:$0xf]
  %v172 = vld [vmem:[%s1 + $0x27c] sm:$0xf]
  %v173 = vld [vmem:[%s1 + $0x280] sm:$0xf]
  %v174 = vld [vmem:[%s1 + $0x284] sm:$0xf]
  %v175 = vld [vmem:[%s1 + $0x288] sm:$0xf]
  %v176 = vld [vmem:[%s1 + $0x28c] sm:$0xf]
  %v177 = vld [vmem:[%s1 + $0x290] sm:$0xf]
  %v178 = vld [vmem:[%s1 + $0x294] sm:$0xf]
  %v179 = vld [vmem:[%s1 + $0x298] sm:$0xf]
  %v180 = vld [vmem:[%s1 + $0x29c] sm:$0xf]
  %v181 = vld [vmem:[%s1 + $0x2a0] sm:$0xf]
  %v182 = vld [vmem:[%s1 + $0x2a4] sm:$0xf]
  %v183 = vld [vmem:[%s1 + $0x2a8] sm:$0xf]
  %v184 = vld [vmem:[%s1 + $0x2ac] sm:$0xf]
  %v185 = vld [vmem:[%s1 + $0x2b0] sm:$0xf]
  %v186 = vld [vmem:[%s1 + $0x2b4] sm:$0xf]
  %v187 = vld [vmem:[%s1 + $0x2b8] sm:$0xf]
  %v188 = vld [vmem:[%s1 + $0x2bc] sm:$0xf]
  %v189 = vld [vmem:[%s1 + $0x2c0] sm:$0xf]
  %v190 = vld [vmem:[%s1 + $0x2c4] sm:$0xf]
  %v191 = vld [vmem:[%s1 + $0x2c8] sm:$0xf]
  %v192 = vld [vmem:[%s1 + $0x2cc] sm:$0xf]
  %v193 = vld [vmem:[%s1 + $0x2d0] sm:$0xf]
  %v194 = vld [vmem:[%s1 + $0x2d4] sm:$0xf]
  %v195 = vld [vmem:[%s1 + $0x2d8] sm:$0xf]
  %v196 = vld [vmem:[%s1 + $0x2dc] sm:$0xf]
  %v197 = vld [vmem:[%s1 + $0x2e0] sm:$0xf]
  %v198 = vld [vmem:[%s1 + $0x2e4] sm:$0xf]
  %v199 = vld [vmem:[%s1 + $0x2e8] sm:$0xf]
  %v200 = vld [vmem:[%s1 + $0x2ec] sm:$0xf]
  %v201 = vld [vmem:[%s1 + $0x2f0] sm:$0xf]
  %v202 = vld [vmem:[%s1 + $0x2f4] sm:$0xf]
  %v203 = vld [vmem:[%s1 + $0x2f8] sm:$0xf]
  %v204 = vld [vmem:[%s1 + $0x2fc] sm:$0xf]
  %v205 = vld [vmem:[%s1 + $0x300] sm:$0xf]
  %v206 = vld [vmem:[%s1 + $0x304] sm:$0xf]
  %v207 = vld [vmem:[%s1 + $0x308] sm:$0xf]
  %v208 = vld [vmem:[%s1 + $0x30c] sm:$0xf]
  %v209 = vld [vmem:[%s1 + $0x310] sm:$0xf]
  %v210 = vld [vmem:[%s1 + $0x314] sm:$0xf]
  %v211 = vld [vmem:[%s1 + $0x318] sm:$0xf]
  %v212 = vld [vmem:[%s1 + $0x31c] sm:$0xf]
  %v213 = vld [vmem:[%s1 + $0x320] sm:$0xf]
  %v214 = vld [vmem:[%s1 + $0x324] sm:$0xf]
  %v215 = vld [vmem:[%s1 + $0x328] sm:$0xf]
  %v216 = vld [vmem:[%s1 + $0x32c] sm:$0xf]
  %v217 = vld [vmem:[%s1 + $0x330] sm:$0xf]
  %v218 = vld [vmem:[%s1 + $0x334] sm:$0xf]
  %v219 = vld [vmem:[%s1 + $0x338] sm:$0xf]
  %v220 = vld [vmem:[%s1 + $0x33c] sm:$0xf]
  %v221 = vld [vmem:[%s1 + $0x340] sm:$0xf]
  %v222 = vld [vmem:[%s1 + $0x344] sm:$0xf]
  %v223 = vld [vmem:[%s1 + $0x348] sm:$0xf]
  %v224 = vld [vmem:[%s1 + $0x34c] sm:$0xf]
  %v225 = vld [vmem:[%s1 + $0x350] sm:$0xf]
  %v226 = vld [vmem:[%s1 + $0x354] sm:$0xf]
  %v227 = vld [vmem:[%s1 + $0x358] sm:$0xf]
  %v228 = vld [vmem:[%s1 + $0x35c] sm:$0xf]
  %v229 = vld [vmem:[%s1 + $0x360] sm:$0xf]
  %v230 = vld [vmem:[%s1 + $0x364] sm:$0xf]
  %v231 = vld [vmem:[%s1 + $0x368] sm:$0xf]
  %v232 = vld [vmem:[%s1 + $0x36c] sm:$0xf]
  %v233 = vld [vmem:[%s1 + $0x370] sm:$0xf]
  %v234 = vld [vmem:[%s1 + $0x374] sm:$0xf]
  %v235 = vld [vmem:[%s1 + $0x378] sm:$0xf]
  %v236 = vld [vmem:[%s1 + $0x37c] sm:$0xf]
  %v237 = vld [vmem:[%s1 + $0x380] sm:$0xf]
  %v238 = vld [vmem:[%s1 + $0x384] sm:$0xf]
  %v239 = vld [vmem:[%s1 + $0x388] sm:$0xf]
  %v240 = vld [vmem:[%s1 + $0x38c] sm:$0xf]
  %v241 = vld [vmem:[%s1 + $0x390] sm:$0xf]
  %v242 = vld [vmem:[%s1 + $0x394] sm:$0xf]
  %v243 = vld [vmem:[%s1 + $0x398] sm:$0xf]
  %v244 = vld [vmem:[%s1 + $0x39c] sm:$0xf]
  %v245 = vld [vmem:[%s1 + $0x3a0] sm:$0xf]
  %v246 = vld [vmem:[%s1 + $0x3a4] sm:$0xf]
  %v247 = vld [vmem:[%s1 + $0x3a8] sm:$0xf]
  %v248 = vld [vmem:[%s1 + $0x3ac] sm:$0xf]
  %v249 = vld [vmem:[%s1 + $0x3b0] sm:$0xf]
  %v250 = vld [vmem:[%s1 + $0x3b4] sm:$0xf]
  %v251 = vld [vmem:[%s1 + $0x3b8] sm:$0xf]
  %v252 = vld [vmem:[%s1 + $0x3bc] sm:$0xf]
  %v253 = vld [vmem:[%s1 + $0x3c0] sm:$0xf]
  %v254 = vld [vmem:[%s1 + $0x3c4] sm:$0xf]
  %v255 = vld [vmem:[%s1 + $0x3c8] sm:$0xf]
  %v256 = vld [vmem:[%s1 + $0x3cc] sm:$0xf]
  %v257 = vld [vmem:[%s1 + $0x3d0] sm:$0xf]
  %v258 = vld [vmem:[%s1 + $0x3d4] sm:$0xf]
  %v259 = vld [vmem:[%s1 + $0x3d8] sm:$0xf]
  %v260 = vld [vmem:[%s1 + $0x3dc] sm:$0xf]
  %v261 = vld [vmem:[%s1 + $0x3e0] sm:$0xf]
  %v262 = vld [vmem:[%s1 + $0x3e4] sm:$0xf]
  %v263 = vld [vmem:[%s1 + $0x3e8] sm:$0xf]
  %v264 = vld [vmem:[%s1 + $0x3ec] sm:$0xf]
  %v265 = vld [vmem:[%s1 + $0x3f0] sm:$0xf]
  %v266 = vld [vmem:[%s1 + $0x3f4] sm:$0xf]
  %v267 = vld [vmem:[%s1 + $0x3f8] sm:$0xf]
  %v268 = vld [vmem:[%s1 + $0x3fc] sm:$0xf]
  %270 = vst [vmem:[#allocation1] ss:$9 sm:$0xff] %v11
  %v271 = vld [vmem:[#allocation1] sm:$0xff]
  %v272 = vld [vmem:[#allocation1 + $0x9] sm:$0xff]
  %v273 = vld [vmem:[#allocation1 + $0x12] sm:$0xff]
  %v274 = vld [vmem:[#allocation1 + $0x1b] sm:$0xff]
  %v275 = vld [vmem:[#allocation1 + $0x24] sm:$0xff]
  %v276 = vld [vmem:[#allocation1 + $0x2d] sm:$0xff]
  %v277 = vld [vmem:[#allocation1 + $0x36] sm:$0xff]
  %v278 = vld [vmem:[#allocation1 + $0x3f] sm:$0xff]
  %280 = vst [vmem:[#allocation1] ss:$9 sm:$0xff] %v12
  %v281 = vld [vmem:[#allocation1] sm:$0xff]
  %v282 = vld [vmem:[#allocation1 + $0x9] sm:$0xff]
  %v283 = vld [vmem:[#allocation1 + $0x12] sm:$0xff]
  %v284 = vld [vmem:[#allocation1 + $0x1b] sm:$0xff]
  %v285 = vld [vmem:[#allocation1 + $0x24] sm:$0xff]
  %v286 = vld [vmem:[#allocation1 + $0x2d] sm:$0xff]
  %v287 = vld [vmem:[#allocation1 + $0x36] sm:$0xff]
  %v288 = vld [vmem:[#allocation1 + $0x3f] sm:$0xff]
  %v561 = vunpack.c.l.b16 %v13
  %v562 = vunpack.c.l.b16 %v14
  %v563 = vunpack.c.l.b16 %v15
  %v564 = vunpack.c.l.b16 %v16
  %v565 = vunpack.c.l.b16 %v17
  %v566 = vunpack.c.l.b16 %v18
  %v567 = vunpack.c.l.b16 %v19
  %v568 = vunpack.c.l.b16 %v20
  %v569 = vunpack.c.l.b16 %v21
  %v570 = vunpack.c.l.b16 %v22
  %v571 = vunpack.c.l.b16 %v23
  %v572 = vunpack.c.l.b16 %v24
  %v573 = vunpack.c.l.b16 %v25
  %v574 = vunpack.c.l.b16 %v26
  %v575 = vunpack.c.l.b16 %v27
  %v576 = vunpack.c.l.b16 %v28
  %v577 = vunpack.c.l.b16 %v29
  %v578 = vunpack.c.l.b16 %v30
  %v579 = vunpack.c.l.b16 %v31
  %v580 = vunpack.c.l.b16 %v32
  %v581 = vunpack.c.l.b16 %v33
  %v582 = vunpack.c.l.b16 %v34
  %v583 = vunpack.c.l.b16 %v35
  %v584 = vunpack.c.l.b16 %v36
  %v585 = vunpack.c.l.b16 %v37
  %v586 = vunpack.c.l.b16 %v38
  %v587 = vunpack.c.l.b16 %v39
  %v588 = vunpack.c.l.b16 %v40
  %v589 = vunpack.c.l.b16 %v41
  %v590 = vunpack.c.l.b16 %v42
  %v591 = vunpack.c.l.b16 %v43
  %v592 = vunpack.c.l.b16 %v44
  %v593 = vunpack.c.l.b16 %v45
  %v594 = vunpack.c.l.b16 %v46
  %v595 = vunpack.c.l.b16 %v47
  %v596 = vunpack.c.l.b16 %v48
  %v597 = vunpack.c.l.b16 %v49
  %v598 = vunpack.c.l.b16 %v50
  %v599 = vunpack.c.l.b16 %v51
  %v600 = vunpack.c.l.b16 %v52
  %v601 = vunpack.c.l.b16 %v53
  %v602 = vunpack.c.l.b16 %v54
  %v603 = vunpack.c.l.b16 %v55
  %v604 = vunpack.c.l.b16 %v56
  %v605 = vunpack.c.l.b16 %v57
  %v606 = vunpack.c.l.b16 %v58
  %v607 = vunpack.c.l.b16 %v59
  %v608 = vunpack.c.l.b16 %v60
  %v609 = vunpack.c.l.b16 %v61
  %v610 = vunpack.c.l.b16 %v62
  %v611 = vunpack.c.l.b16 %v63
  %v612 = vunpack.c.l.b16 %v64
  %v613 = vunpack.c.l.b16 %v65
  %v614 = vunpack.c.l.b16 %v66
  %v615 = vunpack.c.l.b16 %v67
  %v616 = vunpack.c.l.b16 %v68
  %v617 = vunpack.c.l.b16 %v69
  %v618 = vunpack.c.l.b16 %v70
  %v619 = vunpack.c.l.b16 %v71
  %v620 = vunpack.c.l.b16 %v72
  %v621 = vunpack.c.l.b16 %v73
  %v622 = vunpack.c.l.b16 %v74
  %v623 = vunpack.c.l.b16 %v75
  %v624 = vunpack.c.l.b16 %v76
  %v625 = vunpack.c.l.b16 %v77
  %v626 = vunpack.c.l.b16 %v78
  %v627 = vunpack.c.l.b16 %v79
  %v628 = vunpack.c.l.b16 %v80
  %v629 = vunpack.c.l.b16 %v81
  %v630 = vunpack.c.l.b16 %v82
  %v631 = vunpack.c.l.b16 %v83
  %v632 = vunpack.c.l.b16 %v84
  %v633 = vunpack.c.l.b16 %v85
  %v634 = vunpack.c.l.b16 %v86
  %v635 = vunpack.c.l.b16 %v87
  %v636 = vunpack.c.l.b16 %v88
  %v637 = vunpack.c.l.b16 %v89
  %v638 = vunpack.c.l.b16 %v90
  %v639 = vunpack.c.l.b16 %v91
  %v640 = vunpack.c.l.b16 %v92
  %v641 = vunpack.c.l.b16 %v93
  %v642 = vunpack.c.l.b16 %v94
  %v643 = vunpack.c.l.b16 %v95
  %v644 = vunpack.c.l.b16 %v96
  %v645 = vunpack.c.l.b16 %v97
  %v646 = vunpack.c.l.b16 %v98
  %v647 = vunpack.c.l.b16 %v99
  %v648 = vunpack.c.l.b16 %v100
  %v649 = vunpack.c.l.b16 %v101
  %v650 = vunpack.c.l.b16 %v102
  %v651 = vunpack.c.l.b16 %v103
  %v652 = vunpack.c.l.b16 %v104
  %v653 = vunpack.c.l.b16 %v105
  %v654 = vunpack.c.l.b16 %v106
  %v655 = vunpack.c.l.b16 %v107
  %v656 = vunpack.c.l.b16 %v108
  %v657 = vunpack.c.l.b16 %v109
  %v658 = vunpack.c.l.b16 %v110
  %v659 = vunpack.c.l.b16 %v111
  %v660 = vunpack.c.l.b16 %v112
  %v661 = vunpack.c.l.b16 %v113
  %v662 = vunpack.c.l.b16 %v114
  %v663 = vunpack.c.l.b16 %v115
  %v664 = vunpack.c.l.b16 %v116
  %v665 = vunpack.c.l.b16 %v117
  %v666 = vunpack.c.l.b16 %v118
  %v667 = vunpack.c.l.b16 %v119
  %v668 = vunpack.c.l.b16 %v120
  %v669 = vunpack.c.l.b16 %v121
  %v670 = vunpack.c.l.b16 %v122
  %v671 = vunpack.c.l.b16 %v123
  %v672 = vunpack.c.l.b16 %v124
  %v673 = vunpack.c.l.b16 %v125
  %v674 = vunpack.c.l.b16 %v126
  %v675 = vunpack.c.l.b16 %v127
  %v676 = vunpack.c.l.b16 %v128
  %v677 = vunpack.c.l.b16 %v129
  %v678 = vunpack.c.l.b16 %v130
  %v679 = vunpack.c.l.b16 %v131
  %v680 = vunpack.c.l.b16 %v132
  %v681 = vunpack.c.l.b16 %v133
  %v682 = vunpack.c.l.b16 %v134
  %v683 = vunpack.c.l.b16 %v135
  %v684 = vunpack.c.l.b16 %v136
  %v685 = vunpack.c.l.b16 %v137
  %v686 = vunpack.c.l.b16 %v138
  %v687 = vunpack.c.l.b16 %v139
  %v688 = vunpack.c.l.b16 %v140
  %v689 = vunpack.c.l.b16 %v141
  %v690 = vunpack.c.l.b16 %v142
  %v691 = vunpack.c.l.b16 %v143
  %v692 = vunpack.c.l.b16 %v144
  %v693 = vunpack.c.l.b16 %v145
  %v694 = vunpack.c.l.b16 %v146
  %v695 = vunpack.c.l.b16 %v147
  %v696 = vunpack.c.l.b16 %v148
  %v697 = vunpack.c.l.b16 %v149
  %v698 = vunpack.c.l.b16 %v150
  %v699 = vunpack.c.l.b16 %v151
  %v700 = vunpack.c.l.b16 %v152
  %v701 = vunpack.c.l.b16 %v153
  %v702 = vunpack.c.l.b16 %v154
  %v703 = vunpack.c.l.b16 %v155
  %v704 = vunpack.c.l.b16 %v156
  %v705 = vunpack.c.l.b16 %v157
  %v706 = vunpack.c.l.b16 %v158
  %v707 = vunpack.c.l.b16 %v159
  %v708 = vunpack.c.l.b16 %v160
  %v709 = vunpack.c.l.b16 %v161
  %v710 = vunpack.c.l.b16 %v162
  %v711 = vunpack.c.l.b16 %v163
  %v712 = vunpack.c.l.b16 %v164
  %v713 = vunpack.c.l.b16 %v165
  %v714 = vunpack.c.l.b16 %v166
  %v715 = vunpack.c.l.b16 %v167
  %v716 = vunpack.c.l.b16 %v168
  %v717 = vunpack.c.l.b16 %v169
  %v718 = vunpack.c.l.b16 %v170
  %v719 = vunpack.c.l.b16 %v171
  %v720 = vunpack.c.l.b16 %v172
  %v721 = vunpack.c.l.b16 %v173
  %v722 = vunpack.c.l.b16 %v174
  %v723 = vunpack.c.l.b16 %v175
  %v724 = vunpack.c.l.b16 %v176
  %v725 = vunpack.c.l.b16 %v177
  %v726 = vunpack.c.l.b16 %v178
  %v727 = vunpack.c.l.b16 %v179
  %v728 = vunpack.c.l.b16 %v180
  %v729 = vunpack.c.l.b16 %v181
  %v730 = vunpack.c.l.b16 %v182
  %v731 = vunpack.c.l.b16 %v183
  %v732 = vunpack.c.l.b16 %v184
  %v733 = vunpack.c.l.b16 %v185
  %v734 = vunpack.c.l.b16 %v186
  %v735 = vunpack.c.l.b16 %v187
  %v736 = vunpack.c.l.b16 %v188
  %v737 = vunpack.c.l.b16 %v189
  %v738 = vunpack.c.l.b16 %v190
  %v739 = vunpack.c.l.b16 %v191
  %v740 = vunpack.c.l.b16 %v192
  %v741 = vunpack.c.l.b16 %v193
  %v742 = vunpack.c.l.b16 %v194
  %v743 = vunpack.c.l.b16 %v195
  %v744 = vunpack.c.l.b16 %v196
  %v745 = vunpack.c.l.b16 %v197
  %v746 = vunpack.c.l.b16 %v198
  %v747 = vunpack.c.l.b16 %v199
  %v748 = vunpack.c.l.b16 %v200
  %v749 = vunpack.c.l.b16 %v201
  %v750 = vunpack.c.l.b16 %v202
  %v751 = vunpack.c.l.b16 %v203
  %v752 = vunpack.c.l.b16 %v204
  %v753 = vunpack.c.l.b16 %v205
  %v754 = vunpack.c.l.b16 %v206
  %v755 = vunpack.c.l.b16 %v207
  %v756 = vunpack.c.l.b16 %v208
  %v757 = vunpack.c.l.b16 %v209
  %v758 = vunpack.c.l.b16 %v210
  %v759 = vunpack.c.l.b16 %v211
  %v760 = vunpack.c.l.b16 %v212
  %v761 = vunpack.c.l.b16 %v213
  %v762 = vunpack.c.l.b16 %v214
  %v763 = vunpack.c.l.b16 %v215
  %v764 = vunpack.c.l.b16 %v216
  %v765 = vunpack.c.l.b16 %v217
  %v766 = vunpack.c.l.b16 %v218
  %v767 = vunpack.c.l.b16 %v219
  %v768 = vunpack.c.l.b16 %v220
  %v769 = vunpack.c.l.b16 %v221
  %v770 = vunpack.c.l.b16 %v222
  %v771 = vunpack.c.l.b16 %v223
  %v772 = vunpack.c.l.b16 %v224
  %v773 = vunpack.c.l.b16 %v225
  %v774 = vunpack.c.l.b16 %v226
  %v775 = vunpack.c.l.b16 %v227
  %v776 = vunpack.c.l.b16 %v228
  %v777 = vunpack.c.l.b16 %v229
  %v778 = vunpack.c.l.b16 %v230
  %v779 = vunpack.c.l.b16 %v231
  %v780 = vunpack.c.l.b16 %v232
  %v781 = vunpack.c.l.b16 %v233
  %v782 = vunpack.c.l.b16 %v234
  %v783 = vunpack.c.l.b16 %v235
  %v784 = vunpack.c.l.b16 %v236
  %v785 = vunpack.c.l.b16 %v237
  %v786 = vunpack.c.l.b16 %v238
  %v787 = vunpack.c.l.b16 %v239
  %v788 = vunpack.c.l.b16 %v240
  %v789 = vunpack.c.l.b16 %v241
  %v790 = vunpack.c.l.b16 %v242
  %v791 = vunpack.c.l.b16 %v243
  %v792 = vunpack.c.l.b16 %v244
  %v793 = vunpack.c.l.b16 %v245
  %v794 = vunpack.c.l.b16 %v246
  %v795 = vunpack.c.l.b16 %v247
  %v796 = vunpack.c.l.b16 %v248
  %v797 = vunpack.c.l.b16 %v249
  %v798 = vunpack.c.l.b16 %v250
  %v799 = vunpack.c.l.b16 %v251
  %v800 = vunpack.c.l.b16 %v252
  %v801 = vunpack.c.l.b16 %v253
  %v802 = vunpack.c.l.b16 %v254
  %v803 = vunpack.c.l.b16 %v255
  %v804 = vunpack.c.l.b16 %v256
  %v805 = vunpack.c.l.b16 %v257
  %v806 = vunpack.c.l.b16 %v258
  %v807 = vunpack.c.l.b16 %v259
  %v808 = vunpack.c.l.b16 %v260
  %v809 = vunpack.c.l.b16 %v261
  %v810 = vunpack.c.l.b16 %v262
  %v811 = vunpack.c.l.b16 %v263
  %v812 = vunpack.c.l.b16 %v264
  %v813 = vunpack.c.l.b16 %v265
  %v814 = vunpack.c.l.b16 %v266
  %v815 = vunpack.c.l.b16 %v267
  %v816 = vunpack.c.l.b16 %v268
  %v817 = vpack.c.b16 %v562, %v561
  %v818 = vpack.c.b16 %v564, %v563
  %v819 = vpack.c.b16 %v566, %v565
  %v820 = vpack.c.b16 %v568, %v567
  %v821 = vpack.c.b16 %v570, %v569
  %v822 = vpack.c.b16 %v572, %v571
  %v823 = vpack.c.b16 %v574, %v573
  %v824 = vpack.c.b16 %v576, %v575
  %v825 = vpack.c.b16 %v578, %v577
  %v826 = vpack.c.b16 %v580, %v579
  %v827 = vpack.c.b16 %v582, %v581
  %v828 = vpack.c.b16 %v584, %v583
  %v829 = vpack.c.b16 %v586, %v585
  %v830 = vpack.c.b16 %v588, %v587
  %v831 = vpack.c.b16 %v590, %v589
  %v832 = vpack.c.b16 %v592, %v591
  %v833 = vpack.c.b16 %v594, %v593
  %v834 = vpack.c.b16 %v596, %v595
  %v835 = vpack.c.b16 %v598, %v597
  %v836 = vpack.c.b16 %v600, %v599
  %v837 = vpack.c.b16 %v602, %v601
  %v838 = vpack.c.b16 %v604, %v603
  %v839 = vpack.c.b16 %v606, %v605
  %v840 = vpack.c.b16 %v608, %v607
  %v841 = vpack.c.b16 %v610, %v609
  %v842 = vpack.c.b16 %v612, %v611
  %v843 = vpack.c.b16 %v614, %v613
  %v844 = vpack.c.b16 %v616, %v615
  %v845 = vpack.c.b16 %v618, %v617
  %v846 = vpack.c.b16 %v620, %v619
  %v847 = vpack.c.b16 %v622, %v621
  %v848 = vpack.c.b16 %v624, %v623
  %v849 = vpack.c.b16 %v626, %v625
  %v850 = vpack.c.b16 %v628, %v627
  %v851 = vpack.c.b16 %v630, %v629
  %v852 = vpack.c.b16 %v632, %v631
  %v853 = vpack.c.b16 %v634, %v633
  %v854 = vpack.c.b16 %v636, %v635
  %v855 = vpack.c.b16 %v638, %v637
  %v856 = vpack.c.b16 %v640, %v639
  %v857 = vpack.c.b16 %v642, %v641
  %v858 = vpack.c.b16 %v644, %v643
  %v859 = vpack.c.b16 %v646, %v645
  %v860 = vpack.c.b16 %v648, %v647
  %v861 = vpack.c.b16 %v650, %v649
  %v862 = vpack.c.b16 %v652, %v651
  %v863 = vpack.c.b16 %v654, %v653
  %v864 = vpack.c.b16 %v656, %v655
  %v865 = vpack.c.b16 %v658, %v657
  %v866 = vpack.c.b16 %v660, %v659
  %v867 = vpack.c.b16 %v662, %v661
  %v868 = vpack.c.b16 %v664, %v663
  %v869 = vpack.c.b16 %v666, %v665
  %v870 = vpack.c.b16 %v668, %v667
  %v871 = vpack.c.b16 %v670, %v669
  %v872 = vpack.c.b16 %v672, %v671
  %v873 = vpack.c.b16 %v674, %v673
  %v874 = vpack.c.b16 %v676, %v675
  %v875 = vpack.c.b16 %v678, %v677
  %v876 = vpack.c.b16 %v680, %v679
  %v877 = vpack.c.b16 %v682, %v681
  %v878 = vpack.c.b16 %v684, %v683
  %v879 = vpack.c.b16 %v686, %v685
  %v880 = vpack.c.b16 %v688, %v687
  %v881 = vpack.c.b16 %v690, %v689
  %v882 = vpack.c.b16 %v692, %v691
  %v883 = vpack.c.b16 %v694, %v693
  %v884 = vpack.c.b16 %v696, %v695
  %v885 = vpack.c.b16 %v698, %v697
  %v886 = vpack.c.b16 %v700, %v699
  %v887 = vpack.c.b16 %v702, %v701
  %v888 = vpack.c.b16 %v704, %v703
  %v889 = vpack.c.b16 %v706, %v705
  %v890 = vpack.c.b16 %v708, %v707
  %v891 = vpack.c.b16 %v710, %v709
  %v892 = vpack.c.b16 %v712, %v711
  %v893 = vpack.c.b16 %v714, %v713
  %v894 = vpack.c.b16 %v716, %v715
  %v895 = vpack.c.b16 %v718, %v717
  %v896 = vpack.c.b16 %v720, %v719
  %v897 = vpack.c.b16 %v722, %v721
  %v898 = vpack.c.b16 %v724, %v723
  %v899 = vpack.c.b16 %v726, %v725
  %v900 = vpack.c.b16 %v728, %v727
  %v901 = vpack.c.b16 %v730, %v729
  %v902 = vpack.c.b16 %v732, %v731
  %v903 = vpack.c.b16 %v734, %v733
  %v904 = vpack.c.b16 %v736, %v735
  %v905 = vpack.c.b16 %v738, %v737
  %v906 = vpack.c.b16 %v740, %v739
  %v907 = vpack.c.b16 %v742, %v741
  %v908 = vpack.c.b16 %v744, %v743
  %v909 = vpack.c.b16 %v746, %v745
  %v910 = vpack.c.b16 %v748, %v747
  %v911 = vpack.c.b16 %v750, %v749
  %v912 = vpack.c.b16 %v752, %v751
  %v913 = vpack.c.b16 %v754, %v753
  %v914 = vpack.c.b16 %v756, %v755
  %v915 = vpack.c.b16 %v758, %v757
  %v916 = vpack.c.b16 %v760, %v759
  %v917 = vpack.c.b16 %v762, %v761
  %v918 = vpack.c.b16 %v764, %v763
  %v919 = vpack.c.b16 %v766, %v765
  %v920 = vpack.c.b16 %v768, %v767
  %v921 = vpack.c.b16 %v770, %v769
  %v922 = vpack.c.b16 %v772, %v771
  %v923 = vpack.c.b16 %v774, %v773
  %v924 = vpack.c.b16 %v776, %v775
  %v925 = vpack.c.b16 %v778, %v777
  %v926 = vpack.c.b16 %v780, %v779
  %v927 = vpack.c.b16 %v782, %v781
  %v928 = vpack.c.b16 %v784, %v783
  %v929 = vpack.c.b16 %v786, %v785
  %v930 = vpack.c.b16 %v788, %v787
  %v931 = vpack.c.b16 %v790, %v789
  %v932 = vpack.c.b16 %v792, %v791
  %v933 = vpack.c.b16 %v794, %v793
  %v934 = vpack.c.b16 %v796, %v795
  %v935 = vpack.c.b16 %v798, %v797
  %v936 = vpack.c.b16 %v800, %v799
  %v937 = vpack.c.b16 %v802, %v801
  %v938 = vpack.c.b16 %v804, %v803
  %v939 = vpack.c.b16 %v806, %v805
  %v940 = vpack.c.b16 %v808, %v807
  %v941 = vpack.c.b16 %v810, %v809
  %v942 = vpack.c.b16 %v812, %v811
  %v943 = vpack.c.b16 %v814, %v813
  %v944 = vpack.c.b16 %v816, %v815
  %1073 = vmatpush.bf16.msra.mxu0 %v824
  %1074 = vmatpush.bf16.msra.mxu0 %v823
  %1075 = vmatpush.bf16.msra.mxu0 %v822
  %1076 = vmatpush.bf16.msra.mxu0 %v821
  %1077 = vmatpush.bf16.msra.mxu0 %v820
  %1078 = vmatpush.bf16.msra.mxu0 %v819
  %1079 = vmatpush.bf16.msra.mxu0 %v818
  %1080 = vmatpush.bf16.msra.mxu0 %v817
  %1081 = vmatmul.bf16.gmra.mxu0 %v271
  %v1082 = vpop.f32.mrf.mxu0
  %v1083 = vadd.f32 0.0, %v1082
  %v1084 = vpop.f32.mrf.mxu0
  %1085 = vdwg.mxu0
  %1086 = vmatpush.bf16.msra.mxu0 %v832
  %1087 = vmatpush.bf16.msra.mxu0 %v831
  %1088 = vmatpush.bf16.msra.mxu0 %v830
  %1089 = vmatpush.bf16.msra.mxu0 %v829
  %1090 = vmatpush.bf16.msra.mxu0 %v828
  %1091 = vmatpush.bf16.msra.mxu0 %v827
  %1092 = vmatpush.bf16.msra.mxu0 %v826
  %1093 = vmatpush.bf16.msra.mxu0 %v825
  %1094 = vmatmul.bf16.gmra.mxu0 %v272
  %v1095 = vpop.f32.mrf.mxu0
  %v1096 = vadd.f32 %v1083, %v1095
  %v1097 = vpop.f32.mrf.mxu0
  %1098 = vdwg.mxu0
  %1099 = vmatpush.bf16.msra.mxu0 %v840
  %1100 = vmatpush.bf16.msra.mxu0 %v839
  %1101 = vmatpush.bf16.msra.mxu0 %v838
  %1102 = vmatpush.bf16.msra.mxu0 %v837
  %1103 = vmatpush.bf16.msra.mxu0 %v836
  %1104 = vmatpush.bf16.msra.mxu0 %v835
  %1105 = vmatpush.bf16.msra.mxu0 %v834
  %1106 = vmatpush.bf16.msra.mxu0 %v833
  %1107 = vmatmul.bf16.gmra.mxu0 %v273
  %v1108 = vpop.f32.mrf.mxu0
  %v1109 = vadd.f32 %v1096, %v1108
  %v1110 = vpop.f32.mrf.mxu0
  %1111 = vdwg.mxu0
  %1112 = vmatpush.bf16.msra.mxu0 %v848
  %1113 = vmatpush.bf16.msra.mxu0 %v847
  %1114 = vmatpush.bf16.msra.mxu0 %v846
  %1115 = vmatpush.bf16.msra.mxu0 %v845
  %1116 = vmatpush.bf16.msra.mxu0 %v844
  %1117 = vmatpush.bf16.msra.mxu0 %v843
  %1118 = vmatpush.bf16.msra.mxu0 %v842
  %1119 = vmatpush.bf16.msra.mxu0 %v841
  %1120 = vmatmul.bf16.gmra.mxu0 %v274
  %v1121 = vpop.f32.mrf.mxu0
  %v1122 = vadd.f32 %v1109, %v1121
  %v1123 = vpop.f32.mrf.mxu0
  %1124 = vdwg.mxu0
  %1125 = vmatpush.bf16.msra.mxu0 %v856
  %1126 = vmatpush.bf16.msra.mxu0 %v855
  %1127 = vmatpush.bf16.msra.mxu0 %v854
  %1128 = vmatpush.bf16.msra.mxu0 %v853
  %1129 = vmatpush.bf16.msra.mxu0 %v852
  %1130 = vmatpush.bf16.msra.mxu0 %v851
  %1131 = vmatpush.bf16.msra.mxu0 %v850
  %1132 = vmatpush.bf16.msra.mxu0 %v849
  %1133 = vmatmul.bf16.gmra.mxu0 %v275
  %v1134 = vpop.f32.mrf.mxu0
  %v1135 = vadd.f32 %v1122, %v1134
  %v1136 = vpop.f32.mrf.mxu0
  %1137 = vdwg.mxu0
  %1138 = vmatpush.bf16.msra.mxu0 %v864
  %1139 = vmatpush.bf16.msra.mxu0 %v863
  %1140 = vmatpush.bf16.msra.mxu0 %v862
  %1141 = vmatpush.bf16.msra.mxu0 %v861
  %1142 = vmatpush.bf16.msra.mxu0 %v860
  %1143 = vmatpush.bf16.msra.mxu0 %v859
  %1144 = vmatpush.bf16.msra.mxu0 %v858
  %1145 = vmatpush.bf16.msra.mxu0 %v857
  %1146 = vmatmul.bf16.gmra.mxu0 %v276
  %v1147 = vpop.f32.mrf.mxu0
  %v1148 = vadd.f32 %v1135, %v1147
  %v1149 = vpop.f32.mrf.mxu0
  %1150 = vdwg.mxu0
  %1151 = vmatpush.bf16.msra.mxu0 %v872
  %1152 = vmatpush.bf16.msra.mxu0 %v871
  %1153 = vmatpush.bf16.msra.mxu0 %v870
  %1154 = vmatpush.bf16.msra.mxu0 %v869
  %1155 = vmatpush.bf16.msra.mxu0 %v868
  %1156 = vmatpush.bf16.msra.mxu0 %v867
  %1157 = vmatpush.bf16.msra.mxu0 %v866
  %1158 = vmatpush.bf16.msra.mxu0 %v865
  %1159 = vmatmul.bf16.gmra.mxu0 %v277
  %v1160 = vpop.f32.mrf.mxu0
  %v1161 = vadd.f32 %v1148, %v1160
  %v1162 = vpop.f32.mrf.mxu0
  %1163 = vdwg.mxu0
  %1164 = vmatpush.bf16.msra.mxu0 %v880
  %1165 = vmatpush.bf16.msra.mxu0 %v879
  %1166 = vmatpush.bf16.msra.mxu0 %v878
  %1167 = vmatpush.bf16.msra.mxu0 %v877
  %1168 = vmatpush.bf16.msra.mxu0 %v876
  %1169 = vmatpush.bf16.msra.mxu0 %v875
  %1170 = vmatpush.bf16.msra.mxu0 %v874
  %1171 = vmatpush.bf16.msra.mxu0 %v873
  %1172 = vmatmul.bf16.gmra.mxu0 %v278
  %v1173 = vpop.f32.mrf.mxu0
  %v1174 = vadd.f32 %v1161, %v1173
  %v1175 = vpop.f32.mrf.mxu0
  %1176 = vdwg.mxu0
  %1177 = vmatpush.bf16.msra.mxu0 %v888
  %1178 = vmatpush.bf16.msra.mxu0 %v887
  %1179 = vmatpush.bf16.msra.mxu0 %v886
  %1180 = vmatpush.bf16.msra.mxu0 %v885
  %1181 = vmatpush.bf16.msra.mxu0 %v884
  %1182 = vmatpush.bf16.msra.mxu0 %v883
  %1183 = vmatpush.bf16.msra.mxu0 %v882
  %1184 = vmatpush.bf16.msra.mxu0 %v881
  %1185 = vmatmul.bf16.gmra.mxu0 %v281
  %v1186 = vpop.f32.mrf.mxu0
  %v1187 = vadd.f32 %v1174, %v1186
  %v1188 = vpop.f32.mrf.mxu0
  %1189 = vdwg.mxu0
  %1190 = vmatpush.bf16.msra.mxu0 %v896
  %1191 = vmatpush.bf16.msra.mxu0 %v895
  %1192 = vmatpush.bf16.msra.mxu0 %v894
  %1193 = vmatpush.bf16.msra.mxu0 %v893
  %1194 = vmatpush.bf16.msra.mxu0 %v892
  %1195 = vmatpush.bf16.msra.mxu0 %v891
  %1196 = vmatpush.bf16.msra.mxu0 %v890
  %1197 = vmatpush.bf16.msra.mxu0 %v889
  %1198 = vmatmul.bf16.gmra.mxu0 %v282
  %v1199 = vpop.f32.mrf.mxu0
  %v1200 = vadd.f32 %v1187, %v1199
  %v1201 = vpop.f32.mrf.mxu0
  %1202 = vdwg.mxu0
  %1203 = vmatpush.bf16.msra.mxu0 %v904
  %1204 = vmatpush.bf16.msra.mxu0 %v903
  %1205 = vmatpush.bf16.msra.mxu0 %v902
  %1206 = vmatpush.bf16.msra.mxu0 %v901
  %1207 = vmatpush.bf16.msra.mxu0 %v900
  %1208 = vmatpush.bf16.msra.mxu0 %v899
  %1209 = vmatpush.bf16.msra.mxu0 %v898
  %1210 = vmatpush.bf16.msra.mxu0 %v897
  %1211 = vmatmul.bf16.gmra.mxu0 %v283
  %v1212 = vpop.f32.mrf.mxu0
  %v1213 = vadd.f32 %v1200, %v1212
  %v1214 = vpop.f32.mrf.mxu0
  %1215 = vdwg.mxu0
  %1216 = vmatpush.bf16.msra.mxu0 %v912
  %1217 = vmatpush.bf16.msra.mxu0 %v911
  %1218 = vmatpush.bf16.msra.mxu0 %v910
  %1219 = vmatpush.bf16.msra.mxu0 %v909
  %1220 = vmatpush.bf16.msra.mxu0 %v908
  %1221 = vmatpush.bf16.msra.mxu0 %v907
  %1222 = vmatpush.bf16.msra.mxu0 %v906
  %1223 = vmatpush.bf16.msra.mxu0 %v905
  %1224 = vmatmul.bf16.gmra.mxu0 %v284
  %v1225 = vpop.f32.mrf.mxu0
  %v1226 = vadd.f32 %v1213, %v1225
  %v1227 = vpop.f32.mrf.mxu0
  %1228 = vdwg.mxu0
  %1229 = vmatpush.bf16.msra.mxu0 %v920
  %1230 = vmatpush.bf16.msra.mxu0 %v919
  %1231 = vmatpush.bf16.msra.mxu0 %v918
  %1232 = vmatpush.bf16.msra.mxu0 %v917
  %1233 = vmatpush.bf16.msra.mxu0 %v916
  %1234 = vmatpush.bf16.msra.mxu0 %v915
  %1235 = vmatpush.bf16.msra.mxu0 %v914
  %1236 = vmatpush.bf16.msra.mxu0 %v913
  %1237 = vmatmul.bf16.gmra.mxu0 %v285
  %v1238 = vpop.f32.mrf.mxu0
  %v1239 = vadd.f32 %v1226, %v1238
  %v1240 = vpop.f32.mrf.mxu0
  %1241 = vdwg.mxu0
  %1242 = vmatpush.bf16.msra.mxu0 %v928
  %1243 = vmatpush.bf16.msra.mxu0 %v927
  %1244 = vmatpush.bf16.msra.mxu0 %v926
  %1245 = vmatpush.bf16.msra.mxu0 %v925
  %1246 = vmatpush.bf16.msra.mxu0 %v924
  %1247 = vmatpush.bf16.msra.mxu0 %v923
  %1248 = vmatpush.bf16.msra.mxu0 %v922
  %1249 = vmatpush.bf16.msra.mxu0 %v921
  %1250 = vmatmul.bf16.gmra.mxu0 %v286
  %v1251 = vpop.f32.mrf.mxu0
  %v1252 = vadd.f32 %v1239, %v1251
  %v1253 = vpop.f32.mrf.mxu0
  %1254 = vdwg.mxu0
  %1255 = vmatpush.bf16.msra.mxu0 %v936
  %1256 = vmatpush.bf16.msra.mxu0 %v935
  %1257 = vmatpush.bf16.msra.mxu0 %v934
  %1258 = vmatpush.bf16.msra.mxu0 %v933
  %1259 = vmatpush.bf16.msra.mxu0 %v932
  %1260 = vmatpush.bf16.msra.mxu0 %v931
  %1261 = vmatpush.bf16.msra.mxu0 %v930
  %1262 = vmatpush.bf16.msra.mxu0 %v929
  %1263 = vmatmul.bf16.gmra.mxu0 %v287
  %v1264 = vpop.f32.mrf.mxu0
  %v1265 = vadd.f32 %v1252, %v1264
  %v1266 = vpop.f32.mrf.mxu0
  %1267 = vdwg.mxu0
  %1268 = vmatpush.bf16.msra.mxu0 %v944
  %1269 = vmatpush.bf16.msra.mxu0 %v943
  %1270 = vmatpush.bf16.msra.mxu0 %v942
  %1271 = vmatpush.bf16.msra.mxu0 %v941
  %1272 = vmatpush.bf16.msra.mxu0 %v940
  %1273 = vmatpush.bf16.msra.mxu0 %v939
  %1274 = vmatpush.bf16.msra.mxu0 %v938
  %1275 = vmatpush.bf16.msra.mxu0 %v937
  %1276 = vmatmul.bf16.gmra.mxu0 %v288
  %v1277 = vpop.f32.mrf.mxu0
  %v1278 = vadd.f32 %v1265, %v1277
  %v1279 = vpop.f32.mrf.mxu0
  %1280 = vdwg.mxu0
  %v1281 = vmul.f32 %v1278, 0.5
  %v1282 = vtanh.pop %v1281
  %v1283 = vadd.f32 %v1282, 1.0
  %v1284 = vmul.f32 %v1283, 0.5
  %vm1285 = vcmask 1024
  %1286 = vst.msk [vmem:[%s2] sm:$0x3] %vm1285, %v1284
  // Predicated region
  $region10: #{_forward_impl.15} parent=0 // pred_check
    _
  $region11: #{_forward_impl.15} parent=0 // pred_check_branch
    %1288 = sbr.rel (0) target = $region13
  $region12: #{_forward_impl.15} parent=0 // pred_region
    _
  $region13: #{_forward_impl.15} parent=0 // pred_fallthru
    _
  // Predicated region
  $region14: #{_forward_impl.15} parent=0 // pred_check
    _
  $region15: #{_forward_impl.15} parent=0 // pred_check_branch
    %1290 = sbr.rel (0) target = $region17
  $region16: #{_forward_impl.15} parent=0 // pred_region
    _
  $region17: #{_forward_impl.15} parent=0 // pred_fallthru
    _

</llo_original>
